<compile_context>
chip_gen: v6e
topology: v6e:2x2x1
jax: 0.10.0
libtpu: 0.0.40
codegen_flags: <defaults>
</compile_context>

<pallas_src>
import functools
import math

import jax
import jax.numpy as jnp
import numpy as np
from jax import lax
from jax.experimental import pallas as pl
from jax.experimental.pallas import tpu as pltpu


# ---------------------------------------------------------------------------
# Fused resdown stage kernel (one batch image per grid step)
# ---------------------------------------------------------------------------
def _resdown_kernel(x_ref, t_ref, wp_ref, bp_ref,
                    sc0_ref, sh0_ref, w0_ref, b0_ref,
                    sc1_ref, sh1_ref, w1_ref, b1_ref,
                    sc2_ref, sh2_ref, w2_ref, b2_ref,
                    sc3_ref, sh3_ref, w3_ref, b3_ref,
                    o_ref, *, ksize):
    """Whole resdown stage for one image, all intermediates in VMEM.

    x_ref : (1, H, W, Cin)   stage input (NHWC)
    t_ref : (1, 1, Cout)     broadcast style vector (zeros when t is None)
    wp_ref: (Cin, Cout)      1x1 proj weights, BN folded in
    bp_ref: (1, Cout)        1x1 proj bias, BN folded in
    sc/sh : (1, 1, C)        eval-BN scale / shift for each batchconv
    w     : (k*k*C, Cout)    conv weights, HWIO taps flattened along K
    b     : (1, Cout)        conv bias
    o_ref : (1, H, W, Cout)  stage output
    """
    H, W, Cout = o_ref.shape[1], o_ref.shape[2], o_ref.shape[3]
    Cin = x_ref.shape[3]
    pad = ksize // 2

    def bn_relu(z, sc_ref, sh_ref):
        # Eval-mode BatchNorm (per-channel affine) + ReLU, f32 on the VPU.
        return jnp.maximum(z * sc_ref[...] + sh_ref[...], 0.0)

    def conv_same(xn, w_ref, b_ref):
        # Conv2d(k, padding=k//2) as ONE MXU matmul via an im2col patch matrix.
        C = xn.shape[-1]
        if pad > 0:
            # Border-only zero padding (no full-buffer zero fill).
            zc = jnp.zeros((H, pad, C), jnp.float32)
            xp = jnp.concatenate([zc, xn, zc], axis=1)          # pad along W
            zr = jnp.zeros((pad, W + 2 * pad, C), jnp.float32)
            xp = jnp.concatenate([zr, xp, zr], axis=0)          # pad along H
        else:
            xp = xn
        cols = [xp[dy:dy + H, dx:dx + W, :]
                for dy in range(ksize) for dx in range(ksize)]
        patches = jnp.concatenate(cols, axis=-1)                # (H, W, k*k*C)
        patches = patches.reshape(H * W, ksize * ksize * C)
        y = jnp.dot(patches, w_ref[...], preferred_element_type=jnp.float32)
        return (y + b_ref[...]).reshape(H, W, Cout)

    x = x_ref[0]                                                # (H, W, Cin)

    # proj = batchconv0 (BN folded into the 1x1 weights) -> single matmul.
    proj = jnp.dot(x.reshape(H * W, Cin), wp_ref[...],
                   preferred_element_type=jnp.float32) + bp_ref[...]
    proj = proj.reshape(H, W, Cout)

    # x = proj(x) + conv1(conv0(x))   [ + t broadcast ]
    h = conv_same(bn_relu(x, sc0_ref, sh0_ref), w0_ref, b0_ref)
    h = conv_same(bn_relu(h, sc1_ref, sh1_ref), w1_ref, b1_ref)
    y = proj + h + t_ref[...]

    # x = x + conv3(conv2(x))
    h = conv_same(bn_relu(y, sc2_ref, sh2_ref), w2_ref, b2_ref)
    h = conv_same(bn_relu(h, sc3_ref, sh3_ref), w3_ref, b3_ref)
    o_ref[0] = y + h


# ---------------------------------------------------------------------------
# pallas_call wrapper for one fused stage
# ---------------------------------------------------------------------------
_CONST_MAP = {
    2: lambda n: (0, 0),
    3: lambda n: (0, 0, 0),
}


def _const_spec(arr):
    # Full-array block (parameters), same block at every grid step.
    return pl.BlockSpec(arr.shape, _CONST_MAP[arr.ndim])


def resdown_stage(x, kp, t_eff):
    """x: (N, H, W, Cin) f32 NHWC; t_eff: (N, 1, Cout) f32 -> (N, H, W, Cout)."""
    N, H, W, Cin = x.shape
    Cout = kp["proj_w"].shape[1]
    ksize = kp["ksize"]

    in_specs = [
        pl.BlockSpec((1, H, W, Cin), lambda n: (n, 0, 0, 0)),
        pl.BlockSpec((1, 1, Cout), lambda n: (n, 0, 0)),
        _const_spec(kp["proj_w"]),
        _const_spec(kp["proj_b"]),
    ]
    args = [x, t_eff, kp["proj_w"], kp["proj_b"]]
    for sc, sh, wf, b in kp["convs"]:
        in_specs += [_const_spec(sc), _const_spec(sh), _const_spec(wf), _const_spec(b)]
        args += [sc, sh, wf, b]

    return pl.pallas_call(
        functools.partial(_resdown_kernel, ksize=ksize),
        out_shape=jax.ShapeDtypeStruct((N, H, W, Cout), jnp.float32),
        grid=(N,),
        in_specs=in_specs,
        out_specs=pl.BlockSpec((1, H, W, Cout), lambda n: (n, 0, 0, 0)),
        # Keep a shardable parallel axis (batch) for v7x's two TensorCores.
        compiler_params=pltpu.CompilerParams(dimension_semantics=("parallel",)),
    )(*args)


def maxpool2x2(x):
    """MaxPool2d(2, 2) on NHWC (floor semantics, like PyTorch)."""
    # TODO(synk): fold the pool into the next stage's Pallas kernel via strided
    # ref loads; kept as an XLA reduce_window for Pallas-interpreter portability.
    return lax.reduce_window(x, -jnp.inf, lax.max,
                             (1, 2, 2, 1), (1, 2, 2, 1), "VALID")


# ---------------------------------------------------------------------------
# Module forward (NCHW in / NCHW out, like the PyTorch module)
# ---------------------------------------------------------------------------
def downsample_forward(x_nchw, params, t=None):
    x = jnp.transpose(x_nchw, (0, 2, 3, 1)).astype(jnp.float32)   # NCHW -> NHWC
    N = x.shape[0]
    xd = []
    for n, kp in enumerate(params):
        y = x if n == 0 else maxpool2x2(xd[-1])
        Cout = kp["proj_w"].shape[1]
        if t is not None and t.shape[1] >= Cout:
            t_eff = t[:, :Cout].astype(jnp.float32).reshape(N, 1, Cout)
        else:
            t_eff = jnp.zeros((N, 1, Cout), jnp.float32)
        xd.append(resdown_stage(y, kp, t_eff))
    return [jnp.transpose(v, (0, 3, 1, 2)) for v in xd]           # NHWC -> NCHW


# ---------------------------------------------------------------------------
# Deterministic parameter initialization (shapes from the module __init__)
# ---------------------------------------------------------------------------
def _init_bn_conv(key, cin, cout, ksize):
    kg, kb, km, kv, kw, kbias = jax.random.split(key, 6)
    eps = 1e-5
    gamma = 1.0 + 0.1 * jax.random.normal(kg, (cin,), jnp.float32)
    beta = 0.1 * jax.random.normal(kb, (cin,), jnp.float32)
    mean = 0.1 * jax.random.normal(km, (cin,), jnp.float32)
    var = jax.random.uniform(kv, (cin,), jnp.float32, minval=0.5, maxval=1.5)
    scale = gamma / jnp.sqrt(var + eps)
    shift = beta - mean * scale
    fan_in = cin * ksize * ksize
    w = jax.random.normal(kw, (ksize, ksize, cin, cout), jnp.float32) / math.sqrt(fan_in)
    b = 0.1 * jax.random.normal(kbias, (cout,), jnp.float32)
    return (scale, shift, w, b)                 # reference ("unfolded") form


def init_downsample_params(key, nbase, sz):
    params = []
    for i in range(len(nbase) - 1):
        cin, cout = nbase[i], nbase[i + 1]
        key, kp, k0, k1, k2, k3 = jax.random.split(key, 6)
        params.append({
            "proj": _init_bn_conv(kp, cin, cout, 1),
            "conv": [
                _init_bn_conv(k0, cin, cout, sz),
                _init_bn_conv(k1, cout, cout, sz),
                _init_bn_conv(k2, cout, cout, sz),
                _init_bn_conv(k3, cout, cout, sz),
            ],
        })
    return params


def prepare_kernel_params(ref_params, sz):
    """Rearrange reference params into the fused-kernel layout:
    proj BN folded into the 1x1 weights/bias; conv weights flattened (k*k*C, Cout)."""
    out = []
    for stage in ref_params:
        sc_p, sh_p, w_p, b_p = stage["proj"]
        cin, cout = w_p.shape[2], w_p.shape[3]
        w2d = w_p.reshape(cin, cout)
        proj_w = sc_p[:, None] * w2d                    # fold BN scale
        proj_b = (b_p + sh_p @ w2d).reshape(1, cout)    # fold BN shift
        convs = []
        for sc, sh, w, b in stage["conv"]:
            k, _, ci, co = w.shape
            convs.append((sc.reshape(1, 1, ci), sh.reshape(1, 1, ci),
                          w.reshape(k * k * ci, co), b.reshape(1, co)))
        out.append({"ksize": sz, "proj_w": proj_w, "proj_b": proj_b, "convs": convs})
    return out


# ---------------------------------------------------------------------------
# Pure-JAX reference (for correctness check only)
# ---------------------------------------------------------------------------
def _ref_bn_act_conv(x, scale, shift, w, b, relu):
    y = x * scale.reshape(1, 1, 1, -1) + shift.reshape(1, 1, 1, -1)
    if relu:
        y = jnp.maximum(y, 0.0)
    y = lax.conv_general_dilated(
        y, w, window_strides=(1, 1), padding="SAME",
        dimension_numbers=("NHWC", "HWIO", "NHWC"),
        precision=lax.Precision.HIGHEST)
    return y + b.reshape(1, 1, 1, -1)


def _ref_downsample(x_nchw, ref_params, t=None):
    x = jnp.transpose(x_nchw, (0, 2, 3, 1))
    xd = []
    for n, stage in enumerate(ref_params):
        y = x if n == 0 else lax.reduce_window(xd[-1], -jnp.inf, lax.max,
                                               (1, 2, 2, 1), (1, 2, 2, 1), "VALID")
        proj = _ref_bn_act_conv(y, *stage["proj"], relu=False)
        h = _ref_bn_act_conv(y, *stage["conv"][0], relu=True)
        h = _ref_bn_act_conv(h, *stage["conv"][1], relu=True)
        z = proj + h
        if t is not None and t.shape[1] >= z.shape[-1]:
            z = z + t[:, :z.shape[-1]][:, None, None, :]
        h = _ref_bn_act_conv(z, *stage["conv"][2], relu=True)
        h = _ref_bn_act_conv(h, *stage["conv"][3], relu=True)
        xd.append(z + h)
    return [jnp.transpose(v, (0, 3, 1, 2)) for v in xd]


# ---------------------------------------------------------------------------
if __name__ == "__main__":
    key = jax.random.PRNGKey(0)
    kx, kp, kt = jax.random.split(key, 3)

    nbase = [4, 8, 16]      # two resdown stages: 4->8, 8->16
    sz = 3                  # 3x3 convs, padding 1
    N, H, W = 2, 16, 16

    x = jax.random.normal(kx, (N, nbase[0], H, W), jnp.float32)   # NCHW, like PyTorch
    ref_params = init_downsample_params(kp, nbase, sz)
    kparams = prepare_kernel_params(ref_params, sz)

    # --- t = None path -----------------------------------------------------
    outs = jax.block_until_ready(downsample_forward(x, kparams, t=None))
    refs = _ref_downsample(x, ref_params, t=None)
    expected_shapes = [(N, nbase[1], H, W), (N, nbase[2], H // 2, W // 2)]
    for o, r, es in zip(outs, refs, expected_shapes):
        assert o.shape == es, (o.shape, es)
        np.testing.assert_allclose(np.asarray(o), np.asarray(r), rtol=1e-2, atol=1e-2)

    # --- t provided (t.shape[1] >= Cout for both stages) --------------------
    t = jax.random.normal(kt, (N, 32), jnp.float32)
    outs_t = jax.block_until_ready(downsample_forward(x, kparams, t=t))
    refs_t = _ref_downsample(x, ref_params, t=t)
    for o, r in zip(outs_t, refs_t):
        np.testing.assert_allclose(np.asarray(o), np.asarray(r), rtol=1e-2, atol=1e-2)

    print("KERNEL_OK")
</pallas_src>

<mosaic_0001>
module attributes {stable_mosaic.version = 11 : i64} {
  func.func @_resdown_kernel(%arg0: i32, %arg1: memref<1x16x16x4xf32, #tpu.memory_space<vmem>>, %arg2: memref<1x1x8xf32, #tpu.memory_space<vmem>>, %arg3: memref<4x8xf32, #tpu.memory_space<vmem>>, %arg4: memref<1x8xf32, #tpu.memory_space<vmem>>, %arg5: memref<1x1x4xf32, #tpu.memory_space<vmem>>, %arg6: memref<1x1x4xf32, #tpu.memory_space<vmem>>, %arg7: memref<36x8xf32, #tpu.memory_space<vmem>>, %arg8: memref<1x8xf32, #tpu.memory_space<vmem>>, %arg9: memref<1x1x8xf32, #tpu.memory_space<vmem>>, %arg10: memref<1x1x8xf32, #tpu.memory_space<vmem>>, %arg11: memref<72x8xf32, #tpu.memory_space<vmem>>, %arg12: memref<1x8xf32, #tpu.memory_space<vmem>>, %arg13: memref<1x1x8xf32, #tpu.memory_space<vmem>>, %arg14: memref<1x1x8xf32, #tpu.memory_space<vmem>>, %arg15: memref<72x8xf32, #tpu.memory_space<vmem>>, %arg16: memref<1x8xf32, #tpu.memory_space<vmem>>, %arg17: memref<1x1x8xf32, #tpu.memory_space<vmem>>, %arg18: memref<1x1x8xf32, #tpu.memory_space<vmem>>, %arg19: memref<72x8xf32, #tpu.memory_space<vmem>>, %arg20: memref<1x8xf32, #tpu.memory_space<vmem>>, %arg21: memref<1x16x16x8xf32, #tpu.memory_space<vmem>>) attributes {dimension_semantics = [#tpu.dimension_semantics<parallel>], iteration_bounds = array<i64: 2>, scalar_prefetch = 0 : i64, scratch_operands = 0 : i64, tpu.core_type = #tpu.core_type<tc>, window_params = [{transform_indices = @transform_0, window_bounds = array<i64: 1, 16, 16, 4>}, {transform_indices = @transform_1, window_bounds = array<i64: 1, 1, 8>}, {pipeline_mode = #tpu.pipeline_mode<synchronous>, transform_indices = @transform_2, window_bounds = array<i64: 4, 8>}, {pipeline_mode = #tpu.pipeline_mode<synchronous>, transform_indices = @transform_3, window_bounds = array<i64: 1, 8>}, {pipeline_mode = #tpu.pipeline_mode<synchronous>, transform_indices = @transform_4, window_bounds = array<i64: 1, 1, 4>}, {pipeline_mode = #tpu.pipeline_mode<synchronous>, transform_indices = @transform_5, window_bounds = array<i64: 1, 1, 4>}, {pipeline_mode = #tpu.pipeline_mode<synchronous>, transform_indices = @transform_6, window_bounds = array<i64: 36, 8>}, {pipeline_mode = #tpu.pipeline_mode<synchronous>, transform_indices = @transform_7, window_bounds = array<i64: 1, 8>}, {pipeline_mode = #tpu.pipeline_mode<synchronous>, transform_indices = @transform_8, window_bounds = array<i64: 1, 1, 8>}, {pipeline_mode = #tpu.pipeline_mode<synchronous>, transform_indices = @transform_9, window_bounds = array<i64: 1, 1, 8>}, {pipeline_mode = #tpu.pipeline_mode<synchronous>, transform_indices = @transform_10, window_bounds = array<i64: 72, 8>}, {pipeline_mode = #tpu.pipeline_mode<synchronous>, transform_indices = @transform_11, window_bounds = array<i64: 1, 8>}, {pipeline_mode = #tpu.pipeline_mode<synchronous>, transform_indices = @transform_12, window_bounds = array<i64: 1, 1, 8>}, {pipeline_mode = #tpu.pipeline_mode<synchronous>, transform_indices = @transform_13, window_bounds = array<i64: 1, 1, 8>}, {pipeline_mode = #tpu.pipeline_mode<synchronous>, transform_indices = @transform_14, window_bounds = array<i64: 72, 8>}, {pipeline_mode = #tpu.pipeline_mode<synchronous>, transform_indices = @transform_15, window_bounds = array<i64: 1, 8>}, {pipeline_mode = #tpu.pipeline_mode<synchronous>, transform_indices = @transform_16, window_bounds = array<i64: 1, 1, 8>}, {pipeline_mode = #tpu.pipeline_mode<synchronous>, transform_indices = @transform_17, window_bounds = array<i64: 1, 1, 8>}, {pipeline_mode = #tpu.pipeline_mode<synchronous>, transform_indices = @transform_18, window_bounds = array<i64: 72, 8>}, {pipeline_mode = #tpu.pipeline_mode<synchronous>, transform_indices = @transform_19, window_bounds = array<i64: 1, 8>}, {transform_indices = @transform_20, window_bounds = array<i64: 1, 16, 16, 8>}]} {
    %c0 = arith.constant 0 : index
    %c0_0 = arith.constant 0 : index
    %c0_1 = arith.constant 0 : index
    %c0_2 = arith.constant 0 : index
    %0 = vector.load %arg1[%c0, %c0_0, %c0_1, %c0_2] : memref<1x16x16x4xf32, #tpu.memory_space<vmem>>, vector<1x16x16x4xf32>
    %1 = vector.shape_cast %0 : vector<1x16x16x4xf32> to vector<16x16x4xf32>
    %2 = vector.shape_cast %1 : vector<16x16x4xf32> to vector<256x4xf32>
    %c0_3 = arith.constant 0 : index
    %c0_4 = arith.constant 0 : index
    %3 = vector.load %arg3[%c0_3, %c0_4] : memref<4x8xf32, #tpu.memory_space<vmem>>, vector<4x8xf32>
    %cst = arith.constant dense<0.000000e+00> : vector<256x8xf32>
    %4 = tpu.matmul %2, %3, %cst {dimension_numbers = #tpu.dot_dimension_numbers<[1], [0], [0], [1], [0, 0, 1, 1], [], []>} : vector<256x4xf32>, vector<4x8xf32>, vector<256x8xf32> -> vector<256x8xf32>
    %c0_5 = arith.constant 0 : index
    %c0_6 = arith.constant 0 : index
    %5 = vector.load %arg4[%c0_5, %c0_6] : memref<1x8xf32, #tpu.memory_space<vmem>>, vector<1x8xf32>
    %6 = vector.broadcast %5 : vector<1x8xf32> to vector<256x8xf32>
    %7 = arith.addf %4, %6 : vector<256x8xf32>
    %8 = vector.shape_cast %7 : vector<256x8xf32> to vector<16x16x8xf32>
    %c0_7 = arith.constant 0 : index
    %c0_8 = arith.constant 0 : index
    %c0_9 = arith.constant 0 : index
    %9 = vector.load %arg5[%c0_7, %c0_8, %c0_9] : memref<1x1x4xf32, #tpu.memory_space<vmem>>, vector<1x1x4xf32>
    %10 = vector.broadcast %9 : vector<1x1x4xf32> to vector<16x16x4xf32>
    %11 = arith.mulf %1, %10 : vector<16x16x4xf32>
    %c0_10 = arith.constant 0 : index
    %c0_11 = arith.constant 0 : index
    %c0_12 = arith.constant 0 : index
    %12 = vector.load %arg6[%c0_10, %c0_11, %c0_12] : memref<1x1x4xf32, #tpu.memory_space<vmem>>, vector<1x1x4xf32>
    %13 = vector.broadcast %12 : vector<1x1x4xf32> to vector<16x16x4xf32>
    %14 = arith.addf %11, %13 : vector<16x16x4xf32>
    %cst_13 = arith.constant 0.000000e+00 : f32
    %15 = vector.broadcast %cst_13 : f32 to vector<16x16x4xf32>
    %16 = arith.maximumf %14, %15 : vector<16x16x4xf32>
    %cst_14 = arith.constant 0.000000e+00 : f32
    %17 = vector.broadcast %cst_14 : f32 to vector<16x1x4xf32>
    %18 = tpu.concatenate %17, %16, %17 in 1 : vector<16x1x4xf32>, vector<16x16x4xf32>, vector<16x1x4xf32> -> vector<16x18x4xf32>
    %cst_15 = arith.constant 0.000000e+00 : f32
    %19 = vector.broadcast %cst_15 : f32 to vector<1x18x4xf32>
    %20 = tpu.concatenate %19, %18, %19 in 0 : vector<1x18x4xf32>, vector<16x18x4xf32>, vector<1x18x4xf32> -> vector<18x18x4xf32>
    %21 = vector.extract_strided_slice %20 {offsets = [0, 0, 0], sizes = [16, 16, 4], strides = [1, 1, 1]} : vector<18x18x4xf32> to vector<16x16x4xf32>
    %22 = vector.extract_strided_slice %20 {offsets = [0, 1, 0], sizes = [16, 16, 4], strides = [1, 1, 1]} : vector<18x18x4xf32> to vector<16x16x4xf32>
    %23 = vector.extract_strided_slice %20 {offsets = [0, 2, 0], sizes = [16, 16, 4], strides = [1, 1, 1]} : vector<18x18x4xf32> to vector<16x16x4xf32>
    %24 = vector.extract_strided_slice %20 {offsets = [1, 0, 0], sizes = [16, 16, 4], strides = [1, 1, 1]} : vector<18x18x4xf32> to vector<16x16x4xf32>
    %25 = vector.extract_strided_slice %20 {offsets = [1, 1, 0], sizes = [16, 16, 4], strides = [1, 1, 1]} : vector<18x18x4xf32> to vector<16x16x4xf32>
    %26 = vector.extract_strided_slice %20 {offsets = [1, 2, 0], sizes = [16, 16, 4], strides = [1, 1, 1]} : vector<18x18x4xf32> to vector<16x16x4xf32>
    %27 = vector.extract_strided_slice %20 {offsets = [2, 0, 0], sizes = [16, 16, 4], strides = [1, 1, 1]} : vector<18x18x4xf32> to vector<16x16x4xf32>
    %28 = vector.extract_strided_slice %20 {offsets = [2, 1, 0], sizes = [16, 16, 4], strides = [1, 1, 1]} : vector<18x18x4xf32> to vector<16x16x4xf32>
    %29 = vector.extract_strided_slice %20 {offsets = [2, 2, 0], sizes = [16, 16, 4], strides = [1, 1, 1]} : vector<18x18x4xf32> to vector<16x16x4xf32>
    %30 = tpu.concatenate %21, %22, %23, %24, %25, %26, %27, %28, %29 in 2 : vector<16x16x4xf32>, vector<16x16x4xf32>, vector<16x16x4xf32>, vector<16x16x4xf32>, vector<16x16x4xf32>, vector<16x16x4xf32>, vector<16x16x4xf32>, vector<16x16x4xf32>, vector<16x16x4xf32> -> vector<16x16x36xf32>
    %31 = vector.shape_cast %30 : vector<16x16x36xf32> to vector<256x36xf32>
    %c0_16 = arith.constant 0 : index
    %c0_17 = arith.constant 0 : index
    %32 = vector.load %arg7[%c0_16, %c0_17] : memref<36x8xf32, #tpu.memory_space<vmem>>, vector<36x8xf32>
    %cst_18 = arith.constant dense<0.000000e+00> : vector<256x8xf32>
    %33 = tpu.matmul %31, %32, %cst_18 {dimension_numbers = #tpu.dot_dimension_numbers<[1], [0], [0], [1], [0, 0, 1, 1], [], []>} : vector<256x36xf32>, vector<36x8xf32>, vector<256x8xf32> -> vector<256x8xf32>
    %c0_19 = arith.constant 0 : index
    %c0_20 = arith.constant 0 : index
    %34 = vector.load %arg8[%c0_19, %c0_20] : memref<1x8xf32, #tpu.memory_space<vmem>>, vector<1x8xf32>
    %35 = vector.broadcast %34 : vector<1x8xf32> to vector<256x8xf32>
    %36 = arith.addf %33, %35 : vector<256x8xf32>
    %37 = vector.shape_cast %36 : vector<256x8xf32> to vector<16x16x8xf32>
    %c0_21 = arith.constant 0 : index
    %c0_22 = arith.constant 0 : index
    %c0_23 = arith.constant 0 : index
    %38 = vector.load %arg9[%c0_21, %c0_22, %c0_23] : memref<1x1x8xf32, #tpu.memory_space<vmem>>, vector<1x1x8xf32>
    %39 = vector.broadcast %38 : vector<1x1x8xf32> to vector<16x16x8xf32>
    %40 = arith.mulf %37, %39 : vector<16x16x8xf32>
    %c0_24 = arith.constant 0 : index
    %c0_25 = arith.constant 0 : index
    %c0_26 = arith.constant 0 : index
    %41 = vector.load %arg10[%c0_24, %c0_25, %c0_26] : memref<1x1x8xf32, #tpu.memory_space<vmem>>, vector<1x1x8xf32>
    %42 = vector.broadcast %41 : vector<1x1x8xf32> to vector<16x16x8xf32>
    %43 = arith.addf %40, %42 : vector<16x16x8xf32>
    %cst_27 = arith.constant 0.000000e+00 : f32
    %44 = vector.broadcast %cst_27 : f32 to vector<16x16x8xf32>
    %45 = arith.maximumf %43, %44 : vector<16x16x8xf32>
    %cst_28 = arith.constant 0.000000e+00 : f32
    %46 = vector.broadcast %cst_28 : f32 to vector<16x1x8xf32>
    %47 = tpu.concatenate %46, %45, %46 in 1 : vector<16x1x8xf32>, vector<16x16x8xf32>, vector<16x1x8xf32> -> vector<16x18x8xf32>
    %cst_29 = arith.constant 0.000000e+00 : f32
    %48 = vector.broadcast %cst_29 : f32 to vector<1x18x8xf32>
    %49 = tpu.concatenate %48, %47, %48 in 0 : vector<1x18x8xf32>, vector<16x18x8xf32>, vector<1x18x8xf32> -> vector<18x18x8xf32>
    %50 = vector.extract_strided_slice %49 {offsets = [0, 0, 0], sizes = [16, 16, 8], strides = [1, 1, 1]} : vector<18x18x8xf32> to vector<16x16x8xf32>
    %51 = vector.extract_strided_slice %49 {offsets = [0, 1, 0], sizes = [16, 16, 8], strides = [1, 1, 1]} : vector<18x18x8xf32> to vector<16x16x8xf32>
    %52 = vector.extract_strided_slice %49 {offsets = [0, 2, 0], sizes = [16, 16, 8], strides = [1, 1, 1]} : vector<18x18x8xf32> to vector<16x16x8xf32>
    %53 = vector.extract_strided_slice %49 {offsets = [1, 0, 0], sizes = [16, 16, 8], strides = [1, 1, 1]} : vector<18x18x8xf32> to vector<16x16x8xf32>
    %54 = vector.extract_strided_slice %49 {offsets = [1, 1, 0], sizes = [16, 16, 8], strides = [1, 1, 1]} : vector<18x18x8xf32> to vector<16x16x8xf32>
    %55 = vector.extract_strided_slice %49 {offsets = [1, 2, 0], sizes = [16, 16, 8], strides = [1, 1, 1]} : vector<18x18x8xf32> to vector<16x16x8xf32>
    %56 = vector.extract_strided_slice %49 {offsets = [2, 0, 0], sizes = [16, 16, 8], strides = [1, 1, 1]} : vector<18x18x8xf32> to vector<16x16x8xf32>
    %57 = vector.extract_strided_slice %49 {offsets = [2, 1, 0], sizes = [16, 16, 8], strides = [1, 1, 1]} : vector<18x18x8xf32> to vector<16x16x8xf32>
    %58 = vector.extract_strided_slice %49 {offsets = [2, 2, 0], sizes = [16, 16, 8], strides = [1, 1, 1]} : vector<18x18x8xf32> to vector<16x16x8xf32>
    %59 = tpu.concatenate %50, %51, %52, %53, %54, %55, %56, %57, %58 in 2 : vector<16x16x8xf32>, vector<16x16x8xf32>, vector<16x16x8xf32>, vector<16x16x8xf32>, vector<16x16x8xf32>, vector<16x16x8xf32>, vector<16x16x8xf32>, vector<16x16x8xf32>, vector<16x16x8xf32> -> vector<16x16x72xf32>
    %60 = vector.shape_cast %59 : vector<16x16x72xf32> to vector<256x72xf32>
    %c0_30 = arith.constant 0 : index
    %c0_31 = arith.constant 0 : index
    %61 = vector.load %arg11[%c0_30, %c0_31] : memref<72x8xf32, #tpu.memory_space<vmem>>, vector<72x8xf32>
    %cst_32 = arith.constant dense<0.000000e+00> : vector<256x8xf32>
    %62 = tpu.matmul %60, %61, %cst_32 {dimension_numbers = #tpu.dot_dimension_numbers<[1], [0], [0], [1], [0, 0, 1, 1], [], []>} : vector<256x72xf32>, vector<72x8xf32>, vector<256x8xf32> -> vector<256x8xf32>
    %c0_33 = arith.constant 0 : index
    %c0_34 = arith.constant 0 : index
    %63 = vector.load %arg12[%c0_33, %c0_34] : memref<1x8xf32, #tpu.memory_space<vmem>>, vector<1x8xf32>
    %64 = vector.broadcast %63 : vector<1x8xf32> to vector<256x8xf32>
    %65 = arith.addf %62, %64 : vector<256x8xf32>
    %66 = vector.shape_cast %65 : vector<256x8xf32> to vector<16x16x8xf32>
    %67 = arith.addf %8, %66 : vector<16x16x8xf32>
    %c0_35 = arith.constant 0 : index
    %c0_36 = arith.constant 0 : index
    %c0_37 = arith.constant 0 : index
    %68 = vector.load %arg2[%c0_35, %c0_36, %c0_37] : memref<1x1x8xf32, #tpu.memory_space<vmem>>, vector<1x1x8xf32>
    %69 = vector.broadcast %68 : vector<1x1x8xf32> to vector<16x16x8xf32>
    %70 = arith.addf %67, %69 : vector<16x16x8xf32>
    %c0_38 = arith.constant 0 : index
    %c0_39 = arith.constant 0 : index
    %c0_40 = arith.constant 0 : index
    %71 = vector.load %arg13[%c0_38, %c0_39, %c0_40] : memref<1x1x8xf32, #tpu.memory_space<vmem>>, vector<1x1x8xf32>
    %72 = vector.broadcast %71 : vector<1x1x8xf32> to vector<16x16x8xf32>
    %73 = arith.mulf %70, %72 : vector<16x16x8xf32>
    %c0_41 = arith.constant 0 : index
    %c0_42 = arith.constant 0 : index
    %c0_43 = arith.constant 0 : index
    %74 = vector.load %arg14[%c0_41, %c0_42, %c0_43] : memref<1x1x8xf32, #tpu.memory_space<vmem>>, vector<1x1x8xf32>
    %75 = vector.broadcast %74 : vector<1x1x8xf32> to vector<16x16x8xf32>
    %76 = arith.addf %73, %75 : vector<16x16x8xf32>
    %cst_44 = arith.constant 0.000000e+00 : f32
    %77 = vector.broadcast %cst_44 : f32 to vector<16x16x8xf32>
    %78 = arith.maximumf %76, %77 : vector<16x16x8xf32>
    %cst_45 = arith.constant 0.000000e+00 : f32
    %79 = vector.broadcast %cst_45 : f32 to vector<16x1x8xf32>
    %80 = tpu.concatenate %79, %78, %79 in 1 : vector<16x1x8xf32>, vector<16x16x8xf32>, vector<16x1x8xf32> -> vector<16x18x8xf32>
    %cst_46 = arith.constant 0.000000e+00 : f32
    %81 = vector.broadcast %cst_46 : f32 to vector<1x18x8xf32>
    %82 = tpu.concatenate %81, %80, %81 in 0 : vector<1x18x8xf32>, vector<16x18x8xf32>, vector<1x18x8xf32> -> vector<18x18x8xf32>
    %83 = vector.extract_strided_slice %82 {offsets = [0, 0, 0], sizes = [16, 16, 8], strides = [1, 1, 1]} : vector<18x18x8xf32> to vector<16x16x8xf32>
    %84 = vector.extract_strided_slice %82 {offsets = [0, 1, 0], sizes = [16, 16, 8], strides = [1, 1, 1]} : vector<18x18x8xf32> to vector<16x16x8xf32>
    %85 = vector.extract_strided_slice %82 {offsets = [0, 2, 0], sizes = [16, 16, 8], strides = [1, 1, 1]} : vector<18x18x8xf32> to vector<16x16x8xf32>
    %86 = vector.extract_strided_slice %82 {offsets = [1, 0, 0], sizes = [16, 16, 8], strides = [1, 1, 1]} : vector<18x18x8xf32> to vector<16x16x8xf32>
    %87 = vector.extract_strided_slice %82 {offsets = [1, 1, 0], sizes = [16, 16, 8], strides = [1, 1, 1]} : vector<18x18x8xf32> to vector<16x16x8xf32>
    %88 = vector.extract_strided_slice %82 {offsets = [1, 2, 0], sizes = [16, 16, 8], strides = [1, 1, 1]} : vector<18x18x8xf32> to vector<16x16x8xf32>
    %89 = vector.extract_strided_slice %82 {offsets = [2, 0, 0], sizes = [16, 16, 8], strides = [1, 1, 1]} : vector<18x18x8xf32> to vector<16x16x8xf32>
    %90 = vector.extract_strided_slice %82 {offsets = [2, 1, 0], sizes = [16, 16, 8], strides = [1, 1, 1]} : vector<18x18x8xf32> to vector<16x16x8xf32>
    %91 = vector.extract_strided_slice %82 {offsets = [2, 2, 0], sizes = [16, 16, 8], strides = [1, 1, 1]} : vector<18x18x8xf32> to vector<16x16x8xf32>
    %92 = tpu.concatenate %83, %84, %85, %86, %87, %88, %89, %90, %91 in 2 : vector<16x16x8xf32>, vector<16x16x8xf32>, vector<16x16x8xf32>, vector<16x16x8xf32>, vector<16x16x8xf32>, vector<16x16x8xf32>, vector<16x16x8xf32>, vector<16x16x8xf32>, vector<16x16x8xf32> -> vector<16x16x72xf32>
    %93 = vector.shape_cast %92 : vector<16x16x72xf32> to vector<256x72xf32>
    %c0_47 = arith.constant 0 : index
    %c0_48 = arith.constant 0 : index
    %94 = vector.load %arg15[%c0_47, %c0_48] : memref<72x8xf32, #tpu.memory_space<vmem>>, vector<72x8xf32>
    %cst_49 = arith.constant dense<0.000000e+00> : vector<256x8xf32>
    %95 = tpu.matmul %93, %94, %cst_49 {dimension_numbers = #tpu.dot_dimension_numbers<[1], [0], [0], [1], [0, 0, 1, 1], [], []>} : vector<256x72xf32>, vector<72x8xf32>, vector<256x8xf32> -> vector<256x8xf32>
    %c0_50 = arith.constant 0 : index
    %c0_51 = arith.constant 0 : index
    %96 = vector.load %arg16[%c0_50, %c0_51] : memref<1x8xf32, #tpu.memory_space<vmem>>, vector<1x8xf32>
    %97 = vector.broadcast %96 : vector<1x8xf32> to vector<256x8xf32>
    %98 = arith.addf %95, %97 : vector<256x8xf32>
    %99 = vector.shape_cast %98 : vector<256x8xf32> to vector<16x16x8xf32>
    %c0_52 = arith.constant 0 : index
    %c0_53 = arith.constant 0 : index
    %c0_54 = arith.constant 0 : index
    %100 = vector.load %arg17[%c0_52, %c0_53, %c0_54] : memref<1x1x8xf32, #tpu.memory_space<vmem>>, vector<1x1x8xf32>
    %101 = vector.broadcast %100 : vector<1x1x8xf32> to vector<16x16x8xf32>
    %102 = arith.mulf %99, %101 : vector<16x16x8xf32>
    %c0_55 = arith.constant 0 : index
    %c0_56 = arith.constant 0 : index
    %c0_57 = arith.constant 0 : index
    %103 = vector.load %arg18[%c0_55, %c0_56, %c0_57] : memref<1x1x8xf32, #tpu.memory_space<vmem>>, vector<1x1x8xf32>
    %104 = vector.broadcast %103 : vector<1x1x8xf32> to vector<16x16x8xf32>
    %105 = arith.addf %102, %104 : vector<16x16x8xf32>
    %cst_58 = arith.constant 0.000000e+00 : f32
    %106 = vector.broadcast %cst_58 : f32 to vector<16x16x8xf32>
    %107 = arith.maximumf %105, %106 : vector<16x16x8xf32>
    %cst_59 = arith.constant 0.000000e+00 : f32
    %108 = vector.broadcast %cst_59 : f32 to vector<16x1x8xf32>
    %109 = tpu.concatenate %108, %107, %108 in 1 : vector<16x1x8xf32>, vector<16x16x8xf32>, vector<16x1x8xf32> -> vector<16x18x8xf32>
    %cst_60 = arith.constant 0.000000e+00 : f32
    %110 = vector.broadcast %cst_60 : f32 to vector<1x18x8xf32>
    %111 = tpu.concatenate %110, %109, %110 in 0 : vector<1x18x8xf32>, vector<16x18x8xf32>, vector<1x18x8xf32> -> vector<18x18x8xf32>
    %112 = vector.extract_strided_slice %111 {offsets = [0, 0, 0], sizes = [16, 16, 8], strides = [1, 1, 1]} : vector<18x18x8xf32> to vector<16x16x8xf32>
    %113 = vector.extract_strided_slice %111 {offsets = [0, 1, 0], sizes = [16, 16, 8], strides = [1, 1, 1]} : vector<18x18x8xf32> to vector<16x16x8xf32>
    %114 = vector.extract_strided_slice %111 {offsets = [0, 2, 0], sizes = [16, 16, 8], strides = [1, 1, 1]} : vector<18x18x8xf32> to vector<16x16x8xf32>
    %115 = vector.extract_strided_slice %111 {offsets = [1, 0, 0], sizes = [16, 16, 8], strides = [1, 1, 1]} : vector<18x18x8xf32> to vector<16x16x8xf32>
    %116 = vector.extract_strided_slice %111 {offsets = [1, 1, 0], sizes = [16, 16, 8], strides = [1, 1, 1]} : vector<18x18x8xf32> to vector<16x16x8xf32>
    %117 = vector.extract_strided_slice %111 {offsets = [1, 2, 0], sizes = [16, 16, 8], strides = [1, 1, 1]} : vector<18x18x8xf32> to vector<16x16x8xf32>
    %118 = vector.extract_strided_slice %111 {offsets = [2, 0, 0], sizes = [16, 16, 8], strides = [1, 1, 1]} : vector<18x18x8xf32> to vector<16x16x8xf32>
    %119 = vector.extract_strided_slice %111 {offsets = [2, 1, 0], sizes = [16, 16, 8], strides = [1, 1, 1]} : vector<18x18x8xf32> to vector<16x16x8xf32>
    %120 = vector.extract_strided_slice %111 {offsets = [2, 2, 0], sizes = [16, 16, 8], strides = [1, 1, 1]} : vector<18x18x8xf32> to vector<16x16x8xf32>
    %121 = tpu.concatenate %112, %113, %114, %115, %116, %117, %118, %119, %120 in 2 : vector<16x16x8xf32>, vector<16x16x8xf32>, vector<16x16x8xf32>, vector<16x16x8xf32>, vector<16x16x8xf32>, vector<16x16x8xf32>, vector<16x16x8xf32>, vector<16x16x8xf32>, vector<16x16x8xf32> -> vector<16x16x72xf32>
    %122 = vector.shape_cast %121 : vector<16x16x72xf32> to vector<256x72xf32>
    %c0_61 = arith.constant 0 : index
    %c0_62 = arith.constant 0 : index
    %123 = vector.load %arg19[%c0_61, %c0_62] : memref<72x8xf32, #tpu.memory_space<vmem>>, vector<72x8xf32>
    %cst_63 = arith.constant dense<0.000000e+00> : vector<256x8xf32>
    %124 = tpu.matmul %122, %123, %cst_63 {dimension_numbers = #tpu.dot_dimension_numbers<[1], [0], [0], [1], [0, 0, 1, 1], [], []>} : vector<256x72xf32>, vector<72x8xf32>, vector<256x8xf32> -> vector<256x8xf32>
    %c0_64 = arith.constant 0 : index
    %c0_65 = arith.constant 0 : index
    %125 = vector.load %arg20[%c0_64, %c0_65] : memref<1x8xf32, #tpu.memory_space<vmem>>, vector<1x8xf32>
    %126 = vector.broadcast %125 : vector<1x8xf32> to vector<256x8xf32>
    %127 = arith.addf %124, %126 : vector<256x8xf32>
    %128 = vector.shape_cast %127 : vector<256x8xf32> to vector<16x16x8xf32>
    %129 = arith.addf %70, %128 : vector<16x16x8xf32>
    %c0_66 = arith.constant 0 : index
    %c0_67 = arith.constant 0 : index
    %c0_68 = arith.constant 0 : index
    %c0_69 = arith.constant 0 : index
    %130 = vector.load %arg21[%c0_66, %c0_67, %c0_68, %c0_69] : memref<1x16x16x8xf32, #tpu.memory_space<vmem>>, vector<1x16x16x8xf32>
    %131 = vector.shape_cast %130 : vector<1x16x16x8xf32> to vector<16x16x8xf32>
    %132 = vector.shape_cast %129 : vector<16x16x8xf32> to vector<1x16x16x8xf32>
    tpu.vector_store %arg21[%c0_66, %c0_67, %c0_68, %c0_69], %132 {strides = array<i32>} : memref<1x16x16x8xf32, #tpu.memory_space<vmem>>, vector<1x16x16x8xf32>,
    return
  }
  func.func @transform_0(%arg0: i32) -> (i32, i32, i32, i32) {
    %c0_i32 = arith.constant 0 : i32
    %c0_i32_0 = arith.constant 0 : i32
    %c0_i32_1 = arith.constant 0 : i32
    %c0_i32_2 = arith.constant 0 : i32
    return %arg0, %c0_i32, %c0_i32_0, %c0_i32_1 : i32, i32, i32, i32
  }
  func.func @transform_1(%arg0: i32) -> (i32, i32, i32) {
    %c0_i32 = arith.constant 0 : i32
    %c0_i32_0 = arith.constant 0 : i32
    %c0_i32_1 = arith.constant 0 : i32
    return %arg0, %c0_i32, %c0_i32_0 : i32, i32, i32
  }
  func.func @transform_2(%arg0: i32) -> (i32, i32) {
    %c0_i32 = arith.constant 0 : i32
    %c0_i32_0 = arith.constant 0 : i32
    %c0_i32_1 = arith.constant 0 : i32
    return %c0_i32, %c0_i32_0 : i32, i32
  }
  func.func @transform_3(%arg0: i32) -> (i32, i32) {
    %c0_i32 = arith.constant 0 : i32
    %c0_i32_0 = arith.constant 0 : i32
    %c0_i32_1 = arith.constant 0 : i32
    return %c0_i32, %c0_i32_0 : i32, i32
  }
  func.func @transform_4(%arg0: i32) -> (i32, i32, i32) {
    %c0_i32 = arith.constant 0 : i32
    %c0_i32_0 = arith.constant 0 : i32
    %c0_i32_1 = arith.constant 0 : i32
    %c0_i32_2 = arith.constant 0 : i32
    return %c0_i32, %c0_i32_0, %c0_i32_1 : i32, i32, i32
  }
  func.func @transform_5(%arg0: i32) -> (i32, i32, i32) {
    %c0_i32 = arith.constant 0 : i32
    %c0_i32_0 = arith.constant 0 : i32
    %c0_i32_1 = arith.constant 0 : i32
    %c0_i32_2 = arith.constant 0 : i32
    return %c0_i32, %c0_i32_0, %c0_i32_1 : i32, i32, i32
  }
  func.func @transform_6(%arg0: i32) -> (i32, i32) {
    %c0_i32 = arith.constant 0 : i32
    %c0_i32_0 = arith.constant 0 : i32
    %c0_i32_1 = arith.constant 0 : i32
    return %c0_i32, %c0_i32_0 : i32, i32
  }
  func.func @transform_7(%arg0: i32) -> (i32, i32) {
    %c0_i32 = arith.constant 0 : i32
    %c0_i32_0 = arith.constant 0 : i32
    %c0_i32_1 = arith.constant 0 : i32
    return %c0_i32, %c0_i32_0 : i32, i32
  }
  func.func @transform_8(%arg0: i32) -> (i32, i32, i32) {
    %c0_i32 = arith.constant 0 : i32
    %c0_i32_0 = arith.constant 0 : i32
    %c0_i32_1 = arith.constant 0 : i32
    %c0_i32_2 = arith.constant 0 : i32
    return %c0_i32, %c0_i32_0, %c0_i32_1 : i32, i32, i32
  }
  func.func @transform_9(%arg0: i32) -> (i32, i32, i32) {
    %c0_i32 = arith.constant 0 : i32
    %c0_i32_0 = arith.constant 0 : i32
    %c0_i32_1 = arith.constant 0 : i32
    %c0_i32_2 = arith.constant 0 : i32
    return %c0_i32, %c0_i32_0, %c0_i32_1 : i32, i32, i32
  }
  func.func @transform_10(%arg0: i32) -> (i32, i32) {
    %c0_i32 = arith.constant 0 : i32
    %c0_i32_0 = arith.constant 0 : i32
    %c0_i32_1 = arith.constant 0 : i32
    return %c0_i32, %c0_i32_0 : i32, i32
  }
  func.func @transform_11(%arg0: i32) -> (i32, i32) {
    %c0_i32 = arith.constant 0 : i32
    %c0_i32_0 = arith.constant 0 : i32
    %c0_i32_1 = arith.constant 0 : i32
    return %c0_i32, %c0_i32_0 : i32, i32
  }
  func.func @transform_12(%arg0: i32) -> (i32, i32, i32) {
    %c0_i32 = arith.constant 0 : i32
    %c0_i32_0 = arith.constant 0 : i32
    %c0_i32_1 = arith.constant 0 : i32
    %c0_i32_2 = arith.constant 0 : i32
    return %c0_i32, %c0_i32_0, %c0_i32_1 : i32, i32, i32
  }
  func.func @transform_13(%arg0: i32) -> (i32, i32, i32) {
    %c0_i32 = arith.constant 0 : i32
    %c0_i32_0 = arith.constant 0 : i32
    %c0_i32_1 = arith.constant 0 : i32
    %c0_i32_2 = arith.constant 0 : i32
    return %c0_i32, %c0_i32_0, %c0_i32_1 : i32, i32, i32
  }
  func.func @transform_14(%arg0: i32) -> (i32, i32) {
    %c0_i32 = arith.constant 0 : i32
    %c0_i32_0 = arith.constant 0 : i32
    %c0_i32_1 = arith.constant 0 : i32
    return %c0_i32, %c0_i32_0 : i32, i32
  }
  func.func @transform_15(%arg0: i32) -> (i32, i32) {
    %c0_i32 = arith.constant 0 : i32
    %c0_i32_0 = arith.constant 0 : i32
    %c0_i32_1 = arith.constant 0 : i32
    return %c0_i32, %c0_i32_0 : i32, i32
  }
  func.func @transform_16(%arg0: i32) -> (i32, i32, i32) {
    %c0_i32 = arith.constant 0 : i32
    %c0_i32_0 = arith.constant 0 : i32
    %c0_i32_1 = arith.constant 0 : i32
    %c0_i32_2 = arith.constant 0 : i32
    return %c0_i32, %c0_i32_0, %c0_i32_1 : i32, i32, i32
  }
  func.func @transform_17(%arg0: i32) -> (i32, i32, i32) {
    %c0_i32 = arith.constant 0 : i32
    %c0_i32_0 = arith.constant 0 : i32
    %c0_i32_1 = arith.constant 0 : i32
    %c0_i32_2 = arith.constant 0 : i32
    return %c0_i32, %c0_i32_0, %c0_i32_1 : i32, i32, i32
  }
  func.func @transform_18(%arg0: i32) -> (i32, i32) {
    %c0_i32 = arith.constant 0 : i32
    %c0_i32_0 = arith.constant 0 : i32
    %c0_i32_1 = arith.constant 0 : i32
    return %c0_i32, %c0_i32_0 : i32, i32
  }
  func.func @transform_19(%arg0: i32) -> (i32, i32) {
    %c0_i32 = arith.constant 0 : i32
    %c0_i32_0 = arith.constant 0 : i32
    %c0_i32_1 = arith.constant 0 : i32
    return %c0_i32, %c0_i32_0 : i32, i32
  }
  func.func @transform_20(%arg0: i32) -> (i32, i32, i32, i32) {
    %c0_i32 = arith.constant 0 : i32
    %c0_i32_0 = arith.constant 0 : i32
    %c0_i32_1 = arith.constant 0 : i32
    %c0_i32_2 = arith.constant 0 : i32
    return %arg0, %c0_i32, %c0_i32_0, %c0_i32_1 : i32, i32, i32, i32
  }
}

</mosaic_0001>

<llo_original>
// kernel: tpu_custom_call.1
$region0: #{tpu_custom_call.1}
  #allocation0 [shape = 'u32[]', space=smem, size = 0x4, offset = 0x4, fixed_abs, tag = 'smem constant byte address 0x4 - core index']
  #allocation1 [shape = 'u32[144,128]{1,0:T(1,128)}', space=vmem, size = 0x12000, scoped, tag = 'internal scratch']
  %s0 = inlined_call_operand.vmem [shape: f32[2,16,16,4], index: 0, kind: input, shape index: {}]
  %s1 = inlined_call_operand.vmem [shape: f32[2,1,8], index: 1, kind: input, shape index: {}]
  %s2 = inlined_call_operand.vmem [shape: f32[4,8], index: 2, kind: input, shape index: {}]
  %s3 = inlined_call_operand.vmem [shape: f32[1,8], index: 3, kind: input, shape index: {}]
  %s4 = inlined_call_operand.vmem [shape: f32[1,1,4], index: 4, kind: input, shape index: {}]
  %s5 = inlined_call_operand.vmem [shape: f32[1,1,4], index: 5, kind: input, shape index: {}]
  %s6 = inlined_call_operand.vmem [shape: f32[36,8], index: 6, kind: input, shape index: {}]
  %s7 = inlined_call_operand.vmem [shape: f32[1,8], index: 7, kind: input, shape index: {}]
  %s8 = inlined_call_operand.vmem [shape: f32[1,1,8], index: 8, kind: input, shape index: {}]
  %s9 = inlined_call_operand.vmem [shape: f32[1,1,8], index: 9, kind: input, shape index: {}]
  %s10 = inlined_call_operand.vmem [shape: f32[72,8], index: 10, kind: input, shape index: {}]
  %s11 = inlined_call_operand.vmem [shape: f32[1,8], index: 11, kind: input, shape index: {}]
  %s12 = inlined_call_operand.vmem [shape: f32[1,1,8], index: 12, kind: input, shape index: {}]
  %s13 = inlined_call_operand.vmem [shape: f32[1,1,8], index: 13, kind: input, shape index: {}]
  %s14 = inlined_call_operand.vmem [shape: f32[72,8], index: 14, kind: input, shape index: {}]
  %s15 = inlined_call_operand.vmem [shape: f32[1,8], index: 15, kind: input, shape index: {}]
  %s16 = inlined_call_operand.vmem [shape: f32[1,1,8], index: 16, kind: input, shape index: {}]
  %s17 = inlined_call_operand.vmem [shape: f32[1,1,8], index: 17, kind: input, shape index: {}]
  %s18 = inlined_call_operand.vmem [shape: f32[72,8], index: 18, kind: input, shape index: {}]
  %s19 = inlined_call_operand.vmem [shape: f32[1,8], index: 19, kind: input, shape index: {}]
  %s20 = inlined_call_operand.vmem [shape: f32[2,16,16,8], index: 20, kind: output, shape index: {}]
  %s21 = sld [smem:[#allocation0]]
  $region113: #{tpu_custom_call.1} parent=0
    _
  %s23 = ssub.s32 1, %s21
  %s24 = scalar_select 0, %s23, %s21
  loop: start=0, step=1, limit=4
  $region2: #{tpu_custom_call.1} parent=0 // loop_pre_header
    _
  $region3: #{tpu_custom_call.1} parent=0 // loop_header
    %s26 = sphi 0, %s30
    %p27 = scmp.ge.s32.totalorder %s26, 4
    %s36 = sphi 0, %s38
    %s39 = sphi 0, %s36
    %s40 = sphi 0, %s39
    %s56 = sphi 0, %s40
    %s62 = sphi 0, %s64
    %s65 = sphi 0, %s62
    %s66 = sphi 0, %s65
    %s82 = sphi 0, %s66
    %s86 = sphi 0, %s86
    %s88 = sphi 0, %s86
    %s89 = sphi 0, %s88
    %s103 = sphi 0, %s89
    %s107 = sphi 0, %s107
    %s109 = sphi 0, %s107
    %s110 = sphi 0, %s109
    %s124 = sphi 0, %s110
    %s128 = sphi 0, %s128
    %s130 = sphi 0, %s128
    %s131 = sphi 0, %s130
    %s145 = sphi 0, %s131
    %s149 = sphi 0, %s149
    %s151 = sphi 0, %s149
    %s152 = sphi 0, %s151
    %s166 = sphi 0, %s152
    %s170 = sphi 0, %s170
    %s172 = sphi 0, %s170
    %s173 = sphi 0, %s172
    %s187 = sphi 0, %s173
    %s191 = sphi 0, %s191
    %s193 = sphi 0, %s191
    %s194 = sphi 0, %s193
    %s208 = sphi 0, %s194
    %s212 = sphi 0, %s212
    %s214 = sphi 0, %s212
    %s215 = sphi 0, %s214
    %s229 = sphi 0, %s215
    %s233 = sphi 0, %s233
    %s235 = sphi 0, %s233
    %s236 = sphi 0, %s235
    %s250 = sphi 0, %s236
    %s254 = sphi 0, %s254
    %s256 = sphi 0, %s254
    %s257 = sphi 0, %s256
    %s271 = sphi 0, %s257
    %s275 = sphi 0, %s275
    %s277 = sphi 0, %s275
    %s278 = sphi 0, %s277
    %s292 = sphi 0, %s278
    %s296 = sphi 0, %s296
    %s298 = sphi 0, %s296
    %s299 = sphi 0, %s298
    %s313 = sphi 0, %s299
    %s317 = sphi 0, %s317
    %s319 = sphi 0, %s317
    %s320 = sphi 0, %s319
    %s334 = sphi 0, %s320
    %s338 = sphi 0, %s338
    %s340 = sphi 0, %s338
    %s341 = sphi 0, %s340
    %s355 = sphi 0, %s341
    %s359 = sphi 0, %s359
    %s361 = sphi 0, %s359
    %s362 = sphi 0, %s361
    %s376 = sphi 0, %s362
    %s380 = sphi 0, %s380
    %s382 = sphi 0, %s380
    %s383 = sphi 0, %s382
    %s397 = sphi 0, %s383
    %s401 = sphi 0, %s401
    %s403 = sphi 0, %s401
    %s404 = sphi 0, %s403
    %s418 = sphi 0, %s404
    %s422 = sphi 0, %s422
    %s424 = sphi 0, %s422
    %s425 = sphi 0, %s424
    %s439 = sphi 0, %s425
    %s443 = sphi 0, %s443
    %s445 = sphi 0, %s443
    %s446 = sphi 0, %s445
    %s460 = sphi 0, %s446
    %s466 = sphi 0, %s468
    %s469 = sphi 0, %s466
    %s470 = sphi 0, %s469
    %s486 = sphi 0, %s470
  $region4: #{tpu_custom_call.1} parent=0 // loop_header_branch
    %29 = sbr.rel (%p27) target = $region8
  $region5: #{tpu_custom_call.1} parent=0 // loop_body
    %s31 = ssub.s32 %s26, 1
    %s32 = ssub.s32 %s26, 2
    %s33 = sadd.s32 %s26, 1
    %s34 = ssub.s32 %s26, %s33
    %p35 = scmp.eq.s32.totalorder %s34, 0
    %s37 = sadd.s32 %s36, 1
    %s38 = scalar_select %p35, %s36, %s37
    %p41 = pneg %p35
    %p42 = scmp.eq.s32.totalorder %s26, 1
    %p43 = por %p41, %p42
    %p44 = scmp.ne.s32.totalorder %s36, %s39
    %p45 = scmp.eq.s32.totalorder %s26, 0
    %p46 = por %p44, %p45
    %p47 = scmp.ne.s32.totalorder %s36, %s39
    %p48 = scmp.eq.s32.totalorder %s31, 1
    %p49 = por %p47, %p48
    %p50 = scmp.ne.s32.totalorder %s39, %s40
    %p51 = scmp.eq.s32.totalorder %s31, 0
    %p52 = por %p50, %p51
    %p53 = scmp.ne.s32.totalorder %s39, %s40
    %p54 = scmp.eq.s32.totalorder %s32, 1
    %p55 = por %p53, %p54
    %p57 = scmp.ne.s32.totalorder %s40, %s56
    %p58 = scmp.eq.s32.totalorder %s32, 0
    %p59 = por %p57, %p58
    %s60 = ssub.s32 %s26, %s33
    %p61 = scmp.eq.s32.totalorder %s60, 0
    %s63 = sadd.s32 %s62, 1
    %s64 = scalar_select %p61, %s62, %s63
    %p67 = pneg %p61
    %p68 = scmp.eq.s32.totalorder %s26, 1
    %p69 = por %p67, %p68
    %p70 = scmp.ne.s32.totalorder %s62, %s65
    %p71 = scmp.eq.s32.totalorder %s26, 0
    %p72 = por %p70, %p71
    %p73 = scmp.ne.s32.totalorder %s62, %s65
    %p74 = scmp.eq.s32.totalorder %s31, 1
    %p75 = por %p73, %p74
    %p76 = scmp.ne.s32.totalorder %s65, %s66
    %p77 = scmp.eq.s32.totalorder %s31, 0
    %p78 = por %p76, %p77
    %p79 = scmp.ne.s32.totalorder %s65, %s66
    %p80 = scmp.eq.s32.totalorder %s32, 1
    %p81 = por %p79, %p80
    %p83 = scmp.ne.s32.totalorder %s66, %s82
    %p84 = scmp.eq.s32.totalorder %s32, 0
    %p85 = por %p83, %p84
    %s87 = sadd.s32 %s86, 1
    %p90 = scmp.eq.s32.totalorder %s26, 1
    %p91 = scmp.ne.s32.totalorder %s86, %s88
    %p92 = scmp.eq.s32.totalorder %s26, 0
    %p93 = por %p91, %p92
    %p94 = scmp.ne.s32.totalorder %s86, %s88
    %p95 = scmp.eq.s32.totalorder %s31, 1
    %p96 = por %p94, %p95
    %p97 = scmp.ne.s32.totalorder %s88, %s89
    %p98 = scmp.eq.s32.totalorder %s31, 0
    %p99 = por %p97, %p98
    %p100 = scmp.ne.s32.totalorder %s88, %s89
    %p101 = scmp.eq.s32.totalorder %s32, 1
    %p102 = por %p100, %p101
    %p104 = scmp.ne.s32.totalorder %s89, %s103
    %p105 = scmp.eq.s32.totalorder %s32, 0
    %p106 = por %p104, %p105
    %s108 = sadd.s32 %s107, 1
    %p111 = scmp.eq.s32.totalorder %s26, 1
    %p112 = scmp.ne.s32.totalorder %s107, %s109
    %p113 = scmp.eq.s32.totalorder %s26, 0
    %p114 = por %p112, %p113
    %p115 = scmp.ne.s32.totalorder %s107, %s109
    %p116 = scmp.eq.s32.totalorder %s31, 1
    %p117 = por %p115, %p116
    %p118 = scmp.ne.s32.totalorder %s109, %s110
    %p119 = scmp.eq.s32.totalorder %s31, 0
    %p120 = por %p118, %p119
    %p121 = scmp.ne.s32.totalorder %s109, %s110
    %p122 = scmp.eq.s32.totalorder %s32, 1
    %p123 = por %p121, %p122
    %p125 = scmp.ne.s32.totalorder %s110, %s124
    %p126 = scmp.eq.s32.totalorder %s32, 0
    %p127 = por %p125, %p126
    %s129 = sadd.s32 %s128, 1
    %p132 = scmp.eq.s32.totalorder %s26, 1
    %p133 = scmp.ne.s32.totalorder %s128, %s130
    %p134 = scmp.eq.s32.totalorder %s26, 0
    %p135 = por %p133, %p134
    %p136 = scmp.ne.s32.totalorder %s128, %s130
    %p137 = scmp.eq.s32.totalorder %s31, 1
    %p138 = por %p136, %p137
    %p139 = scmp.ne.s32.totalorder %s130, %s131
    %p140 = scmp.eq.s32.totalorder %s31, 0
    %p141 = por %p139, %p140
    %p142 = scmp.ne.s32.totalorder %s130, %s131
    %p143 = scmp.eq.s32.totalorder %s32, 1
    %p144 = por %p142, %p143
    %p146 = scmp.ne.s32.totalorder %s131, %s145
    %p147 = scmp.eq.s32.totalorder %s32, 0
    %p148 = por %p146, %p147
    %s150 = sadd.s32 %s149, 1
    %p153 = scmp.eq.s32.totalorder %s26, 1
    %p154 = scmp.ne.s32.totalorder %s149, %s151
    %p155 = scmp.eq.s32.totalorder %s26, 0
    %p156 = por %p154, %p155
    %p157 = scmp.ne.s32.totalorder %s149, %s151
    %p158 = scmp.eq.s32.totalorder %s31, 1
    %p159 = por %p157, %p158
    %p160 = scmp.ne.s32.totalorder %s151, %s152
    %p161 = scmp.eq.s32.totalorder %s31, 0
    %p162 = por %p160, %p161
    %p163 = scmp.ne.s32.totalorder %s151, %s152
    %p164 = scmp.eq.s32.totalorder %s32, 1
    %p165 = por %p163, %p164
    %p167 = scmp.ne.s32.totalorder %s152, %s166
    %p168 = scmp.eq.s32.totalorder %s32, 0
    %p169 = por %p167, %p168
    %s171 = sadd.s32 %s170, 1
    %p174 = scmp.eq.s32.totalorder %s26, 1
    %p175 = scmp.ne.s32.totalorder %s170, %s172
    %p176 = scmp.eq.s32.totalorder %s26, 0
    %p177 = por %p175, %p176
    %p178 = scmp.ne.s32.totalorder %s170, %s172
    %p179 = scmp.eq.s32.totalorder %s31, 1
    %p180 = por %p178, %p179
    %p181 = scmp.ne.s32.totalorder %s172, %s173
    %p182 = scmp.eq.s32.totalorder %s31, 0
    %p183 = por %p181, %p182
    %p184 = scmp.ne.s32.totalorder %s172, %s173
    %p185 = scmp.eq.s32.totalorder %s32, 1
    %p186 = por %p184, %p185
    %p188 = scmp.ne.s32.totalorder %s173, %s187
    %p189 = scmp.eq.s32.totalorder %s32, 0
    %p190 = por %p188, %p189
    %s192 = sadd.s32 %s191, 1
    %p195 = scmp.eq.s32.totalorder %s26, 1
    %p196 = scmp.ne.s32.totalorder %s191, %s193
    %p197 = scmp.eq.s32.totalorder %s26, 0
    %p198 = por %p196, %p197
    %p199 = scmp.ne.s32.totalorder %s191, %s193
    %p200 = scmp.eq.s32.totalorder %s31, 1
    %p201 = por %p199, %p200
    %p202 = scmp.ne.s32.totalorder %s193, %s194
    %p203 = scmp.eq.s32.totalorder %s31, 0
    %p204 = por %p202, %p203
    %p205 = scmp.ne.s32.totalorder %s193, %s194
    %p206 = scmp.eq.s32.totalorder %s32, 1
    %p207 = por %p205, %p206
    %p209 = scmp.ne.s32.totalorder %s194, %s208
    %p210 = scmp.eq.s32.totalorder %s32, 0
    %p211 = por %p209, %p210
    %s213 = sadd.s32 %s212, 1
    %p216 = scmp.eq.s32.totalorder %s26, 1
    %p217 = scmp.ne.s32.totalorder %s212, %s214
    %p218 = scmp.eq.s32.totalorder %s26, 0
    %p219 = por %p217, %p218
    %p220 = scmp.ne.s32.totalorder %s212, %s214
    %p221 = scmp.eq.s32.totalorder %s31, 1
    %p222 = por %p220, %p221
    %p223 = scmp.ne.s32.totalorder %s214, %s215
    %p224 = scmp.eq.s32.totalorder %s31, 0
    %p225 = por %p223, %p224
    %p226 = scmp.ne.s32.totalorder %s214, %s215
    %p227 = scmp.eq.s32.totalorder %s32, 1
    %p228 = por %p226, %p227
    %p230 = scmp.ne.s32.totalorder %s215, %s229
    %p231 = scmp.eq.s32.totalorder %s32, 0
    %p232 = por %p230, %p231
    %s234 = sadd.s32 %s233, 1
    %p237 = scmp.eq.s32.totalorder %s26, 1
    %p238 = scmp.ne.s32.totalorder %s233, %s235
    %p239 = scmp.eq.s32.totalorder %s26, 0
    %p240 = por %p238, %p239
    %p241 = scmp.ne.s32.totalorder %s233, %s235
    %p242 = scmp.eq.s32.totalorder %s31, 1
    %p243 = por %p241, %p242
    %p244 = scmp.ne.s32.totalorder %s235, %s236
    %p245 = scmp.eq.s32.totalorder %s31, 0
    %p246 = por %p244, %p245
    %p247 = scmp.ne.s32.totalorder %s235, %s236
    %p248 = scmp.eq.s32.totalorder %s32, 1
    %p249 = por %p247, %p248
    %p251 = scmp.ne.s32.totalorder %s236, %s250
    %p252 = scmp.eq.s32.totalorder %s32, 0
    %p253 = por %p251, %p252
    %s255 = sadd.s32 %s254, 1
    %p258 = scmp.eq.s32.totalorder %s26, 1
    %p259 = scmp.ne.s32.totalorder %s254, %s256
    %p260 = scmp.eq.s32.totalorder %s26, 0
    %p261 = por %p259, %p260
    %p262 = scmp.ne.s32.totalorder %s254, %s256
    %p263 = scmp.eq.s32.totalorder %s31, 1
    %p264 = por %p262, %p263
    %p265 = scmp.ne.s32.totalorder %s256, %s257
    %p266 = scmp.eq.s32.totalorder %s31, 0
    %p267 = por %p265, %p266
    %p268 = scmp.ne.s32.totalorder %s256, %s257
    %p269 = scmp.eq.s32.totalorder %s32, 1
    %p270 = por %p268, %p269
    %p272 = scmp.ne.s32.totalorder %s257, %s271
    %p273 = scmp.eq.s32.totalorder %s32, 0
    %p274 = por %p272, %p273
    %s276 = sadd.s32 %s275, 1
    %p279 = scmp.eq.s32.totalorder %s26, 1
    %p280 = scmp.ne.s32.totalorder %s275, %s277
    %p281 = scmp.eq.s32.totalorder %s26, 0
    %p282 = por %p280, %p281
    %p283 = scmp.ne.s32.totalorder %s275, %s277
    %p284 = scmp.eq.s32.totalorder %s31, 1
    %p285 = por %p283, %p284
    %p286 = scmp.ne.s32.totalorder %s277, %s278
    %p287 = scmp.eq.s32.totalorder %s31, 0
    %p288 = por %p286, %p287
    %p289 = scmp.ne.s32.totalorder %s277, %s278
    %p290 = scmp.eq.s32.totalorder %s32, 1
    %p291 = por %p289, %p290
    %p293 = scmp.ne.s32.totalorder %s278, %s292
    %p294 = scmp.eq.s32.totalorder %s32, 0
    %p295 = por %p293, %p294
    %s297 = sadd.s32 %s296, 1
    %p300 = scmp.eq.s32.totalorder %s26, 1
    %p301 = scmp.ne.s32.totalorder %s296, %s298
    %p302 = scmp.eq.s32.totalorder %s26, 0
    %p303 = por %p301, %p302
    %p304 = scmp.ne.s32.totalorder %s296, %s298
    %p305 = scmp.eq.s32.totalorder %s31, 1
    %p306 = por %p304, %p305
    %p307 = scmp.ne.s32.totalorder %s298, %s299
    %p308 = scmp.eq.s32.totalorder %s31, 0
    %p309 = por %p307, %p308
    %p310 = scmp.ne.s32.totalorder %s298, %s299
    %p311 = scmp.eq.s32.totalorder %s32, 1
    %p312 = por %p310, %p311
    %p314 = scmp.ne.s32.totalorder %s299, %s313
    %p315 = scmp.eq.s32.totalorder %s32, 0
    %p316 = por %p314, %p315
    %s318 = sadd.s32 %s317, 1
    %p321 = scmp.eq.s32.totalorder %s26, 1
    %p322 = scmp.ne.s32.totalorder %s317, %s319
    %p323 = scmp.eq.s32.totalorder %s26, 0
    %p324 = por %p322, %p323
    %p325 = scmp.ne.s32.totalorder %s317, %s319
    %p326 = scmp.eq.s32.totalorder %s31, 1
    %p327 = por %p325, %p326
    %p328 = scmp.ne.s32.totalorder %s319, %s320
    %p329 = scmp.eq.s32.totalorder %s31, 0
    %p330 = por %p328, %p329
    %p331 = scmp.ne.s32.totalorder %s319, %s320
    %p332 = scmp.eq.s32.totalorder %s32, 1
    %p333 = por %p331, %p332
    %p335 = scmp.ne.s32.totalorder %s320, %s334
    %p336 = scmp.eq.s32.totalorder %s32, 0
    %p337 = por %p335, %p336
    %s339 = sadd.s32 %s338, 1
    %p342 = scmp.eq.s32.totalorder %s26, 1
    %p343 = scmp.ne.s32.totalorder %s338, %s340
    %p344 = scmp.eq.s32.totalorder %s26, 0
    %p345 = por %p343, %p344
    %p346 = scmp.ne.s32.totalorder %s338, %s340
    %p347 = scmp.eq.s32.totalorder %s31, 1
    %p348 = por %p346, %p347
    %p349 = scmp.ne.s32.totalorder %s340, %s341
    %p350 = scmp.eq.s32.totalorder %s31, 0
    %p351 = por %p349, %p350
    %p352 = scmp.ne.s32.totalorder %s340, %s341
    %p353 = scmp.eq.s32.totalorder %s32, 1
    %p354 = por %p352, %p353
    %p356 = scmp.ne.s32.totalorder %s341, %s355
    %p357 = scmp.eq.s32.totalorder %s32, 0
    %p358 = por %p356, %p357
    %s360 = sadd.s32 %s359, 1
    %p363 = scmp.eq.s32.totalorder %s26, 1
    %p364 = scmp.ne.s32.totalorder %s359, %s361
    %p365 = scmp.eq.s32.totalorder %s26, 0
    %p366 = por %p364, %p365
    %p367 = scmp.ne.s32.totalorder %s359, %s361
    %p368 = scmp.eq.s32.totalorder %s31, 1
    %p369 = por %p367, %p368
    %p370 = scmp.ne.s32.totalorder %s361, %s362
    %p371 = scmp.eq.s32.totalorder %s31, 0
    %p372 = por %p370, %p371
    %p373 = scmp.ne.s32.totalorder %s361, %s362
    %p374 = scmp.eq.s32.totalorder %s32, 1
    %p375 = por %p373, %p374
    %p377 = scmp.ne.s32.totalorder %s362, %s376
    %p378 = scmp.eq.s32.totalorder %s32, 0
    %p379 = por %p377, %p378
    %s381 = sadd.s32 %s380, 1
    %p384 = scmp.eq.s32.totalorder %s26, 1
    %p385 = scmp.ne.s32.totalorder %s380, %s382
    %p386 = scmp.eq.s32.totalorder %s26, 0
    %p387 = por %p385, %p386
    %p388 = scmp.ne.s32.totalorder %s380, %s382
    %p389 = scmp.eq.s32.totalorder %s31, 1
    %p390 = por %p388, %p389
    %p391 = scmp.ne.s32.totalorder %s382, %s383
    %p392 = scmp.eq.s32.totalorder %s31, 0
    %p393 = por %p391, %p392
    %p394 = scmp.ne.s32.totalorder %s382, %s383
    %p395 = scmp.eq.s32.totalorder %s32, 1
    %p396 = por %p394, %p395
    %p398 = scmp.ne.s32.totalorder %s383, %s397
    %p399 = scmp.eq.s32.totalorder %s32, 0
    %p400 = por %p398, %p399
    %s402 = sadd.s32 %s401, 1
    %p405 = scmp.eq.s32.totalorder %s26, 1
    %p406 = scmp.ne.s32.totalorder %s401, %s403
    %p407 = scmp.eq.s32.totalorder %s26, 0
    %p408 = por %p406, %p407
    %p409 = scmp.ne.s32.totalorder %s401, %s403
    %p410 = scmp.eq.s32.totalorder %s31, 1
    %p411 = por %p409, %p410
    %p412 = scmp.ne.s32.totalorder %s403, %s404
    %p413 = scmp.eq.s32.totalorder %s31, 0
    %p414 = por %p412, %p413
    %p415 = scmp.ne.s32.totalorder %s403, %s404
    %p416 = scmp.eq.s32.totalorder %s32, 1
    %p417 = por %p415, %p416
    %p419 = scmp.ne.s32.totalorder %s404, %s418
    %p420 = scmp.eq.s32.totalorder %s32, 0
    %p421 = por %p419, %p420
    %s423 = sadd.s32 %s422, 1
    %p426 = scmp.eq.s32.totalorder %s26, 1
    %p427 = scmp.ne.s32.totalorder %s422, %s424
    %p428 = scmp.eq.s32.totalorder %s26, 0
    %p429 = por %p427, %p428
    %p430 = scmp.ne.s32.totalorder %s422, %s424
    %p431 = scmp.eq.s32.totalorder %s31, 1
    %p432 = por %p430, %p431
    %p433 = scmp.ne.s32.totalorder %s424, %s425
    %p434 = scmp.eq.s32.totalorder %s31, 0
    %p435 = por %p433, %p434
    %p436 = scmp.ne.s32.totalorder %s424, %s425
    %p437 = scmp.eq.s32.totalorder %s32, 1
    %p438 = por %p436, %p437
    %p440 = scmp.ne.s32.totalorder %s425, %s439
    %p441 = scmp.eq.s32.totalorder %s32, 0
    %p442 = por %p440, %p441
    %s444 = sadd.s32 %s443, 1
    %p447 = scmp.eq.s32.totalorder %s26, 1
    %p448 = scmp.ne.s32.totalorder %s443, %s445
    %p449 = scmp.eq.s32.totalorder %s26, 0
    %p450 = por %p448, %p449
    %p451 = scmp.ne.s32.totalorder %s443, %s445
    %p452 = scmp.eq.s32.totalorder %s31, 1
    %p453 = por %p451, %p452
    %p454 = scmp.ne.s32.totalorder %s445, %s446
    %p455 = scmp.eq.s32.totalorder %s31, 0
    %p456 = por %p454, %p455
    %p457 = scmp.ne.s32.totalorder %s445, %s446
    %p458 = scmp.eq.s32.totalorder %s32, 1
    %p459 = por %p457, %p458
    %p461 = scmp.ne.s32.totalorder %s446, %s460
    %p462 = scmp.eq.s32.totalorder %s32, 0
    %p463 = por %p461, %p462
    %s464 = ssub.s32 %s26, %s33
    %p465 = scmp.eq.s32.totalorder %s464, 0
    %s467 = sadd.s32 %s466, 1
    %s468 = scalar_select %p465, %s466, %s467
    %p471 = pneg %p465
    %p472 = scmp.eq.s32.totalorder %s26, 1
    %p473 = por %p471, %p472
    %p474 = scmp.ne.s32.totalorder %s466, %s469
    %p475 = scmp.eq.s32.totalorder %s26, 0
    %p476 = por %p474, %p475
    %p477 = scmp.ne.s32.totalorder %s466, %s469
    %p478 = scmp.eq.s32.totalorder %s31, 1
    %p479 = por %p477, %p478
    %p480 = scmp.ne.s32.totalorder %s469, %s470
    %p481 = scmp.eq.s32.totalorder %s31, 0
    %p482 = por %p480, %p481
    %p483 = scmp.ne.s32.totalorder %s469, %s470
    %p484 = scmp.eq.s32.totalorder %s32, 1
    %p485 = por %p483, %p484
    %p487 = scmp.ne.s32.totalorder %s470, %s486
    %p488 = scmp.eq.s32.totalorder %s32, 0
    %p489 = por %p487, %p488
    %p490 = scmp.le.s32.totalorder 1, %s26
    %p491 = scmp.lt.s32.totalorder %s26, 3
    %p492 = pnand %p490, %p491
    %p493 = pneg %p492
    // Predicated region
    $region9: #{tpu_custom_call.1} parent=5 // pred_check
      _
    $region10: #{tpu_custom_call.1} parent=5 // pred_check_branch
      %495 = sbr.rel (%p492) target = $region12
    $region11: #{tpu_custom_call.1} parent=5 // pred_region
      %s496 = ssub.s32 %s26, 1
      // Predicated region
      $region13: #{tpu_custom_call.1} parent=11 // pred_check
        %p497 = pneg %p99
      $region14: #{tpu_custom_call.1} parent=11 // pred_check_branch
        %499 = sbr.rel (%p497) target = $region16
      $region15: #{tpu_custom_call.1} parent=11 // pred_region
        _
      $region16: #{tpu_custom_call.1} parent=11 // pred_fallthru
        _
      // Predicated region
      $region17: #{tpu_custom_call.1} parent=11 // pred_check
        %p500 = pneg %p120
      $region18: #{tpu_custom_call.1} parent=11 // pred_check_branch
        %502 = sbr.rel (%p500) target = $region20
      $region19: #{tpu_custom_call.1} parent=11 // pred_region
        _
      $region20: #{tpu_custom_call.1} parent=11 // pred_fallthru
        _
      // Predicated region
      $region21: #{tpu_custom_call.1} parent=11 // pred_check
        %p503 = pneg %p141
      $region22: #{tpu_custom_call.1} parent=11 // pred_check_branch
        %505 = sbr.rel (%p503) target = $region24
      $region23: #{tpu_custom_call.1} parent=11 // pred_region
        _
      $region24: #{tpu_custom_call.1} parent=11 // pred_fallthru
        _
      // Predicated region
      $region25: #{tpu_custom_call.1} parent=11 // pred_check
        %p506 = pneg %p162
      $region26: #{tpu_custom_call.1} parent=11 // pred_check_branch
        %508 = sbr.rel (%p506) target = $region28
      $region27: #{tpu_custom_call.1} parent=11 // pred_region
        _
      $region28: #{tpu_custom_call.1} parent=11 // pred_fallthru
        _
      // Predicated region
      $region29: #{tpu_custom_call.1} parent=11 // pred_check
        %p509 = pneg %p183
      $region30: #{tpu_custom_call.1} parent=11 // pred_check_branch
        %511 = sbr.rel (%p509) target = $region32
      $region31: #{tpu_custom_call.1} parent=11 // pred_region
        _
      $region32: #{tpu_custom_call.1} parent=11 // pred_fallthru
        _
      // Predicated region
      $region33: #{tpu_custom_call.1} parent=11 // pred_check
        %p512 = pneg %p204
      $region34: #{tpu_custom_call.1} parent=11 // pred_check_branch
        %514 = sbr.rel (%p512) target = $region36
      $region35: #{tpu_custom_call.1} parent=11 // pred_region
        _
      $region36: #{tpu_custom_call.1} parent=11 // pred_fallthru
        _
      // Predicated region
      $region37: #{tpu_custom_call.1} parent=11 // pred_check
        %p515 = pneg %p225
      $region38: #{tpu_custom_call.1} parent=11 // pred_check_branch
        %517 = sbr.rel (%p515) target = $region40
      $region39: #{tpu_custom_call.1} parent=11 // pred_region
        _
      $region40: #{tpu_custom_call.1} parent=11 // pred_fallthru
        _
      // Predicated region
      $region41: #{tpu_custom_call.1} parent=11 // pred_check
        %p518 = pneg %p246
      $region42: #{tpu_custom_call.1} parent=11 // pred_check_branch
        %520 = sbr.rel (%p518) target = $region44
      $region43: #{tpu_custom_call.1} parent=11 // pred_region
        _
      $region44: #{tpu_custom_call.1} parent=11 // pred_fallthru
        _
      // Predicated region
      $region45: #{tpu_custom_call.1} parent=11 // pred_check
        %p521 = pneg %p267
      $region46: #{tpu_custom_call.1} parent=11 // pred_check_branch
        %523 = sbr.rel (%p521) target = $region48
      $region47: #{tpu_custom_call.1} parent=11 // pred_region
        _
      $region48: #{tpu_custom_call.1} parent=11 // pred_fallthru
        _
      // Predicated region
      $region49: #{tpu_custom_call.1} parent=11 // pred_check
        %p524 = pneg %p288
      $region50: #{tpu_custom_call.1} parent=11 // pred_check_branch
        %526 = sbr.rel (%p524) target = $region52
      $region51: #{tpu_custom_call.1} parent=11 // pred_region
        _
      $region52: #{tpu_custom_call.1} parent=11 // pred_fallthru
        _
      // Predicated region
      $region53: #{tpu_custom_call.1} parent=11 // pred_check
        %p527 = pneg %p309
      $region54: #{tpu_custom_call.1} parent=11 // pred_check_branch
        %529 = sbr.rel (%p527) target = $region56
      $region55: #{tpu_custom_call.1} parent=11 // pred_region
        _
      $region56: #{tpu_custom_call.1} parent=11 // pred_fallthru
        _
      // Predicated region
      $region57: #{tpu_custom_call.1} parent=11 // pred_check
        %p530 = pneg %p330
      $region58: #{tpu_custom_call.1} parent=11 // pred_check_branch
        %532 = sbr.rel (%p530) target = $region60
      $region59: #{tpu_custom_call.1} parent=11 // pred_region
        _
      $region60: #{tpu_custom_call.1} parent=11 // pred_fallthru
        _
      // Predicated region
      $region61: #{tpu_custom_call.1} parent=11 // pred_check
        %p533 = pneg %p351
      $region62: #{tpu_custom_call.1} parent=11 // pred_check_branch
        %535 = sbr.rel (%p533) target = $region64
      $region63: #{tpu_custom_call.1} parent=11 // pred_region
        _
      $region64: #{tpu_custom_call.1} parent=11 // pred_fallthru
        _
      // Predicated region
      $region65: #{tpu_custom_call.1} parent=11 // pred_check
        %p536 = pneg %p372
      $region66: #{tpu_custom_call.1} parent=11 // pred_check_branch
        %538 = sbr.rel (%p536) target = $region68
      $region67: #{tpu_custom_call.1} parent=11 // pred_region
        _
      $region68: #{tpu_custom_call.1} parent=11 // pred_fallthru
        _
      // Predicated region
      $region69: #{tpu_custom_call.1} parent=11 // pred_check
        %p539 = pneg %p393
      $region70: #{tpu_custom_call.1} parent=11 // pred_check_branch
        %541 = sbr.rel (%p539) target = $region72
      $region71: #{tpu_custom_call.1} parent=11 // pred_region
        _
      $region72: #{tpu_custom_call.1} parent=11 // pred_fallthru
        _
      // Predicated region
      $region73: #{tpu_custom_call.1} parent=11 // pred_check
        %p542 = pneg %p414
      $region74: #{tpu_custom_call.1} parent=11 // pred_check_branch
        %544 = sbr.rel (%p542) target = $region76
      $region75: #{tpu_custom_call.1} parent=11 // pred_region
        _
      $region76: #{tpu_custom_call.1} parent=11 // pred_fallthru
        _
      // Predicated region
      $region77: #{tpu_custom_call.1} parent=11 // pred_check
        %p545 = pneg %p435
      $region78: #{tpu_custom_call.1} parent=11 // pred_check_branch
        %547 = sbr.rel (%p545) target = $region80
      $region79: #{tpu_custom_call.1} parent=11 // pred_region
        _
      $region80: #{tpu_custom_call.1} parent=11 // pred_fallthru
        _
      // Predicated region
      $region81: #{tpu_custom_call.1} parent=11 // pred_check
        %p548 = pneg %p456
      $region82: #{tpu_custom_call.1} parent=11 // pred_check_branch
        %550 = sbr.rel (%p548) target = $region84
      $region83: #{tpu_custom_call.1} parent=11 // pred_region
        _
      $region84: #{tpu_custom_call.1} parent=11 // pred_fallthru
        _
    $region12: #{tpu_custom_call.1} parent=5 // pred_fallthru
      _
    %p551 = scmp.lt.s32.totalorder %s26, 2
    // Predicated region
    $region85: #{tpu_custom_call.1} parent=5 // pred_check
      %p552 = pneg %p551
    $region86: #{tpu_custom_call.1} parent=5 // pred_check_branch
      %554 = sbr.rel (%p552) target = $region88
    $region87: #{tpu_custom_call.1} parent=5 // pred_region
      // Predicated region
      $region89: #{tpu_custom_call.1} parent=87 // pred_check
        %p555 = pneg %p46
      $region90: #{tpu_custom_call.1} parent=87 // pred_check_branch
        %557 = sbr.rel (%p555) target = $region92
      $region91: #{tpu_custom_call.1} parent=87 // pred_region
        %p558 = scmp.lt.s32.totalorder %s26, 1
        %s559 = scalar_select %p558, %s26, 1
        %s560 = smul.addr %s559, 32
        %s561 = smul.addr %s560, 8
        %s562 = scalar_lea.vmem %s0, %s561
      $region92: #{tpu_custom_call.1} parent=87 // pred_fallthru
        _
      // Predicated region
      $region93: #{tpu_custom_call.1} parent=87 // pred_check
        %p563 = pneg %p72
      $region94: #{tpu_custom_call.1} parent=87 // pred_check_branch
        %565 = sbr.rel (%p563) target = $region96
      $region95: #{tpu_custom_call.1} parent=87 // pred_region
        %p566 = scmp.lt.s32.totalorder %s26, 1
        %s567 = scalar_select %p566, %s26, 1
        %s568 = scalar_lea.vmem %s1, %s567
      $region96: #{tpu_custom_call.1} parent=87 // pred_fallthru
        _
    $region88: #{tpu_custom_call.1} parent=5 // pred_fallthru
      _
    %p569 = scmp.le.s32.totalorder 1, %s26
    %p570 = scmp.lt.s32.totalorder %s26, 3
    %p571 = pnand %p569, %p570
    %p572 = pneg %p571
    // Predicated region
    $region97: #{tpu_custom_call.1} parent=5 // pred_check
      _
    $region98: #{tpu_custom_call.1} parent=5 // pred_check_branch
      %574 = sbr.rel (%p571) target = $region100
    $region99: #{tpu_custom_call.1} parent=5 // pred_region
      %s575 = ssub.s32 %s26, 1
      %p576 = scmp.lt.s32.totalorder %s31, 1
      %s577 = scalar_select %p576, %s31, 1
      %s578 = smul.addr %s577, 32
      %s579 = smul.addr %s578, 8
      %s580 = scalar_lea.vmem %s0, %s579
      %p581 = pneg %p52
      %p582 = pneg %p49
      %p583 = scmp.lt.s32.totalorder %s31, 1
      %s584 = scalar_select %p583, %s31, 1
      %s585 = scalar_lea.vmem %s1, %s584
      %p586 = pneg %p78
      %p587 = pneg %p75
      %p588 = pneg %p99
      %p589 = pneg %p96
      %p590 = pneg %p120
      %p591 = pneg %p117
      %p592 = pneg %p141
      %p593 = pneg %p138
      %p594 = pneg %p162
      %p595 = pneg %p159
      %p596 = pneg %p183
      %p597 = pneg %p180
      %p598 = pneg %p204
      %p599 = pneg %p201
      %p600 = pneg %p225
      %p601 = pneg %p222
      %p602 = pneg %p246
      %p603 = pneg %p243
      %p604 = pneg %p267
      %p605 = pneg %p264
      %p606 = pneg %p288
      %p607 = pneg %p285
      %p608 = pneg %p309
      %p609 = pneg %p306
      %p610 = pneg %p330
      %p611 = pneg %p327
      %p612 = pneg %p351
      %p613 = pneg %p348
      %p614 = pneg %p372
      %p615 = pneg %p369
      %p616 = pneg %p393
      %p617 = pneg %p390
      %p618 = pneg %p414
      %p619 = pneg %p411
      %p620 = pneg %p435
      %p621 = pneg %p432
      %p622 = pneg %p456
      %p623 = pneg %p453
      %p624 = pneg %p482
      %p625 = pneg %p479
      %p626 = scmp.lt.s32.totalorder %s31, 1
      %s627 = scalar_select %p626, %s31, 1
      %s628 = smul.addr %s627, 32
      %s629 = smul.addr %s628, 8
      %s630 = scalar_lea.vmem %s20, %s629
      %p631 = scmp.lt.s32.totalorder %s31, 1
      %s632 = scalar_select %p631, %s31, 1
      %s633 = smul.addr %s632, 32
      %s634 = smul.addr %s633, 8
      %s635 = scalar_lea.vmem %s0, %s634
      %p636 = scmp.lt.s32.totalorder %s31, 1
      %s637 = scalar_select %p636, %s31, 1
      %s638 = scalar_lea.vmem %s1, %s637
      %p639 = scmp.lt.s32.totalorder %s31, 1
      %s640 = scalar_select %p639, %s31, 1
      %s641 = smul.addr %s640, 32
      %s642 = smul.addr %s641, 8
      %s643 = scalar_lea.vmem %s20, %s642
      %v644 = vld [vmem:[%s635] sm:$0xff]
      %v645 = vld [vmem:[%s635 + $0x8] sm:$0xff]
      %v646 = vld [vmem:[%s635 + $0x10] sm:$0xff]
      %v647 = vld [vmem:[%s635 + $0x18] sm:$0xff]
      %v648 = vld [vmem:[%s635 + $0x20] sm:$0xff]
      %v649 = vld [vmem:[%s635 + $0x28] sm:$0xff]
      %v650 = vld [vmem:[%s635 + $0x30] sm:$0xff]
      %v651 = vld [vmem:[%s635 + $0x38] sm:$0xff]
      %v652 = vld [vmem:[%s635 + $0x40] sm:$0xff]
      %v653 = vld [vmem:[%s635 + $0x48] sm:$0xff]
      %v654 = vld [vmem:[%s635 + $0x50] sm:$0xff]
      %v655 = vld [vmem:[%s635 + $0x58] sm:$0xff]
      %v656 = vld [vmem:[%s635 + $0x60] sm:$0xff]
      %v657 = vld [vmem:[%s635 + $0x68] sm:$0xff]
      %v658 = vld [vmem:[%s635 + $0x70] sm:$0xff]
      %v659 = vld [vmem:[%s635 + $0x78] sm:$0xff]
      %v660 = vld [vmem:[%s635 + $0x80] sm:$0xff]
      %v661 = vld [vmem:[%s635 + $0x88] sm:$0xff]
      %v662 = vld [vmem:[%s635 + $0x90] sm:$0xff]
      %v663 = vld [vmem:[%s635 + $0x98] sm:$0xff]
      %v664 = vld [vmem:[%s635 + $0xa0] sm:$0xff]
      %v665 = vld [vmem:[%s635 + $0xa8] sm:$0xff]
      %v666 = vld [vmem:[%s635 + $0xb0] sm:$0xff]
      %v667 = vld [vmem:[%s635 + $0xb8] sm:$0xff]
      %v668 = vld [vmem:[%s635 + $0xc0] sm:$0xff]
      %v669 = vld [vmem:[%s635 + $0xc8] sm:$0xff]
      %v670 = vld [vmem:[%s635 + $0xd0] sm:$0xff]
      %v671 = vld [vmem:[%s635 + $0xd8] sm:$0xff]
      %v672 = vld [vmem:[%s635 + $0xe0] sm:$0xff]
      %v673 = vld [vmem:[%s635 + $0xe8] sm:$0xff]
      %v674 = vld [vmem:[%s635 + $0xf0] sm:$0xff]
      %v675 = vld [vmem:[%s635 + $0xf8] sm:$0xff]
      %v676 = vld [vmem:[%s2] sm:$0xf]
      %v677 = vld [vmem:[%s3] sm:$0x1]
      %v679 = vlaneseq
      %v680 = vshrl.u32 %v679, 7
      %v681 = vsub.s32 0, %v680
      %v682 = vrot.slane %v677, %v681
      %vm684 = vcmask 31744
      %v686 = vsel %vm684, %v644, 0
      %v689 = vsel %vm684, %v645, 0
      %v692 = vsel %vm684, %v646, 0
      %v695 = vsel %vm684, %v647, 0
      %v698 = vsel %vm684, %v648, 0
      %v701 = vsel %vm684, %v649, 0
      %v704 = vsel %vm684, %v650, 0
      %v707 = vsel %vm684, %v651, 0
      %v710 = vsel %vm684, %v652, 0
      %v713 = vsel %vm684, %v653, 0
      %v716 = vsel %vm684, %v654, 0
      %v719 = vsel %vm684, %v655, 0
      %v722 = vsel %vm684, %v656, 0
      %v725 = vsel %vm684, %v657, 0
      %v728 = vsel %vm684, %v658, 0
      %v731 = vsel %vm684, %v659, 0
      %v734 = vsel %vm684, %v660, 0
      %v737 = vsel %vm684, %v661, 0
      %v740 = vsel %vm684, %v662, 0
      %v743 = vsel %vm684, %v663, 0
      %v746 = vsel %vm684, %v664, 0
      %v749 = vsel %vm684, %v665, 0
      %v752 = vsel %vm684, %v666, 0
      %v755 = vsel %vm684, %v667, 0
      %v758 = vsel %vm684, %v668, 0
      %v761 = vsel %vm684, %v669, 0
      %v764 = vsel %vm684, %v670, 0
      %v767 = vsel %vm684, %v671, 0
      %v770 = vsel %vm684, %v672, 0
      %v773 = vsel %vm684, %v673, 0
      %v776 = vsel %vm684, %v674, 0
      %v779 = vsel %vm684, %v675, 0
      %vm781 = vcmask 1043456
      %v783 = vsel %vm781, %v676, 0
      %785 = vmatprep.subr.mxu0 0.0
      %786 = vmatpush1.msra.mxu0 0.0
      %787 = vmatprep.subr.mxu0 0.0
      %788 = vmatpush1.msra.mxu0 0.0
      %789 = vmatprep.subr.mxu0 0.0
      %790 = vmatpush1.msra.mxu0 0.0
      %791 = vmatprep.subr.mxu0 0.0
      %792 = vmatpush1.msra.mxu0 0.0
      %793 = vmatprep.subr.mxu0 0.0
      %794 = vmatpush1.msra.mxu0 0.0
      %795 = vmatprep.subr.mxu0 0.0
      %796 = vmatpush1.msra.mxu0 0.0
      %797 = vmatprep.subr.mxu0 0.0
      %798 = vmatpush1.msra.mxu0 0.0
      %799 = vmatprep.subr.mxu0 0.0
      %800 = vmatpush1.msra.mxu0 0.0
      %801 = vmatprep.subr.mxu0 0.0
      %802 = vmatpush1.msra.mxu0 0.0
      %803 = vmatprep.subr.mxu0 0.0
      %804 = vmatpush1.msra.mxu0 0.0
      %805 = vmatprep.subr.mxu0 0.0
      %806 = vmatpush1.msra.mxu0 0.0
      %807 = vmatprep.subr.mxu0 0.0
      %808 = vmatpush1.msra.mxu0 0.0
      %809 = vmatprep.subr.mxu0 0.0
      %810 = vmatpush1.msra.mxu0 0.0
      %811 = vmatprep.subr.mxu0 0.0
      %812 = vmatpush1.msra.mxu0 0.0
      %813 = vmatprep.subr.mxu0 0.0
      %814 = vmatpush1.msra.mxu0 0.0
      %815 = vmatprep.subr.mxu0 0.0
      %816 = vmatpush1.msra.mxu0 %v783
      %817 = vmatprep.subr.mxu0 0.0
      %818 = vmatpush2.msra.mxu0 0.0
      %819 = vmatprep.subr.mxu0 0.0
      %820 = vmatpush2.msra.mxu0 0.0
      %821 = vmatprep.subr.mxu0 0.0
      %822 = vmatpush2.msra.mxu0 0.0
      %823 = vmatprep.subr.mxu0 0.0
      %824 = vmatpush2.msra.mxu0 0.0
      %825 = vmatprep.subr.mxu0 0.0
      %826 = vmatpush2.msra.mxu0 0.0
      %827 = vmatprep.subr.mxu0 0.0
      %828 = vmatpush2.msra.mxu0 0.0
      %829 = vmatprep.subr.mxu0 0.0
      %830 = vmatpush2.msra.mxu0 0.0
      %831 = vmatprep.subr.mxu0 0.0
      %832 = vmatpush2.msra.mxu0 0.0
      %833 = vmatprep.subr.mxu0 0.0
      %834 = vmatpush2.msra.mxu0 0.0
      %835 = vmatprep.subr.mxu0 0.0
      %836 = vmatpush2.msra.mxu0 0.0
      %837 = vmatprep.subr.mxu0 0.0
      %838 = vmatpush2.msra.mxu0 0.0
      %839 = vmatprep.subr.mxu0 0.0
      %840 = vmatpush2.msra.mxu0 0.0
      %841 = vmatprep.subr.mxu0 0.0
      %842 = vmatpush2.msra.mxu0 0.0
      %843 = vmatprep.subr.mxu0 0.0
      %844 = vmatpush2.msra.mxu0 0.0
      %845 = vmatprep.subr.mxu0 0.0
      %846 = vmatpush2.msra.mxu0 0.0
      %847 = vmatprep.subr.mxu0 0.0
      %848 = vmatpush2.msra.mxu0 0.0
      %849 = vmatprep.mubr.f32.mxu0 0.0
      %850 = vmatmul.mubr.f32.gmra.mxu0 %v686
      %v851 = vpop.f32.mrf.mxu0
      %v852 = vadd.f32 %v682, %v851
      %v853 = vpop.f32.mrf.mxu0
      %854 = vmatprep.mubr.f32.mxu0 0.0
      %855 = vmatmul.mubr.f32.gmra.mxu0 %v689
      %v856 = vpop.f32.mrf.mxu0
      %v857 = vadd.f32 %v682, %v856
      %v858 = vpop.f32.mrf.mxu0
      %859 = vmatprep.mubr.f32.mxu0 0.0
      %860 = vmatmul.mubr.f32.gmra.mxu0 %v692
      %v861 = vpop.f32.mrf.mxu0
      %v862 = vadd.f32 %v682, %v861
      %v863 = vpop.f32.mrf.mxu0
      %864 = vmatprep.mubr.f32.mxu0 0.0
      %865 = vmatmul.mubr.f32.gmra.mxu0 %v695
      %v866 = vpop.f32.mrf.mxu0
      %v867 = vadd.f32 %v682, %v866
      %v868 = vpop.f32.mrf.mxu0
      %869 = vmatprep.mubr.f32.mxu0 0.0
      %870 = vmatmul.mubr.f32.gmra.mxu0 %v698
      %v871 = vpop.f32.mrf.mxu0
      %v872 = vadd.f32 %v682, %v871
      %v873 = vpop.f32.mrf.mxu0
      %874 = vmatprep.mubr.f32.mxu0 0.0
      %875 = vmatmul.mubr.f32.gmra.mxu0 %v701
      %v876 = vpop.f32.mrf.mxu0
      %v877 = vadd.f32 %v682, %v876
      %v878 = vpop.f32.mrf.mxu0
      %879 = vmatprep.mubr.f32.mxu0 0.0
      %880 = vmatmul.mubr.f32.gmra.mxu0 %v704
      %v881 = vpop.f32.mrf.mxu0
      %v882 = vadd.f32 %v682, %v881
      %v883 = vpop.f32.mrf.mxu0
      %884 = vmatprep.mubr.f32.mxu0 0.0
      %885 = vmatmul.mubr.f32.gmra.mxu0 %v707
      %v886 = vpop.f32.mrf.mxu0
      %v887 = vadd.f32 %v682, %v886
      %v888 = vpop.f32.mrf.mxu0
      %889 = vmatprep.mubr.f32.mxu0 0.0
      %890 = vmatmul.mubr.f32.gmra.mxu0 %v710
      %v891 = vpop.f32.mrf.mxu0
      %v892 = vadd.f32 %v682, %v891
      %v893 = vpop.f32.mrf.mxu0
      %894 = vmatprep.mubr.f32.mxu0 0.0
      %895 = vmatmul.mubr.f32.gmra.mxu0 %v713
      %v896 = vpop.f32.mrf.mxu0
      %v897 = vadd.f32 %v682, %v896
      %v898 = vpop.f32.mrf.mxu0
      %899 = vmatprep.mubr.f32.mxu0 0.0
      %900 = vmatmul.mubr.f32.gmra.mxu0 %v716
      %v901 = vpop.f32.mrf.mxu0
      %v902 = vadd.f32 %v682, %v901
      %v903 = vpop.f32.mrf.mxu0
      %904 = vmatprep.mubr.f32.mxu0 0.0
      %905 = vmatmul.mubr.f32.gmra.mxu0 %v719
      %v906 = vpop.f32.mrf.mxu0
      %v907 = vadd.f32 %v682, %v906
      %v908 = vpop.f32.mrf.mxu0
      %909 = vmatprep.mubr.f32.mxu0 0.0
      %910 = vmatmul.mubr.f32.gmra.mxu0 %v722
      %v911 = vpop.f32.mrf.mxu0
      %v912 = vadd.f32 %v682, %v911
      %v913 = vpop.f32.mrf.mxu0
      %914 = vmatprep.mubr.f32.mxu0 0.0
      %915 = vmatmul.mubr.f32.gmra.mxu0 %v725
      %v916 = vpop.f32.mrf.mxu0
      %v917 = vadd.f32 %v682, %v916
      %v918 = vpop.f32.mrf.mxu0
      %919 = vmatprep.mubr.f32.mxu0 0.0
      %920 = vmatmul.mubr.f32.gmra.mxu0 %v728
      %v921 = vpop.f32.mrf.mxu0
      %v922 = vadd.f32 %v682, %v921
      %v923 = vpop.f32.mrf.mxu0
      %924 = vmatprep.mubr.f32.mxu0 0.0
      %925 = vmatmul.mubr.f32.gmra.mxu0 %v731
      %v926 = vpop.f32.mrf.mxu0
      %v927 = vadd.f32 %v682, %v926
      %v928 = vpop.f32.mrf.mxu0
      %929 = vmatprep.mubr.f32.mxu0 0.0
      %930 = vmatmul.mubr.f32.gmra.mxu0 %v734
      %v931 = vpop.f32.mrf.mxu0
      %v932 = vadd.f32 %v682, %v931
      %v933 = vpop.f32.mrf.mxu0
      %934 = vmatprep.mubr.f32.mxu0 0.0
      %935 = vmatmul.mubr.f32.gmra.mxu0 %v737
      %v936 = vpop.f32.mrf.mxu0
      %v937 = vadd.f32 %v682, %v936
      %v938 = vpop.f32.mrf.mxu0
      %939 = vmatprep.mubr.f32.mxu0 0.0
      %940 = vmatmul.mubr.f32.gmra.mxu0 %v740
      %v941 = vpop.f32.mrf.mxu0
      %v942 = vadd.f32 %v682, %v941
      %v943 = vpop.f32.mrf.mxu0
      %944 = vmatprep.mubr.f32.mxu0 0.0
      %945 = vmatmul.mubr.f32.gmra.mxu0 %v743
      %v946 = vpop.f32.mrf.mxu0
      %v947 = vadd.f32 %v682, %v946
      %v948 = vpop.f32.mrf.mxu0
      %949 = vmatprep.mubr.f32.mxu0 0.0
      %950 = vmatmul.mubr.f32.gmra.mxu0 %v746
      %v951 = vpop.f32.mrf.mxu0
      %v952 = vadd.f32 %v682, %v951
      %v953 = vpop.f32.mrf.mxu0
      %954 = vmatprep.mubr.f32.mxu0 0.0
      %955 = vmatmul.mubr.f32.gmra.mxu0 %v749
      %v956 = vpop.f32.mrf.mxu0
      %v957 = vadd.f32 %v682, %v956
      %v958 = vpop.f32.mrf.mxu0
      %959 = vmatprep.mubr.f32.mxu0 0.0
      %960 = vmatmul.mubr.f32.gmra.mxu0 %v752
      %v961 = vpop.f32.mrf.mxu0
      %v962 = vadd.f32 %v682, %v961
      %v963 = vpop.f32.mrf.mxu0
      %964 = vmatprep.mubr.f32.mxu0 0.0
      %965 = vmatmul.mubr.f32.gmra.mxu0 %v755
      %v966 = vpop.f32.mrf.mxu0
      %v967 = vadd.f32 %v682, %v966
      %v968 = vpop.f32.mrf.mxu0
      %969 = vmatprep.mubr.f32.mxu0 0.0
      %970 = vmatmul.mubr.f32.gmra.mxu0 %v758
      %v971 = vpop.f32.mrf.mxu0
      %v972 = vadd.f32 %v682, %v971
      %v973 = vpop.f32.mrf.mxu0
      %974 = vmatprep.mubr.f32.mxu0 0.0
      %975 = vmatmul.mubr.f32.gmra.mxu0 %v761
      %v976 = vpop.f32.mrf.mxu0
      %v977 = vadd.f32 %v682, %v976
      %v978 = vpop.f32.mrf.mxu0
      %979 = vmatprep.mubr.f32.mxu0 0.0
      %980 = vmatmul.mubr.f32.gmra.mxu0 %v764
      %v981 = vpop.f32.mrf.mxu0
      %v982 = vadd.f32 %v682, %v981
      %v983 = vpop.f32.mrf.mxu0
      %984 = vmatprep.mubr.f32.mxu0 0.0
      %985 = vmatmul.mubr.f32.gmra.mxu0 %v767
      %v986 = vpop.f32.mrf.mxu0
      %v987 = vadd.f32 %v682, %v986
      %v988 = vpop.f32.mrf.mxu0
      %989 = vmatprep.mubr.f32.mxu0 0.0
      %990 = vmatmul.mubr.f32.gmra.mxu0 %v770
      %v991 = vpop.f32.mrf.mxu0
      %v992 = vadd.f32 %v682, %v991
      %v993 = vpop.f32.mrf.mxu0
      %994 = vmatprep.mubr.f32.mxu0 0.0
      %995 = vmatmul.mubr.f32.gmra.mxu0 %v773
      %v996 = vpop.f32.mrf.mxu0
      %v997 = vadd.f32 %v682, %v996
      %v998 = vpop.f32.mrf.mxu0
      %999 = vmatprep.mubr.f32.mxu0 0.0
      %1000 = vmatmul.mubr.f32.gmra.mxu0 %v776
      %v1001 = vpop.f32.mrf.mxu0
      %v1002 = vadd.f32 %v682, %v1001
      %v1003 = vpop.f32.mrf.mxu0
      %1004 = vmatprep.mubr.f32.mxu0 0.0
      %1005 = vmatmul.mubr.f32.gmra.mxu0 %v779
      %v1006 = vpop.f32.mrf.mxu0
      %v1007 = vadd.f32 %v682, %v1006
      %v1008 = vpop.f32.mrf.mxu0
      %1009 = vdwg.mxu0
      %v1010 = vld [vmem:[%s4] sm:$0x1]
      %v1012 = vlaneseq
      %v1013 = vshrl.u32 %v1012, 7
      %v1014 = vsub.s32 0, %v1013
      %v1015 = vrot.slane %v1010, %v1014
      %v1017 = vmul.f32 %v644, %v1015
      %v1018 = vmul.f32 %v645, %v1015
      %v1019 = vmul.f32 %v646, %v1015
      %v1020 = vmul.f32 %v647, %v1015
      %v1021 = vmul.f32 %v648, %v1015
      %v1022 = vmul.f32 %v649, %v1015
      %v1023 = vmul.f32 %v650, %v1015
      %v1024 = vmul.f32 %v651, %v1015
      %v1025 = vmul.f32 %v652, %v1015
      %v1026 = vmul.f32 %v653, %v1015
      %v1027 = vmul.f32 %v654, %v1015
      %v1028 = vmul.f32 %v655, %v1015
      %v1029 = vmul.f32 %v656, %v1015
      %v1030 = vmul.f32 %v657, %v1015
      %v1031 = vmul.f32 %v658, %v1015
      %v1032 = vmul.f32 %v659, %v1015
      %v1033 = vmul.f32 %v660, %v1015
      %v1034 = vmul.f32 %v661, %v1015
      %v1035 = vmul.f32 %v662, %v1015
      %v1036 = vmul.f32 %v663, %v1015
      %v1037 = vmul.f32 %v664, %v1015
      %v1038 = vmul.f32 %v665, %v1015
      %v1039 = vmul.f32 %v666, %v1015
      %v1040 = vmul.f32 %v667, %v1015
      %v1041 = vmul.f32 %v668, %v1015
      %v1042 = vmul.f32 %v669, %v1015
      %v1043 = vmul.f32 %v670, %v1015
      %v1044 = vmul.f32 %v671, %v1015
      %v1045 = vmul.f32 %v672, %v1015
      %v1046 = vmul.f32 %v673, %v1015
      %v1047 = vmul.f32 %v674, %v1015
      %v1048 = vmul.f32 %v675, %v1015
      %v1049 = vld [vmem:[%s5] sm:$0x1]
      %v1051 = vlaneseq
      %v1052 = vshrl.u32 %v1051, 7
      %v1053 = vsub.s32 0, %v1052
      %v1054 = vrot.slane %v1049, %v1053
      %v1056 = vadd.f32 %v1017, %v1054
      %v1057 = vadd.f32 %v1018, %v1054
      %v1058 = vadd.f32 %v1019, %v1054
      %v1059 = vadd.f32 %v1020, %v1054
      %v1060 = vadd.f32 %v1021, %v1054
      %v1061 = vadd.f32 %v1022, %v1054
      %v1062 = vadd.f32 %v1023, %v1054
      %v1063 = vadd.f32 %v1024, %v1054
      %v1064 = vadd.f32 %v1025, %v1054
      %v1065 = vadd.f32 %v1026, %v1054
      %v1066 = vadd.f32 %v1027, %v1054
      %v1067 = vadd.f32 %v1028, %v1054
      %v1068 = vadd.f32 %v1029, %v1054
      %v1069 = vadd.f32 %v1030, %v1054
      %v1070 = vadd.f32 %v1031, %v1054
      %v1071 = vadd.f32 %v1032, %v1054
      %v1072 = vadd.f32 %v1033, %v1054
      %v1073 = vadd.f32 %v1034, %v1054
      %v1074 = vadd.f32 %v1035, %v1054
      %v1075 = vadd.f32 %v1036, %v1054
      %v1076 = vadd.f32 %v1037, %v1054
      %v1077 = vadd.f32 %v1038, %v1054
      %v1078 = vadd.f32 %v1039, %v1054
      %v1079 = vadd.f32 %v1040, %v1054
      %v1080 = vadd.f32 %v1041, %v1054
      %v1081 = vadd.f32 %v1042, %v1054
      %v1082 = vadd.f32 %v1043, %v1054
      %v1083 = vadd.f32 %v1044, %v1054
      %v1084 = vadd.f32 %v1045, %v1054
      %v1085 = vadd.f32 %v1046, %v1054
      %v1086 = vadd.f32 %v1047, %v1054
      %v1087 = vadd.f32 %v1048, %v1054
      %v1088 = vmax.f32 %v1056, 0.0
      %v1089 = vmax.f32 %v1057, 0.0
      %v1090 = vmax.f32 %v1058, 0.0
      %v1091 = vmax.f32 %v1059, 0.0
      %v1092 = vmax.f32 %v1060, 0.0
      %v1093 = vmax.f32 %v1061, 0.0
      %v1094 = vmax.f32 %v1062, 0.0
      %v1095 = vmax.f32 %v1063, 0.0
      %v1096 = vmax.f32 %v1064, 0.0
      %v1097 = vmax.f32 %v1065, 0.0
      %v1098 = vmax.f32 %v1066, 0.0
      %v1099 = vmax.f32 %v1067, 0.0
      %v1100 = vmax.f32 %v1068, 0.0
      %v1101 = vmax.f32 %v1069, 0.0
      %v1102 = vmax.f32 %v1070, 0.0
      %v1103 = vmax.f32 %v1071, 0.0
      %v1104 = vmax.f32 %v1072, 0.0
      %v1105 = vmax.f32 %v1073, 0.0
      %v1106 = vmax.f32 %v1074, 0.0
      %v1107 = vmax.f32 %v1075, 0.0
      %v1108 = vmax.f32 %v1076, 0.0
      %v1109 = vmax.f32 %v1077, 0.0
      %v1110 = vmax.f32 %v1078, 0.0
      %v1111 = vmax.f32 %v1079, 0.0
      %v1112 = vmax.f32 %v1080, 0.0
      %v1113 = vmax.f32 %v1081, 0.0
      %v1114 = vmax.f32 %v1082, 0.0
      %v1115 = vmax.f32 %v1083, 0.0
      %v1116 = vmax.f32 %v1084, 0.0
      %v1117 = vmax.f32 %v1085, 0.0
      %v1118 = vmax.f32 %v1086, 0.0
      %v1119 = vmax.f32 %v1087, 0.0
      %vm1152 = vcmask 1040384
      %v1153 = vrot.slane %v1088, 7
      %v1154 = vrot.slane %v1089, 7
      %v1155 = vsel %vm1152, %v1153, %v1154
      %v1156 = vrot.slane %v1090, 7
      %v1157 = vrot.slane %v1091, 7
      %v1158 = vsel %vm1152, %v1156, %v1157
      %v1159 = vrot.slane %v1092, 7
      %v1160 = vrot.slane %v1093, 7
      %v1161 = vsel %vm1152, %v1159, %v1160
      %v1162 = vrot.slane %v1094, 7
      %v1163 = vrot.slane %v1095, 7
      %v1164 = vsel %vm1152, %v1162, %v1163
      %v1165 = vrot.slane %v1096, 7
      %v1166 = vrot.slane %v1097, 7
      %v1167 = vsel %vm1152, %v1165, %v1166
      %v1168 = vrot.slane %v1098, 7
      %v1169 = vrot.slane %v1099, 7
      %v1170 = vsel %vm1152, %v1168, %v1169
      %v1171 = vrot.slane %v1100, 7
      %v1172 = vrot.slane %v1101, 7
      %v1173 = vsel %vm1152, %v1171, %v1172
      %v1174 = vrot.slane %v1102, 7
      %v1175 = vrot.slane %v1103, 7
      %v1176 = vsel %vm1152, %v1174, %v1175
      %v1177 = vrot.slane %v1104, 7
      %v1178 = vrot.slane %v1105, 7
      %v1179 = vsel %vm1152, %v1177, %v1178
      %v1180 = vrot.slane %v1106, 7
      %v1181 = vrot.slane %v1107, 7
      %v1182 = vsel %vm1152, %v1180, %v1181
      %v1183 = vrot.slane %v1108, 7
      %v1184 = vrot.slane %v1109, 7
      %v1185 = vsel %vm1152, %v1183, %v1184
      %v1186 = vrot.slane %v1110, 7
      %v1187 = vrot.slane %v1111, 7
      %v1188 = vsel %vm1152, %v1186, %v1187
      %v1189 = vrot.slane %v1112, 7
      %v1190 = vrot.slane %v1113, 7
      %v1191 = vsel %vm1152, %v1189, %v1190
      %v1192 = vrot.slane %v1114, 7
      %v1193 = vrot.slane %v1115, 7
      %v1194 = vsel %vm1152, %v1192, %v1193
      %v1195 = vrot.slane %v1116, 7
      %v1196 = vrot.slane %v1117, 7
      %v1197 = vsel %vm1152, %v1195, %v1196
      %v1198 = vrot.slane %v1118, 7
      %v1199 = vrot.slane %v1119, 7
      %v1200 = vsel %vm1152, %v1198, %v1199
      %v1248 = vsel %vm1152, 0.0, %v1153
      %v1249 = vsel %vm1152, 0.0, %v1156
      %v1250 = vsel %vm1152, 0.0, %v1159
      %v1251 = vsel %vm1152, 0.0, %v1162
      %v1252 = vsel %vm1152, 0.0, %v1165
      %v1253 = vsel %vm1152, 0.0, %v1168
      %v1254 = vsel %vm1152, 0.0, %v1171
      %v1255 = vsel %vm1152, 0.0, %v1174
      %v1256 = vsel %vm1152, 0.0, %v1177
      %v1257 = vsel %vm1152, 0.0, %v1180
      %v1258 = vsel %vm1152, 0.0, %v1183
      %v1259 = vsel %vm1152, 0.0, %v1186
      %v1260 = vsel %vm1152, 0.0, %v1189
      %v1261 = vsel %vm1152, 0.0, %v1192
      %v1262 = vsel %vm1152, 0.0, %v1195
      %v1263 = vsel %vm1152, 0.0, %v1198
      %v1264 = vsel %vm1152, %v1154, 0.0
      %v1265 = vsel %vm1152, %v1157, 0.0
      %v1266 = vsel %vm1152, %v1160, 0.0
      %v1267 = vsel %vm1152, %v1163, 0.0
      %v1268 = vsel %vm1152, %v1166, 0.0
      %v1269 = vsel %vm1152, %v1169, 0.0
      %v1270 = vsel %vm1152, %v1172, 0.0
      %v1271 = vsel %vm1152, %v1175, 0.0
      %v1272 = vsel %vm1152, %v1178, 0.0
      %v1273 = vsel %vm1152, %v1181, 0.0
      %v1274 = vsel %vm1152, %v1184, 0.0
      %v1275 = vsel %vm1152, %v1187, 0.0
      %v1276 = vsel %vm1152, %v1190, 0.0
      %v1277 = vsel %vm1152, %v1193, 0.0
      %v1278 = vsel %vm1152, %v1196, 0.0
      %v1279 = vsel %vm1152, %v1199, 0.0
      %vm1311 = vcmask 1046528
      %v1312 = vrot.slane 0.0, 1
      %v1313 = vsel %vm1311, %v1312, %v1312
      %v1314 = vrot.slane %v1248, 1
      %v1315 = vrot.slane %v1155, 1
      %v1316 = vsel %vm1311, %v1314, %v1315
      %v1317 = vrot.slane %v1264, 1
      %v1318 = vsel %vm1311, %v1315, %v1317
      %v1319 = vrot.slane %v1249, 1
      %v1320 = vrot.slane %v1158, 1
      %v1321 = vsel %vm1311, %v1319, %v1320
      %v1322 = vrot.slane %v1265, 1
      %v1323 = vsel %vm1311, %v1320, %v1322
      %v1324 = vrot.slane %v1250, 1
      %v1325 = vrot.slane %v1161, 1
      %v1326 = vsel %vm1311, %v1324, %v1325
      %v1327 = vrot.slane %v1266, 1
      %v1328 = vsel %vm1311, %v1325, %v1327
      %v1329 = vrot.slane %v1251, 1
      %v1330 = vrot.slane %v1164, 1
      %v1331 = vsel %vm1311, %v1329, %v1330
      %v1332 = vrot.slane %v1267, 1
      %v1333 = vsel %vm1311, %v1330, %v1332
      %v1334 = vrot.slane %v1252, 1
      %v1335 = vrot.slane %v1167, 1
      %v1336 = vsel %vm1311, %v1334, %v1335
      %v1337 = vrot.slane %v1268, 1
      %v1338 = vsel %vm1311, %v1335, %v1337
      %v1339 = vrot.slane %v1253, 1
      %v1340 = vrot.slane %v1170, 1
      %v1341 = vsel %vm1311, %v1339, %v1340
      %v1342 = vrot.slane %v1269, 1
      %v1343 = vsel %vm1311, %v1340, %v1342
      %v1344 = vrot.slane %v1254, 1
      %v1345 = vrot.slane %v1173, 1
      %v1346 = vsel %vm1311, %v1344, %v1345
      %v1347 = vrot.slane %v1270, 1
      %v1348 = vsel %vm1311, %v1345, %v1347
      %v1349 = vrot.slane %v1255, 1
      %v1350 = vrot.slane %v1176, 1
      %v1351 = vsel %vm1311, %v1349, %v1350
      %v1352 = vrot.slane %v1271, 1
      %v1353 = vsel %vm1311, %v1350, %v1352
      %v1354 = vrot.slane %v1256, 1
      %v1355 = vrot.slane %v1179, 1
      %v1356 = vsel %vm1311, %v1354, %v1355
      %v1357 = vrot.slane %v1272, 1
      %v1358 = vsel %vm1311, %v1355, %v1357
      %v1359 = vrot.slane %v1257, 1
      %v1360 = vrot.slane %v1182, 1
      %v1361 = vsel %vm1311, %v1359, %v1360
      %v1362 = vrot.slane %v1273, 1
      %v1363 = vsel %vm1311, %v1360, %v1362
      %v1364 = vrot.slane %v1258, 1
      %v1365 = vrot.slane %v1185, 1
      %v1366 = vsel %vm1311, %v1364, %v1365
      %v1367 = vrot.slane %v1274, 1
      %v1368 = vsel %vm1311, %v1365, %v1367
      %v1369 = vrot.slane %v1259, 1
      %v1370 = vrot.slane %v1188, 1
      %v1371 = vsel %vm1311, %v1369, %v1370
      %v1372 = vrot.slane %v1275, 1
      %v1373 = vsel %vm1311, %v1370, %v1372
      %v1374 = vrot.slane %v1260, 1
      %v1375 = vrot.slane %v1191, 1
      %v1376 = vsel %vm1311, %v1374, %v1375
      %v1377 = vrot.slane %v1276, 1
      %v1378 = vsel %vm1311, %v1375, %v1377
      %v1379 = vrot.slane %v1261, 1
      %v1380 = vrot.slane %v1194, 1
      %v1381 = vsel %vm1311, %v1379, %v1380
      %v1382 = vrot.slane %v1277, 1
      %v1383 = vsel %vm1311, %v1380, %v1382
      %v1384 = vrot.slane %v1262, 1
      %v1385 = vrot.slane %v1197, 1
      %v1386 = vsel %vm1311, %v1384, %v1385
      %v1387 = vrot.slane %v1278, 1
      %v1388 = vsel %vm1311, %v1385, %v1387
      %1389 = vrot.lane.b32.xlu0 %v1313, 4
      %v1390 = vpop.permute.xlu0 %1389
      %1391 = vrot.lane.b32.xlu0 %v1316, 4
      %v1392 = vpop.permute.xlu0 %1391
      %1393 = vrot.lane.b32.xlu0 %v1318, 4
      %v1394 = vpop.permute.xlu0 %1393
      %1395 = vrot.lane.b32.xlu0 %v1321, 4
      %v1396 = vpop.permute.xlu0 %1395
      %1397 = vrot.lane.b32.xlu0 %v1323, 4
      %v1398 = vpop.permute.xlu0 %1397
      %1399 = vrot.lane.b32.xlu0 %v1326, 4
      %v1400 = vpop.permute.xlu0 %1399
      %1401 = vrot.lane.b32.xlu0 %v1328, 4
      %v1402 = vpop.permute.xlu0 %1401
      %1403 = vrot.lane.b32.xlu0 %v1331, 4
      %v1404 = vpop.permute.xlu0 %1403
      %1405 = vrot.lane.b32.xlu0 %v1333, 4
      %v1406 = vpop.permute.xlu0 %1405
      %1407 = vrot.lane.b32.xlu0 %v1336, 4
      %v1408 = vpop.permute.xlu0 %1407
      %1409 = vrot.lane.b32.xlu0 %v1338, 4
      %v1410 = vpop.permute.xlu0 %1409
      %1411 = vrot.lane.b32.xlu0 %v1341, 4
      %v1412 = vpop.permute.xlu0 %1411
      %1413 = vrot.lane.b32.xlu0 %v1343, 4
      %v1414 = vpop.permute.xlu0 %1413
      %1415 = vrot.lane.b32.xlu0 %v1346, 4
      %v1416 = vpop.permute.xlu0 %1415
      %1417 = vrot.lane.b32.xlu0 %v1348, 4
      %v1418 = vpop.permute.xlu0 %1417
      %1419 = vrot.lane.b32.xlu0 %v1351, 4
      %v1420 = vpop.permute.xlu0 %1419
      %1421 = vrot.lane.b32.xlu0 %v1353, 4
      %v1422 = vpop.permute.xlu0 %1421
      %1423 = vrot.lane.b32.xlu0 %v1356, 4
      %v1424 = vpop.permute.xlu0 %1423
      %1425 = vrot.lane.b32.xlu0 %v1358, 4
      %v1426 = vpop.permute.xlu0 %1425
      %1427 = vrot.lane.b32.xlu0 %v1361, 4
      %v1428 = vpop.permute.xlu0 %1427
      %1429 = vrot.lane.b32.xlu0 %v1363, 4
      %v1430 = vpop.permute.xlu0 %1429
      %1431 = vrot.lane.b32.xlu0 %v1366, 4
      %v1432 = vpop.permute.xlu0 %1431
      %1433 = vrot.lane.b32.xlu0 %v1368, 4
      %v1434 = vpop.permute.xlu0 %1433
      %1435 = vrot.lane.b32.xlu0 %v1371, 4
      %v1436 = vpop.permute.xlu0 %1435
      %1437 = vrot.lane.b32.xlu0 %v1373, 4
      %v1438 = vpop.permute.xlu0 %1437
      %1439 = vrot.lane.b32.xlu0 %v1376, 4
      %v1440 = vpop.permute.xlu0 %1439
      %1441 = vrot.lane.b32.xlu0 %v1378, 4
      %v1442 = vpop.permute.xlu0 %1441
      %1443 = vrot.lane.b32.xlu0 %v1381, 4
      %v1444 = vpop.permute.xlu0 %1443
      %1445 = vrot.lane.b32.xlu0 %v1383, 4
      %v1446 = vpop.permute.xlu0 %1445
      %1447 = vrot.lane.b32.xlu0 %v1386, 4
      %v1448 = vpop.permute.xlu0 %1447
      %1449 = vrot.lane.b32.xlu0 %v1388, 4
      %v1450 = vpop.permute.xlu0 %1449
      %vm1482 = vcmask 1045504
      %v1483 = vrot.slane 0.0, 2
      %v1484 = vsel %vm1482, %v1483, %v1483
      %v1485 = vrot.slane %v1248, 2
      %v1486 = vrot.slane %v1155, 2
      %v1487 = vsel %vm1482, %v1485, %v1486
      %v1488 = vrot.slane %v1264, 2
      %v1489 = vsel %vm1482, %v1486, %v1488
      %v1490 = vrot.slane %v1249, 2
      %v1491 = vrot.slane %v1158, 2
      %v1492 = vsel %vm1482, %v1490, %v1491
      %v1493 = vrot.slane %v1265, 2
      %v1494 = vsel %vm1482, %v1491, %v1493
      %v1495 = vrot.slane %v1250, 2
      %v1496 = vrot.slane %v1161, 2
      %v1497 = vsel %vm1482, %v1495, %v1496
      %v1498 = vrot.slane %v1266, 2
      %v1499 = vsel %vm1482, %v1496, %v1498
      %v1500 = vrot.slane %v1251, 2
      %v1501 = vrot.slane %v1164, 2
      %v1502 = vsel %vm1482, %v1500, %v1501
      %v1503 = vrot.slane %v1267, 2
      %v1504 = vsel %vm1482, %v1501, %v1503
      %v1505 = vrot.slane %v1252, 2
      %v1506 = vrot.slane %v1167, 2
      %v1507 = vsel %vm1482, %v1505, %v1506
      %v1508 = vrot.slane %v1268, 2
      %v1509 = vsel %vm1482, %v1506, %v1508
      %v1510 = vrot.slane %v1253, 2
      %v1511 = vrot.slane %v1170, 2
      %v1512 = vsel %vm1482, %v1510, %v1511
      %v1513 = vrot.slane %v1269, 2
      %v1514 = vsel %vm1482, %v1511, %v1513
      %v1515 = vrot.slane %v1254, 2
      %v1516 = vrot.slane %v1173, 2
      %v1517 = vsel %vm1482, %v1515, %v1516
      %v1518 = vrot.slane %v1270, 2
      %v1519 = vsel %vm1482, %v1516, %v1518
      %v1520 = vrot.slane %v1255, 2
      %v1521 = vrot.slane %v1176, 2
      %v1522 = vsel %vm1482, %v1520, %v1521
      %v1523 = vrot.slane %v1271, 2
      %v1524 = vsel %vm1482, %v1521, %v1523
      %v1525 = vrot.slane %v1256, 2
      %v1526 = vrot.slane %v1179, 2
      %v1527 = vsel %vm1482, %v1525, %v1526
      %v1528 = vrot.slane %v1272, 2
      %v1529 = vsel %vm1482, %v1526, %v1528
      %v1530 = vrot.slane %v1257, 2
      %v1531 = vrot.slane %v1182, 2
      %v1532 = vsel %vm1482, %v1530, %v1531
      %v1533 = vrot.slane %v1273, 2
      %v1534 = vsel %vm1482, %v1531, %v1533
      %v1535 = vrot.slane %v1258, 2
      %v1536 = vrot.slane %v1185, 2
      %v1537 = vsel %vm1482, %v1535, %v1536
      %v1538 = vrot.slane %v1274, 2
      %v1539 = vsel %vm1482, %v1536, %v1538
      %v1540 = vrot.slane %v1259, 2
      %v1541 = vrot.slane %v1188, 2
      %v1542 = vsel %vm1482, %v1540, %v1541
      %v1543 = vrot.slane %v1275, 2
      %v1544 = vsel %vm1482, %v1541, %v1543
      %v1545 = vrot.slane %v1260, 2
      %v1546 = vrot.slane %v1191, 2
      %v1547 = vsel %vm1482, %v1545, %v1546
      %v1548 = vrot.slane %v1276, 2
      %v1549 = vsel %vm1482, %v1546, %v1548
      %v1550 = vrot.slane %v1261, 2
      %v1551 = vrot.slane %v1194, 2
      %v1552 = vsel %vm1482, %v1550, %v1551
      %v1553 = vrot.slane %v1277, 2
      %v1554 = vsel %vm1482, %v1551, %v1553
      %v1555 = vrot.slane %v1262, 2
      %v1556 = vrot.slane %v1197, 2
      %v1557 = vsel %vm1482, %v1555, %v1556
      %v1558 = vrot.slane %v1278, 2
      %v1559 = vsel %vm1482, %v1556, %v1558
      %1560 = vrot.lane.b32.xlu0 %v1484, 8
      %v1561 = vpop.permute.xlu0 %1560
      %1562 = vrot.lane.b32.xlu0 %v1487, 8
      %v1563 = vpop.permute.xlu0 %1562
      %1564 = vrot.lane.b32.xlu0 %v1489, 8
      %v1565 = vpop.permute.xlu0 %1564
      %1566 = vrot.lane.b32.xlu0 %v1492, 8
      %v1567 = vpop.permute.xlu0 %1566
      %1568 = vrot.lane.b32.xlu0 %v1494, 8
      %v1569 = vpop.permute.xlu0 %1568
      %1570 = vrot.lane.b32.xlu0 %v1497, 8
      %v1571 = vpop.permute.xlu0 %1570
      %1572 = vrot.lane.b32.xlu0 %v1499, 8
      %v1573 = vpop.permute.xlu0 %1572
      %1574 = vrot.lane.b32.xlu0 %v1502, 8
      %v1575 = vpop.permute.xlu0 %1574
      %1576 = vrot.lane.b32.xlu0 %v1504, 8
      %v1577 = vpop.permute.xlu0 %1576
      %1578 = vrot.lane.b32.xlu0 %v1507, 8
      %v1579 = vpop.permute.xlu0 %1578
      %1580 = vrot.lane.b32.xlu0 %v1509, 8
      %v1581 = vpop.permute.xlu0 %1580
      %1582 = vrot.lane.b32.xlu0 %v1512, 8
      %v1583 = vpop.permute.xlu0 %1582
      %1584 = vrot.lane.b32.xlu0 %v1514, 8
      %v1585 = vpop.permute.xlu0 %1584
      %1586 = vrot.lane.b32.xlu0 %v1517, 8
      %v1587 = vpop.permute.xlu0 %1586
      %1588 = vrot.lane.b32.xlu0 %v1519, 8
      %v1589 = vpop.permute.xlu0 %1588
      %1590 = vrot.lane.b32.xlu0 %v1522, 8
      %v1591 = vpop.permute.xlu0 %1590
      %1592 = vrot.lane.b32.xlu0 %v1524, 8
      %v1593 = vpop.permute.xlu0 %1592
      %1594 = vrot.lane.b32.xlu0 %v1527, 8
      %v1595 = vpop.permute.xlu0 %1594
      %1596 = vrot.lane.b32.xlu0 %v1529, 8
      %v1597 = vpop.permute.xlu0 %1596
      %1598 = vrot.lane.b32.xlu0 %v1532, 8
      %v1599 = vpop.permute.xlu0 %1598
      %1600 = vrot.lane.b32.xlu0 %v1534, 8
      %v1601 = vpop.permute.xlu0 %1600
      %1602 = vrot.lane.b32.xlu0 %v1537, 8
      %v1603 = vpop.permute.xlu0 %1602
      %1604 = vrot.lane.b32.xlu0 %v1539, 8
      %v1605 = vpop.permute.xlu0 %1604
      %1606 = vrot.lane.b32.xlu0 %v1542, 8
      %v1607 = vpop.permute.xlu0 %1606
      %1608 = vrot.lane.b32.xlu0 %v1544, 8
      %v1609 = vpop.permute.xlu0 %1608
      %1610 = vrot.lane.b32.xlu0 %v1547, 8
      %v1611 = vpop.permute.xlu0 %1610
      %1612 = vrot.lane.b32.xlu0 %v1549, 8
      %v1613 = vpop.permute.xlu0 %1612
      %1614 = vrot.lane.b32.xlu0 %v1552, 8
      %v1615 = vpop.permute.xlu0 %1614
      %1616 = vrot.lane.b32.xlu0 %v1554, 8
      %v1617 = vpop.permute.xlu0 %1616
      %1618 = vrot.lane.b32.xlu0 %v1557, 8
      %v1619 = vpop.permute.xlu0 %1618
      %1620 = vrot.lane.b32.xlu0 %v1559, 8
      %v1621 = vpop.permute.xlu0 %1620
      %1654 = vrot.lane.b32.xlu0 %v1248, 12
      %v1655 = vpop.permute.xlu0 %1654
      %1656 = vrot.lane.b32.xlu0 %v1155, 12
      %v1657 = vpop.permute.xlu0 %1656
      %1658 = vrot.lane.b32.xlu0 %v1249, 12
      %v1659 = vpop.permute.xlu0 %1658
      %1660 = vrot.lane.b32.xlu0 %v1158, 12
      %v1661 = vpop.permute.xlu0 %1660
      %1662 = vrot.lane.b32.xlu0 %v1250, 12
      %v1663 = vpop.permute.xlu0 %1662
      %1664 = vrot.lane.b32.xlu0 %v1161, 12
      %v1665 = vpop.permute.xlu0 %1664
      %1666 = vrot.lane.b32.xlu0 %v1251, 12
      %v1667 = vpop.permute.xlu0 %1666
      %1668 = vrot.lane.b32.xlu0 %v1164, 12
      %v1669 = vpop.permute.xlu0 %1668
      %1670 = vrot.lane.b32.xlu0 %v1252, 12
      %v1671 = vpop.permute.xlu0 %1670
      %1672 = vrot.lane.b32.xlu0 %v1167, 12
      %v1673 = vpop.permute.xlu0 %1672
      %1674 = vrot.lane.b32.xlu0 %v1253, 12
      %v1675 = vpop.permute.xlu0 %1674
      %1676 = vrot.lane.b32.xlu0 %v1170, 12
      %v1677 = vpop.permute.xlu0 %1676
      %1678 = vrot.lane.b32.xlu0 %v1254, 12
      %v1679 = vpop.permute.xlu0 %1678
      %1680 = vrot.lane.b32.xlu0 %v1173, 12
      %v1681 = vpop.permute.xlu0 %1680
      %1682 = vrot.lane.b32.xlu0 %v1255, 12
      %v1683 = vpop.permute.xlu0 %1682
      %1684 = vrot.lane.b32.xlu0 %v1176, 12
      %v1685 = vpop.permute.xlu0 %1684
      %1686 = vrot.lane.b32.xlu0 %v1256, 12
      %v1687 = vpop.permute.xlu0 %1686
      %1688 = vrot.lane.b32.xlu0 %v1179, 12
      %v1689 = vpop.permute.xlu0 %1688
      %1690 = vrot.lane.b32.xlu0 %v1257, 12
      %v1691 = vpop.permute.xlu0 %1690
      %1692 = vrot.lane.b32.xlu0 %v1182, 12
      %v1693 = vpop.permute.xlu0 %1692
      %1694 = vrot.lane.b32.xlu0 %v1258, 12
      %v1695 = vpop.permute.xlu0 %1694
      %1696 = vrot.lane.b32.xlu0 %v1185, 12
      %v1697 = vpop.permute.xlu0 %1696
      %1698 = vrot.lane.b32.xlu0 %v1259, 12
      %v1699 = vpop.permute.xlu0 %1698
      %1700 = vrot.lane.b32.xlu0 %v1188, 12
      %v1701 = vpop.permute.xlu0 %1700
      %1702 = vrot.lane.b32.xlu0 %v1260, 12
      %v1703 = vpop.permute.xlu0 %1702
      %1704 = vrot.lane.b32.xlu0 %v1191, 12
      %v1705 = vpop.permute.xlu0 %1704
      %1706 = vrot.lane.b32.xlu0 %v1261, 12
      %v1707 = vpop.permute.xlu0 %1706
      %1708 = vrot.lane.b32.xlu0 %v1194, 12
      %v1709 = vpop.permute.xlu0 %1708
      %1710 = vrot.lane.b32.xlu0 %v1262, 12
      %v1711 = vpop.permute.xlu0 %1710
      %1712 = vrot.lane.b32.xlu0 %v1197, 12
      %v1713 = vpop.permute.xlu0 %1712
      %1714 = vrot.lane.b32.xlu0 %v1263, 12
      %v1715 = vpop.permute.xlu0 %1714
      %1716 = vrot.lane.b32.xlu0 %v1200, 12
      %v1717 = vpop.permute.xlu0 %1716
      %v1751 = vrot.slane %v1263, 1
      %v1752 = vrot.slane %v1200, 1
      %v1753 = vsel %vm1311, %v1751, %v1752
      %v1754 = vrot.slane %v1279, 1
      %v1755 = vsel %vm1311, %v1752, %v1754
      %1756 = vrot.lane.b32.xlu0 %v1316, 16
      %v1757 = vpop.permute.xlu0 %1756
      %1758 = vrot.lane.b32.xlu0 %v1318, 16
      %v1759 = vpop.permute.xlu0 %1758
      %1760 = vrot.lane.b32.xlu0 %v1321, 16
      %v1761 = vpop.permute.xlu0 %1760
      %1762 = vrot.lane.b32.xlu0 %v1323, 16
      %v1763 = vpop.permute.xlu0 %1762
      %1764 = vrot.lane.b32.xlu0 %v1326, 16
      %v1765 = vpop.permute.xlu0 %1764
      %1766 = vrot.lane.b32.xlu0 %v1328, 16
      %v1767 = vpop.permute.xlu0 %1766
      %1768 = vrot.lane.b32.xlu0 %v1331, 16
      %v1769 = vpop.permute.xlu0 %1768
      %1770 = vrot.lane.b32.xlu0 %v1333, 16
      %v1771 = vpop.permute.xlu0 %1770
      %1772 = vrot.lane.b32.xlu0 %v1336, 16
      %v1773 = vpop.permute.xlu0 %1772
      %1774 = vrot.lane.b32.xlu0 %v1338, 16
      %v1775 = vpop.permute.xlu0 %1774
      %1776 = vrot.lane.b32.xlu0 %v1341, 16
      %v1777 = vpop.permute.xlu0 %1776
      %1778 = vrot.lane.b32.xlu0 %v1343, 16
      %v1779 = vpop.permute.xlu0 %1778
      %1780 = vrot.lane.b32.xlu0 %v1346, 16
      %v1781 = vpop.permute.xlu0 %1780
      %1782 = vrot.lane.b32.xlu0 %v1348, 16
      %v1783 = vpop.permute.xlu0 %1782
      %1784 = vrot.lane.b32.xlu0 %v1351, 16
      %v1785 = vpop.permute.xlu0 %1784
      %1786 = vrot.lane.b32.xlu0 %v1353, 16
      %v1787 = vpop.permute.xlu0 %1786
      %1788 = vrot.lane.b32.xlu0 %v1356, 16
      %v1789 = vpop.permute.xlu0 %1788
      %1790 = vrot.lane.b32.xlu0 %v1358, 16
      %v1791 = vpop.permute.xlu0 %1790
      %1792 = vrot.lane.b32.xlu0 %v1361, 16
      %v1793 = vpop.permute.xlu0 %1792
      %1794 = vrot.lane.b32.xlu0 %v1363, 16
      %v1795 = vpop.permute.xlu0 %1794
      %1796 = vrot.lane.b32.xlu0 %v1366, 16
      %v1797 = vpop.permute.xlu0 %1796
      %1798 = vrot.lane.b32.xlu0 %v1368, 16
      %v1799 = vpop.permute.xlu0 %1798
      %1800 = vrot.lane.b32.xlu0 %v1371, 16
      %v1801 = vpop.permute.xlu0 %1800
      %1802 = vrot.lane.b32.xlu0 %v1373, 16
      %v1803 = vpop.permute.xlu0 %1802
      %1804 = vrot.lane.b32.xlu0 %v1376, 16
      %v1805 = vpop.permute.xlu0 %1804
      %1806 = vrot.lane.b32.xlu0 %v1378, 16
      %v1807 = vpop.permute.xlu0 %1806
      %1808 = vrot.lane.b32.xlu0 %v1381, 16
      %v1809 = vpop.permute.xlu0 %1808
      %1810 = vrot.lane.b32.xlu0 %v1383, 16
      %v1811 = vpop.permute.xlu0 %1810
      %1812 = vrot.lane.b32.xlu0 %v1386, 16
      %v1813 = vpop.permute.xlu0 %1812
      %1814 = vrot.lane.b32.xlu0 %v1388, 16
      %v1815 = vpop.permute.xlu0 %1814
      %1816 = vrot.lane.b32.xlu0 %v1753, 16
      %v1817 = vpop.permute.xlu0 %1816
      %1818 = vrot.lane.b32.xlu0 %v1755, 16
      %v1819 = vpop.permute.xlu0 %1818
      %v1852 = vrot.slane %v1263, 2
      %v1853 = vrot.slane %v1200, 2
      %v1854 = vsel %vm1482, %v1852, %v1853
      %v1855 = vrot.slane %v1279, 2
      %v1856 = vsel %vm1482, %v1853, %v1855
      %1857 = vrot.lane.b32.xlu0 %v1487, 20
      %v1858 = vpop.permute.xlu0 %1857
      %1859 = vrot.lane.b32.xlu0 %v1489, 20
      %v1860 = vpop.permute.xlu0 %1859
      %1861 = vrot.lane.b32.xlu0 %v1492, 20
      %v1862 = vpop.permute.xlu0 %1861
      %1863 = vrot.lane.b32.xlu0 %v1494, 20
      %v1864 = vpop.permute.xlu0 %1863
      %1865 = vrot.lane.b32.xlu0 %v1497, 20
      %v1866 = vpop.permute.xlu0 %1865
      %1867 = vrot.lane.b32.xlu0 %v1499, 20
      %v1868 = vpop.permute.xlu0 %1867
      %1869 = vrot.lane.b32.xlu0 %v1502, 20
      %v1870 = vpop.permute.xlu0 %1869
      %1871 = vrot.lane.b32.xlu0 %v1504, 20
      %v1872 = vpop.permute.xlu0 %1871
      %1873 = vrot.lane.b32.xlu0 %v1507, 20
      %v1874 = vpop.permute.xlu0 %1873
      %1875 = vrot.lane.b32.xlu0 %v1509, 20
      %v1876 = vpop.permute.xlu0 %1875
      %1877 = vrot.lane.b32.xlu0 %v1512, 20
      %v1878 = vpop.permute.xlu0 %1877
      %1879 = vrot.lane.b32.xlu0 %v1514, 20
      %v1880 = vpop.permute.xlu0 %1879
      %1881 = vrot.lane.b32.xlu0 %v1517, 20
      %v1882 = vpop.permute.xlu0 %1881
      %1883 = vrot.lane.b32.xlu0 %v1519, 20
      %v1884 = vpop.permute.xlu0 %1883
      %1885 = vrot.lane.b32.xlu0 %v1522, 20
      %v1886 = vpop.permute.xlu0 %1885
      %1887 = vrot.lane.b32.xlu0 %v1524, 20
      %v1888 = vpop.permute.xlu0 %1887
      %1889 = vrot.lane.b32.xlu0 %v1527, 20
      %v1890 = vpop.permute.xlu0 %1889
      %1891 = vrot.lane.b32.xlu0 %v1529, 20
      %v1892 = vpop.permute.xlu0 %1891
      %1893 = vrot.lane.b32.xlu0 %v1532, 20
      %v1894 = vpop.permute.xlu0 %1893
      %1895 = vrot.lane.b32.xlu0 %v1534, 20
      %v1896 = vpop.permute.xlu0 %1895
      %1897 = vrot.lane.b32.xlu0 %v1537, 20
      %v1898 = vpop.permute.xlu0 %1897
      %1899 = vrot.lane.b32.xlu0 %v1539, 20
      %v1900 = vpop.permute.xlu0 %1899
      %1901 = vrot.lane.b32.xlu0 %v1542, 20
      %v1902 = vpop.permute.xlu0 %1901
      %1903 = vrot.lane.b32.xlu0 %v1544, 20
      %v1904 = vpop.permute.xlu0 %1903
      %1905 = vrot.lane.b32.xlu0 %v1547, 20
      %v1906 = vpop.permute.xlu0 %1905
      %1907 = vrot.lane.b32.xlu0 %v1549, 20
      %v1908 = vpop.permute.xlu0 %1907
      %1909 = vrot.lane.b32.xlu0 %v1552, 20
      %v1910 = vpop.permute.xlu0 %1909
      %1911 = vrot.lane.b32.xlu0 %v1554, 20
      %v1912 = vpop.permute.xlu0 %1911
      %1913 = vrot.lane.b32.xlu0 %v1557, 20
      %v1914 = vpop.permute.xlu0 %1913
      %1915 = vrot.lane.b32.xlu0 %v1559, 20
      %v1916 = vpop.permute.xlu0 %1915
      %1917 = vrot.lane.b32.xlu0 %v1854, 20
      %v1918 = vpop.permute.xlu0 %1917
      %1919 = vrot.lane.b32.xlu0 %v1856, 20
      %v1920 = vpop.permute.xlu0 %1919
      %1953 = vrot.lane.b32.xlu0 %v1249, 24
      %v1954 = vpop.permute.xlu0 %1953
      %1955 = vrot.lane.b32.xlu0 %v1158, 24
      %v1956 = vpop.permute.xlu0 %1955
      %1957 = vrot.lane.b32.xlu0 %v1250, 24
      %v1958 = vpop.permute.xlu0 %1957
      %1959 = vrot.lane.b32.xlu0 %v1161, 24
      %v1960 = vpop.permute.xlu0 %1959
      %1961 = vrot.lane.b32.xlu0 %v1251, 24
      %v1962 = vpop.permute.xlu0 %1961
      %1963 = vrot.lane.b32.xlu0 %v1164, 24
      %v1964 = vpop.permute.xlu0 %1963
      %1965 = vrot.lane.b32.xlu0 %v1252, 24
      %v1966 = vpop.permute.xlu0 %1965
      %1967 = vrot.lane.b32.xlu0 %v1167, 24
      %v1968 = vpop.permute.xlu0 %1967
      %1969 = vrot.lane.b32.xlu0 %v1253, 24
      %v1970 = vpop.permute.xlu0 %1969
      %1971 = vrot.lane.b32.xlu0 %v1170, 24
      %v1972 = vpop.permute.xlu0 %1971
      %1973 = vrot.lane.b32.xlu0 %v1254, 24
      %v1974 = vpop.permute.xlu0 %1973
      %1975 = vrot.lane.b32.xlu0 %v1173, 24
      %v1976 = vpop.permute.xlu0 %1975
      %1977 = vrot.lane.b32.xlu0 %v1255, 24
      %v1978 = vpop.permute.xlu0 %1977
      %1979 = vrot.lane.b32.xlu0 %v1176, 24
      %v1980 = vpop.permute.xlu0 %1979
      %1981 = vrot.lane.b32.xlu0 %v1256, 24
      %v1982 = vpop.permute.xlu0 %1981
      %1983 = vrot.lane.b32.xlu0 %v1179, 24
      %v1984 = vpop.permute.xlu0 %1983
      %1985 = vrot.lane.b32.xlu0 %v1257, 24
      %v1986 = vpop.permute.xlu0 %1985
      %1987 = vrot.lane.b32.xlu0 %v1182, 24
      %v1988 = vpop.permute.xlu0 %1987
      %1989 = vrot.lane.b32.xlu0 %v1258, 24
      %v1990 = vpop.permute.xlu0 %1989
      %1991 = vrot.lane.b32.xlu0 %v1185, 24
      %v1992 = vpop.permute.xlu0 %1991
      %1993 = vrot.lane.b32.xlu0 %v1259, 24
      %v1994 = vpop.permute.xlu0 %1993
      %1995 = vrot.lane.b32.xlu0 %v1188, 24
      %v1996 = vpop.permute.xlu0 %1995
      %1997 = vrot.lane.b32.xlu0 %v1260, 24
      %v1998 = vpop.permute.xlu0 %1997
      %1999 = vrot.lane.b32.xlu0 %v1191, 24
      %v2000 = vpop.permute.xlu0 %1999
      %2001 = vrot.lane.b32.xlu0 %v1261, 24
      %v2002 = vpop.permute.xlu0 %2001
      %2003 = vrot.lane.b32.xlu0 %v1194, 24
      %v2004 = vpop.permute.xlu0 %2003
      %2005 = vrot.lane.b32.xlu0 %v1262, 24
      %v2006 = vpop.permute.xlu0 %2005
      %2007 = vrot.lane.b32.xlu0 %v1197, 24
      %v2008 = vpop.permute.xlu0 %2007
      %2009 = vrot.lane.b32.xlu0 %v1263, 24
      %v2010 = vpop.permute.xlu0 %2009
      %2011 = vrot.lane.b32.xlu0 %v1200, 24
      %v2012 = vpop.permute.xlu0 %2011
      %2013 = vrot.lane.b32.xlu0 0.0, 24
      %v2014 = vpop.permute.xlu0 %2013
      %2046 = vrot.lane.b32.xlu0 %v1321, 28
      %v2047 = vpop.permute.xlu0 %2046
      %2048 = vrot.lane.b32.xlu0 %v1323, 28
      %v2049 = vpop.permute.xlu0 %2048
      %2050 = vrot.lane.b32.xlu0 %v1326, 28
      %v2051 = vpop.permute.xlu0 %2050
      %2052 = vrot.lane.b32.xlu0 %v1328, 28
      %v2053 = vpop.permute.xlu0 %2052
      %2054 = vrot.lane.b32.xlu0 %v1331, 28
      %v2055 = vpop.permute.xlu0 %2054
      %2056 = vrot.lane.b32.xlu0 %v1333, 28
      %v2057 = vpop.permute.xlu0 %2056
      %2058 = vrot.lane.b32.xlu0 %v1336, 28
      %v2059 = vpop.permute.xlu0 %2058
      %2060 = vrot.lane.b32.xlu0 %v1338, 28
      %v2061 = vpop.permute.xlu0 %2060
      %2062 = vrot.lane.b32.xlu0 %v1341, 28
      %v2063 = vpop.permute.xlu0 %2062
      %2064 = vrot.lane.b32.xlu0 %v1343, 28
      %v2065 = vpop.permute.xlu0 %2064
      %2066 = vrot.lane.b32.xlu0 %v1346, 28
      %v2067 = vpop.permute.xlu0 %2066
      %2068 = vrot.lane.b32.xlu0 %v1348, 28
      %v2069 = vpop.permute.xlu0 %2068
      %2070 = vrot.lane.b32.xlu0 %v1351, 28
      %v2071 = vpop.permute.xlu0 %2070
      %2072 = vrot.lane.b32.xlu0 %v1353, 28
      %v2073 = vpop.permute.xlu0 %2072
      %2074 = vrot.lane.b32.xlu0 %v1356, 28
      %v2075 = vpop.permute.xlu0 %2074
      %2076 = vrot.lane.b32.xlu0 %v1358, 28
      %v2077 = vpop.permute.xlu0 %2076
      %2078 = vrot.lane.b32.xlu0 %v1361, 28
      %v2079 = vpop.permute.xlu0 %2078
      %2080 = vrot.lane.b32.xlu0 %v1363, 28
      %v2081 = vpop.permute.xlu0 %2080
      %2082 = vrot.lane.b32.xlu0 %v1366, 28
      %v2083 = vpop.permute.xlu0 %2082
      %2084 = vrot.lane.b32.xlu0 %v1368, 28
      %v2085 = vpop.permute.xlu0 %2084
      %2086 = vrot.lane.b32.xlu0 %v1371, 28
      %v2087 = vpop.permute.xlu0 %2086
      %2088 = vrot.lane.b32.xlu0 %v1373, 28
      %v2089 = vpop.permute.xlu0 %2088
      %2090 = vrot.lane.b32.xlu0 %v1376, 28
      %v2091 = vpop.permute.xlu0 %2090
      %2092 = vrot.lane.b32.xlu0 %v1378, 28
      %v2093 = vpop.permute.xlu0 %2092
      %2094 = vrot.lane.b32.xlu0 %v1381, 28
      %v2095 = vpop.permute.xlu0 %2094
      %2096 = vrot.lane.b32.xlu0 %v1383, 28
      %v2097 = vpop.permute.xlu0 %2096
      %2098 = vrot.lane.b32.xlu0 %v1386, 28
      %v2099 = vpop.permute.xlu0 %2098
      %2100 = vrot.lane.b32.xlu0 %v1388, 28
      %v2101 = vpop.permute.xlu0 %2100
      %2102 = vrot.lane.b32.xlu0 %v1753, 28
      %v2103 = vpop.permute.xlu0 %2102
      %2104 = vrot.lane.b32.xlu0 %v1755, 28
      %v2105 = vpop.permute.xlu0 %2104
      %2106 = vrot.lane.b32.xlu0 %v1313, 28
      %v2107 = vpop.permute.xlu0 %2106
      %2139 = vrot.lane.b32.xlu0 %v1492, 32
      %v2140 = vpop.permute.xlu0 %2139
      %2141 = vrot.lane.b32.xlu0 %v1494, 32
      %v2142 = vpop.permute.xlu0 %2141
      %2143 = vrot.lane.b32.xlu0 %v1497, 32
      %v2144 = vpop.permute.xlu0 %2143
      %2145 = vrot.lane.b32.xlu0 %v1499, 32
      %v2146 = vpop.permute.xlu0 %2145
      %2147 = vrot.lane.b32.xlu0 %v1502, 32
      %v2148 = vpop.permute.xlu0 %2147
      %2149 = vrot.lane.b32.xlu0 %v1504, 32
      %v2150 = vpop.permute.xlu0 %2149
      %2151 = vrot.lane.b32.xlu0 %v1507, 32
      %v2152 = vpop.permute.xlu0 %2151
      %2153 = vrot.lane.b32.xlu0 %v1509, 32
      %v2154 = vpop.permute.xlu0 %2153
      %2155 = vrot.lane.b32.xlu0 %v1512, 32
      %v2156 = vpop.permute.xlu0 %2155
      %2157 = vrot.lane.b32.xlu0 %v1514, 32
      %v2158 = vpop.permute.xlu0 %2157
      %2159 = vrot.lane.b32.xlu0 %v1517, 32
      %v2160 = vpop.permute.xlu0 %2159
      %2161 = vrot.lane.b32.xlu0 %v1519, 32
      %v2162 = vpop.permute.xlu0 %2161
      %2163 = vrot.lane.b32.xlu0 %v1522, 32
      %v2164 = vpop.permute.xlu0 %2163
      %2165 = vrot.lane.b32.xlu0 %v1524, 32
      %v2166 = vpop.permute.xlu0 %2165
      %2167 = vrot.lane.b32.xlu0 %v1527, 32
      %v2168 = vpop.permute.xlu0 %2167
      %2169 = vrot.lane.b32.xlu0 %v1529, 32
      %v2170 = vpop.permute.xlu0 %2169
      %2171 = vrot.lane.b32.xlu0 %v1532, 32
      %v2172 = vpop.permute.xlu0 %2171
      %2173 = vrot.lane.b32.xlu0 %v1534, 32
      %v2174 = vpop.permute.xlu0 %2173
      %2175 = vrot.lane.b32.xlu0 %v1537, 32
      %v2176 = vpop.permute.xlu0 %2175
      %2177 = vrot.lane.b32.xlu0 %v1539, 32
      %v2178 = vpop.permute.xlu0 %2177
      %2179 = vrot.lane.b32.xlu0 %v1542, 32
      %v2180 = vpop.permute.xlu0 %2179
      %2181 = vrot.lane.b32.xlu0 %v1544, 32
      %v2182 = vpop.permute.xlu0 %2181
      %2183 = vrot.lane.b32.xlu0 %v1547, 32
      %v2184 = vpop.permute.xlu0 %2183
      %2185 = vrot.lane.b32.xlu0 %v1549, 32
      %v2186 = vpop.permute.xlu0 %2185
      %2187 = vrot.lane.b32.xlu0 %v1552, 32
      %v2188 = vpop.permute.xlu0 %2187
      %2189 = vrot.lane.b32.xlu0 %v1554, 32
      %v2190 = vpop.permute.xlu0 %2189
      %2191 = vrot.lane.b32.xlu0 %v1557, 32
      %v2192 = vpop.permute.xlu0 %2191
      %2193 = vrot.lane.b32.xlu0 %v1559, 32
      %v2194 = vpop.permute.xlu0 %2193
      %2195 = vrot.lane.b32.xlu0 %v1854, 32
      %v2196 = vpop.permute.xlu0 %2195
      %2197 = vrot.lane.b32.xlu0 %v1856, 32
      %v2198 = vpop.permute.xlu0 %2197
      %2199 = vrot.lane.b32.xlu0 %v1484, 32
      %v2200 = vpop.permute.xlu0 %2199
      %v2232 = vsel %vm684, 0.0, %v1390
      %v2233 = vsel %vm684, %v1248, %v1392
      %v2234 = vsel %vm684, %v1155, %v1394
      %v2235 = vsel %vm684, %v1249, %v1396
      %v2236 = vsel %vm684, %v1158, %v1398
      %v2237 = vsel %vm684, %v1250, %v1400
      %v2238 = vsel %vm684, %v1161, %v1402
      %v2239 = vsel %vm684, %v1251, %v1404
      %v2240 = vsel %vm684, %v1164, %v1406
      %v2241 = vsel %vm684, %v1252, %v1408
      %v2242 = vsel %vm684, %v1167, %v1410
      %v2243 = vsel %vm684, %v1253, %v1412
      %v2244 = vsel %vm684, %v1170, %v1414
      %v2245 = vsel %vm684, %v1254, %v1416
      %v2246 = vsel %vm684, %v1173, %v1418
      %v2247 = vsel %vm684, %v1255, %v1420
      %v2248 = vsel %vm684, %v1176, %v1422
      %v2249 = vsel %vm684, %v1256, %v1424
      %v2250 = vsel %vm684, %v1179, %v1426
      %v2251 = vsel %vm684, %v1257, %v1428
      %v2252 = vsel %vm684, %v1182, %v1430
      %v2253 = vsel %vm684, %v1258, %v1432
      %v2254 = vsel %vm684, %v1185, %v1434
      %v2255 = vsel %vm684, %v1259, %v1436
      %v2256 = vsel %vm684, %v1188, %v1438
      %v2257 = vsel %vm684, %v1260, %v1440
      %v2258 = vsel %vm684, %v1191, %v1442
      %v2259 = vsel %vm684, %v1261, %v1444
      %v2260 = vsel %vm684, %v1194, %v1446
      %v2261 = vsel %vm684, %v1262, %v1448
      %v2262 = vsel %vm684, %v1197, %v1450
      %vm2263 = vcmask 64512
      %v2264 = vsel %vm2263, %v2232, %v1561
      %v2265 = vsel %vm2263, %v2233, %v1563
      %v2266 = vsel %vm2263, %v2234, %v1565
      %v2267 = vsel %vm2263, %v2235, %v1567
      %v2268 = vsel %vm2263, %v2236, %v1569
      %v2269 = vsel %vm2263, %v2237, %v1571
      %v2270 = vsel %vm2263, %v2238, %v1573
      %v2271 = vsel %vm2263, %v2239, %v1575
      %v2272 = vsel %vm2263, %v2240, %v1577
      %v2273 = vsel %vm2263, %v2241, %v1579
      %v2274 = vsel %vm2263, %v2242, %v1581
      %v2275 = vsel %vm2263, %v2243, %v1583
      %v2276 = vsel %vm2263, %v2244, %v1585
      %v2277 = vsel %vm2263, %v2245, %v1587
      %v2278 = vsel %vm2263, %v2246, %v1589
      %v2279 = vsel %vm2263, %v2247, %v1591
      %v2280 = vsel %vm2263, %v2248, %v1593
      %v2281 = vsel %vm2263, %v2249, %v1595
      %v2282 = vsel %vm2263, %v2250, %v1597
      %v2283 = vsel %vm2263, %v2251, %v1599
      %v2284 = vsel %vm2263, %v2252, %v1601
      %v2285 = vsel %vm2263, %v2253, %v1603
      %v2286 = vsel %vm2263, %v2254, %v1605
      %v2287 = vsel %vm2263, %v2255, %v1607
      %v2288 = vsel %vm2263, %v2256, %v1609
      %v2289 = vsel %vm2263, %v2257, %v1611
      %v2290 = vsel %vm2263, %v2258, %v1613
      %v2291 = vsel %vm2263, %v2259, %v1615
      %v2292 = vsel %vm2263, %v2260, %v1617
      %v2293 = vsel %vm2263, %v2261, %v1619
      %v2294 = vsel %vm2263, %v2262, %v1621
      %vm2295 = vcmask 97280
      %v2296 = vsel %vm2295, %v2264, %v1655
      %v2297 = vsel %vm2295, %v2264, %v1657
      %v2298 = vsel %vm2295, %v2265, %v1659
      %v2299 = vsel %vm2295, %v2266, %v1661
      %v2300 = vsel %vm2295, %v2267, %v1663
      %v2301 = vsel %vm2295, %v2268, %v1665
      %v2302 = vsel %vm2295, %v2269, %v1667
      %v2303 = vsel %vm2295, %v2270, %v1669
      %v2304 = vsel %vm2295, %v2271, %v1671
      %v2305 = vsel %vm2295, %v2272, %v1673
      %v2306 = vsel %vm2295, %v2273, %v1675
      %v2307 = vsel %vm2295, %v2274, %v1677
      %v2308 = vsel %vm2295, %v2275, %v1679
      %v2309 = vsel %vm2295, %v2276, %v1681
      %v2310 = vsel %vm2295, %v2277, %v1683
      %v2311 = vsel %vm2295, %v2278, %v1685
      %v2312 = vsel %vm2295, %v2279, %v1687
      %v2313 = vsel %vm2295, %v2280, %v1689
      %v2314 = vsel %vm2295, %v2281, %v1691
      %v2315 = vsel %vm2295, %v2282, %v1693
      %v2316 = vsel %vm2295, %v2283, %v1695
      %v2317 = vsel %vm2295, %v2284, %v1697
      %v2318 = vsel %vm2295, %v2285, %v1699
      %v2319 = vsel %vm2295, %v2286, %v1701
      %v2320 = vsel %vm2295, %v2287, %v1703
      %v2321 = vsel %vm2295, %v2288, %v1705
      %v2322 = vsel %vm2295, %v2289, %v1707
      %v2323 = vsel %vm2295, %v2290, %v1709
      %v2324 = vsel %vm2295, %v2291, %v1711
      %v2325 = vsel %vm2295, %v2292, %v1713
      %v2326 = vsel %vm2295, %v2293, %v1715
      %v2327 = vsel %vm2295, %v2294, %v1717
      %vm2328 = vcmask 130048
      %v2329 = vsel %vm2328, %v2296, %v1757
      %v2330 = vsel %vm2328, %v2297, %v1759
      %v2331 = vsel %vm2328, %v2298, %v1761
      %v2332 = vsel %vm2328, %v2299, %v1763
      %v2333 = vsel %vm2328, %v2300, %v1765
      %v2334 = vsel %vm2328, %v2301, %v1767
      %v2335 = vsel %vm2328, %v2302, %v1769
      %v2336 = vsel %vm2328, %v2303, %v1771
      %v2337 = vsel %vm2328, %v2304, %v1773
      %v2338 = vsel %vm2328, %v2305, %v1775
      %v2339 = vsel %vm2328, %v2306, %v1777
      %v2340 = vsel %vm2328, %v2307, %v1779
      %v2341 = vsel %vm2328, %v2308, %v1781
      %v2342 = vsel %vm2328, %v2309, %v1783
      %v2343 = vsel %vm2328, %v2310, %v1785
      %v2344 = vsel %vm2328, %v2311, %v1787
      %v2345 = vsel %vm2328, %v2312, %v1789
      %v2346 = vsel %vm2328, %v2313, %v1791
      %v2347 = vsel %vm2328, %v2314, %v1793
      %v2348 = vsel %vm2328, %v2315, %v1795
      %v2349 = vsel %vm2328, %v2316, %v1797
      %v2350 = vsel %vm2328, %v2317, %v1799
      %v2351 = vsel %vm2328, %v2318, %v1801
      %v2352 = vsel %vm2328, %v2319, %v1803
      %v2353 = vsel %vm2328, %v2320, %v1805
      %v2354 = vsel %vm2328, %v2321, %v1807
      %v2355 = vsel %vm2328, %v2322, %v1809
      %v2356 = vsel %vm2328, %v2323, %v1811
      %v2357 = vsel %vm2328, %v2324, %v1813
      %v2358 = vsel %vm2328, %v2325, %v1815
      %v2359 = vsel %vm2328, %v2326, %v1817
      %v2360 = vsel %vm2328, %v2327, %v1819
      %vm2361 = vcmask 162816
      %v2362 = vsel %vm2361, %v2329, %v1858
      %v2363 = vsel %vm2361, %v2330, %v1860
      %v2364 = vsel %vm2361, %v2331, %v1862
      %v2365 = vsel %vm2361, %v2332, %v1864
      %v2366 = vsel %vm2361, %v2333, %v1866
      %v2367 = vsel %vm2361, %v2334, %v1868
      %v2368 = vsel %vm2361, %v2335, %v1870
      %v2369 = vsel %vm2361, %v2336, %v1872
      %v2370 = vsel %vm2361, %v2337, %v1874
      %v2371 = vsel %vm2361, %v2338, %v1876
      %v2372 = vsel %vm2361, %v2339, %v1878
      %v2373 = vsel %vm2361, %v2340, %v1880
      %v2374 = vsel %vm2361, %v2341, %v1882
      %v2375 = vsel %vm2361, %v2342, %v1884
      %v2376 = vsel %vm2361, %v2343, %v1886
      %v2377 = vsel %vm2361, %v2344, %v1888
      %v2378 = vsel %vm2361, %v2345, %v1890
      %v2379 = vsel %vm2361, %v2346, %v1892
      %v2380 = vsel %vm2361, %v2347, %v1894
      %v2381 = vsel %vm2361, %v2348, %v1896
      %v2382 = vsel %vm2361, %v2349, %v1898
      %v2383 = vsel %vm2361, %v2350, %v1900
      %v2384 = vsel %vm2361, %v2351, %v1902
      %v2385 = vsel %vm2361, %v2352, %v1904
      %v2386 = vsel %vm2361, %v2353, %v1906
      %v2387 = vsel %vm2361, %v2354, %v1908
      %v2388 = vsel %vm2361, %v2355, %v1910
      %v2389 = vsel %vm2361, %v2356, %v1912
      %v2390 = vsel %vm2361, %v2357, %v1914
      %v2391 = vsel %vm2361, %v2358, %v1916
      %v2392 = vsel %vm2361, %v2359, %v1918
      %v2393 = vsel %vm2361, %v2360, %v1920
      %vm2394 = vcmask 195584
      %v2395 = vsel %vm2394, %v2362, %v1954
      %v2396 = vsel %vm2394, %v2363, %v1956
      %v2397 = vsel %vm2394, %v2364, %v1958
      %v2398 = vsel %vm2394, %v2365, %v1960
      %v2399 = vsel %vm2394, %v2366, %v1962
      %v2400 = vsel %vm2394, %v2367, %v1964
      %v2401 = vsel %vm2394, %v2368, %v1966
      %v2402 = vsel %vm2394, %v2369, %v1968
      %v2403 = vsel %vm2394, %v2370, %v1970
      %v2404 = vsel %vm2394, %v2371, %v1972
      %v2405 = vsel %vm2394, %v2372, %v1974
      %v2406 = vsel %vm2394, %v2373, %v1976
      %v2407 = vsel %vm2394, %v2374, %v1978
      %v2408 = vsel %vm2394, %v2375, %v1980
      %v2409 = vsel %vm2394, %v2376, %v1982
      %v2410 = vsel %vm2394, %v2377, %v1984
      %v2411 = vsel %vm2394, %v2378, %v1986
      %v2412 = vsel %vm2394, %v2379, %v1988
      %v2413 = vsel %vm2394, %v2380, %v1990
      %v2414 = vsel %vm2394, %v2381, %v1992
      %v2415 = vsel %vm2394, %v2382, %v1994
      %v2416 = vsel %vm2394, %v2383, %v1996
      %v2417 = vsel %vm2394, %v2384, %v1998
      %v2418 = vsel %vm2394, %v2385, %v2000
      %v2419 = vsel %vm2394, %v2386, %v2002
      %v2420 = vsel %vm2394, %v2387, %v2004
      %v2421 = vsel %vm2394, %v2388, %v2006
      %v2422 = vsel %vm2394, %v2389, %v2008
      %v2423 = vsel %vm2394, %v2390, %v2010
      %v2424 = vsel %vm2394, %v2391, %v2012
      %v2425 = vsel %vm2394, %v2392, %v2014
      %v2426 = vsel %vm2394, %v2393, %v2014
      %vm2427 = vcmask 228352
      %v2428 = vsel %vm2427, %v2395, %v2047
      %v2429 = vsel %vm2427, %v2396, %v2049
      %v2430 = vsel %vm2427, %v2397, %v2051
      %v2431 = vsel %vm2427, %v2398, %v2053
      %v2432 = vsel %vm2427, %v2399, %v2055
      %v2433 = vsel %vm2427, %v2400, %v2057
      %v2434 = vsel %vm2427, %v2401, %v2059
      %v2435 = vsel %vm2427, %v2402, %v2061
      %v2436 = vsel %vm2427, %v2403, %v2063
      %v2437 = vsel %vm2427, %v2404, %v2065
      %v2438 = vsel %vm2427, %v2405, %v2067
      %v2439 = vsel %vm2427, %v2406, %v2069
      %v2440 = vsel %vm2427, %v2407, %v2071
      %v2441 = vsel %vm2427, %v2408, %v2073
      %v2442 = vsel %vm2427, %v2409, %v2075
      %v2443 = vsel %vm2427, %v2410, %v2077
      %v2444 = vsel %vm2427, %v2411, %v2079
      %v2445 = vsel %vm2427, %v2412, %v2081
      %v2446 = vsel %vm2427, %v2413, %v2083
      %v2447 = vsel %vm2427, %v2414, %v2085
      %v2448 = vsel %vm2427, %v2415, %v2087
      %v2449 = vsel %vm2427, %v2416, %v2089
      %v2450 = vsel %vm2427, %v2417, %v2091
      %v2451 = vsel %vm2427, %v2418, %v2093
      %v2452 = vsel %vm2427, %v2419, %v2095
      %v2453 = vsel %vm2427, %v2420, %v2097
      %v2454 = vsel %vm2427, %v2421, %v2099
      %v2455 = vsel %vm2427, %v2422, %v2101
      %v2456 = vsel %vm2427, %v2423, %v2103
      %v2457 = vsel %vm2427, %v2424, %v2105
      %v2458 = vsel %vm2427, %v2425, %v2107
      %v2459 = vsel %vm2427, %v2426, %v2107
      %vm2460 = vcmask 261120
      %v2461 = vsel %vm2460, %v2428, %v2140
      %v2462 = vsel %vm2460, %v2429, %v2142
      %v2463 = vsel %vm2460, %v2430, %v2144
      %v2464 = vsel %vm2460, %v2431, %v2146
      %v2465 = vsel %vm2460, %v2432, %v2148
      %v2466 = vsel %vm2460, %v2433, %v2150
      %v2467 = vsel %vm2460, %v2434, %v2152
      %v2468 = vsel %vm2460, %v2435, %v2154
      %v2469 = vsel %vm2460, %v2436, %v2156
      %v2470 = vsel %vm2460, %v2437, %v2158
      %v2471 = vsel %vm2460, %v2438, %v2160
      %v2472 = vsel %vm2460, %v2439, %v2162
      %v2473 = vsel %vm2460, %v2440, %v2164
      %v2474 = vsel %vm2460, %v2441, %v2166
      %v2475 = vsel %vm2460, %v2442, %v2168
      %v2476 = vsel %vm2460, %v2443, %v2170
      %v2477 = vsel %vm2460, %v2444, %v2172
      %v2478 = vsel %vm2460, %v2445, %v2174
      %v2479 = vsel %vm2460, %v2446, %v2176
      %v2480 = vsel %vm2460, %v2447, %v2178
      %v2481 = vsel %vm2460, %v2448, %v2180
      %v2482 = vsel %vm2460, %v2449, %v2182
      %v2483 = vsel %vm2460, %v2450, %v2184
      %v2484 = vsel %vm2460, %v2451, %v2186
      %v2485 = vsel %vm2460, %v2452, %v2188
      %v2486 = vsel %vm2460, %v2453, %v2190
      %v2487 = vsel %vm2460, %v2454, %v2192
      %v2488 = vsel %vm2460, %v2455, %v2194
      %v2489 = vsel %vm2460, %v2456, %v2196
      %v2490 = vsel %vm2460, %v2457, %v2198
      %v2491 = vsel %vm2460, %v2458, %v2200
      %v2492 = vsel %vm2460, %v2459, %v2200
      %v2493 = vld [vmem:[%s6] sm:$0xff]
      %v2494 = vld [vmem:[%s6 + $0x8] sm:$0xff]
      %v2495 = vld [vmem:[%s6 + $0x10] sm:$0xff]
      %v2496 = vld [vmem:[%s6 + $0x18] sm:$0xff]
      %v2497 = vld [vmem:[%s6 + $0x20] sm:$0xf]
      %v2498 = vld [vmem:[%s7] sm:$0x1]
      %v2500 = vlaneseq
      %v2501 = vshrl.u32 %v2500, 7
      %v2502 = vsub.s32 0, %v2501
      %v2503 = vrot.slane %v2498, %v2502
      %vm2505 = vcmask 293888
      %v2507 = vsel %vm2505, %v2461, 0
      %v2510 = vsel %vm2505, %v2462, 0
      %v2513 = vsel %vm2505, %v2463, 0
      %v2516 = vsel %vm2505, %v2464, 0
      %v2519 = vsel %vm2505, %v2465, 0
      %v2522 = vsel %vm2505, %v2466, 0
      %v2525 = vsel %vm2505, %v2467, 0
      %v2528 = vsel %vm2505, %v2468, 0
      %v2531 = vsel %vm2505, %v2469, 0
      %v2534 = vsel %vm2505, %v2470, 0
      %v2537 = vsel %vm2505, %v2471, 0
      %v2540 = vsel %vm2505, %v2472, 0
      %v2543 = vsel %vm2505, %v2473, 0
      %v2546 = vsel %vm2505, %v2474, 0
      %v2549 = vsel %vm2505, %v2475, 0
      %v2552 = vsel %vm2505, %v2476, 0
      %v2555 = vsel %vm2505, %v2477, 0
      %v2558 = vsel %vm2505, %v2478, 0
      %v2561 = vsel %vm2505, %v2479, 0
      %v2564 = vsel %vm2505, %v2480, 0
      %v2567 = vsel %vm2505, %v2481, 0
      %v2570 = vsel %vm2505, %v2482, 0
      %v2573 = vsel %vm2505, %v2483, 0
      %v2576 = vsel %vm2505, %v2484, 0
      %v2579 = vsel %vm2505, %v2485, 0
      %v2582 = vsel %vm2505, %v2486, 0
      %v2585 = vsel %vm2505, %v2487, 0
      %v2588 = vsel %vm2505, %v2488, 0
      %v2591 = vsel %vm2505, %v2489, 0
      %v2594 = vsel %vm2505, %v2490, 0
      %v2597 = vsel %vm2505, %v2491, 0
      %v2600 = vsel %vm2505, %v2492, 0
      %v2603 = vsel %vm781, %v2497, 0
      %2605 = vmatprep.subr.mxu0 0.0
      %2606 = vmatpush1.msra.mxu0 0.0
      %2607 = vmatprep.subr.mxu0 0.0
      %2608 = vmatpush1.msra.mxu0 0.0
      %2609 = vmatprep.subr.mxu0 0.0
      %2610 = vmatpush1.msra.mxu0 0.0
      %2611 = vmatprep.subr.mxu0 0.0
      %2612 = vmatpush1.msra.mxu0 0.0
      %2613 = vmatprep.subr.mxu0 0.0
      %2614 = vmatpush1.msra.mxu0 0.0
      %2615 = vmatprep.subr.mxu0 0.0
      %2616 = vmatpush1.msra.mxu0 0.0
      %2617 = vmatprep.subr.mxu0 0.0
      %2618 = vmatpush1.msra.mxu0 0.0
      %2619 = vmatprep.subr.mxu0 0.0
      %2620 = vmatpush1.msra.mxu0 0.0
      %2621 = vmatprep.subr.mxu0 0.0
      %2622 = vmatpush1.msra.mxu0 0.0
      %2623 = vmatprep.subr.mxu0 0.0
      %2624 = vmatpush1.msra.mxu0 0.0
      %2625 = vmatprep.subr.mxu0 0.0
      %2626 = vmatpush1.msra.mxu0 0.0
      %2627 = vmatprep.subr.mxu0 0.0
      %2628 = vmatpush1.msra.mxu0 %v2603
      %2629 = vmatprep.subr.mxu0 0.0
      %2630 = vmatpush1.msra.mxu0 %v2496
      %2631 = vmatprep.subr.mxu0 0.0
      %2632 = vmatpush1.msra.mxu0 %v2495
      %2633 = vmatprep.subr.mxu0 0.0
      %2634 = vmatpush1.msra.mxu0 %v2494
      %2635 = vmatprep.subr.mxu0 0.0
      %2636 = vmatpush1.msra.mxu0 %v2493
      %2637 = vmatprep.subr.mxu0 0.0
      %2638 = vmatpush2.msra.mxu0 0.0
      %2639 = vmatprep.subr.mxu0 0.0
      %2640 = vmatpush2.msra.mxu0 0.0
      %2641 = vmatprep.subr.mxu0 0.0
      %2642 = vmatpush2.msra.mxu0 0.0
      %2643 = vmatprep.subr.mxu0 0.0
      %2644 = vmatpush2.msra.mxu0 0.0
      %2645 = vmatprep.subr.mxu0 0.0
      %2646 = vmatpush2.msra.mxu0 0.0
      %2647 = vmatprep.subr.mxu0 0.0
      %2648 = vmatpush2.msra.mxu0 0.0
      %2649 = vmatprep.subr.mxu0 0.0
      %2650 = vmatpush2.msra.mxu0 0.0
      %2651 = vmatprep.subr.mxu0 0.0
      %2652 = vmatpush2.msra.mxu0 0.0
      %2653 = vmatprep.subr.mxu0 0.0
      %2654 = vmatpush2.msra.mxu0 0.0
      %2655 = vmatprep.subr.mxu0 0.0
      %2656 = vmatpush2.msra.mxu0 0.0
      %2657 = vmatprep.subr.mxu0 0.0
      %2658 = vmatpush2.msra.mxu0 0.0
      %2659 = vmatprep.subr.mxu0 0.0
      %2660 = vmatpush2.msra.mxu0 0.0
      %2661 = vmatprep.subr.mxu0 0.0
      %2662 = vmatpush2.msra.mxu0 0.0
      %2663 = vmatprep.subr.mxu0 0.0
      %2664 = vmatpush2.msra.mxu0 0.0
      %2665 = vmatprep.subr.mxu0 0.0
      %2666 = vmatpush2.msra.mxu0 0.0
      %2667 = vmatprep.subr.mxu0 0.0
      %2668 = vmatpush2.msra.mxu0 0.0
      %2669 = vmatprep.mubr.f32.mxu0 0.0
      %2670 = vmatmul.mubr.f32.gmra.mxu0 %v2507
      %v2671 = vpop.f32.mrf.mxu0
      %v2672 = vadd.f32 %v2503, %v2671
      %v2673 = vpop.f32.mrf.mxu0
      %2674 = vmatprep.mubr.f32.mxu0 0.0
      %2675 = vmatmul.mubr.f32.gmra.mxu0 %v2510
      %v2676 = vpop.f32.mrf.mxu0
      %v2677 = vadd.f32 %v2503, %v2676
      %v2678 = vpop.f32.mrf.mxu0
      %2679 = vmatprep.mubr.f32.mxu0 0.0
      %2680 = vmatmul.mubr.f32.gmra.mxu0 %v2513
      %v2681 = vpop.f32.mrf.mxu0
      %v2682 = vadd.f32 %v2503, %v2681
      %v2683 = vpop.f32.mrf.mxu0
      %2684 = vmatprep.mubr.f32.mxu0 0.0
      %2685 = vmatmul.mubr.f32.gmra.mxu0 %v2516
      %v2686 = vpop.f32.mrf.mxu0
      %v2687 = vadd.f32 %v2503, %v2686
      %v2688 = vpop.f32.mrf.mxu0
      %2689 = vmatprep.mubr.f32.mxu0 0.0
      %2690 = vmatmul.mubr.f32.gmra.mxu0 %v2519
      %v2691 = vpop.f32.mrf.mxu0
      %v2692 = vadd.f32 %v2503, %v2691
      %v2693 = vpop.f32.mrf.mxu0
      %2694 = vmatprep.mubr.f32.mxu0 0.0
      %2695 = vmatmul.mubr.f32.gmra.mxu0 %v2522
      %v2696 = vpop.f32.mrf.mxu0
      %v2697 = vadd.f32 %v2503, %v2696
      %v2698 = vpop.f32.mrf.mxu0
      %2699 = vmatprep.mubr.f32.mxu0 0.0
      %2700 = vmatmul.mubr.f32.gmra.mxu0 %v2525
      %v2701 = vpop.f32.mrf.mxu0
      %v2702 = vadd.f32 %v2503, %v2701
      %v2703 = vpop.f32.mrf.mxu0
      %2704 = vmatprep.mubr.f32.mxu0 0.0
      %2705 = vmatmul.mubr.f32.gmra.mxu0 %v2528
      %v2706 = vpop.f32.mrf.mxu0
      %v2707 = vadd.f32 %v2503, %v2706
      %v2708 = vpop.f32.mrf.mxu0
      %2709 = vmatprep.mubr.f32.mxu0 0.0
      %2710 = vmatmul.mubr.f32.gmra.mxu0 %v2531
      %v2711 = vpop.f32.mrf.mxu0
      %v2712 = vadd.f32 %v2503, %v2711
      %v2713 = vpop.f32.mrf.mxu0
      %2714 = vmatprep.mubr.f32.mxu0 0.0
      %2715 = vmatmul.mubr.f32.gmra.mxu0 %v2534
      %v2716 = vpop.f32.mrf.mxu0
      %v2717 = vadd.f32 %v2503, %v2716
      %v2718 = vpop.f32.mrf.mxu0
      %2719 = vmatprep.mubr.f32.mxu0 0.0
      %2720 = vmatmul.mubr.f32.gmra.mxu0 %v2537
      %v2721 = vpop.f32.mrf.mxu0
      %v2722 = vadd.f32 %v2503, %v2721
      %v2723 = vpop.f32.mrf.mxu0
      %2724 = vmatprep.mubr.f32.mxu0 0.0
      %2725 = vmatmul.mubr.f32.gmra.mxu0 %v2540
      %v2726 = vpop.f32.mrf.mxu0
      %v2727 = vadd.f32 %v2503, %v2726
      %v2728 = vpop.f32.mrf.mxu0
      %2729 = vmatprep.mubr.f32.mxu0 0.0
      %2730 = vmatmul.mubr.f32.gmra.mxu0 %v2543
      %v2731 = vpop.f32.mrf.mxu0
      %v2732 = vadd.f32 %v2503, %v2731
      %v2733 = vpop.f32.mrf.mxu0
      %2734 = vmatprep.mubr.f32.mxu0 0.0
      %2735 = vmatmul.mubr.f32.gmra.mxu0 %v2546
      %v2736 = vpop.f32.mrf.mxu0
      %v2737 = vadd.f32 %v2503, %v2736
      %v2738 = vpop.f32.mrf.mxu0
      %2739 = vmatprep.mubr.f32.mxu0 0.0
      %2740 = vmatmul.mubr.f32.gmra.mxu0 %v2549
      %v2741 = vpop.f32.mrf.mxu0
      %v2742 = vadd.f32 %v2503, %v2741
      %v2743 = vpop.f32.mrf.mxu0
      %2744 = vmatprep.mubr.f32.mxu0 0.0
      %2745 = vmatmul.mubr.f32.gmra.mxu0 %v2552
      %v2746 = vpop.f32.mrf.mxu0
      %v2747 = vadd.f32 %v2503, %v2746
      %v2748 = vpop.f32.mrf.mxu0
      %2749 = vmatprep.mubr.f32.mxu0 0.0
      %2750 = vmatmul.mubr.f32.gmra.mxu0 %v2555
      %v2751 = vpop.f32.mrf.mxu0
      %v2752 = vadd.f32 %v2503, %v2751
      %v2753 = vpop.f32.mrf.mxu0
      %2754 = vmatprep.mubr.f32.mxu0 0.0
      %2755 = vmatmul.mubr.f32.gmra.mxu0 %v2558
      %v2756 = vpop.f32.mrf.mxu0
      %v2757 = vadd.f32 %v2503, %v2756
      %v2758 = vpop.f32.mrf.mxu0
      %2759 = vmatprep.mubr.f32.mxu0 0.0
      %2760 = vmatmul.mubr.f32.gmra.mxu0 %v2561
      %v2761 = vpop.f32.mrf.mxu0
      %v2762 = vadd.f32 %v2503, %v2761
      %v2763 = vpop.f32.mrf.mxu0
      %2764 = vmatprep.mubr.f32.mxu0 0.0
      %2765 = vmatmul.mubr.f32.gmra.mxu0 %v2564
      %v2766 = vpop.f32.mrf.mxu0
      %v2767 = vadd.f32 %v2503, %v2766
      %v2768 = vpop.f32.mrf.mxu0
      %2769 = vmatprep.mubr.f32.mxu0 0.0
      %2770 = vmatmul.mubr.f32.gmra.mxu0 %v2567
      %v2771 = vpop.f32.mrf.mxu0
      %v2772 = vadd.f32 %v2503, %v2771
      %v2773 = vpop.f32.mrf.mxu0
      %2774 = vmatprep.mubr.f32.mxu0 0.0
      %2775 = vmatmul.mubr.f32.gmra.mxu0 %v2570
      %v2776 = vpop.f32.mrf.mxu0
      %v2777 = vadd.f32 %v2503, %v2776
      %v2778 = vpop.f32.mrf.mxu0
      %2779 = vmatprep.mubr.f32.mxu0 0.0
      %2780 = vmatmul.mubr.f32.gmra.mxu0 %v2573
      %v2781 = vpop.f32.mrf.mxu0
      %v2782 = vadd.f32 %v2503, %v2781
      %v2783 = vpop.f32.mrf.mxu0
      %2784 = vmatprep.mubr.f32.mxu0 0.0
      %2785 = vmatmul.mubr.f32.gmra.mxu0 %v2576
      %v2786 = vpop.f32.mrf.mxu0
      %v2787 = vadd.f32 %v2503, %v2786
      %v2788 = vpop.f32.mrf.mxu0
      %2789 = vmatprep.mubr.f32.mxu0 0.0
      %2790 = vmatmul.mubr.f32.gmra.mxu0 %v2579
      %v2791 = vpop.f32.mrf.mxu0
      %v2792 = vadd.f32 %v2503, %v2791
      %v2793 = vpop.f32.mrf.mxu0
      %2794 = vmatprep.mubr.f32.mxu0 0.0
      %2795 = vmatmul.mubr.f32.gmra.mxu0 %v2582
      %v2796 = vpop.f32.mrf.mxu0
      %v2797 = vadd.f32 %v2503, %v2796
      %v2798 = vpop.f32.mrf.mxu0
      %2799 = vmatprep.mubr.f32.mxu0 0.0
      %2800 = vmatmul.mubr.f32.gmra.mxu0 %v2585
      %v2801 = vpop.f32.mrf.mxu0
      %v2802 = vadd.f32 %v2503, %v2801
      %v2803 = vpop.f32.mrf.mxu0
      %2804 = vmatprep.mubr.f32.mxu0 0.0
      %2805 = vmatmul.mubr.f32.gmra.mxu0 %v2588
      %v2806 = vpop.f32.mrf.mxu0
      %v2807 = vadd.f32 %v2503, %v2806
      %v2808 = vpop.f32.mrf.mxu0
      %2809 = vmatprep.mubr.f32.mxu0 0.0
      %2810 = vmatmul.mubr.f32.gmra.mxu0 %v2591
      %v2811 = vpop.f32.mrf.mxu0
      %v2812 = vadd.f32 %v2503, %v2811
      %v2813 = vpop.f32.mrf.mxu0
      %2814 = vmatprep.mubr.f32.mxu0 0.0
      %2815 = vmatmul.mubr.f32.gmra.mxu0 %v2594
      %v2816 = vpop.f32.mrf.mxu0
      %v2817 = vadd.f32 %v2503, %v2816
      %v2818 = vpop.f32.mrf.mxu0
      %2819 = vmatprep.mubr.f32.mxu0 0.0
      %2820 = vmatmul.mubr.f32.gmra.mxu0 %v2597
      %v2821 = vpop.f32.mrf.mxu0
      %v2822 = vadd.f32 %v2503, %v2821
      %v2823 = vpop.f32.mrf.mxu0
      %2824 = vmatprep.mubr.f32.mxu0 0.0
      %2825 = vmatmul.mubr.f32.gmra.mxu0 %v2600
      %v2826 = vpop.f32.mrf.mxu0
      %v2827 = vadd.f32 %v2503, %v2826
      %v2828 = vpop.f32.mrf.mxu0
      %2829 = vdwg.mxu0
      %v2830 = vld [vmem:[%s8] sm:$0x1]
      %v2832 = vlaneseq
      %v2833 = vshrl.u32 %v2832, 7
      %v2834 = vsub.s32 0, %v2833
      %v2835 = vrot.slane %v2830, %v2834
      %v2837 = vmul.f32 %v2672, %v2835
      %v2838 = vmul.f32 %v2677, %v2835
      %v2839 = vmul.f32 %v2682, %v2835
      %v2840 = vmul.f32 %v2687, %v2835
      %v2841 = vmul.f32 %v2692, %v2835
      %v2842 = vmul.f32 %v2697, %v2835
      %v2843 = vmul.f32 %v2702, %v2835
      %v2844 = vmul.f32 %v2707, %v2835
      %v2845 = vmul.f32 %v2712, %v2835
      %v2846 = vmul.f32 %v2717, %v2835
      %v2847 = vmul.f32 %v2722, %v2835
      %v2848 = vmul.f32 %v2727, %v2835
      %v2849 = vmul.f32 %v2732, %v2835
      %v2850 = vmul.f32 %v2737, %v2835
      %v2851 = vmul.f32 %v2742, %v2835
      %v2852 = vmul.f32 %v2747, %v2835
      %v2853 = vmul.f32 %v2752, %v2835
      %v2854 = vmul.f32 %v2757, %v2835
      %v2855 = vmul.f32 %v2762, %v2835
      %v2856 = vmul.f32 %v2767, %v2835
      %v2857 = vmul.f32 %v2772, %v2835
      %v2858 = vmul.f32 %v2777, %v2835
      %v2859 = vmul.f32 %v2782, %v2835
      %v2860 = vmul.f32 %v2787, %v2835
      %v2861 = vmul.f32 %v2792, %v2835
      %v2862 = vmul.f32 %v2797, %v2835
      %v2863 = vmul.f32 %v2802, %v2835
      %v2864 = vmul.f32 %v2807, %v2835
      %v2865 = vmul.f32 %v2812, %v2835
      %v2866 = vmul.f32 %v2817, %v2835
      %v2867 = vmul.f32 %v2822, %v2835
      %v2868 = vmul.f32 %v2827, %v2835
      %v2869 = vld [vmem:[%s9] sm:$0x1]
      %v2871 = vlaneseq
      %v2872 = vshrl.u32 %v2871, 7
      %v2873 = vsub.s32 0, %v2872
      %v2874 = vrot.slane %v2869, %v2873
      %v2876 = vadd.f32 %v2837, %v2874
      %v2877 = vadd.f32 %v2838, %v2874
      %v2878 = vadd.f32 %v2839, %v2874
      %v2879 = vadd.f32 %v2840, %v2874
      %v2880 = vadd.f32 %v2841, %v2874
      %v2881 = vadd.f32 %v2842, %v2874
      %v2882 = vadd.f32 %v2843, %v2874
      %v2883 = vadd.f32 %v2844, %v2874
      %v2884 = vadd.f32 %v2845, %v2874
      %v2885 = vadd.f32 %v2846, %v2874
      %v2886 = vadd.f32 %v2847, %v2874
      %v2887 = vadd.f32 %v2848, %v2874
      %v2888 = vadd.f32 %v2849, %v2874
      %v2889 = vadd.f32 %v2850, %v2874
      %v2890 = vadd.f32 %v2851, %v2874
      %v2891 = vadd.f32 %v2852, %v2874
      %v2892 = vadd.f32 %v2853, %v2874
      %v2893 = vadd.f32 %v2854, %v2874
      %v2894 = vadd.f32 %v2855, %v2874
      %v2895 = vadd.f32 %v2856, %v2874
      %v2896 = vadd.f32 %v2857, %v2874
      %v2897 = vadd.f32 %v2858, %v2874
      %v2898 = vadd.f32 %v2859, %v2874
      %v2899 = vadd.f32 %v2860, %v2874
      %v2900 = vadd.f32 %v2861, %v2874
      %v2901 = vadd.f32 %v2862, %v2874
      %v2902 = vadd.f32 %v2863, %v2874
      %v2903 = vadd.f32 %v2864, %v2874
      %v2904 = vadd.f32 %v2865, %v2874
      %v2905 = vadd.f32 %v2866, %v2874
      %v2906 = vadd.f32 %v2867, %v2874
      %v2907 = vadd.f32 %v2868, %v2874
      %v2908 = vmax.f32 %v2876, 0.0
      %v2909 = vmax.f32 %v2877, 0.0
      %v2910 = vmax.f32 %v2878, 0.0
      %v2911 = vmax.f32 %v2879, 0.0
      %v2912 = vmax.f32 %v2880, 0.0
      %v2913 = vmax.f32 %v2881, 0.0
      %v2914 = vmax.f32 %v2882, 0.0
      %v2915 = vmax.f32 %v2883, 0.0
      %v2916 = vmax.f32 %v2884, 0.0
      %v2917 = vmax.f32 %v2885, 0.0
      %v2918 = vmax.f32 %v2886, 0.0
      %v2919 = vmax.f32 %v2887, 0.0
      %v2920 = vmax.f32 %v2888, 0.0
      %v2921 = vmax.f32 %v2889, 0.0
      %v2922 = vmax.f32 %v2890, 0.0
      %v2923 = vmax.f32 %v2891, 0.0
      %v2924 = vmax.f32 %v2892, 0.0
      %v2925 = vmax.f32 %v2893, 0.0
      %v2926 = vmax.f32 %v2894, 0.0
      %v2927 = vmax.f32 %v2895, 0.0
      %v2928 = vmax.f32 %v2896, 0.0
      %v2929 = vmax.f32 %v2897, 0.0
      %v2930 = vmax.f32 %v2898, 0.0
      %v2931 = vmax.f32 %v2899, 0.0
      %v2932 = vmax.f32 %v2900, 0.0
      %v2933 = vmax.f32 %v2901, 0.0
      %v2934 = vmax.f32 %v2902, 0.0
      %v2935 = vmax.f32 %v2903, 0.0
      %v2936 = vmax.f32 %v2904, 0.0
      %v2937 = vmax.f32 %v2905, 0.0
      %v2938 = vmax.f32 %v2906, 0.0
      %v2939 = vmax.f32 %v2907, 0.0
      %v2972 = vrot.slane %v2908, 7
      %v2973 = vrot.slane %v2909, 7
      %v2974 = vsel %vm1152, %v2972, %v2973
      %v2975 = vrot.slane %v2910, 7
      %v2976 = vrot.slane %v2911, 7
      %v2977 = vsel %vm1152, %v2975, %v2976
      %v2978 = vrot.slane %v2912, 7
      %v2979 = vrot.slane %v2913, 7
      %v2980 = vsel %vm1152, %v2978, %v2979
      %v2981 = vrot.slane %v2914, 7
      %v2982 = vrot.slane %v2915, 7
      %v2983 = vsel %vm1152, %v2981, %v2982
      %v2984 = vrot.slane %v2916, 7
      %v2985 = vrot.slane %v2917, 7
      %v2986 = vsel %vm1152, %v2984, %v2985
      %v2987 = vrot.slane %v2918, 7
      %v2988 = vrot.slane %v2919, 7
      %v2989 = vsel %vm1152, %v2987, %v2988
      %v2990 = vrot.slane %v2920, 7
      %v2991 = vrot.slane %v2921, 7
      %v2992 = vsel %vm1152, %v2990, %v2991
      %v2993 = vrot.slane %v2922, 7
      %v2994 = vrot.slane %v2923, 7
      %v2995 = vsel %vm1152, %v2993, %v2994
      %v2996 = vrot.slane %v2924, 7
      %v2997 = vrot.slane %v2925, 7
      %v2998 = vsel %vm1152, %v2996, %v2997
      %v2999 = vrot.slane %v2926, 7
      %v3000 = vrot.slane %v2927, 7
      %v3001 = vsel %vm1152, %v2999, %v3000
      %v3002 = vrot.slane %v2928, 7
      %v3003 = vrot.slane %v2929, 7
      %v3004 = vsel %vm1152, %v3002, %v3003
      %v3005 = vrot.slane %v2930, 7
      %v3006 = vrot.slane %v2931, 7
      %v3007 = vsel %vm1152, %v3005, %v3006
      %v3008 = vrot.slane %v2932, 7
      %v3009 = vrot.slane %v2933, 7
      %v3010 = vsel %vm1152, %v3008, %v3009
      %v3011 = vrot.slane %v2934, 7
      %v3012 = vrot.slane %v2935, 7
      %v3013 = vsel %vm1152, %v3011, %v3012
      %v3014 = vrot.slane %v2936, 7
      %v3015 = vrot.slane %v2937, 7
      %v3016 = vsel %vm1152, %v3014, %v3015
      %v3017 = vrot.slane %v2938, 7
      %v3018 = vrot.slane %v2939, 7
      %v3019 = vsel %vm1152, %v3017, %v3018
      %v3067 = vsel %vm1152, 0.0, %v2972
      %v3068 = vsel %vm1152, 0.0, %v2975
      %v3069 = vsel %vm1152, 0.0, %v2978
      %v3070 = vsel %vm1152, 0.0, %v2981
      %v3071 = vsel %vm1152, 0.0, %v2984
      %v3072 = vsel %vm1152, 0.0, %v2987
      %v3073 = vsel %vm1152, 0.0, %v2990
      %v3074 = vsel %vm1152, 0.0, %v2993
      %v3075 = vsel %vm1152, 0.0, %v2996
      %v3076 = vsel %vm1152, 0.0, %v2999
      %v3077 = vsel %vm1152, 0.0, %v3002
      %v3078 = vsel %vm1152, 0.0, %v3005
      %v3079 = vsel %vm1152, 0.0, %v3008
      %v3080 = vsel %vm1152, 0.0, %v3011
      %v3081 = vsel %vm1152, 0.0, %v3014
      %v3082 = vsel %vm1152, 0.0, %v3017
      %v3083 = vsel %vm1152, %v2973, 0.0
      %v3084 = vsel %vm1152, %v2976, 0.0
      %v3085 = vsel %vm1152, %v2979, 0.0
      %v3086 = vsel %vm1152, %v2982, 0.0
      %v3087 = vsel %vm1152, %v2985, 0.0
      %v3088 = vsel %vm1152, %v2988, 0.0
      %v3089 = vsel %vm1152, %v2991, 0.0
      %v3090 = vsel %vm1152, %v2994, 0.0
      %v3091 = vsel %vm1152, %v2997, 0.0
      %v3092 = vsel %vm1152, %v3000, 0.0
      %v3093 = vsel %vm1152, %v3003, 0.0
      %v3094 = vsel %vm1152, %v3006, 0.0
      %v3095 = vsel %vm1152, %v3009, 0.0
      %v3096 = vsel %vm1152, %v3012, 0.0
      %v3097 = vsel %vm1152, %v3015, 0.0
      %v3098 = vsel %vm1152, %v3018, 0.0
      %v3129 = vrot.slane %v3067, 1
      %v3130 = vrot.slane %v2974, 1
      %v3131 = vsel %vm1311, %v3129, %v3130
      %v3132 = vrot.slane %v3083, 1
      %v3133 = vsel %vm1311, %v3130, %v3132
      %v3134 = vrot.slane %v3068, 1
      %v3135 = vrot.slane %v2977, 1
      %v3136 = vsel %vm1311, %v3134, %v3135
      %v3137 = vrot.slane %v3084, 1
      %v3138 = vsel %vm1311, %v3135, %v3137
      %v3139 = vrot.slane %v3069, 1
      %v3140 = vrot.slane %v2980, 1
      %v3141 = vsel %vm1311, %v3139, %v3140
      %v3142 = vrot.slane %v3085, 1
      %v3143 = vsel %vm1311, %v3140, %v3142
      %v3144 = vrot.slane %v3070, 1
      %v3145 = vrot.slane %v2983, 1
      %v3146 = vsel %vm1311, %v3144, %v3145
      %v3147 = vrot.slane %v3086, 1
      %v3148 = vsel %vm1311, %v3145, %v3147
      %v3149 = vrot.slane %v3071, 1
      %v3150 = vrot.slane %v2986, 1
      %v3151 = vsel %vm1311, %v3149, %v3150
      %v3152 = vrot.slane %v3087, 1
      %v3153 = vsel %vm1311, %v3150, %v3152
      %v3154 = vrot.slane %v3072, 1
      %v3155 = vrot.slane %v2989, 1
      %v3156 = vsel %vm1311, %v3154, %v3155
      %v3157 = vrot.slane %v3088, 1
      %v3158 = vsel %vm1311, %v3155, %v3157
      %v3159 = vrot.slane %v3073, 1
      %v3160 = vrot.slane %v2992, 1
      %v3161 = vsel %vm1311, %v3159, %v3160
      %v3162 = vrot.slane %v3089, 1
      %v3163 = vsel %vm1311, %v3160, %v3162
      %v3164 = vrot.slane %v3074, 1
      %v3165 = vrot.slane %v2995, 1
      %v3166 = vsel %vm1311, %v3164, %v3165
      %v3167 = vrot.slane %v3090, 1
      %v3168 = vsel %vm1311, %v3165, %v3167
      %v3169 = vrot.slane %v3075, 1
      %v3170 = vrot.slane %v2998, 1
      %v3171 = vsel %vm1311, %v3169, %v3170
      %v3172 = vrot.slane %v3091, 1
      %v3173 = vsel %vm1311, %v3170, %v3172
      %v3174 = vrot.slane %v3076, 1
      %v3175 = vrot.slane %v3001, 1
      %v3176 = vsel %vm1311, %v3174, %v3175
      %v3177 = vrot.slane %v3092, 1
      %v3178 = vsel %vm1311, %v3175, %v3177
      %v3179 = vrot.slane %v3077, 1
      %v3180 = vrot.slane %v3004, 1
      %v3181 = vsel %vm1311, %v3179, %v3180
      %v3182 = vrot.slane %v3093, 1
      %v3183 = vsel %vm1311, %v3180, %v3182
      %v3184 = vrot.slane %v3078, 1
      %v3185 = vrot.slane %v3007, 1
      %v3186 = vsel %vm1311, %v3184, %v3185
      %v3187 = vrot.slane %v3094, 1
      %v3188 = vsel %vm1311, %v3185, %v3187
      %v3189 = vrot.slane %v3079, 1
      %v3190 = vrot.slane %v3010, 1
      %v3191 = vsel %vm1311, %v3189, %v3190
      %v3192 = vrot.slane %v3095, 1
      %v3193 = vsel %vm1311, %v3190, %v3192
      %v3194 = vrot.slane %v3080, 1
      %v3195 = vrot.slane %v3013, 1
      %v3196 = vsel %vm1311, %v3194, %v3195
      %v3197 = vrot.slane %v3096, 1
      %v3198 = vsel %vm1311, %v3195, %v3197
      %v3199 = vrot.slane %v3081, 1
      %v3200 = vrot.slane %v3016, 1
      %v3201 = vsel %vm1311, %v3199, %v3200
      %v3202 = vrot.slane %v3097, 1
      %v3203 = vsel %vm1311, %v3200, %v3202
      %3204 = vrot.lane.b32.xlu0 %v1313, 8
      %v3205 = vpop.permute.xlu0 %3204
      %3206 = vrot.lane.b32.xlu0 %v3131, 8
      %v3207 = vpop.permute.xlu0 %3206
      %3208 = vrot.lane.b32.xlu0 %v3133, 8
      %v3209 = vpop.permute.xlu0 %3208
      %3210 = vrot.lane.b32.xlu0 %v3136, 8
      %v3211 = vpop.permute.xlu0 %3210
      %3212 = vrot.lane.b32.xlu0 %v3138, 8
      %v3213 = vpop.permute.xlu0 %3212
      %3214 = vrot.lane.b32.xlu0 %v3141, 8
      %v3215 = vpop.permute.xlu0 %3214
      %3216 = vrot.lane.b32.xlu0 %v3143, 8
      %v3217 = vpop.permute.xlu0 %3216
      %3218 = vrot.lane.b32.xlu0 %v3146, 8
      %v3219 = vpop.permute.xlu0 %3218
      %3220 = vrot.lane.b32.xlu0 %v3148, 8
      %v3221 = vpop.permute.xlu0 %3220
      %3222 = vrot.lane.b32.xlu0 %v3151, 8
      %v3223 = vpop.permute.xlu0 %3222
      %3224 = vrot.lane.b32.xlu0 %v3153, 8
      %v3225 = vpop.permute.xlu0 %3224
      %3226 = vrot.lane.b32.xlu0 %v3156, 8
      %v3227 = vpop.permute.xlu0 %3226
      %3228 = vrot.lane.b32.xlu0 %v3158, 8
      %v3229 = vpop.permute.xlu0 %3228
      %3230 = vrot.lane.b32.xlu0 %v3161, 8
      %v3231 = vpop.permute.xlu0 %3230
      %3232 = vrot.lane.b32.xlu0 %v3163, 8
      %v3233 = vpop.permute.xlu0 %3232
      %3234 = vrot.lane.b32.xlu0 %v3166, 8
      %v3235 = vpop.permute.xlu0 %3234
      %3236 = vrot.lane.b32.xlu0 %v3168, 8
      %v3237 = vpop.permute.xlu0 %3236
      %3238 = vrot.lane.b32.xlu0 %v3171, 8
      %v3239 = vpop.permute.xlu0 %3238
      %3240 = vrot.lane.b32.xlu0 %v3173, 8
      %v3241 = vpop.permute.xlu0 %3240
      %3242 = vrot.lane.b32.xlu0 %v3176, 8
      %v3243 = vpop.permute.xlu0 %3242
      %3244 = vrot.lane.b32.xlu0 %v3178, 8
      %v3245 = vpop.permute.xlu0 %3244
      %3246 = vrot.lane.b32.xlu0 %v3181, 8
      %v3247 = vpop.permute.xlu0 %3246
      %3248 = vrot.lane.b32.xlu0 %v3183, 8
      %v3249 = vpop.permute.xlu0 %3248
      %3250 = vrot.lane.b32.xlu0 %v3186, 8
      %v3251 = vpop.permute.xlu0 %3250
      %3252 = vrot.lane.b32.xlu0 %v3188, 8
      %v3253 = vpop.permute.xlu0 %3252
      %3254 = vrot.lane.b32.xlu0 %v3191, 8
      %v3255 = vpop.permute.xlu0 %3254
      %3256 = vrot.lane.b32.xlu0 %v3193, 8
      %v3257 = vpop.permute.xlu0 %3256
      %3258 = vrot.lane.b32.xlu0 %v3196, 8
      %v3259 = vpop.permute.xlu0 %3258
      %3260 = vrot.lane.b32.xlu0 %v3198, 8
      %v3261 = vpop.permute.xlu0 %3260
      %3262 = vrot.lane.b32.xlu0 %v3201, 8
      %v3263 = vpop.permute.xlu0 %3262
      %3264 = vrot.lane.b32.xlu0 %v3203, 8
      %v3265 = vpop.permute.xlu0 %3264
      %v3297 = vrot.slane %v3067, 2
      %v3298 = vrot.slane %v2974, 2
      %v3299 = vsel %vm1482, %v3297, %v3298
      %v3300 = vrot.slane %v3083, 2
      %v3301 = vsel %vm1482, %v3298, %v3300
      %v3302 = vrot.slane %v3068, 2
      %v3303 = vrot.slane %v2977, 2
      %v3304 = vsel %vm1482, %v3302, %v3303
      %v3305 = vrot.slane %v3084, 2
      %v3306 = vsel %vm1482, %v3303, %v3305
      %v3307 = vrot.slane %v3069, 2
      %v3308 = vrot.slane %v2980, 2
      %v3309 = vsel %vm1482, %v3307, %v3308
      %v3310 = vrot.slane %v3085, 2
      %v3311 = vsel %vm1482, %v3308, %v3310
      %v3312 = vrot.slane %v3070, 2
      %v3313 = vrot.slane %v2983, 2
      %v3314 = vsel %vm1482, %v3312, %v3313
      %v3315 = vrot.slane %v3086, 2
      %v3316 = vsel %vm1482, %v3313, %v3315
      %v3317 = vrot.slane %v3071, 2
      %v3318 = vrot.slane %v2986, 2
      %v3319 = vsel %vm1482, %v3317, %v3318
      %v3320 = vrot.slane %v3087, 2
      %v3321 = vsel %vm1482, %v3318, %v3320
      %v3322 = vrot.slane %v3072, 2
      %v3323 = vrot.slane %v2989, 2
      %v3324 = vsel %vm1482, %v3322, %v3323
      %v3325 = vrot.slane %v3088, 2
      %v3326 = vsel %vm1482, %v3323, %v3325
      %v3327 = vrot.slane %v3073, 2
      %v3328 = vrot.slane %v2992, 2
      %v3329 = vsel %vm1482, %v3327, %v3328
      %v3330 = vrot.slane %v3089, 2
      %v3331 = vsel %vm1482, %v3328, %v3330
      %v3332 = vrot.slane %v3074, 2
      %v3333 = vrot.slane %v2995, 2
      %v3334 = vsel %vm1482, %v3332, %v3333
      %v3335 = vrot.slane %v3090, 2
      %v3336 = vsel %vm1482, %v3333, %v3335
      %v3337 = vrot.slane %v3075, 2
      %v3338 = vrot.slane %v2998, 2
      %v3339 = vsel %vm1482, %v3337, %v3338
      %v3340 = vrot.slane %v3091, 2
      %v3341 = vsel %vm1482, %v3338, %v3340
      %v3342 = vrot.slane %v3076, 2
      %v3343 = vrot.slane %v3001, 2
      %v3344 = vsel %vm1482, %v3342, %v3343
      %v3345 = vrot.slane %v3092, 2
      %v3346 = vsel %vm1482, %v3343, %v3345
      %v3347 = vrot.slane %v3077, 2
      %v3348 = vrot.slane %v3004, 2
      %v3349 = vsel %vm1482, %v3347, %v3348
      %v3350 = vrot.slane %v3093, 2
      %v3351 = vsel %vm1482, %v3348, %v3350
      %v3352 = vrot.slane %v3078, 2
      %v3353 = vrot.slane %v3007, 2
      %v3354 = vsel %vm1482, %v3352, %v3353
      %v3355 = vrot.slane %v3094, 2
      %v3356 = vsel %vm1482, %v3353, %v3355
      %v3357 = vrot.slane %v3079, 2
      %v3358 = vrot.slane %v3010, 2
      %v3359 = vsel %vm1482, %v3357, %v3358
      %v3360 = vrot.slane %v3095, 2
      %v3361 = vsel %vm1482, %v3358, %v3360
      %v3362 = vrot.slane %v3080, 2
      %v3363 = vrot.slane %v3013, 2
      %v3364 = vsel %vm1482, %v3362, %v3363
      %v3365 = vrot.slane %v3096, 2
      %v3366 = vsel %vm1482, %v3363, %v3365
      %v3367 = vrot.slane %v3081, 2
      %v3368 = vrot.slane %v3016, 2
      %v3369 = vsel %vm1482, %v3367, %v3368
      %v3370 = vrot.slane %v3097, 2
      %v3371 = vsel %vm1482, %v3368, %v3370
      %3372 = vrot.lane.b32.xlu0 %v1484, 16
      %v3373 = vpop.permute.xlu0 %3372
      %3374 = vrot.lane.b32.xlu0 %v3299, 16
      %v3375 = vpop.permute.xlu0 %3374
      %3376 = vrot.lane.b32.xlu0 %v3301, 16
      %v3377 = vpop.permute.xlu0 %3376
      %3378 = vrot.lane.b32.xlu0 %v3304, 16
      %v3379 = vpop.permute.xlu0 %3378
      %3380 = vrot.lane.b32.xlu0 %v3306, 16
      %v3381 = vpop.permute.xlu0 %3380
      %3382 = vrot.lane.b32.xlu0 %v3309, 16
      %v3383 = vpop.permute.xlu0 %3382
      %3384 = vrot.lane.b32.xlu0 %v3311, 16
      %v3385 = vpop.permute.xlu0 %3384
      %3386 = vrot.lane.b32.xlu0 %v3314, 16
      %v3387 = vpop.permute.xlu0 %3386
      %3388 = vrot.lane.b32.xlu0 %v3316, 16
      %v3389 = vpop.permute.xlu0 %3388
      %3390 = vrot.lane.b32.xlu0 %v3319, 16
      %v3391 = vpop.permute.xlu0 %3390
      %3392 = vrot.lane.b32.xlu0 %v3321, 16
      %v3393 = vpop.permute.xlu0 %3392
      %3394 = vrot.lane.b32.xlu0 %v3324, 16
      %v3395 = vpop.permute.xlu0 %3394
      %3396 = vrot.lane.b32.xlu0 %v3326, 16
      %v3397 = vpop.permute.xlu0 %3396
      %3398 = vrot.lane.b32.xlu0 %v3329, 16
      %v3399 = vpop.permute.xlu0 %3398
      %3400 = vrot.lane.b32.xlu0 %v3331, 16
      %v3401 = vpop.permute.xlu0 %3400
      %3402 = vrot.lane.b32.xlu0 %v3334, 16
      %v3403 = vpop.permute.xlu0 %3402
      %3404 = vrot.lane.b32.xlu0 %v3336, 16
      %v3405 = vpop.permute.xlu0 %3404
      %3406 = vrot.lane.b32.xlu0 %v3339, 16
      %v3407 = vpop.permute.xlu0 %3406
      %3408 = vrot.lane.b32.xlu0 %v3341, 16
      %v3409 = vpop.permute.xlu0 %3408
      %3410 = vrot.lane.b32.xlu0 %v3344, 16
      %v3411 = vpop.permute.xlu0 %3410
      %3412 = vrot.lane.b32.xlu0 %v3346, 16
      %v3413 = vpop.permute.xlu0 %3412
      %3414 = vrot.lane.b32.xlu0 %v3349, 16
      %v3415 = vpop.permute.xlu0 %3414
      %3416 = vrot.lane.b32.xlu0 %v3351, 16
      %v3417 = vpop.permute.xlu0 %3416
      %3418 = vrot.lane.b32.xlu0 %v3354, 16
      %v3419 = vpop.permute.xlu0 %3418
      %3420 = vrot.lane.b32.xlu0 %v3356, 16
      %v3421 = vpop.permute.xlu0 %3420
      %3422 = vrot.lane.b32.xlu0 %v3359, 16
      %v3423 = vpop.permute.xlu0 %3422
      %3424 = vrot.lane.b32.xlu0 %v3361, 16
      %v3425 = vpop.permute.xlu0 %3424
      %3426 = vrot.lane.b32.xlu0 %v3364, 16
      %v3427 = vpop.permute.xlu0 %3426
      %3428 = vrot.lane.b32.xlu0 %v3366, 16
      %v3429 = vpop.permute.xlu0 %3428
      %3430 = vrot.lane.b32.xlu0 %v3369, 16
      %v3431 = vpop.permute.xlu0 %3430
      %3432 = vrot.lane.b32.xlu0 %v3371, 16
      %v3433 = vpop.permute.xlu0 %3432
      %3466 = vrot.lane.b32.xlu0 %v3067, 24
      %v3467 = vpop.permute.xlu0 %3466
      %3468 = vrot.lane.b32.xlu0 %v2974, 24
      %v3469 = vpop.permute.xlu0 %3468
      %3470 = vrot.lane.b32.xlu0 %v3068, 24
      %v3471 = vpop.permute.xlu0 %3470
      %3472 = vrot.lane.b32.xlu0 %v2977, 24
      %v3473 = vpop.permute.xlu0 %3472
      %3474 = vrot.lane.b32.xlu0 %v3069, 24
      %v3475 = vpop.permute.xlu0 %3474
      %3476 = vrot.lane.b32.xlu0 %v2980, 24
      %v3477 = vpop.permute.xlu0 %3476
      %3478 = vrot.lane.b32.xlu0 %v3070, 24
      %v3479 = vpop.permute.xlu0 %3478
      %3480 = vrot.lane.b32.xlu0 %v2983, 24
      %v3481 = vpop.permute.xlu0 %3480
      %3482 = vrot.lane.b32.xlu0 %v3071, 24
      %v3483 = vpop.permute.xlu0 %3482
      %3484 = vrot.lane.b32.xlu0 %v2986, 24
      %v3485 = vpop.permute.xlu0 %3484
      %3486 = vrot.lane.b32.xlu0 %v3072, 24
      %v3487 = vpop.permute.xlu0 %3486
      %3488 = vrot.lane.b32.xlu0 %v2989, 24
      %v3489 = vpop.permute.xlu0 %3488
      %3490 = vrot.lane.b32.xlu0 %v3073, 24
      %v3491 = vpop.permute.xlu0 %3490
      %3492 = vrot.lane.b32.xlu0 %v2992, 24
      %v3493 = vpop.permute.xlu0 %3492
      %3494 = vrot.lane.b32.xlu0 %v3074, 24
      %v3495 = vpop.permute.xlu0 %3494
      %3496 = vrot.lane.b32.xlu0 %v2995, 24
      %v3497 = vpop.permute.xlu0 %3496
      %3498 = vrot.lane.b32.xlu0 %v3075, 24
      %v3499 = vpop.permute.xlu0 %3498
      %3500 = vrot.lane.b32.xlu0 %v2998, 24
      %v3501 = vpop.permute.xlu0 %3500
      %3502 = vrot.lane.b32.xlu0 %v3076, 24
      %v3503 = vpop.permute.xlu0 %3502
      %3504 = vrot.lane.b32.xlu0 %v3001, 24
      %v3505 = vpop.permute.xlu0 %3504
      %3506 = vrot.lane.b32.xlu0 %v3077, 24
      %v3507 = vpop.permute.xlu0 %3506
      %3508 = vrot.lane.b32.xlu0 %v3004, 24
      %v3509 = vpop.permute.xlu0 %3508
      %3510 = vrot.lane.b32.xlu0 %v3078, 24
      %v3511 = vpop.permute.xlu0 %3510
      %3512 = vrot.lane.b32.xlu0 %v3007, 24
      %v3513 = vpop.permute.xlu0 %3512
      %3514 = vrot.lane.b32.xlu0 %v3079, 24
      %v3515 = vpop.permute.xlu0 %3514
      %3516 = vrot.lane.b32.xlu0 %v3010, 24
      %v3517 = vpop.permute.xlu0 %3516
      %3518 = vrot.lane.b32.xlu0 %v3080, 24
      %v3519 = vpop.permute.xlu0 %3518
      %3520 = vrot.lane.b32.xlu0 %v3013, 24
      %v3521 = vpop.permute.xlu0 %3520
      %3522 = vrot.lane.b32.xlu0 %v3081, 24
      %v3523 = vpop.permute.xlu0 %3522
      %3524 = vrot.lane.b32.xlu0 %v3016, 24
      %v3525 = vpop.permute.xlu0 %3524
      %3526 = vrot.lane.b32.xlu0 %v3082, 24
      %v3527 = vpop.permute.xlu0 %3526
      %3528 = vrot.lane.b32.xlu0 %v3019, 24
      %v3529 = vpop.permute.xlu0 %3528
      %v3563 = vrot.slane %v3082, 1
      %v3564 = vrot.slane %v3019, 1
      %v3565 = vsel %vm1311, %v3563, %v3564
      %v3566 = vrot.slane %v3098, 1
      %v3567 = vsel %vm1311, %v3564, %v3566
      %3568 = vrot.lane.b32.xlu0 %v3131, 32
      %v3569 = vpop.permute.xlu0 %3568
      %3570 = vrot.lane.b32.xlu0 %v3133, 32
      %v3571 = vpop.permute.xlu0 %3570
      %3572 = vrot.lane.b32.xlu0 %v3136, 32
      %v3573 = vpop.permute.xlu0 %3572
      %3574 = vrot.lane.b32.xlu0 %v3138, 32
      %v3575 = vpop.permute.xlu0 %3574
      %3576 = vrot.lane.b32.xlu0 %v3141, 32
      %v3577 = vpop.permute.xlu0 %3576
      %3578 = vrot.lane.b32.xlu0 %v3143, 32
      %v3579 = vpop.permute.xlu0 %3578
      %3580 = vrot.lane.b32.xlu0 %v3146, 32
      %v3581 = vpop.permute.xlu0 %3580
      %3582 = vrot.lane.b32.xlu0 %v3148, 32
      %v3583 = vpop.permute.xlu0 %3582
      %3584 = vrot.lane.b32.xlu0 %v3151, 32
      %v3585 = vpop.permute.xlu0 %3584
      %3586 = vrot.lane.b32.xlu0 %v3153, 32
      %v3587 = vpop.permute.xlu0 %3586
      %3588 = vrot.lane.b32.xlu0 %v3156, 32
      %v3589 = vpop.permute.xlu0 %3588
      %3590 = vrot.lane.b32.xlu0 %v3158, 32
      %v3591 = vpop.permute.xlu0 %3590
      %3592 = vrot.lane.b32.xlu0 %v3161, 32
      %v3593 = vpop.permute.xlu0 %3592
      %3594 = vrot.lane.b32.xlu0 %v3163, 32
      %v3595 = vpop.permute.xlu0 %3594
      %3596 = vrot.lane.b32.xlu0 %v3166, 32
      %v3597 = vpop.permute.xlu0 %3596
      %3598 = vrot.lane.b32.xlu0 %v3168, 32
      %v3599 = vpop.permute.xlu0 %3598
      %3600 = vrot.lane.b32.xlu0 %v3171, 32
      %v3601 = vpop.permute.xlu0 %3600
      %3602 = vrot.lane.b32.xlu0 %v3173, 32
      %v3603 = vpop.permute.xlu0 %3602
      %3604 = vrot.lane.b32.xlu0 %v3176, 32
      %v3605 = vpop.permute.xlu0 %3604
      %3606 = vrot.lane.b32.xlu0 %v3178, 32
      %v3607 = vpop.permute.xlu0 %3606
      %3608 = vrot.lane.b32.xlu0 %v3181, 32
      %v3609 = vpop.permute.xlu0 %3608
      %3610 = vrot.lane.b32.xlu0 %v3183, 32
      %v3611 = vpop.permute.xlu0 %3610
      %3612 = vrot.lane.b32.xlu0 %v3186, 32
      %v3613 = vpop.permute.xlu0 %3612
      %3614 = vrot.lane.b32.xlu0 %v3188, 32
      %v3615 = vpop.permute.xlu0 %3614
      %3616 = vrot.lane.b32.xlu0 %v3191, 32
      %v3617 = vpop.permute.xlu0 %3616
      %3618 = vrot.lane.b32.xlu0 %v3193, 32
      %v3619 = vpop.permute.xlu0 %3618
      %3620 = vrot.lane.b32.xlu0 %v3196, 32
      %v3621 = vpop.permute.xlu0 %3620
      %3622 = vrot.lane.b32.xlu0 %v3198, 32
      %v3623 = vpop.permute.xlu0 %3622
      %3624 = vrot.lane.b32.xlu0 %v3201, 32
      %v3625 = vpop.permute.xlu0 %3624
      %3626 = vrot.lane.b32.xlu0 %v3203, 32
      %v3627 = vpop.permute.xlu0 %3626
      %3628 = vrot.lane.b32.xlu0 %v3565, 32
      %v3629 = vpop.permute.xlu0 %3628
      %3630 = vrot.lane.b32.xlu0 %v3567, 32
      %v3631 = vpop.permute.xlu0 %3630
      %v3664 = vrot.slane %v3082, 2
      %v3665 = vrot.slane %v3019, 2
      %v3666 = vsel %vm1482, %v3664, %v3665
      %v3667 = vrot.slane %v3098, 2
      %v3668 = vsel %vm1482, %v3665, %v3667
      %3669 = vrot.lane.b32.xlu0 %v3299, 40
      %v3670 = vpop.permute.xlu0 %3669
      %3671 = vrot.lane.b32.xlu0 %v3301, 40
      %v3672 = vpop.permute.xlu0 %3671
      %3673 = vrot.lane.b32.xlu0 %v3304, 40
      %v3674 = vpop.permute.xlu0 %3673
      %3675 = vrot.lane.b32.xlu0 %v3306, 40
      %v3676 = vpop.permute.xlu0 %3675
      %3677 = vrot.lane.b32.xlu0 %v3309, 40
      %v3678 = vpop.permute.xlu0 %3677
      %3679 = vrot.lane.b32.xlu0 %v3311, 40
      %v3680 = vpop.permute.xlu0 %3679
      %3681 = vrot.lane.b32.xlu0 %v3314, 40
      %v3682 = vpop.permute.xlu0 %3681
      %3683 = vrot.lane.b32.xlu0 %v3316, 40
      %v3684 = vpop.permute.xlu0 %3683
      %3685 = vrot.lane.b32.xlu0 %v3319, 40
      %v3686 = vpop.permute.xlu0 %3685
      %3687 = vrot.lane.b32.xlu0 %v3321, 40
      %v3688 = vpop.permute.xlu0 %3687
      %3689 = vrot.lane.b32.xlu0 %v3324, 40
      %v3690 = vpop.permute.xlu0 %3689
      %3691 = vrot.lane.b32.xlu0 %v3326, 40
      %v3692 = vpop.permute.xlu0 %3691
      %3693 = vrot.lane.b32.xlu0 %v3329, 40
      %v3694 = vpop.permute.xlu0 %3693
      %3695 = vrot.lane.b32.xlu0 %v3331, 40
      %v3696 = vpop.permute.xlu0 %3695
      %3697 = vrot.lane.b32.xlu0 %v3334, 40
      %v3698 = vpop.permute.xlu0 %3697
      %3699 = vrot.lane.b32.xlu0 %v3336, 40
      %v3700 = vpop.permute.xlu0 %3699
      %3701 = vrot.lane.b32.xlu0 %v3339, 40
      %v3702 = vpop.permute.xlu0 %3701
      %3703 = vrot.lane.b32.xlu0 %v3341, 40
      %v3704 = vpop.permute.xlu0 %3703
      %3705 = vrot.lane.b32.xlu0 %v3344, 40
      %v3706 = vpop.permute.xlu0 %3705
      %3707 = vrot.lane.b32.xlu0 %v3346, 40
      %v3708 = vpop.permute.xlu0 %3707
      %3709 = vrot.lane.b32.xlu0 %v3349, 40
      %v3710 = vpop.permute.xlu0 %3709
      %3711 = vrot.lane.b32.xlu0 %v3351, 40
      %v3712 = vpop.permute.xlu0 %3711
      %3713 = vrot.lane.b32.xlu0 %v3354, 40
      %v3714 = vpop.permute.xlu0 %3713
      %3715 = vrot.lane.b32.xlu0 %v3356, 40
      %v3716 = vpop.permute.xlu0 %3715
      %3717 = vrot.lane.b32.xlu0 %v3359, 40
      %v3718 = vpop.permute.xlu0 %3717
      %3719 = vrot.lane.b32.xlu0 %v3361, 40
      %v3720 = vpop.permute.xlu0 %3719
      %3721 = vrot.lane.b32.xlu0 %v3364, 40
      %v3722 = vpop.permute.xlu0 %3721
      %3723 = vrot.lane.b32.xlu0 %v3366, 40
      %v3724 = vpop.permute.xlu0 %3723
      %3725 = vrot.lane.b32.xlu0 %v3369, 40
      %v3726 = vpop.permute.xlu0 %3725
      %3727 = vrot.lane.b32.xlu0 %v3371, 40
      %v3728 = vpop.permute.xlu0 %3727
      %3729 = vrot.lane.b32.xlu0 %v3666, 40
      %v3730 = vpop.permute.xlu0 %3729
      %3731 = vrot.lane.b32.xlu0 %v3668, 40
      %v3732 = vpop.permute.xlu0 %3731
      %3765 = vrot.lane.b32.xlu0 %v3068, 48
      %v3766 = vpop.permute.xlu0 %3765
      %3767 = vrot.lane.b32.xlu0 %v2977, 48
      %v3768 = vpop.permute.xlu0 %3767
      %3769 = vrot.lane.b32.xlu0 %v3069, 48
      %v3770 = vpop.permute.xlu0 %3769
      %3771 = vrot.lane.b32.xlu0 %v2980, 48
      %v3772 = vpop.permute.xlu0 %3771
      %3773 = vrot.lane.b32.xlu0 %v3070, 48
      %v3774 = vpop.permute.xlu0 %3773
      %3775 = vrot.lane.b32.xlu0 %v2983, 48
      %v3776 = vpop.permute.xlu0 %3775
      %3777 = vrot.lane.b32.xlu0 %v3071, 48
      %v3778 = vpop.permute.xlu0 %3777
      %3779 = vrot.lane.b32.xlu0 %v2986, 48
      %v3780 = vpop.permute.xlu0 %3779
      %3781 = vrot.lane.b32.xlu0 %v3072, 48
      %v3782 = vpop.permute.xlu0 %3781
      %3783 = vrot.lane.b32.xlu0 %v2989, 48
      %v3784 = vpop.permute.xlu0 %3783
      %3785 = vrot.lane.b32.xlu0 %v3073, 48
      %v3786 = vpop.permute.xlu0 %3785
      %3787 = vrot.lane.b32.xlu0 %v2992, 48
      %v3788 = vpop.permute.xlu0 %3787
      %3789 = vrot.lane.b32.xlu0 %v3074, 48
      %v3790 = vpop.permute.xlu0 %3789
      %3791 = vrot.lane.b32.xlu0 %v2995, 48
      %v3792 = vpop.permute.xlu0 %3791
      %3793 = vrot.lane.b32.xlu0 %v3075, 48
      %v3794 = vpop.permute.xlu0 %3793
      %3795 = vrot.lane.b32.xlu0 %v2998, 48
      %v3796 = vpop.permute.xlu0 %3795
      %3797 = vrot.lane.b32.xlu0 %v3076, 48
      %v3798 = vpop.permute.xlu0 %3797
      %3799 = vrot.lane.b32.xlu0 %v3001, 48
      %v3800 = vpop.permute.xlu0 %3799
      %3801 = vrot.lane.b32.xlu0 %v3077, 48
      %v3802 = vpop.permute.xlu0 %3801
      %3803 = vrot.lane.b32.xlu0 %v3004, 48
      %v3804 = vpop.permute.xlu0 %3803
      %3805 = vrot.lane.b32.xlu0 %v3078, 48
      %v3806 = vpop.permute.xlu0 %3805
      %3807 = vrot.lane.b32.xlu0 %v3007, 48
      %v3808 = vpop.permute.xlu0 %3807
      %3809 = vrot.lane.b32.xlu0 %v3079, 48
      %v3810 = vpop.permute.xlu0 %3809
      %3811 = vrot.lane.b32.xlu0 %v3010, 48
      %v3812 = vpop.permute.xlu0 %3811
      %3813 = vrot.lane.b32.xlu0 %v3080, 48
      %v3814 = vpop.permute.xlu0 %3813
      %3815 = vrot.lane.b32.xlu0 %v3013, 48
      %v3816 = vpop.permute.xlu0 %3815
      %3817 = vrot.lane.b32.xlu0 %v3081, 48
      %v3818 = vpop.permute.xlu0 %3817
      %3819 = vrot.lane.b32.xlu0 %v3016, 48
      %v3820 = vpop.permute.xlu0 %3819
      %3821 = vrot.lane.b32.xlu0 %v3082, 48
      %v3822 = vpop.permute.xlu0 %3821
      %3823 = vrot.lane.b32.xlu0 %v3019, 48
      %v3824 = vpop.permute.xlu0 %3823
      %3825 = vrot.lane.b32.xlu0 0.0, 48
      %v3826 = vpop.permute.xlu0 %3825
      %3858 = vrot.lane.b32.xlu0 %v3136, 56
      %v3859 = vpop.permute.xlu0 %3858
      %3860 = vrot.lane.b32.xlu0 %v3138, 56
      %v3861 = vpop.permute.xlu0 %3860
      %3862 = vrot.lane.b32.xlu0 %v3141, 56
      %v3863 = vpop.permute.xlu0 %3862
      %3864 = vrot.lane.b32.xlu0 %v3143, 56
      %v3865 = vpop.permute.xlu0 %3864
      %3866 = vrot.lane.b32.xlu0 %v3146, 56
      %v3867 = vpop.permute.xlu0 %3866
      %3868 = vrot.lane.b32.xlu0 %v3148, 56
      %v3869 = vpop.permute.xlu0 %3868
      %3870 = vrot.lane.b32.xlu0 %v3151, 56
      %v3871 = vpop.permute.xlu0 %3870
      %3872 = vrot.lane.b32.xlu0 %v3153, 56
      %v3873 = vpop.permute.xlu0 %3872
      %3874 = vrot.lane.b32.xlu0 %v3156, 56
      %v3875 = vpop.permute.xlu0 %3874
      %3876 = vrot.lane.b32.xlu0 %v3158, 56
      %v3877 = vpop.permute.xlu0 %3876
      %3878 = vrot.lane.b32.xlu0 %v3161, 56
      %v3879 = vpop.permute.xlu0 %3878
      %3880 = vrot.lane.b32.xlu0 %v3163, 56
      %v3881 = vpop.permute.xlu0 %3880
      %3882 = vrot.lane.b32.xlu0 %v3166, 56
      %v3883 = vpop.permute.xlu0 %3882
      %3884 = vrot.lane.b32.xlu0 %v3168, 56
      %v3885 = vpop.permute.xlu0 %3884
      %3886 = vrot.lane.b32.xlu0 %v3171, 56
      %v3887 = vpop.permute.xlu0 %3886
      %3888 = vrot.lane.b32.xlu0 %v3173, 56
      %v3889 = vpop.permute.xlu0 %3888
      %3890 = vrot.lane.b32.xlu0 %v3176, 56
      %v3891 = vpop.permute.xlu0 %3890
      %3892 = vrot.lane.b32.xlu0 %v3178, 56
      %v3893 = vpop.permute.xlu0 %3892
      %3894 = vrot.lane.b32.xlu0 %v3181, 56
      %v3895 = vpop.permute.xlu0 %3894
      %3896 = vrot.lane.b32.xlu0 %v3183, 56
      %v3897 = vpop.permute.xlu0 %3896
      %3898 = vrot.lane.b32.xlu0 %v3186, 56
      %v3899 = vpop.permute.xlu0 %3898
      %3900 = vrot.lane.b32.xlu0 %v3188, 56
      %v3901 = vpop.permute.xlu0 %3900
      %3902 = vrot.lane.b32.xlu0 %v3191, 56
      %v3903 = vpop.permute.xlu0 %3902
      %3904 = vrot.lane.b32.xlu0 %v3193, 56
      %v3905 = vpop.permute.xlu0 %3904
      %3906 = vrot.lane.b32.xlu0 %v3196, 56
      %v3907 = vpop.permute.xlu0 %3906
      %3908 = vrot.lane.b32.xlu0 %v3198, 56
      %v3909 = vpop.permute.xlu0 %3908
      %3910 = vrot.lane.b32.xlu0 %v3201, 56
      %v3911 = vpop.permute.xlu0 %3910
      %3912 = vrot.lane.b32.xlu0 %v3203, 56
      %v3913 = vpop.permute.xlu0 %3912
      %3914 = vrot.lane.b32.xlu0 %v3565, 56
      %v3915 = vpop.permute.xlu0 %3914
      %3916 = vrot.lane.b32.xlu0 %v3567, 56
      %v3917 = vpop.permute.xlu0 %3916
      %3918 = vrot.lane.b32.xlu0 %v1313, 56
      %v3919 = vpop.permute.xlu0 %3918
      %3951 = vrot.lane.b32.xlu0 %v3304, 64
      %v3952 = vpop.permute.xlu0 %3951
      %3953 = vrot.lane.b32.xlu0 %v3306, 64
      %v3954 = vpop.permute.xlu0 %3953
      %3955 = vrot.lane.b32.xlu0 %v3309, 64
      %v3956 = vpop.permute.xlu0 %3955
      %3957 = vrot.lane.b32.xlu0 %v3311, 64
      %v3958 = vpop.permute.xlu0 %3957
      %3959 = vrot.lane.b32.xlu0 %v3314, 64
      %v3960 = vpop.permute.xlu0 %3959
      %3961 = vrot.lane.b32.xlu0 %v3316, 64
      %v3962 = vpop.permute.xlu0 %3961
      %3963 = vrot.lane.b32.xlu0 %v3319, 64
      %v3964 = vpop.permute.xlu0 %3963
      %3965 = vrot.lane.b32.xlu0 %v3321, 64
      %v3966 = vpop.permute.xlu0 %3965
      %3967 = vrot.lane.b32.xlu0 %v3324, 64
      %v3968 = vpop.permute.xlu0 %3967
      %3969 = vrot.lane.b32.xlu0 %v3326, 64
      %v3970 = vpop.permute.xlu0 %3969
      %3971 = vrot.lane.b32.xlu0 %v3329, 64
      %v3972 = vpop.permute.xlu0 %3971
      %3973 = vrot.lane.b32.xlu0 %v3331, 64
      %v3974 = vpop.permute.xlu0 %3973
      %3975 = vrot.lane.b32.xlu0 %v3334, 64
      %v3976 = vpop.permute.xlu0 %3975
      %3977 = vrot.lane.b32.xlu0 %v3336, 64
      %v3978 = vpop.permute.xlu0 %3977
      %3979 = vrot.lane.b32.xlu0 %v3339, 64
      %v3980 = vpop.permute.xlu0 %3979
      %3981 = vrot.lane.b32.xlu0 %v3341, 64
      %v3982 = vpop.permute.xlu0 %3981
      %3983 = vrot.lane.b32.xlu0 %v3344, 64
      %v3984 = vpop.permute.xlu0 %3983
      %3985 = vrot.lane.b32.xlu0 %v3346, 64
      %v3986 = vpop.permute.xlu0 %3985
      %3987 = vrot.lane.b32.xlu0 %v3349, 64
      %v3988 = vpop.permute.xlu0 %3987
      %3989 = vrot.lane.b32.xlu0 %v3351, 64
      %v3990 = vpop.permute.xlu0 %3989
      %3991 = vrot.lane.b32.xlu0 %v3354, 64
      %v3992 = vpop.permute.xlu0 %3991
      %3993 = vrot.lane.b32.xlu0 %v3356, 64
      %v3994 = vpop.permute.xlu0 %3993
      %3995 = vrot.lane.b32.xlu0 %v3359, 64
      %v3996 = vpop.permute.xlu0 %3995
      %3997 = vrot.lane.b32.xlu0 %v3361, 64
      %v3998 = vpop.permute.xlu0 %3997
      %3999 = vrot.lane.b32.xlu0 %v3364, 64
      %v4000 = vpop.permute.xlu0 %3999
      %4001 = vrot.lane.b32.xlu0 %v3366, 64
      %v4002 = vpop.permute.xlu0 %4001
      %4003 = vrot.lane.b32.xlu0 %v3369, 64
      %v4004 = vpop.permute.xlu0 %4003
      %4005 = vrot.lane.b32.xlu0 %v3371, 64
      %v4006 = vpop.permute.xlu0 %4005
      %4007 = vrot.lane.b32.xlu0 %v3666, 64
      %v4008 = vpop.permute.xlu0 %4007
      %4009 = vrot.lane.b32.xlu0 %v3668, 64
      %v4010 = vpop.permute.xlu0 %4009
      %4011 = vrot.lane.b32.xlu0 %v1484, 64
      %v4012 = vpop.permute.xlu0 %4011
      %v4044 = vsel %vm2263, 0.0, %v3205
      %v4045 = vsel %vm2263, %v3067, %v3207
      %v4046 = vsel %vm2263, %v2974, %v3209
      %v4047 = vsel %vm2263, %v3068, %v3211
      %v4048 = vsel %vm2263, %v2977, %v3213
      %v4049 = vsel %vm2263, %v3069, %v3215
      %v4050 = vsel %vm2263, %v2980, %v3217
      %v4051 = vsel %vm2263, %v3070, %v3219
      %v4052 = vsel %vm2263, %v2983, %v3221
      %v4053 = vsel %vm2263, %v3071, %v3223
      %v4054 = vsel %vm2263, %v2986, %v3225
      %v4055 = vsel %vm2263, %v3072, %v3227
      %v4056 = vsel %vm2263, %v2989, %v3229
      %v4057 = vsel %vm2263, %v3073, %v3231
      %v4058 = vsel %vm2263, %v2992, %v3233
      %v4059 = vsel %vm2263, %v3074, %v3235
      %v4060 = vsel %vm2263, %v2995, %v3237
      %v4061 = vsel %vm2263, %v3075, %v3239
      %v4062 = vsel %vm2263, %v2998, %v3241
      %v4063 = vsel %vm2263, %v3076, %v3243
      %v4064 = vsel %vm2263, %v3001, %v3245
      %v4065 = vsel %vm2263, %v3077, %v3247
      %v4066 = vsel %vm2263, %v3004, %v3249
      %v4067 = vsel %vm2263, %v3078, %v3251
      %v4068 = vsel %vm2263, %v3007, %v3253
      %v4069 = vsel %vm2263, %v3079, %v3255
      %v4070 = vsel %vm2263, %v3010, %v3257
      %v4071 = vsel %vm2263, %v3080, %v3259
      %v4072 = vsel %vm2263, %v3013, %v3261
      %v4073 = vsel %vm2263, %v3081, %v3263
      %v4074 = vsel %vm2263, %v3016, %v3265
      %v4075 = vsel %vm2328, %v4044, %v3373
      %v4076 = vsel %vm2328, %v4045, %v3375
      %v4077 = vsel %vm2328, %v4046, %v3377
      %v4078 = vsel %vm2328, %v4047, %v3379
      %v4079 = vsel %vm2328, %v4048, %v3381
      %v4080 = vsel %vm2328, %v4049, %v3383
      %v4081 = vsel %vm2328, %v4050, %v3385
      %v4082 = vsel %vm2328, %v4051, %v3387
      %v4083 = vsel %vm2328, %v4052, %v3389
      %v4084 = vsel %vm2328, %v4053, %v3391
      %v4085 = vsel %vm2328, %v4054, %v3393
      %v4086 = vsel %vm2328, %v4055, %v3395
      %v4087 = vsel %vm2328, %v4056, %v3397
      %v4088 = vsel %vm2328, %v4057, %v3399
      %v4089 = vsel %vm2328, %v4058, %v3401
      %v4090 = vsel %vm2328, %v4059, %v3403
      %v4091 = vsel %vm2328, %v4060, %v3405
      %v4092 = vsel %vm2328, %v4061, %v3407
      %v4093 = vsel %vm2328, %v4062, %v3409
      %v4094 = vsel %vm2328, %v4063, %v3411
      %v4095 = vsel %vm2328, %v4064, %v3413
      %v4096 = vsel %vm2328, %v4065, %v3415
      %v4097 = vsel %vm2328, %v4066, %v3417
      %v4098 = vsel %vm2328, %v4067, %v3419
      %v4099 = vsel %vm2328, %v4068, %v3421
      %v4100 = vsel %vm2328, %v4069, %v3423
      %v4101 = vsel %vm2328, %v4070, %v3425
      %v4102 = vsel %vm2328, %v4071, %v3427
      %v4103 = vsel %vm2328, %v4072, %v3429
      %v4104 = vsel %vm2328, %v4073, %v3431
      %v4105 = vsel %vm2328, %v4074, %v3433
      %v4106 = vsel %vm2394, %v4075, %v3467
      %v4107 = vsel %vm2394, %v4075, %v3469
      %v4108 = vsel %vm2394, %v4076, %v3471
      %v4109 = vsel %vm2394, %v4077, %v3473
      %v4110 = vsel %vm2394, %v4078, %v3475
      %v4111 = vsel %vm2394, %v4079, %v3477
      %v4112 = vsel %vm2394, %v4080, %v3479
      %v4113 = vsel %vm2394, %v4081, %v3481
      %v4114 = vsel %vm2394, %v4082, %v3483
      %v4115 = vsel %vm2394, %v4083, %v3485
      %v4116 = vsel %vm2394, %v4084, %v3487
      %v4117 = vsel %vm2394, %v4085, %v3489
      %v4118 = vsel %vm2394, %v4086, %v3491
      %v4119 = vsel %vm2394, %v4087, %v3493
      %v4120 = vsel %vm2394, %v4088, %v3495
      %v4121 = vsel %vm2394, %v4089, %v3497
      %v4122 = vsel %vm2394, %v4090, %v3499
      %v4123 = vsel %vm2394, %v4091, %v3501
      %v4124 = vsel %vm2394, %v4092, %v3503
      %v4125 = vsel %vm2394, %v4093, %v3505
      %v4126 = vsel %vm2394, %v4094, %v3507
      %v4127 = vsel %vm2394, %v4095, %v3509
      %v4128 = vsel %vm2394, %v4096, %v3511
      %v4129 = vsel %vm2394, %v4097, %v3513
      %v4130 = vsel %vm2394, %v4098, %v3515
      %v4131 = vsel %vm2394, %v4099, %v3517
      %v4132 = vsel %vm2394, %v4100, %v3519
      %v4133 = vsel %vm2394, %v4101, %v3521
      %v4134 = vsel %vm2394, %v4102, %v3523
      %v4135 = vsel %vm2394, %v4103, %v3525
      %v4136 = vsel %vm2394, %v4104, %v3527
      %v4137 = vsel %vm2394, %v4105, %v3529
      %v4138 = vsel %vm2460, %v4106, %v3569
      %v4139 = vsel %vm2460, %v4107, %v3571
      %v4140 = vsel %vm2460, %v4108, %v3573
      %v4141 = vsel %vm2460, %v4109, %v3575
      %v4142 = vsel %vm2460, %v4110, %v3577
      %v4143 = vsel %vm2460, %v4111, %v3579
      %v4144 = vsel %vm2460, %v4112, %v3581
      %v4145 = vsel %vm2460, %v4113, %v3583
      %v4146 = vsel %vm2460, %v4114, %v3585
      %v4147 = vsel %vm2460, %v4115, %v3587
      %v4148 = vsel %vm2460, %v4116, %v3589
      %v4149 = vsel %vm2460, %v4117, %v3591
      %v4150 = vsel %vm2460, %v4118, %v3593
      %v4151 = vsel %vm2460, %v4119, %v3595
      %v4152 = vsel %vm2460, %v4120, %v3597
      %v4153 = vsel %vm2460, %v4121, %v3599
      %v4154 = vsel %vm2460, %v4122, %v3601
      %v4155 = vsel %vm2460, %v4123, %v3603
      %v4156 = vsel %vm2460, %v4124, %v3605
      %v4157 = vsel %vm2460, %v4125, %v3607
      %v4158 = vsel %vm2460, %v4126, %v3609
      %v4159 = vsel %vm2460, %v4127, %v3611
      %v4160 = vsel %vm2460, %v4128, %v3613
      %v4161 = vsel %vm2460, %v4129, %v3615
      %v4162 = vsel %vm2460, %v4130, %v3617
      %v4163 = vsel %vm2460, %v4131, %v3619
      %v4164 = vsel %vm2460, %v4132, %v3621
      %v4165 = vsel %vm2460, %v4133, %v3623
      %v4166 = vsel %vm2460, %v4134, %v3625
      %v4167 = vsel %vm2460, %v4135, %v3627
      %v4168 = vsel %vm2460, %v4136, %v3629
      %v4169 = vsel %vm2460, %v4137, %v3631
      %vm4170 = vcmask 326656
      %v4171 = vsel %vm4170, %v4138, %v3670
      %v4172 = vsel %vm4170, %v4139, %v3672
      %v4173 = vsel %vm4170, %v4140, %v3674
      %v4174 = vsel %vm4170, %v4141, %v3676
      %v4175 = vsel %vm4170, %v4142, %v3678
      %v4176 = vsel %vm4170, %v4143, %v3680
      %v4177 = vsel %vm4170, %v4144, %v3682
      %v4178 = vsel %vm4170, %v4145, %v3684
      %v4179 = vsel %vm4170, %v4146, %v3686
      %v4180 = vsel %vm4170, %v4147, %v3688
      %v4181 = vsel %vm4170, %v4148, %v3690
      %v4182 = vsel %vm4170, %v4149, %v3692
      %v4183 = vsel %vm4170, %v4150, %v3694
      %v4184 = vsel %vm4170, %v4151, %v3696
      %v4185 = vsel %vm4170, %v4152, %v3698
      %v4186 = vsel %vm4170, %v4153, %v3700
      %v4187 = vsel %vm4170, %v4154, %v3702
      %v4188 = vsel %vm4170, %v4155, %v3704
      %v4189 = vsel %vm4170, %v4156, %v3706
      %v4190 = vsel %vm4170, %v4157, %v3708
      %v4191 = vsel %vm4170, %v4158, %v3710
      %v4192 = vsel %vm4170, %v4159, %v3712
      %v4193 = vsel %vm4170, %v4160, %v3714
      %v4194 = vsel %vm4170, %v4161, %v3716
      %v4195 = vsel %vm4170, %v4162, %v3718
      %v4196 = vsel %vm4170, %v4163, %v3720
      %v4197 = vsel %vm4170, %v4164, %v3722
      %v4198 = vsel %vm4170, %v4165, %v3724
      %v4199 = vsel %vm4170, %v4166, %v3726
      %v4200 = vsel %vm4170, %v4167, %v3728
      %v4201 = vsel %vm4170, %v4168, %v3730
      %v4202 = vsel %vm4170, %v4169, %v3732
      %vm4203 = vcmask 392192
      %v4204 = vsel %vm4203, %v4171, %v3766
      %v4205 = vsel %vm4203, %v4172, %v3768
      %v4206 = vsel %vm4203, %v4173, %v3770
      %v4207 = vsel %vm4203, %v4174, %v3772
      %v4208 = vsel %vm4203, %v4175, %v3774
      %v4209 = vsel %vm4203, %v4176, %v3776
      %v4210 = vsel %vm4203, %v4177, %v3778
      %v4211 = vsel %vm4203, %v4178, %v3780
      %v4212 = vsel %vm4203, %v4179, %v3782
      %v4213 = vsel %vm4203, %v4180, %v3784
      %v4214 = vsel %vm4203, %v4181, %v3786
      %v4215 = vsel %vm4203, %v4182, %v3788
      %v4216 = vsel %vm4203, %v4183, %v3790
      %v4217 = vsel %vm4203, %v4184, %v3792
      %v4218 = vsel %vm4203, %v4185, %v3794
      %v4219 = vsel %vm4203, %v4186, %v3796
      %v4220 = vsel %vm4203, %v4187, %v3798
      %v4221 = vsel %vm4203, %v4188, %v3800
      %v4222 = vsel %vm4203, %v4189, %v3802
      %v4223 = vsel %vm4203, %v4190, %v3804
      %v4224 = vsel %vm4203, %v4191, %v3806
      %v4225 = vsel %vm4203, %v4192, %v3808
      %v4226 = vsel %vm4203, %v4193, %v3810
      %v4227 = vsel %vm4203, %v4194, %v3812
      %v4228 = vsel %vm4203, %v4195, %v3814
      %v4229 = vsel %vm4203, %v4196, %v3816
      %v4230 = vsel %vm4203, %v4197, %v3818
      %v4231 = vsel %vm4203, %v4198, %v3820
      %v4232 = vsel %vm4203, %v4199, %v3822
      %v4233 = vsel %vm4203, %v4200, %v3824
      %v4234 = vsel %vm4203, %v4201, %v3826
      %v4235 = vsel %vm4203, %v4202, %v3826
      %vm4236 = vcmask 457728
      %v4237 = vsel %vm4236, %v4204, %v3859
      %v4238 = vsel %vm4236, %v4205, %v3861
      %v4239 = vsel %vm4236, %v4206, %v3863
      %v4240 = vsel %vm4236, %v4207, %v3865
      %v4241 = vsel %vm4236, %v4208, %v3867
      %v4242 = vsel %vm4236, %v4209, %v3869
      %v4243 = vsel %vm4236, %v4210, %v3871
      %v4244 = vsel %vm4236, %v4211, %v3873
      %v4245 = vsel %vm4236, %v4212, %v3875
      %v4246 = vsel %vm4236, %v4213, %v3877
      %v4247 = vsel %vm4236, %v4214, %v3879
      %v4248 = vsel %vm4236, %v4215, %v3881
      %v4249 = vsel %vm4236, %v4216, %v3883
      %v4250 = vsel %vm4236, %v4217, %v3885
      %v4251 = vsel %vm4236, %v4218, %v3887
      %v4252 = vsel %vm4236, %v4219, %v3889
      %v4253 = vsel %vm4236, %v4220, %v3891
      %v4254 = vsel %vm4236, %v4221, %v3893
      %v4255 = vsel %vm4236, %v4222, %v3895
      %v4256 = vsel %vm4236, %v4223, %v3897
      %v4257 = vsel %vm4236, %v4224, %v3899
      %v4258 = vsel %vm4236, %v4225, %v3901
      %v4259 = vsel %vm4236, %v4226, %v3903
      %v4260 = vsel %vm4236, %v4227, %v3905
      %v4261 = vsel %vm4236, %v4228, %v3907
      %v4262 = vsel %vm4236, %v4229, %v3909
      %v4263 = vsel %vm4236, %v4230, %v3911
      %v4264 = vsel %vm4236, %v4231, %v3913
      %v4265 = vsel %vm4236, %v4232, %v3915
      %v4266 = vsel %vm4236, %v4233, %v3917
      %v4267 = vsel %vm4236, %v4234, %v3919
      %v4268 = vsel %vm4236, %v4235, %v3919
      %vm4269 = vcmask 523264
      %v4270 = vsel %vm4269, %v4237, %v3952
      %v4271 = vsel %vm4269, %v4238, %v3954
      %v4272 = vsel %vm4269, %v4239, %v3956
      %v4273 = vsel %vm4269, %v4240, %v3958
      %v4274 = vsel %vm4269, %v4241, %v3960
      %v4275 = vsel %vm4269, %v4242, %v3962
      %v4276 = vsel %vm4269, %v4243, %v3964
      %v4277 = vsel %vm4269, %v4244, %v3966
      %v4278 = vsel %vm4269, %v4245, %v3968
      %v4279 = vsel %vm4269, %v4246, %v3970
      %v4280 = vsel %vm4269, %v4247, %v3972
      %v4281 = vsel %vm4269, %v4248, %v3974
      %v4282 = vsel %vm4269, %v4249, %v3976
      %v4283 = vsel %vm4269, %v4250, %v3978
      %v4284 = vsel %vm4269, %v4251, %v3980
      %v4285 = vsel %vm4269, %v4252, %v3982
      %v4286 = vsel %vm4269, %v4253, %v3984
      %v4287 = vsel %vm4269, %v4254, %v3986
      %v4288 = vsel %vm4269, %v4255, %v3988
      %v4289 = vsel %vm4269, %v4256, %v3990
      %v4290 = vsel %vm4269, %v4257, %v3992
      %v4291 = vsel %vm4269, %v4258, %v3994
      %v4292 = vsel %vm4269, %v4259, %v3996
      %v4293 = vsel %vm4269, %v4260, %v3998
      %v4294 = vsel %vm4269, %v4261, %v4000
      %v4295 = vsel %vm4269, %v4262, %v4002
      %v4296 = vsel %vm4269, %v4263, %v4004
      %v4297 = vsel %vm4269, %v4264, %v4006
      %v4298 = vsel %vm4269, %v4265, %v4008
      %v4299 = vsel %vm4269, %v4266, %v4010
      %v4300 = vsel %vm4269, %v4267, %v4012
      %v4301 = vsel %vm4269, %v4268, %v4012
      %v4302 = vld [vmem:[%s10] sm:$0xff]
      %v4303 = vld [vmem:[%s10 + $0x8] sm:$0xff]
      %v4304 = vld [vmem:[%s10 + $0x10] sm:$0xff]
      %v4305 = vld [vmem:[%s10 + $0x18] sm:$0xff]
      %v4306 = vld [vmem:[%s10 + $0x20] sm:$0xff]
      %v4307 = vld [vmem:[%s10 + $0x28] sm:$0xff]
      %v4308 = vld [vmem:[%s10 + $0x30] sm:$0xff]
      %v4309 = vld [vmem:[%s10 + $0x38] sm:$0xff]
      %v4310 = vld [vmem:[%s10 + $0x40] sm:$0xff]
      %v4311 = vld [vmem:[%s11] sm:$0x1]
      %v4313 = vlaneseq
      %v4314 = vshrl.u32 %v4313, 7
      %v4315 = vsub.s32 0, %v4314
      %v4316 = vrot.slane %v4311, %v4315
      %vm4318 = vcmask 588800
      %v4320 = vsel %vm4318, %v4270, 0
      %v4323 = vsel %vm4318, %v4271, 0
      %v4326 = vsel %vm4318, %v4272, 0
      %v4329 = vsel %vm4318, %v4273, 0
      %v4332 = vsel %vm4318, %v4274, 0
      %v4335 = vsel %vm4318, %v4275, 0
      %v4338 = vsel %vm4318, %v4276, 0
      %v4341 = vsel %vm4318, %v4277, 0
      %v4344 = vsel %vm4318, %v4278, 0
      %v4347 = vsel %vm4318, %v4279, 0
      %v4350 = vsel %vm4318, %v4280, 0
      %v4353 = vsel %vm4318, %v4281, 0
      %v4356 = vsel %vm4318, %v4282, 0
      %v4359 = vsel %vm4318, %v4283, 0
      %v4362 = vsel %vm4318, %v4284, 0
      %v4365 = vsel %vm4318, %v4285, 0
      %v4368 = vsel %vm4318, %v4286, 0
      %v4371 = vsel %vm4318, %v4287, 0
      %v4374 = vsel %vm4318, %v4288, 0
      %v4377 = vsel %vm4318, %v4289, 0
      %v4380 = vsel %vm4318, %v4290, 0
      %v4383 = vsel %vm4318, %v4291, 0
      %v4386 = vsel %vm4318, %v4292, 0
      %v4389 = vsel %vm4318, %v4293, 0
      %v4392 = vsel %vm4318, %v4294, 0
      %v4395 = vsel %vm4318, %v4295, 0
      %v4398 = vsel %vm4318, %v4296, 0
      %v4401 = vsel %vm4318, %v4297, 0
      %v4404 = vsel %vm4318, %v4298, 0
      %v4407 = vsel %vm4318, %v4299, 0
      %v4410 = vsel %vm4318, %v4300, 0
      %v4413 = vsel %vm4318, %v4301, 0
      %4415 = vmatprep.subr.mxu0 0.0
      %4416 = vmatpush1.msra.mxu0 0.0
      %4417 = vmatprep.subr.mxu0 0.0
      %4418 = vmatpush1.msra.mxu0 0.0
      %4419 = vmatprep.subr.mxu0 0.0
      %4420 = vmatpush1.msra.mxu0 0.0
      %4421 = vmatprep.subr.mxu0 0.0
      %4422 = vmatpush1.msra.mxu0 0.0
      %4423 = vmatprep.subr.mxu0 0.0
      %4424 = vmatpush1.msra.mxu0 0.0
      %4425 = vmatprep.subr.mxu0 0.0
      %4426 = vmatpush1.msra.mxu0 0.0
      %4427 = vmatprep.subr.mxu0 0.0
      %4428 = vmatpush1.msra.mxu0 0.0
      %4429 = vmatprep.subr.mxu0 0.0
      %4430 = vmatpush1.msra.mxu0 %v4310
      %4431 = vmatprep.subr.mxu0 0.0
      %4432 = vmatpush1.msra.mxu0 %v4309
      %4433 = vmatprep.subr.mxu0 0.0
      %4434 = vmatpush1.msra.mxu0 %v4308
      %4435 = vmatprep.subr.mxu0 0.0
      %4436 = vmatpush1.msra.mxu0 %v4307
      %4437 = vmatprep.subr.mxu0 0.0
      %4438 = vmatpush1.msra.mxu0 %v4306
      %4439 = vmatprep.subr.mxu0 0.0
      %4440 = vmatpush1.msra.mxu0 %v4305
      %4441 = vmatprep.subr.mxu0 0.0
      %4442 = vmatpush1.msra.mxu0 %v4304
      %4443 = vmatprep.subr.mxu0 0.0
      %4444 = vmatpush1.msra.mxu0 %v4303
      %4445 = vmatprep.subr.mxu0 0.0
      %4446 = vmatpush1.msra.mxu0 %v4302
      %4447 = vmatprep.subr.mxu0 0.0
      %4448 = vmatpush2.msra.mxu0 0.0
      %4449 = vmatprep.subr.mxu0 0.0
      %4450 = vmatpush2.msra.mxu0 0.0
      %4451 = vmatprep.subr.mxu0 0.0
      %4452 = vmatpush2.msra.mxu0 0.0
      %4453 = vmatprep.subr.mxu0 0.0
      %4454 = vmatpush2.msra.mxu0 0.0
      %4455 = vmatprep.subr.mxu0 0.0
      %4456 = vmatpush2.msra.mxu0 0.0
      %4457 = vmatprep.subr.mxu0 0.0
      %4458 = vmatpush2.msra.mxu0 0.0
      %4459 = vmatprep.subr.mxu0 0.0
      %4460 = vmatpush2.msra.mxu0 0.0
      %4461 = vmatprep.subr.mxu0 0.0
      %4462 = vmatpush2.msra.mxu0 0.0
      %4463 = vmatprep.subr.mxu0 0.0
      %4464 = vmatpush2.msra.mxu0 0.0
      %4465 = vmatprep.subr.mxu0 0.0
      %4466 = vmatpush2.msra.mxu0 0.0
      %4467 = vmatprep.subr.mxu0 0.0
      %4468 = vmatpush2.msra.mxu0 0.0
      %4469 = vmatprep.subr.mxu0 0.0
      %4470 = vmatpush2.msra.mxu0 0.0
      %4471 = vmatprep.subr.mxu0 0.0
      %4472 = vmatpush2.msra.mxu0 0.0
      %4473 = vmatprep.subr.mxu0 0.0
      %4474 = vmatpush2.msra.mxu0 0.0
      %4475 = vmatprep.subr.mxu0 0.0
      %4476 = vmatpush2.msra.mxu0 0.0
      %4477 = vmatprep.subr.mxu0 0.0
      %4478 = vmatpush2.msra.mxu0 0.0
      %4479 = vmatprep.mubr.f32.mxu0 0.0
      %4480 = vmatmul.mubr.f32.gmra.mxu0 %v4320
      %v4481 = vpop.f32.mrf.mxu0
      %v4482 = vadd.f32 %v4316, %v4481
      %v4483 = vpop.f32.mrf.mxu0
      %4484 = vmatprep.mubr.f32.mxu0 0.0
      %4485 = vmatmul.mubr.f32.gmra.mxu0 %v4323
      %v4486 = vpop.f32.mrf.mxu0
      %v4487 = vadd.f32 %v4316, %v4486
      %v4488 = vpop.f32.mrf.mxu0
      %4489 = vmatprep.mubr.f32.mxu0 0.0
      %4490 = vmatmul.mubr.f32.gmra.mxu0 %v4326
      %v4491 = vpop.f32.mrf.mxu0
      %v4492 = vadd.f32 %v4316, %v4491
      %v4493 = vpop.f32.mrf.mxu0
      %4494 = vmatprep.mubr.f32.mxu0 0.0
      %4495 = vmatmul.mubr.f32.gmra.mxu0 %v4329
      %v4496 = vpop.f32.mrf.mxu0
      %v4497 = vadd.f32 %v4316, %v4496
      %v4498 = vpop.f32.mrf.mxu0
      %4499 = vmatprep.mubr.f32.mxu0 0.0
      %4500 = vmatmul.mubr.f32.gmra.mxu0 %v4332
      %v4501 = vpop.f32.mrf.mxu0
      %v4502 = vadd.f32 %v4316, %v4501
      %v4503 = vpop.f32.mrf.mxu0
      %4504 = vmatprep.mubr.f32.mxu0 0.0
      %4505 = vmatmul.mubr.f32.gmra.mxu0 %v4335
      %v4506 = vpop.f32.mrf.mxu0
      %v4507 = vadd.f32 %v4316, %v4506
      %v4508 = vpop.f32.mrf.mxu0
      %4509 = vmatprep.mubr.f32.mxu0 0.0
      %4510 = vmatmul.mubr.f32.gmra.mxu0 %v4338
      %v4511 = vpop.f32.mrf.mxu0
      %v4512 = vadd.f32 %v4316, %v4511
      %v4513 = vpop.f32.mrf.mxu0
      %4514 = vmatprep.mubr.f32.mxu0 0.0
      %4515 = vmatmul.mubr.f32.gmra.mxu0 %v4341
      %v4516 = vpop.f32.mrf.mxu0
      %v4517 = vadd.f32 %v4316, %v4516
      %v4518 = vpop.f32.mrf.mxu0
      %4519 = vmatprep.mubr.f32.mxu0 0.0
      %4520 = vmatmul.mubr.f32.gmra.mxu0 %v4344
      %v4521 = vpop.f32.mrf.mxu0
      %v4522 = vadd.f32 %v4316, %v4521
      %v4523 = vpop.f32.mrf.mxu0
      %4524 = vmatprep.mubr.f32.mxu0 0.0
      %4525 = vmatmul.mubr.f32.gmra.mxu0 %v4347
      %v4526 = vpop.f32.mrf.mxu0
      %v4527 = vadd.f32 %v4316, %v4526
      %v4528 = vpop.f32.mrf.mxu0
      %4529 = vmatprep.mubr.f32.mxu0 0.0
      %4530 = vmatmul.mubr.f32.gmra.mxu0 %v4350
      %v4531 = vpop.f32.mrf.mxu0
      %v4532 = vadd.f32 %v4316, %v4531
      %v4533 = vpop.f32.mrf.mxu0
      %4534 = vmatprep.mubr.f32.mxu0 0.0
      %4535 = vmatmul.mubr.f32.gmra.mxu0 %v4353
      %v4536 = vpop.f32.mrf.mxu0
      %v4537 = vadd.f32 %v4316, %v4536
      %v4538 = vpop.f32.mrf.mxu0
      %4539 = vmatprep.mubr.f32.mxu0 0.0
      %4540 = vmatmul.mubr.f32.gmra.mxu0 %v4356
      %v4541 = vpop.f32.mrf.mxu0
      %v4542 = vadd.f32 %v4316, %v4541
      %v4543 = vpop.f32.mrf.mxu0
      %4544 = vmatprep.mubr.f32.mxu0 0.0
      %4545 = vmatmul.mubr.f32.gmra.mxu0 %v4359
      %v4546 = vpop.f32.mrf.mxu0
      %v4547 = vadd.f32 %v4316, %v4546
      %v4548 = vpop.f32.mrf.mxu0
      %4549 = vmatprep.mubr.f32.mxu0 0.0
      %4550 = vmatmul.mubr.f32.gmra.mxu0 %v4362
      %v4551 = vpop.f32.mrf.mxu0
      %v4552 = vadd.f32 %v4316, %v4551
      %v4553 = vpop.f32.mrf.mxu0
      %4554 = vmatprep.mubr.f32.mxu0 0.0
      %4555 = vmatmul.mubr.f32.gmra.mxu0 %v4365
      %v4556 = vpop.f32.mrf.mxu0
      %v4557 = vadd.f32 %v4316, %v4556
      %v4558 = vpop.f32.mrf.mxu0
      %4559 = vmatprep.mubr.f32.mxu0 0.0
      %4560 = vmatmul.mubr.f32.gmra.mxu0 %v4368
      %v4561 = vpop.f32.mrf.mxu0
      %v4562 = vadd.f32 %v4316, %v4561
      %v4563 = vpop.f32.mrf.mxu0
      %4564 = vmatprep.mubr.f32.mxu0 0.0
      %4565 = vmatmul.mubr.f32.gmra.mxu0 %v4371
      %v4566 = vpop.f32.mrf.mxu0
      %v4567 = vadd.f32 %v4316, %v4566
      %v4568 = vpop.f32.mrf.mxu0
      %4569 = vmatprep.mubr.f32.mxu0 0.0
      %4570 = vmatmul.mubr.f32.gmra.mxu0 %v4374
      %v4571 = vpop.f32.mrf.mxu0
      %v4572 = vadd.f32 %v4316, %v4571
      %v4573 = vpop.f32.mrf.mxu0
      %4574 = vmatprep.mubr.f32.mxu0 0.0
      %4575 = vmatmul.mubr.f32.gmra.mxu0 %v4377
      %v4576 = vpop.f32.mrf.mxu0
      %v4577 = vadd.f32 %v4316, %v4576
      %v4578 = vpop.f32.mrf.mxu0
      %4579 = vmatprep.mubr.f32.mxu0 0.0
      %4580 = vmatmul.mubr.f32.gmra.mxu0 %v4380
      %v4581 = vpop.f32.mrf.mxu0
      %v4582 = vadd.f32 %v4316, %v4581
      %v4583 = vpop.f32.mrf.mxu0
      %4584 = vmatprep.mubr.f32.mxu0 0.0
      %4585 = vmatmul.mubr.f32.gmra.mxu0 %v4383
      %v4586 = vpop.f32.mrf.mxu0
      %v4587 = vadd.f32 %v4316, %v4586
      %v4588 = vpop.f32.mrf.mxu0
      %4589 = vmatprep.mubr.f32.mxu0 0.0
      %4590 = vmatmul.mubr.f32.gmra.mxu0 %v4386
      %v4591 = vpop.f32.mrf.mxu0
      %v4592 = vadd.f32 %v4316, %v4591
      %v4593 = vpop.f32.mrf.mxu0
      %4594 = vmatprep.mubr.f32.mxu0 0.0
      %4595 = vmatmul.mubr.f32.gmra.mxu0 %v4389
      %v4596 = vpop.f32.mrf.mxu0
      %v4597 = vadd.f32 %v4316, %v4596
      %v4598 = vpop.f32.mrf.mxu0
      %4599 = vmatprep.mubr.f32.mxu0 0.0
      %4600 = vmatmul.mubr.f32.gmra.mxu0 %v4392
      %v4601 = vpop.f32.mrf.mxu0
      %v4602 = vadd.f32 %v4316, %v4601
      %v4603 = vpop.f32.mrf.mxu0
      %4604 = vmatprep.mubr.f32.mxu0 0.0
      %4605 = vmatmul.mubr.f32.gmra.mxu0 %v4395
      %v4606 = vpop.f32.mrf.mxu0
      %v4607 = vadd.f32 %v4316, %v4606
      %v4608 = vpop.f32.mrf.mxu0
      %4609 = vmatprep.mubr.f32.mxu0 0.0
      %4610 = vmatmul.mubr.f32.gmra.mxu0 %v4398
      %v4611 = vpop.f32.mrf.mxu0
      %v4612 = vadd.f32 %v4316, %v4611
      %v4613 = vpop.f32.mrf.mxu0
      %4614 = vmatprep.mubr.f32.mxu0 0.0
      %4615 = vmatmul.mubr.f32.gmra.mxu0 %v4401
      %v4616 = vpop.f32.mrf.mxu0
      %v4617 = vadd.f32 %v4316, %v4616
      %v4618 = vpop.f32.mrf.mxu0
      %4619 = vmatprep.mubr.f32.mxu0 0.0
      %4620 = vmatmul.mubr.f32.gmra.mxu0 %v4404
      %v4621 = vpop.f32.mrf.mxu0
      %v4622 = vadd.f32 %v4316, %v4621
      %v4623 = vpop.f32.mrf.mxu0
      %4624 = vmatprep.mubr.f32.mxu0 0.0
      %4625 = vmatmul.mubr.f32.gmra.mxu0 %v4407
      %v4626 = vpop.f32.mrf.mxu0
      %v4627 = vadd.f32 %v4316, %v4626
      %v4628 = vpop.f32.mrf.mxu0
      %4629 = vmatprep.mubr.f32.mxu0 0.0
      %4630 = vmatmul.mubr.f32.gmra.mxu0 %v4410
      %v4631 = vpop.f32.mrf.mxu0
      %v4632 = vadd.f32 %v4316, %v4631
      %v4633 = vpop.f32.mrf.mxu0
      %4634 = vmatprep.mubr.f32.mxu0 0.0
      %4635 = vmatmul.mubr.f32.gmra.mxu0 %v4413
      %v4636 = vpop.f32.mrf.mxu0
      %v4637 = vadd.f32 %v4316, %v4636
      %v4638 = vpop.f32.mrf.mxu0
      %4639 = vdwg.mxu0
      %v4640 = vadd.f32 %v852, %v4482
      %v4641 = vadd.f32 %v857, %v4487
      %v4642 = vadd.f32 %v862, %v4492
      %v4643 = vadd.f32 %v867, %v4497
      %v4644 = vadd.f32 %v872, %v4502
      %v4645 = vadd.f32 %v877, %v4507
      %v4646 = vadd.f32 %v882, %v4512
      %v4647 = vadd.f32 %v887, %v4517
      %v4648 = vadd.f32 %v892, %v4522
      %v4649 = vadd.f32 %v897, %v4527
      %v4650 = vadd.f32 %v902, %v4532
      %v4651 = vadd.f32 %v907, %v4537
      %v4652 = vadd.f32 %v912, %v4542
      %v4653 = vadd.f32 %v917, %v4547
      %v4654 = vadd.f32 %v922, %v4552
      %v4655 = vadd.f32 %v927, %v4557
      %v4656 = vadd.f32 %v932, %v4562
      %v4657 = vadd.f32 %v937, %v4567
      %v4658 = vadd.f32 %v942, %v4572
      %v4659 = vadd.f32 %v947, %v4577
      %v4660 = vadd.f32 %v952, %v4582
      %v4661 = vadd.f32 %v957, %v4587
      %v4662 = vadd.f32 %v962, %v4592
      %v4663 = vadd.f32 %v967, %v4597
      %v4664 = vadd.f32 %v972, %v4602
      %v4665 = vadd.f32 %v977, %v4607
      %v4666 = vadd.f32 %v982, %v4612
      %v4667 = vadd.f32 %v987, %v4617
      %v4668 = vadd.f32 %v992, %v4622
      %v4669 = vadd.f32 %v997, %v4627
      %v4670 = vadd.f32 %v1002, %v4632
      %v4671 = vadd.f32 %v1007, %v4637
      %v4672 = vld [vmem:[%s638] sm:$0x1]
      %v4674 = vlaneseq
      %v4675 = vshrl.u32 %v4674, 7
      %v4676 = vsub.s32 0, %v4675
      %v4677 = vrot.slane %v4672, %v4676
      %v4679 = vadd.f32 %v4640, %v4677
      %v4680 = vadd.f32 %v4641, %v4677
      %v4681 = vadd.f32 %v4642, %v4677
      %v4682 = vadd.f32 %v4643, %v4677
      %v4683 = vadd.f32 %v4644, %v4677
      %v4684 = vadd.f32 %v4645, %v4677
      %v4685 = vadd.f32 %v4646, %v4677
      %v4686 = vadd.f32 %v4647, %v4677
      %v4687 = vadd.f32 %v4648, %v4677
      %v4688 = vadd.f32 %v4649, %v4677
      %v4689 = vadd.f32 %v4650, %v4677
      %v4690 = vadd.f32 %v4651, %v4677
      %v4691 = vadd.f32 %v4652, %v4677
      %v4692 = vadd.f32 %v4653, %v4677
      %v4693 = vadd.f32 %v4654, %v4677
      %v4694 = vadd.f32 %v4655, %v4677
      %v4695 = vadd.f32 %v4656, %v4677
      %v4696 = vadd.f32 %v4657, %v4677
      %v4697 = vadd.f32 %v4658, %v4677
      %v4698 = vadd.f32 %v4659, %v4677
      %v4699 = vadd.f32 %v4660, %v4677
      %v4700 = vadd.f32 %v4661, %v4677
      %v4701 = vadd.f32 %v4662, %v4677
      %v4702 = vadd.f32 %v4663, %v4677
      %v4703 = vadd.f32 %v4664, %v4677
      %v4704 = vadd.f32 %v4665, %v4677
      %v4705 = vadd.f32 %v4666, %v4677
      %v4706 = vadd.f32 %v4667, %v4677
      %v4707 = vadd.f32 %v4668, %v4677
      %v4708 = vadd.f32 %v4669, %v4677
      %v4709 = vadd.f32 %v4670, %v4677
      %v4710 = vadd.f32 %v4671, %v4677
      %v4711 = vld [vmem:[%s12] sm:$0x1]
      %v4713 = vlaneseq
      %v4714 = vshrl.u32 %v4713, 7
      %v4715 = vsub.s32 0, %v4714
      %v4716 = vrot.slane %v4711, %v4715
      %v4718 = vmul.f32 %v4679, %v4716
      %v4719 = vmul.f32 %v4680, %v4716
      %v4720 = vmul.f32 %v4681, %v4716
      %v4721 = vmul.f32 %v4682, %v4716
      %v4722 = vmul.f32 %v4683, %v4716
      %v4723 = vmul.f32 %v4684, %v4716
      %v4724 = vmul.f32 %v4685, %v4716
      %v4725 = vmul.f32 %v4686, %v4716
      %v4726 = vmul.f32 %v4687, %v4716
      %v4727 = vmul.f32 %v4688, %v4716
      %v4728 = vmul.f32 %v4689, %v4716
      %v4729 = vmul.f32 %v4690, %v4716
      %v4730 = vmul.f32 %v4691, %v4716
      %v4731 = vmul.f32 %v4692, %v4716
      %v4732 = vmul.f32 %v4693, %v4716
      %v4733 = vmul.f32 %v4694, %v4716
      %v4734 = vmul.f32 %v4695, %v4716
      %v4735 = vmul.f32 %v4696, %v4716
      %v4736 = vmul.f32 %v4697, %v4716
      %v4737 = vmul.f32 %v4698, %v4716
      %v4738 = vmul.f32 %v4699, %v4716
      %v4739 = vmul.f32 %v4700, %v4716
      %v4740 = vmul.f32 %v4701, %v4716
      %v4741 = vmul.f32 %v4702, %v4716
      %v4742 = vmul.f32 %v4703, %v4716
      %v4743 = vmul.f32 %v4704, %v4716
      %v4744 = vmul.f32 %v4705, %v4716
      %v4745 = vmul.f32 %v4706, %v4716
      %v4746 = vmul.f32 %v4707, %v4716
      %v4747 = vmul.f32 %v4708, %v4716
      %v4748 = vmul.f32 %v4709, %v4716
      %v4749 = vmul.f32 %v4710, %v4716
      %v4750 = vld [vmem:[%s13] sm:$0x1]
      %v4752 = vlaneseq
      %v4753 = vshrl.u32 %v4752, 7
      %v4754 = vsub.s32 0, %v4753
      %v4755 = vrot.slane %v4750, %v4754
      %v4757 = vadd.f32 %v4718, %v4755
      %v4758 = vadd.f32 %v4719, %v4755
      %v4759 = vadd.f32 %v4720, %v4755
      %v4760 = vadd.f32 %v4721, %v4755
      %v4761 = vadd.f32 %v4722, %v4755
      %v4762 = vadd.f32 %v4723, %v4755
      %v4763 = vadd.f32 %v4724, %v4755
      %v4764 = vadd.f32 %v4725, %v4755
      %v4765 = vadd.f32 %v4726, %v4755
      %v4766 = vadd.f32 %v4727, %v4755
      %v4767 = vadd.f32 %v4728, %v4755
      %v4768 = vadd.f32 %v4729, %v4755
      %v4769 = vadd.f32 %v4730, %v4755
      %v4770 = vadd.f32 %v4731, %v4755
      %v4771 = vadd.f32 %v4732, %v4755
      %v4772 = vadd.f32 %v4733, %v4755
      %v4773 = vadd.f32 %v4734, %v4755
      %v4774 = vadd.f32 %v4735, %v4755
      %v4775 = vadd.f32 %v4736, %v4755
      %v4776 = vadd.f32 %v4737, %v4755
      %v4777 = vadd.f32 %v4738, %v4755
      %v4778 = vadd.f32 %v4739, %v4755
      %v4779 = vadd.f32 %v4740, %v4755
      %v4780 = vadd.f32 %v4741, %v4755
      %v4781 = vadd.f32 %v4742, %v4755
      %v4782 = vadd.f32 %v4743, %v4755
      %v4783 = vadd.f32 %v4744, %v4755
      %v4784 = vadd.f32 %v4745, %v4755
      %v4785 = vadd.f32 %v4746, %v4755
      %v4786 = vadd.f32 %v4747, %v4755
      %v4787 = vadd.f32 %v4748, %v4755
      %v4788 = vadd.f32 %v4749, %v4755
      %v4789 = vmax.f32 %v4757, 0.0
      %v4790 = vmax.f32 %v4758, 0.0
      %v4791 = vmax.f32 %v4759, 0.0
      %v4792 = vmax.f32 %v4760, 0.0
      %v4793 = vmax.f32 %v4761, 0.0
      %v4794 = vmax.f32 %v4762, 0.0
      %v4795 = vmax.f32 %v4763, 0.0
      %v4796 = vmax.f32 %v4764, 0.0
      %v4797 = vmax.f32 %v4765, 0.0
      %v4798 = vmax.f32 %v4766, 0.0
      %v4799 = vmax.f32 %v4767, 0.0
      %v4800 = vmax.f32 %v4768, 0.0
      %v4801 = vmax.f32 %v4769, 0.0
      %v4802 = vmax.f32 %v4770, 0.0
      %v4803 = vmax.f32 %v4771, 0.0
      %v4804 = vmax.f32 %v4772, 0.0
      %v4805 = vmax.f32 %v4773, 0.0
      %v4806 = vmax.f32 %v4774, 0.0
      %v4807 = vmax.f32 %v4775, 0.0
      %v4808 = vmax.f32 %v4776, 0.0
      %v4809 = vmax.f32 %v4777, 0.0
      %v4810 = vmax.f32 %v4778, 0.0
      %v4811 = vmax.f32 %v4779, 0.0
      %v4812 = vmax.f32 %v4780, 0.0
      %v4813 = vmax.f32 %v4781, 0.0
      %v4814 = vmax.f32 %v4782, 0.0
      %v4815 = vmax.f32 %v4783, 0.0
      %v4816 = vmax.f32 %v4784, 0.0
      %v4817 = vmax.f32 %v4785, 0.0
      %v4818 = vmax.f32 %v4786, 0.0
      %v4819 = vmax.f32 %v4787, 0.0
      %v4820 = vmax.f32 %v4788, 0.0
      %v4853 = vrot.slane %v4789, 7
      %v4854 = vrot.slane %v4790, 7
      %v4855 = vsel %vm1152, %v4853, %v4854
      %v4856 = vrot.slane %v4791, 7
      %v4857 = vrot.slane %v4792, 7
      %v4858 = vsel %vm1152, %v4856, %v4857
      %v4859 = vrot.slane %v4793, 7
      %v4860 = vrot.slane %v4794, 7
      %v4861 = vsel %vm1152, %v4859, %v4860
      %v4862 = vrot.slane %v4795, 7
      %v4863 = vrot.slane %v4796, 7
      %v4864 = vsel %vm1152, %v4862, %v4863
      %v4865 = vrot.slane %v4797, 7
      %v4866 = vrot.slane %v4798, 7
      %v4867 = vsel %vm1152, %v4865, %v4866
      %v4868 = vrot.slane %v4799, 7
      %v4869 = vrot.slane %v4800, 7
      %v4870 = vsel %vm1152, %v4868, %v4869
      %v4871 = vrot.slane %v4801, 7
      %v4872 = vrot.slane %v4802, 7
      %v4873 = vsel %vm1152, %v4871, %v4872
      %v4874 = vrot.slane %v4803, 7
      %v4875 = vrot.slane %v4804, 7
      %v4876 = vsel %vm1152, %v4874, %v4875
      %v4877 = vrot.slane %v4805, 7
      %v4878 = vrot.slane %v4806, 7
      %v4879 = vsel %vm1152, %v4877, %v4878
      %v4880 = vrot.slane %v4807, 7
      %v4881 = vrot.slane %v4808, 7
      %v4882 = vsel %vm1152, %v4880, %v4881
      %v4883 = vrot.slane %v4809, 7
      %v4884 = vrot.slane %v4810, 7
      %v4885 = vsel %vm1152, %v4883, %v4884
      %v4886 = vrot.slane %v4811, 7
      %v4887 = vrot.slane %v4812, 7
      %v4888 = vsel %vm1152, %v4886, %v4887
      %v4889 = vrot.slane %v4813, 7
      %v4890 = vrot.slane %v4814, 7
      %v4891 = vsel %vm1152, %v4889, %v4890
      %v4892 = vrot.slane %v4815, 7
      %v4893 = vrot.slane %v4816, 7
      %v4894 = vsel %vm1152, %v4892, %v4893
      %v4895 = vrot.slane %v4817, 7
      %v4896 = vrot.slane %v4818, 7
      %v4897 = vsel %vm1152, %v4895, %v4896
      %v4898 = vrot.slane %v4819, 7
      %v4899 = vrot.slane %v4820, 7
      %v4900 = vsel %vm1152, %v4898, %v4899
      %v4948 = vsel %vm1152, 0.0, %v4853
      %v4949 = vsel %vm1152, 0.0, %v4856
      %v4950 = vsel %vm1152, 0.0, %v4859
      %v4951 = vsel %vm1152, 0.0, %v4862
      %v4952 = vsel %vm1152, 0.0, %v4865
      %v4953 = vsel %vm1152, 0.0, %v4868
      %v4954 = vsel %vm1152, 0.0, %v4871
      %v4955 = vsel %vm1152, 0.0, %v4874
      %v4956 = vsel %vm1152, 0.0, %v4877
      %v4957 = vsel %vm1152, 0.0, %v4880
      %v4958 = vsel %vm1152, 0.0, %v4883
      %v4959 = vsel %vm1152, 0.0, %v4886
      %v4960 = vsel %vm1152, 0.0, %v4889
      %v4961 = vsel %vm1152, 0.0, %v4892
      %v4962 = vsel %vm1152, 0.0, %v4895
      %v4963 = vsel %vm1152, 0.0, %v4898
      %v4964 = vsel %vm1152, %v4854, 0.0
      %v4965 = vsel %vm1152, %v4857, 0.0
      %v4966 = vsel %vm1152, %v4860, 0.0
      %v4967 = vsel %vm1152, %v4863, 0.0
      %v4968 = vsel %vm1152, %v4866, 0.0
      %v4969 = vsel %vm1152, %v4869, 0.0
      %v4970 = vsel %vm1152, %v4872, 0.0
      %v4971 = vsel %vm1152, %v4875, 0.0
      %v4972 = vsel %vm1152, %v4878, 0.0
      %v4973 = vsel %vm1152, %v4881, 0.0
      %v4974 = vsel %vm1152, %v4884, 0.0
      %v4975 = vsel %vm1152, %v4887, 0.0
      %v4976 = vsel %vm1152, %v4890, 0.0
      %v4977 = vsel %vm1152, %v4893, 0.0
      %v4978 = vsel %vm1152, %v4896, 0.0
      %v4979 = vsel %vm1152, %v4899, 0.0
      %v5010 = vrot.slane %v4948, 1
      %v5011 = vrot.slane %v4855, 1
      %v5012 = vsel %vm1311, %v5010, %v5011
      %v5013 = vrot.slane %v4964, 1
      %v5014 = vsel %vm1311, %v5011, %v5013
      %v5015 = vrot.slane %v4949, 1
      %v5016 = vrot.slane %v4858, 1
      %v5017 = vsel %vm1311, %v5015, %v5016
      %v5018 = vrot.slane %v4965, 1
      %v5019 = vsel %vm1311, %v5016, %v5018
      %v5020 = vrot.slane %v4950, 1
      %v5021 = vrot.slane %v4861, 1
      %v5022 = vsel %vm1311, %v5020, %v5021
      %v5023 = vrot.slane %v4966, 1
      %v5024 = vsel %vm1311, %v5021, %v5023
      %v5025 = vrot.slane %v4951, 1
      %v5026 = vrot.slane %v4864, 1
      %v5027 = vsel %vm1311, %v5025, %v5026
      %v5028 = vrot.slane %v4967, 1
      %v5029 = vsel %vm1311, %v5026, %v5028
      %v5030 = vrot.slane %v4952, 1
      %v5031 = vrot.slane %v4867, 1
      %v5032 = vsel %vm1311, %v5030, %v5031
      %v5033 = vrot.slane %v4968, 1
      %v5034 = vsel %vm1311, %v5031, %v5033
      %v5035 = vrot.slane %v4953, 1
      %v5036 = vrot.slane %v4870, 1
      %v5037 = vsel %vm1311, %v5035, %v5036
      %v5038 = vrot.slane %v4969, 1
      %v5039 = vsel %vm1311, %v5036, %v5038
      %v5040 = vrot.slane %v4954, 1
      %v5041 = vrot.slane %v4873, 1
      %v5042 = vsel %vm1311, %v5040, %v5041
      %v5043 = vrot.slane %v4970, 1
      %v5044 = vsel %vm1311, %v5041, %v5043
      %v5045 = vrot.slane %v4955, 1
      %v5046 = vrot.slane %v4876, 1
      %v5047 = vsel %vm1311, %v5045, %v5046
      %v5048 = vrot.slane %v4971, 1
      %v5049 = vsel %vm1311, %v5046, %v5048
      %v5050 = vrot.slane %v4956, 1
      %v5051 = vrot.slane %v4879, 1
      %v5052 = vsel %vm1311, %v5050, %v5051
      %v5053 = vrot.slane %v4972, 1
      %v5054 = vsel %vm1311, %v5051, %v5053
      %v5055 = vrot.slane %v4957, 1
      %v5056 = vrot.slane %v4882, 1
      %v5057 = vsel %vm1311, %v5055, %v5056
      %v5058 = vrot.slane %v4973, 1
      %v5059 = vsel %vm1311, %v5056, %v5058
      %v5060 = vrot.slane %v4958, 1
      %v5061 = vrot.slane %v4885, 1
      %v5062 = vsel %vm1311, %v5060, %v5061
      %v5063 = vrot.slane %v4974, 1
      %v5064 = vsel %vm1311, %v5061, %v5063
      %v5065 = vrot.slane %v4959, 1
      %v5066 = vrot.slane %v4888, 1
      %v5067 = vsel %vm1311, %v5065, %v5066
      %v5068 = vrot.slane %v4975, 1
      %v5069 = vsel %vm1311, %v5066, %v5068
      %v5070 = vrot.slane %v4960, 1
      %v5071 = vrot.slane %v4891, 1
      %v5072 = vsel %vm1311, %v5070, %v5071
      %v5073 = vrot.slane %v4976, 1
      %v5074 = vsel %vm1311, %v5071, %v5073
      %v5075 = vrot.slane %v4961, 1
      %v5076 = vrot.slane %v4894, 1
      %v5077 = vsel %vm1311, %v5075, %v5076
      %v5078 = vrot.slane %v4977, 1
      %v5079 = vsel %vm1311, %v5076, %v5078
      %v5080 = vrot.slane %v4962, 1
      %v5081 = vrot.slane %v4897, 1
      %v5082 = vsel %vm1311, %v5080, %v5081
      %v5083 = vrot.slane %v4978, 1
      %v5084 = vsel %vm1311, %v5081, %v5083
      %5085 = vrot.lane.b32.xlu0 %v5012, 8
      %v5086 = vpop.permute.xlu0 %5085
      %5087 = vrot.lane.b32.xlu0 %v5014, 8
      %v5088 = vpop.permute.xlu0 %5087
      %5089 = vrot.lane.b32.xlu0 %v5017, 8
      %v5090 = vpop.permute.xlu0 %5089
      %5091 = vrot.lane.b32.xlu0 %v5019, 8
      %v5092 = vpop.permute.xlu0 %5091
      %5093 = vrot.lane.b32.xlu0 %v5022, 8
      %v5094 = vpop.permute.xlu0 %5093
      %5095 = vrot.lane.b32.xlu0 %v5024, 8
      %v5096 = vpop.permute.xlu0 %5095
      %5097 = vrot.lane.b32.xlu0 %v5027, 8
      %v5098 = vpop.permute.xlu0 %5097
      %5099 = vrot.lane.b32.xlu0 %v5029, 8
      %v5100 = vpop.permute.xlu0 %5099
      %5101 = vrot.lane.b32.xlu0 %v5032, 8
      %v5102 = vpop.permute.xlu0 %5101
      %5103 = vrot.lane.b32.xlu0 %v5034, 8
      %v5104 = vpop.permute.xlu0 %5103
      %5105 = vrot.lane.b32.xlu0 %v5037, 8
      %v5106 = vpop.permute.xlu0 %5105
      %5107 = vrot.lane.b32.xlu0 %v5039, 8
      %v5108 = vpop.permute.xlu0 %5107
      %5109 = vrot.lane.b32.xlu0 %v5042, 8
      %v5110 = vpop.permute.xlu0 %5109
      %5111 = vrot.lane.b32.xlu0 %v5044, 8
      %v5112 = vpop.permute.xlu0 %5111
      %5113 = vrot.lane.b32.xlu0 %v5047, 8
      %v5114 = vpop.permute.xlu0 %5113
      %5115 = vrot.lane.b32.xlu0 %v5049, 8
      %v5116 = vpop.permute.xlu0 %5115
      %5117 = vrot.lane.b32.xlu0 %v5052, 8
      %v5118 = vpop.permute.xlu0 %5117
      %5119 = vrot.lane.b32.xlu0 %v5054, 8
      %v5120 = vpop.permute.xlu0 %5119
      %5121 = vrot.lane.b32.xlu0 %v5057, 8
      %v5122 = vpop.permute.xlu0 %5121
      %5123 = vrot.lane.b32.xlu0 %v5059, 8
      %v5124 = vpop.permute.xlu0 %5123
      %5125 = vrot.lane.b32.xlu0 %v5062, 8
      %v5126 = vpop.permute.xlu0 %5125
      %5127 = vrot.lane.b32.xlu0 %v5064, 8
      %v5128 = vpop.permute.xlu0 %5127
      %5129 = vrot.lane.b32.xlu0 %v5067, 8
      %v5130 = vpop.permute.xlu0 %5129
      %5131 = vrot.lane.b32.xlu0 %v5069, 8
      %v5132 = vpop.permute.xlu0 %5131
      %5133 = vrot.lane.b32.xlu0 %v5072, 8
      %v5134 = vpop.permute.xlu0 %5133
      %5135 = vrot.lane.b32.xlu0 %v5074, 8
      %v5136 = vpop.permute.xlu0 %5135
      %5137 = vrot.lane.b32.xlu0 %v5077, 8
      %v5138 = vpop.permute.xlu0 %5137
      %5139 = vrot.lane.b32.xlu0 %v5079, 8
      %v5140 = vpop.permute.xlu0 %5139
      %5141 = vrot.lane.b32.xlu0 %v5082, 8
      %v5142 = vpop.permute.xlu0 %5141
      %5143 = vrot.lane.b32.xlu0 %v5084, 8
      %v5144 = vpop.permute.xlu0 %5143
      %v5175 = vrot.slane %v4948, 2
      %v5176 = vrot.slane %v4855, 2
      %v5177 = vsel %vm1482, %v5175, %v5176
      %v5178 = vrot.slane %v4964, 2
      %v5179 = vsel %vm1482, %v5176, %v5178
      %v5180 = vrot.slane %v4949, 2
      %v5181 = vrot.slane %v4858, 2
      %v5182 = vsel %vm1482, %v5180, %v5181
      %v5183 = vrot.slane %v4965, 2
      %v5184 = vsel %vm1482, %v5181, %v5183
      %v5185 = vrot.slane %v4950, 2
      %v5186 = vrot.slane %v4861, 2
      %v5187 = vsel %vm1482, %v5185, %v5186
      %v5188 = vrot.slane %v4966, 2
      %v5189 = vsel %vm1482, %v5186, %v5188
      %v5190 = vrot.slane %v4951, 2
      %v5191 = vrot.slane %v4864, 2
      %v5192 = vsel %vm1482, %v5190, %v5191
      %v5193 = vrot.slane %v4967, 2
      %v5194 = vsel %vm1482, %v5191, %v5193
      %v5195 = vrot.slane %v4952, 2
      %v5196 = vrot.slane %v4867, 2
      %v5197 = vsel %vm1482, %v5195, %v5196
      %v5198 = vrot.slane %v4968, 2
      %v5199 = vsel %vm1482, %v5196, %v5198
      %v5200 = vrot.slane %v4953, 2
      %v5201 = vrot.slane %v4870, 2
      %v5202 = vsel %vm1482, %v5200, %v5201
      %v5203 = vrot.slane %v4969, 2
      %v5204 = vsel %vm1482, %v5201, %v5203
      %v5205 = vrot.slane %v4954, 2
      %v5206 = vrot.slane %v4873, 2
      %v5207 = vsel %vm1482, %v5205, %v5206
      %v5208 = vrot.slane %v4970, 2
      %v5209 = vsel %vm1482, %v5206, %v5208
      %v5210 = vrot.slane %v4955, 2
      %v5211 = vrot.slane %v4876, 2
      %v5212 = vsel %vm1482, %v5210, %v5211
      %v5213 = vrot.slane %v4971, 2
      %v5214 = vsel %vm1482, %v5211, %v5213
      %v5215 = vrot.slane %v4956, 2
      %v5216 = vrot.slane %v4879, 2
      %v5217 = vsel %vm1482, %v5215, %v5216
      %v5218 = vrot.slane %v4972, 2
      %v5219 = vsel %vm1482, %v5216, %v5218
      %v5220 = vrot.slane %v4957, 2
      %v5221 = vrot.slane %v4882, 2
      %v5222 = vsel %vm1482, %v5220, %v5221
      %v5223 = vrot.slane %v4973, 2
      %v5224 = vsel %vm1482, %v5221, %v5223
      %v5225 = vrot.slane %v4958, 2
      %v5226 = vrot.slane %v4885, 2
      %v5227 = vsel %vm1482, %v5225, %v5226
      %v5228 = vrot.slane %v4974, 2
      %v5229 = vsel %vm1482, %v5226, %v5228
      %v5230 = vrot.slane %v4959, 2
      %v5231 = vrot.slane %v4888, 2
      %v5232 = vsel %vm1482, %v5230, %v5231
      %v5233 = vrot.slane %v4975, 2
      %v5234 = vsel %vm1482, %v5231, %v5233
      %v5235 = vrot.slane %v4960, 2
      %v5236 = vrot.slane %v4891, 2
      %v5237 = vsel %vm1482, %v5235, %v5236
      %v5238 = vrot.slane %v4976, 2
      %v5239 = vsel %vm1482, %v5236, %v5238
      %v5240 = vrot.slane %v4961, 2
      %v5241 = vrot.slane %v4894, 2
      %v5242 = vsel %vm1482, %v5240, %v5241
      %v5243 = vrot.slane %v4977, 2
      %v5244 = vsel %vm1482, %v5241, %v5243
      %v5245 = vrot.slane %v4962, 2
      %v5246 = vrot.slane %v4897, 2
      %v5247 = vsel %vm1482, %v5245, %v5246
      %v5248 = vrot.slane %v4978, 2
      %v5249 = vsel %vm1482, %v5246, %v5248
      %5250 = vrot.lane.b32.xlu0 %v5177, 16
      %v5251 = vpop.permute.xlu0 %5250
      %5252 = vrot.lane.b32.xlu0 %v5179, 16
      %v5253 = vpop.permute.xlu0 %5252
      %5254 = vrot.lane.b32.xlu0 %v5182, 16
      %v5255 = vpop.permute.xlu0 %5254
      %5256 = vrot.lane.b32.xlu0 %v5184, 16
      %v5257 = vpop.permute.xlu0 %5256
      %5258 = vrot.lane.b32.xlu0 %v5187, 16
      %v5259 = vpop.permute.xlu0 %5258
      %5260 = vrot.lane.b32.xlu0 %v5189, 16
      %v5261 = vpop.permute.xlu0 %5260
      %5262 = vrot.lane.b32.xlu0 %v5192, 16
      %v5263 = vpop.permute.xlu0 %5262
      %5264 = vrot.lane.b32.xlu0 %v5194, 16
      %v5265 = vpop.permute.xlu0 %5264
      %5266 = vrot.lane.b32.xlu0 %v5197, 16
      %v5267 = vpop.permute.xlu0 %5266
      %5268 = vrot.lane.b32.xlu0 %v5199, 16
      %v5269 = vpop.permute.xlu0 %5268
      %5270 = vrot.lane.b32.xlu0 %v5202, 16
      %v5271 = vpop.permute.xlu0 %5270
      %5272 = vrot.lane.b32.xlu0 %v5204, 16
      %v5273 = vpop.permute.xlu0 %5272
      %5274 = vrot.lane.b32.xlu0 %v5207, 16
      %v5275 = vpop.permute.xlu0 %5274
      %5276 = vrot.lane.b32.xlu0 %v5209, 16
      %v5277 = vpop.permute.xlu0 %5276
      %5278 = vrot.lane.b32.xlu0 %v5212, 16
      %v5279 = vpop.permute.xlu0 %5278
      %5280 = vrot.lane.b32.xlu0 %v5214, 16
      %v5281 = vpop.permute.xlu0 %5280
      %5282 = vrot.lane.b32.xlu0 %v5217, 16
      %v5283 = vpop.permute.xlu0 %5282
      %5284 = vrot.lane.b32.xlu0 %v5219, 16
      %v5285 = vpop.permute.xlu0 %5284
      %5286 = vrot.lane.b32.xlu0 %v5222, 16
      %v5287 = vpop.permute.xlu0 %5286
      %5288 = vrot.lane.b32.xlu0 %v5224, 16
      %v5289 = vpop.permute.xlu0 %5288
      %5290 = vrot.lane.b32.xlu0 %v5227, 16
      %v5291 = vpop.permute.xlu0 %5290
      %5292 = vrot.lane.b32.xlu0 %v5229, 16
      %v5293 = vpop.permute.xlu0 %5292
      %5294 = vrot.lane.b32.xlu0 %v5232, 16
      %v5295 = vpop.permute.xlu0 %5294
      %5296 = vrot.lane.b32.xlu0 %v5234, 16
      %v5297 = vpop.permute.xlu0 %5296
      %5298 = vrot.lane.b32.xlu0 %v5237, 16
      %v5299 = vpop.permute.xlu0 %5298
      %5300 = vrot.lane.b32.xlu0 %v5239, 16
      %v5301 = vpop.permute.xlu0 %5300
      %5302 = vrot.lane.b32.xlu0 %v5242, 16
      %v5303 = vpop.permute.xlu0 %5302
      %5304 = vrot.lane.b32.xlu0 %v5244, 16
      %v5305 = vpop.permute.xlu0 %5304
      %5306 = vrot.lane.b32.xlu0 %v5247, 16
      %v5307 = vpop.permute.xlu0 %5306
      %5308 = vrot.lane.b32.xlu0 %v5249, 16
      %v5309 = vpop.permute.xlu0 %5308
      %5341 = vrot.lane.b32.xlu0 %v4948, 24
      %v5342 = vpop.permute.xlu0 %5341
      %5343 = vrot.lane.b32.xlu0 %v4855, 24
      %v5344 = vpop.permute.xlu0 %5343
      %5345 = vrot.lane.b32.xlu0 %v4949, 24
      %v5346 = vpop.permute.xlu0 %5345
      %5347 = vrot.lane.b32.xlu0 %v4858, 24
      %v5348 = vpop.permute.xlu0 %5347
      %5349 = vrot.lane.b32.xlu0 %v4950, 24
      %v5350 = vpop.permute.xlu0 %5349
      %5351 = vrot.lane.b32.xlu0 %v4861, 24
      %v5352 = vpop.permute.xlu0 %5351
      %5353 = vrot.lane.b32.xlu0 %v4951, 24
      %v5354 = vpop.permute.xlu0 %5353
      %5355 = vrot.lane.b32.xlu0 %v4864, 24
      %v5356 = vpop.permute.xlu0 %5355
      %5357 = vrot.lane.b32.xlu0 %v4952, 24
      %v5358 = vpop.permute.xlu0 %5357
      %5359 = vrot.lane.b32.xlu0 %v4867, 24
      %v5360 = vpop.permute.xlu0 %5359
      %5361 = vrot.lane.b32.xlu0 %v4953, 24
      %v5362 = vpop.permute.xlu0 %5361
      %5363 = vrot.lane.b32.xlu0 %v4870, 24
      %v5364 = vpop.permute.xlu0 %5363
      %5365 = vrot.lane.b32.xlu0 %v4954, 24
      %v5366 = vpop.permute.xlu0 %5365
      %5367 = vrot.lane.b32.xlu0 %v4873, 24
      %v5368 = vpop.permute.xlu0 %5367
      %5369 = vrot.lane.b32.xlu0 %v4955, 24
      %v5370 = vpop.permute.xlu0 %5369
      %5371 = vrot.lane.b32.xlu0 %v4876, 24
      %v5372 = vpop.permute.xlu0 %5371
      %5373 = vrot.lane.b32.xlu0 %v4956, 24
      %v5374 = vpop.permute.xlu0 %5373
      %5375 = vrot.lane.b32.xlu0 %v4879, 24
      %v5376 = vpop.permute.xlu0 %5375
      %5377 = vrot.lane.b32.xlu0 %v4957, 24
      %v5378 = vpop.permute.xlu0 %5377
      %5379 = vrot.lane.b32.xlu0 %v4882, 24
      %v5380 = vpop.permute.xlu0 %5379
      %5381 = vrot.lane.b32.xlu0 %v4958, 24
      %v5382 = vpop.permute.xlu0 %5381
      %5383 = vrot.lane.b32.xlu0 %v4885, 24
      %v5384 = vpop.permute.xlu0 %5383
      %5385 = vrot.lane.b32.xlu0 %v4959, 24
      %v5386 = vpop.permute.xlu0 %5385
      %5387 = vrot.lane.b32.xlu0 %v4888, 24
      %v5388 = vpop.permute.xlu0 %5387
      %5389 = vrot.lane.b32.xlu0 %v4960, 24
      %v5390 = vpop.permute.xlu0 %5389
      %5391 = vrot.lane.b32.xlu0 %v4891, 24
      %v5392 = vpop.permute.xlu0 %5391
      %5393 = vrot.lane.b32.xlu0 %v4961, 24
      %v5394 = vpop.permute.xlu0 %5393
      %5395 = vrot.lane.b32.xlu0 %v4894, 24
      %v5396 = vpop.permute.xlu0 %5395
      %5397 = vrot.lane.b32.xlu0 %v4962, 24
      %v5398 = vpop.permute.xlu0 %5397
      %5399 = vrot.lane.b32.xlu0 %v4897, 24
      %v5400 = vpop.permute.xlu0 %5399
      %5401 = vrot.lane.b32.xlu0 %v4963, 24
      %v5402 = vpop.permute.xlu0 %5401
      %5403 = vrot.lane.b32.xlu0 %v4900, 24
      %v5404 = vpop.permute.xlu0 %5403
      %v5438 = vrot.slane %v4963, 1
      %v5439 = vrot.slane %v4900, 1
      %v5440 = vsel %vm1311, %v5438, %v5439
      %v5441 = vrot.slane %v4979, 1
      %v5442 = vsel %vm1311, %v5439, %v5441
      %5443 = vrot.lane.b32.xlu0 %v5012, 32
      %v5444 = vpop.permute.xlu0 %5443
      %5445 = vrot.lane.b32.xlu0 %v5014, 32
      %v5446 = vpop.permute.xlu0 %5445
      %5447 = vrot.lane.b32.xlu0 %v5017, 32
      %v5448 = vpop.permute.xlu0 %5447
      %5449 = vrot.lane.b32.xlu0 %v5019, 32
      %v5450 = vpop.permute.xlu0 %5449
      %5451 = vrot.lane.b32.xlu0 %v5022, 32
      %v5452 = vpop.permute.xlu0 %5451
      %5453 = vrot.lane.b32.xlu0 %v5024, 32
      %v5454 = vpop.permute.xlu0 %5453
      %5455 = vrot.lane.b32.xlu0 %v5027, 32
      %v5456 = vpop.permute.xlu0 %5455
      %5457 = vrot.lane.b32.xlu0 %v5029, 32
      %v5458 = vpop.permute.xlu0 %5457
      %5459 = vrot.lane.b32.xlu0 %v5032, 32
      %v5460 = vpop.permute.xlu0 %5459
      %5461 = vrot.lane.b32.xlu0 %v5034, 32
      %v5462 = vpop.permute.xlu0 %5461
      %5463 = vrot.lane.b32.xlu0 %v5037, 32
      %v5464 = vpop.permute.xlu0 %5463
      %5465 = vrot.lane.b32.xlu0 %v5039, 32
      %v5466 = vpop.permute.xlu0 %5465
      %5467 = vrot.lane.b32.xlu0 %v5042, 32
      %v5468 = vpop.permute.xlu0 %5467
      %5469 = vrot.lane.b32.xlu0 %v5044, 32
      %v5470 = vpop.permute.xlu0 %5469
      %5471 = vrot.lane.b32.xlu0 %v5047, 32
      %v5472 = vpop.permute.xlu0 %5471
      %5473 = vrot.lane.b32.xlu0 %v5049, 32
      %v5474 = vpop.permute.xlu0 %5473
      %5475 = vrot.lane.b32.xlu0 %v5052, 32
      %v5476 = vpop.permute.xlu0 %5475
      %5477 = vrot.lane.b32.xlu0 %v5054, 32
      %v5478 = vpop.permute.xlu0 %5477
      %5479 = vrot.lane.b32.xlu0 %v5057, 32
      %v5480 = vpop.permute.xlu0 %5479
      %5481 = vrot.lane.b32.xlu0 %v5059, 32
      %v5482 = vpop.permute.xlu0 %5481
      %5483 = vrot.lane.b32.xlu0 %v5062, 32
      %v5484 = vpop.permute.xlu0 %5483
      %5485 = vrot.lane.b32.xlu0 %v5064, 32
      %v5486 = vpop.permute.xlu0 %5485
      %5487 = vrot.lane.b32.xlu0 %v5067, 32
      %v5488 = vpop.permute.xlu0 %5487
      %5489 = vrot.lane.b32.xlu0 %v5069, 32
      %v5490 = vpop.permute.xlu0 %5489
      %5491 = vrot.lane.b32.xlu0 %v5072, 32
      %v5492 = vpop.permute.xlu0 %5491
      %5493 = vrot.lane.b32.xlu0 %v5074, 32
      %v5494 = vpop.permute.xlu0 %5493
      %5495 = vrot.lane.b32.xlu0 %v5077, 32
      %v5496 = vpop.permute.xlu0 %5495
      %5497 = vrot.lane.b32.xlu0 %v5079, 32
      %v5498 = vpop.permute.xlu0 %5497
      %5499 = vrot.lane.b32.xlu0 %v5082, 32
      %v5500 = vpop.permute.xlu0 %5499
      %5501 = vrot.lane.b32.xlu0 %v5084, 32
      %v5502 = vpop.permute.xlu0 %5501
      %5503 = vrot.lane.b32.xlu0 %v5440, 32
      %v5504 = vpop.permute.xlu0 %5503
      %5505 = vrot.lane.b32.xlu0 %v5442, 32
      %v5506 = vpop.permute.xlu0 %5505
      %v5539 = vrot.slane %v4963, 2
      %v5540 = vrot.slane %v4900, 2
      %v5541 = vsel %vm1482, %v5539, %v5540
      %v5542 = vrot.slane %v4979, 2
      %v5543 = vsel %vm1482, %v5540, %v5542
      %5544 = vrot.lane.b32.xlu0 %v5177, 40
      %v5545 = vpop.permute.xlu0 %5544
      %5546 = vrot.lane.b32.xlu0 %v5179, 40
      %v5547 = vpop.permute.xlu0 %5546
      %5548 = vrot.lane.b32.xlu0 %v5182, 40
      %v5549 = vpop.permute.xlu0 %5548
      %5550 = vrot.lane.b32.xlu0 %v5184, 40
      %v5551 = vpop.permute.xlu0 %5550
      %5552 = vrot.lane.b32.xlu0 %v5187, 40
      %v5553 = vpop.permute.xlu0 %5552
      %5554 = vrot.lane.b32.xlu0 %v5189, 40
      %v5555 = vpop.permute.xlu0 %5554
      %5556 = vrot.lane.b32.xlu0 %v5192, 40
      %v5557 = vpop.permute.xlu0 %5556
      %5558 = vrot.lane.b32.xlu0 %v5194, 40
      %v5559 = vpop.permute.xlu0 %5558
      %5560 = vrot.lane.b32.xlu0 %v5197, 40
      %v5561 = vpop.permute.xlu0 %5560
      %5562 = vrot.lane.b32.xlu0 %v5199, 40
      %v5563 = vpop.permute.xlu0 %5562
      %5564 = vrot.lane.b32.xlu0 %v5202, 40
      %v5565 = vpop.permute.xlu0 %5564
      %5566 = vrot.lane.b32.xlu0 %v5204, 40
      %v5567 = vpop.permute.xlu0 %5566
      %5568 = vrot.lane.b32.xlu0 %v5207, 40
      %v5569 = vpop.permute.xlu0 %5568
      %5570 = vrot.lane.b32.xlu0 %v5209, 40
      %v5571 = vpop.permute.xlu0 %5570
      %5572 = vrot.lane.b32.xlu0 %v5212, 40
      %v5573 = vpop.permute.xlu0 %5572
      %5574 = vrot.lane.b32.xlu0 %v5214, 40
      %v5575 = vpop.permute.xlu0 %5574
      %5576 = vrot.lane.b32.xlu0 %v5217, 40
      %v5577 = vpop.permute.xlu0 %5576
      %5578 = vrot.lane.b32.xlu0 %v5219, 40
      %v5579 = vpop.permute.xlu0 %5578
      %5580 = vrot.lane.b32.xlu0 %v5222, 40
      %v5581 = vpop.permute.xlu0 %5580
      %5582 = vrot.lane.b32.xlu0 %v5224, 40
      %v5583 = vpop.permute.xlu0 %5582
      %5584 = vrot.lane.b32.xlu0 %v5227, 40
      %v5585 = vpop.permute.xlu0 %5584
      %5586 = vrot.lane.b32.xlu0 %v5229, 40
      %v5587 = vpop.permute.xlu0 %5586
      %5588 = vrot.lane.b32.xlu0 %v5232, 40
      %v5589 = vpop.permute.xlu0 %5588
      %5590 = vrot.lane.b32.xlu0 %v5234, 40
      %v5591 = vpop.permute.xlu0 %5590
      %5592 = vrot.lane.b32.xlu0 %v5237, 40
      %v5593 = vpop.permute.xlu0 %5592
      %5594 = vrot.lane.b32.xlu0 %v5239, 40
      %v5595 = vpop.permute.xlu0 %5594
      %5596 = vrot.lane.b32.xlu0 %v5242, 40
      %v5597 = vpop.permute.xlu0 %5596
      %5598 = vrot.lane.b32.xlu0 %v5244, 40
      %v5599 = vpop.permute.xlu0 %5598
      %5600 = vrot.lane.b32.xlu0 %v5247, 40
      %v5601 = vpop.permute.xlu0 %5600
      %5602 = vrot.lane.b32.xlu0 %v5249, 40
      %v5603 = vpop.permute.xlu0 %5602
      %5604 = vrot.lane.b32.xlu0 %v5541, 40
      %v5605 = vpop.permute.xlu0 %5604
      %5606 = vrot.lane.b32.xlu0 %v5543, 40
      %v5607 = vpop.permute.xlu0 %5606
      %5640 = vrot.lane.b32.xlu0 %v4949, 48
      %v5641 = vpop.permute.xlu0 %5640
      %5642 = vrot.lane.b32.xlu0 %v4858, 48
      %v5643 = vpop.permute.xlu0 %5642
      %5644 = vrot.lane.b32.xlu0 %v4950, 48
      %v5645 = vpop.permute.xlu0 %5644
      %5646 = vrot.lane.b32.xlu0 %v4861, 48
      %v5647 = vpop.permute.xlu0 %5646
      %5648 = vrot.lane.b32.xlu0 %v4951, 48
      %v5649 = vpop.permute.xlu0 %5648
      %5650 = vrot.lane.b32.xlu0 %v4864, 48
      %v5651 = vpop.permute.xlu0 %5650
      %5652 = vrot.lane.b32.xlu0 %v4952, 48
      %v5653 = vpop.permute.xlu0 %5652
      %5654 = vrot.lane.b32.xlu0 %v4867, 48
      %v5655 = vpop.permute.xlu0 %5654
      %5656 = vrot.lane.b32.xlu0 %v4953, 48
      %v5657 = vpop.permute.xlu0 %5656
      %5658 = vrot.lane.b32.xlu0 %v4870, 48
      %v5659 = vpop.permute.xlu0 %5658
      %5660 = vrot.lane.b32.xlu0 %v4954, 48
      %v5661 = vpop.permute.xlu0 %5660
      %5662 = vrot.lane.b32.xlu0 %v4873, 48
      %v5663 = vpop.permute.xlu0 %5662
      %5664 = vrot.lane.b32.xlu0 %v4955, 48
      %v5665 = vpop.permute.xlu0 %5664
      %5666 = vrot.lane.b32.xlu0 %v4876, 48
      %v5667 = vpop.permute.xlu0 %5666
      %5668 = vrot.lane.b32.xlu0 %v4956, 48
      %v5669 = vpop.permute.xlu0 %5668
      %5670 = vrot.lane.b32.xlu0 %v4879, 48
      %v5671 = vpop.permute.xlu0 %5670
      %5672 = vrot.lane.b32.xlu0 %v4957, 48
      %v5673 = vpop.permute.xlu0 %5672
      %5674 = vrot.lane.b32.xlu0 %v4882, 48
      %v5675 = vpop.permute.xlu0 %5674
      %5676 = vrot.lane.b32.xlu0 %v4958, 48
      %v5677 = vpop.permute.xlu0 %5676
      %5678 = vrot.lane.b32.xlu0 %v4885, 48
      %v5679 = vpop.permute.xlu0 %5678
      %5680 = vrot.lane.b32.xlu0 %v4959, 48
      %v5681 = vpop.permute.xlu0 %5680
      %5682 = vrot.lane.b32.xlu0 %v4888, 48
      %v5683 = vpop.permute.xlu0 %5682
      %5684 = vrot.lane.b32.xlu0 %v4960, 48
      %v5685 = vpop.permute.xlu0 %5684
      %5686 = vrot.lane.b32.xlu0 %v4891, 48
      %v5687 = vpop.permute.xlu0 %5686
      %5688 = vrot.lane.b32.xlu0 %v4961, 48
      %v5689 = vpop.permute.xlu0 %5688
      %5690 = vrot.lane.b32.xlu0 %v4894, 48
      %v5691 = vpop.permute.xlu0 %5690
      %5692 = vrot.lane.b32.xlu0 %v4962, 48
      %v5693 = vpop.permute.xlu0 %5692
      %5694 = vrot.lane.b32.xlu0 %v4897, 48
      %v5695 = vpop.permute.xlu0 %5694
      %5696 = vrot.lane.b32.xlu0 %v4963, 48
      %v5697 = vpop.permute.xlu0 %5696
      %5698 = vrot.lane.b32.xlu0 %v4900, 48
      %v5699 = vpop.permute.xlu0 %5698
      %5730 = vrot.lane.b32.xlu0 %v5017, 56
      %v5731 = vpop.permute.xlu0 %5730
      %5732 = vrot.lane.b32.xlu0 %v5019, 56
      %v5733 = vpop.permute.xlu0 %5732
      %5734 = vrot.lane.b32.xlu0 %v5022, 56
      %v5735 = vpop.permute.xlu0 %5734
      %5736 = vrot.lane.b32.xlu0 %v5024, 56
      %v5737 = vpop.permute.xlu0 %5736
      %5738 = vrot.lane.b32.xlu0 %v5027, 56
      %v5739 = vpop.permute.xlu0 %5738
      %5740 = vrot.lane.b32.xlu0 %v5029, 56
      %v5741 = vpop.permute.xlu0 %5740
      %5742 = vrot.lane.b32.xlu0 %v5032, 56
      %v5743 = vpop.permute.xlu0 %5742
      %5744 = vrot.lane.b32.xlu0 %v5034, 56
      %v5745 = vpop.permute.xlu0 %5744
      %5746 = vrot.lane.b32.xlu0 %v5037, 56
      %v5747 = vpop.permute.xlu0 %5746
      %5748 = vrot.lane.b32.xlu0 %v5039, 56
      %v5749 = vpop.permute.xlu0 %5748
      %5750 = vrot.lane.b32.xlu0 %v5042, 56
      %v5751 = vpop.permute.xlu0 %5750
      %5752 = vrot.lane.b32.xlu0 %v5044, 56
      %v5753 = vpop.permute.xlu0 %5752
      %5754 = vrot.lane.b32.xlu0 %v5047, 56
      %v5755 = vpop.permute.xlu0 %5754
      %5756 = vrot.lane.b32.xlu0 %v5049, 56
      %v5757 = vpop.permute.xlu0 %5756
      %5758 = vrot.lane.b32.xlu0 %v5052, 56
      %v5759 = vpop.permute.xlu0 %5758
      %5760 = vrot.lane.b32.xlu0 %v5054, 56
      %v5761 = vpop.permute.xlu0 %5760
      %5762 = vrot.lane.b32.xlu0 %v5057, 56
      %v5763 = vpop.permute.xlu0 %5762
      %5764 = vrot.lane.b32.xlu0 %v5059, 56
      %v5765 = vpop.permute.xlu0 %5764
      %5766 = vrot.lane.b32.xlu0 %v5062, 56
      %v5767 = vpop.permute.xlu0 %5766
      %5768 = vrot.lane.b32.xlu0 %v5064, 56
      %v5769 = vpop.permute.xlu0 %5768
      %5770 = vrot.lane.b32.xlu0 %v5067, 56
      %v5771 = vpop.permute.xlu0 %5770
      %5772 = vrot.lane.b32.xlu0 %v5069, 56
      %v5773 = vpop.permute.xlu0 %5772
      %5774 = vrot.lane.b32.xlu0 %v5072, 56
      %v5775 = vpop.permute.xlu0 %5774
      %5776 = vrot.lane.b32.xlu0 %v5074, 56
      %v5777 = vpop.permute.xlu0 %5776
      %5778 = vrot.lane.b32.xlu0 %v5077, 56
      %v5779 = vpop.permute.xlu0 %5778
      %5780 = vrot.lane.b32.xlu0 %v5079, 56
      %v5781 = vpop.permute.xlu0 %5780
      %5782 = vrot.lane.b32.xlu0 %v5082, 56
      %v5783 = vpop.permute.xlu0 %5782
      %5784 = vrot.lane.b32.xlu0 %v5084, 56
      %v5785 = vpop.permute.xlu0 %5784
      %5786 = vrot.lane.b32.xlu0 %v5440, 56
      %v5787 = vpop.permute.xlu0 %5786
      %5788 = vrot.lane.b32.xlu0 %v5442, 56
      %v5789 = vpop.permute.xlu0 %5788
      %5820 = vrot.lane.b32.xlu0 %v5182, 64
      %v5821 = vpop.permute.xlu0 %5820
      %5822 = vrot.lane.b32.xlu0 %v5184, 64
      %v5823 = vpop.permute.xlu0 %5822
      %5824 = vrot.lane.b32.xlu0 %v5187, 64
      %v5825 = vpop.permute.xlu0 %5824
      %5826 = vrot.lane.b32.xlu0 %v5189, 64
      %v5827 = vpop.permute.xlu0 %5826
      %5828 = vrot.lane.b32.xlu0 %v5192, 64
      %v5829 = vpop.permute.xlu0 %5828
      %5830 = vrot.lane.b32.xlu0 %v5194, 64
      %v5831 = vpop.permute.xlu0 %5830
      %5832 = vrot.lane.b32.xlu0 %v5197, 64
      %v5833 = vpop.permute.xlu0 %5832
      %5834 = vrot.lane.b32.xlu0 %v5199, 64
      %v5835 = vpop.permute.xlu0 %5834
      %5836 = vrot.lane.b32.xlu0 %v5202, 64
      %v5837 = vpop.permute.xlu0 %5836
      %5838 = vrot.lane.b32.xlu0 %v5204, 64
      %v5839 = vpop.permute.xlu0 %5838
      %5840 = vrot.lane.b32.xlu0 %v5207, 64
      %v5841 = vpop.permute.xlu0 %5840
      %5842 = vrot.lane.b32.xlu0 %v5209, 64
      %v5843 = vpop.permute.xlu0 %5842
      %5844 = vrot.lane.b32.xlu0 %v5212, 64
      %v5845 = vpop.permute.xlu0 %5844
      %5846 = vrot.lane.b32.xlu0 %v5214, 64
      %v5847 = vpop.permute.xlu0 %5846
      %5848 = vrot.lane.b32.xlu0 %v5217, 64
      %v5849 = vpop.permute.xlu0 %5848
      %5850 = vrot.lane.b32.xlu0 %v5219, 64
      %v5851 = vpop.permute.xlu0 %5850
      %5852 = vrot.lane.b32.xlu0 %v5222, 64
      %v5853 = vpop.permute.xlu0 %5852
      %5854 = vrot.lane.b32.xlu0 %v5224, 64
      %v5855 = vpop.permute.xlu0 %5854
      %5856 = vrot.lane.b32.xlu0 %v5227, 64
      %v5857 = vpop.permute.xlu0 %5856
      %5858 = vrot.lane.b32.xlu0 %v5229, 64
      %v5859 = vpop.permute.xlu0 %5858
      %5860 = vrot.lane.b32.xlu0 %v5232, 64
      %v5861 = vpop.permute.xlu0 %5860
      %5862 = vrot.lane.b32.xlu0 %v5234, 64
      %v5863 = vpop.permute.xlu0 %5862
      %5864 = vrot.lane.b32.xlu0 %v5237, 64
      %v5865 = vpop.permute.xlu0 %5864
      %5866 = vrot.lane.b32.xlu0 %v5239, 64
      %v5867 = vpop.permute.xlu0 %5866
      %5868 = vrot.lane.b32.xlu0 %v5242, 64
      %v5869 = vpop.permute.xlu0 %5868
      %5870 = vrot.lane.b32.xlu0 %v5244, 64
      %v5871 = vpop.permute.xlu0 %5870
      %5872 = vrot.lane.b32.xlu0 %v5247, 64
      %v5873 = vpop.permute.xlu0 %5872
      %5874 = vrot.lane.b32.xlu0 %v5249, 64
      %v5875 = vpop.permute.xlu0 %5874
      %5876 = vrot.lane.b32.xlu0 %v5541, 64
      %v5877 = vpop.permute.xlu0 %5876
      %5878 = vrot.lane.b32.xlu0 %v5543, 64
      %v5879 = vpop.permute.xlu0 %5878
      %v5910 = vsel %vm2263, %v4948, %v5086
      %v5911 = vsel %vm2263, %v4855, %v5088
      %v5912 = vsel %vm2263, %v4949, %v5090
      %v5913 = vsel %vm2263, %v4858, %v5092
      %v5914 = vsel %vm2263, %v4950, %v5094
      %v5915 = vsel %vm2263, %v4861, %v5096
      %v5916 = vsel %vm2263, %v4951, %v5098
      %v5917 = vsel %vm2263, %v4864, %v5100
      %v5918 = vsel %vm2263, %v4952, %v5102
      %v5919 = vsel %vm2263, %v4867, %v5104
      %v5920 = vsel %vm2263, %v4953, %v5106
      %v5921 = vsel %vm2263, %v4870, %v5108
      %v5922 = vsel %vm2263, %v4954, %v5110
      %v5923 = vsel %vm2263, %v4873, %v5112
      %v5924 = vsel %vm2263, %v4955, %v5114
      %v5925 = vsel %vm2263, %v4876, %v5116
      %v5926 = vsel %vm2263, %v4956, %v5118
      %v5927 = vsel %vm2263, %v4879, %v5120
      %v5928 = vsel %vm2263, %v4957, %v5122
      %v5929 = vsel %vm2263, %v4882, %v5124
      %v5930 = vsel %vm2263, %v4958, %v5126
      %v5931 = vsel %vm2263, %v4885, %v5128
      %v5932 = vsel %vm2263, %v4959, %v5130
      %v5933 = vsel %vm2263, %v4888, %v5132
      %v5934 = vsel %vm2263, %v4960, %v5134
      %v5935 = vsel %vm2263, %v4891, %v5136
      %v5936 = vsel %vm2263, %v4961, %v5138
      %v5937 = vsel %vm2263, %v4894, %v5140
      %v5938 = vsel %vm2263, %v4962, %v5142
      %v5939 = vsel %vm2263, %v4897, %v5144
      %v5940 = vsel %vm2328, %v5910, %v5251
      %v5941 = vsel %vm2328, %v5911, %v5253
      %v5942 = vsel %vm2328, %v5912, %v5255
      %v5943 = vsel %vm2328, %v5913, %v5257
      %v5944 = vsel %vm2328, %v5914, %v5259
      %v5945 = vsel %vm2328, %v5915, %v5261
      %v5946 = vsel %vm2328, %v5916, %v5263
      %v5947 = vsel %vm2328, %v5917, %v5265
      %v5948 = vsel %vm2328, %v5918, %v5267
      %v5949 = vsel %vm2328, %v5919, %v5269
      %v5950 = vsel %vm2328, %v5920, %v5271
      %v5951 = vsel %vm2328, %v5921, %v5273
      %v5952 = vsel %vm2328, %v5922, %v5275
      %v5953 = vsel %vm2328, %v5923, %v5277
      %v5954 = vsel %vm2328, %v5924, %v5279
      %v5955 = vsel %vm2328, %v5925, %v5281
      %v5956 = vsel %vm2328, %v5926, %v5283
      %v5957 = vsel %vm2328, %v5927, %v5285
      %v5958 = vsel %vm2328, %v5928, %v5287
      %v5959 = vsel %vm2328, %v5929, %v5289
      %v5960 = vsel %vm2328, %v5930, %v5291
      %v5961 = vsel %vm2328, %v5931, %v5293
      %v5962 = vsel %vm2328, %v5932, %v5295
      %v5963 = vsel %vm2328, %v5933, %v5297
      %v5964 = vsel %vm2328, %v5934, %v5299
      %v5965 = vsel %vm2328, %v5935, %v5301
      %v5966 = vsel %vm2328, %v5936, %v5303
      %v5967 = vsel %vm2328, %v5937, %v5305
      %v5968 = vsel %vm2328, %v5938, %v5307
      %v5969 = vsel %vm2328, %v5939, %v5309
      %v5970 = vsel %vm2394, %v4075, %v5342
      %v5971 = vsel %vm2394, %v4075, %v5344
      %v5972 = vsel %vm2394, %v5940, %v5346
      %v5973 = vsel %vm2394, %v5941, %v5348
      %v5974 = vsel %vm2394, %v5942, %v5350
      %v5975 = vsel %vm2394, %v5943, %v5352
      %v5976 = vsel %vm2394, %v5944, %v5354
      %v5977 = vsel %vm2394, %v5945, %v5356
      %v5978 = vsel %vm2394, %v5946, %v5358
      %v5979 = vsel %vm2394, %v5947, %v5360
      %v5980 = vsel %vm2394, %v5948, %v5362
      %v5981 = vsel %vm2394, %v5949, %v5364
      %v5982 = vsel %vm2394, %v5950, %v5366
      %v5983 = vsel %vm2394, %v5951, %v5368
      %v5984 = vsel %vm2394, %v5952, %v5370
      %v5985 = vsel %vm2394, %v5953, %v5372
      %v5986 = vsel %vm2394, %v5954, %v5374
      %v5987 = vsel %vm2394, %v5955, %v5376
      %v5988 = vsel %vm2394, %v5956, %v5378
      %v5989 = vsel %vm2394, %v5957, %v5380
      %v5990 = vsel %vm2394, %v5958, %v5382
      %v5991 = vsel %vm2394, %v5959, %v5384
      %v5992 = vsel %vm2394, %v5960, %v5386
      %v5993 = vsel %vm2394, %v5961, %v5388
      %v5994 = vsel %vm2394, %v5962, %v5390
      %v5995 = vsel %vm2394, %v5963, %v5392
      %v5996 = vsel %vm2394, %v5964, %v5394
      %v5997 = vsel %vm2394, %v5965, %v5396
      %v5998 = vsel %vm2394, %v5966, %v5398
      %v5999 = vsel %vm2394, %v5967, %v5400
      %v6000 = vsel %vm2394, %v5968, %v5402
      %v6001 = vsel %vm2394, %v5969, %v5404
      %v6002 = vsel %vm2460, %v5970, %v5444
      %v6003 = vsel %vm2460, %v5971, %v5446
      %v6004 = vsel %vm2460, %v5972, %v5448
      %v6005 = vsel %vm2460, %v5973, %v5450
      %v6006 = vsel %vm2460, %v5974, %v5452
      %v6007 = vsel %vm2460, %v5975, %v5454
      %v6008 = vsel %vm2460, %v5976, %v5456
      %v6009 = vsel %vm2460, %v5977, %v5458
      %v6010 = vsel %vm2460, %v5978, %v5460
      %v6011 = vsel %vm2460, %v5979, %v5462
      %v6012 = vsel %vm2460, %v5980, %v5464
      %v6013 = vsel %vm2460, %v5981, %v5466
      %v6014 = vsel %vm2460, %v5982, %v5468
      %v6015 = vsel %vm2460, %v5983, %v5470
      %v6016 = vsel %vm2460, %v5984, %v5472
      %v6017 = vsel %vm2460, %v5985, %v5474
      %v6018 = vsel %vm2460, %v5986, %v5476
      %v6019 = vsel %vm2460, %v5987, %v5478
      %v6020 = vsel %vm2460, %v5988, %v5480
      %v6021 = vsel %vm2460, %v5989, %v5482
      %v6022 = vsel %vm2460, %v5990, %v5484
      %v6023 = vsel %vm2460, %v5991, %v5486
      %v6024 = vsel %vm2460, %v5992, %v5488
      %v6025 = vsel %vm2460, %v5993, %v5490
      %v6026 = vsel %vm2460, %v5994, %v5492
      %v6027 = vsel %vm2460, %v5995, %v5494
      %v6028 = vsel %vm2460, %v5996, %v5496
      %v6029 = vsel %vm2460, %v5997, %v5498
      %v6030 = vsel %vm2460, %v5998, %v5500
      %v6031 = vsel %vm2460, %v5999, %v5502
      %v6032 = vsel %vm2460, %v6000, %v5504
      %v6033 = vsel %vm2460, %v6001, %v5506
      %v6034 = vsel %vm4170, %v6002, %v5545
      %v6035 = vsel %vm4170, %v6003, %v5547
      %v6036 = vsel %vm4170, %v6004, %v5549
      %v6037 = vsel %vm4170, %v6005, %v5551
      %v6038 = vsel %vm4170, %v6006, %v5553
      %v6039 = vsel %vm4170, %v6007, %v5555
      %v6040 = vsel %vm4170, %v6008, %v5557
      %v6041 = vsel %vm4170, %v6009, %v5559
      %v6042 = vsel %vm4170, %v6010, %v5561
      %v6043 = vsel %vm4170, %v6011, %v5563
      %v6044 = vsel %vm4170, %v6012, %v5565
      %v6045 = vsel %vm4170, %v6013, %v5567
      %v6046 = vsel %vm4170, %v6014, %v5569
      %v6047 = vsel %vm4170, %v6015, %v5571
      %v6048 = vsel %vm4170, %v6016, %v5573
      %v6049 = vsel %vm4170, %v6017, %v5575
      %v6050 = vsel %vm4170, %v6018, %v5577
      %v6051 = vsel %vm4170, %v6019, %v5579
      %v6052 = vsel %vm4170, %v6020, %v5581
      %v6053 = vsel %vm4170, %v6021, %v5583
      %v6054 = vsel %vm4170, %v6022, %v5585
      %v6055 = vsel %vm4170, %v6023, %v5587
      %v6056 = vsel %vm4170, %v6024, %v5589
      %v6057 = vsel %vm4170, %v6025, %v5591
      %v6058 = vsel %vm4170, %v6026, %v5593
      %v6059 = vsel %vm4170, %v6027, %v5595
      %v6060 = vsel %vm4170, %v6028, %v5597
      %v6061 = vsel %vm4170, %v6029, %v5599
      %v6062 = vsel %vm4170, %v6030, %v5601
      %v6063 = vsel %vm4170, %v6031, %v5603
      %v6064 = vsel %vm4170, %v6032, %v5605
      %v6065 = vsel %vm4170, %v6033, %v5607
      %v6066 = vsel %vm4203, %v6034, %v5641
      %v6067 = vsel %vm4203, %v6035, %v5643
      %v6068 = vsel %vm4203, %v6036, %v5645
      %v6069 = vsel %vm4203, %v6037, %v5647
      %v6070 = vsel %vm4203, %v6038, %v5649
      %v6071 = vsel %vm4203, %v6039, %v5651
      %v6072 = vsel %vm4203, %v6040, %v5653
      %v6073 = vsel %vm4203, %v6041, %v5655
      %v6074 = vsel %vm4203, %v6042, %v5657
      %v6075 = vsel %vm4203, %v6043, %v5659
      %v6076 = vsel %vm4203, %v6044, %v5661
      %v6077 = vsel %vm4203, %v6045, %v5663
      %v6078 = vsel %vm4203, %v6046, %v5665
      %v6079 = vsel %vm4203, %v6047, %v5667
      %v6080 = vsel %vm4203, %v6048, %v5669
      %v6081 = vsel %vm4203, %v6049, %v5671
      %v6082 = vsel %vm4203, %v6050, %v5673
      %v6083 = vsel %vm4203, %v6051, %v5675
      %v6084 = vsel %vm4203, %v6052, %v5677
      %v6085 = vsel %vm4203, %v6053, %v5679
      %v6086 = vsel %vm4203, %v6054, %v5681
      %v6087 = vsel %vm4203, %v6055, %v5683
      %v6088 = vsel %vm4203, %v6056, %v5685
      %v6089 = vsel %vm4203, %v6057, %v5687
      %v6090 = vsel %vm4203, %v6058, %v5689
      %v6091 = vsel %vm4203, %v6059, %v5691
      %v6092 = vsel %vm4203, %v6060, %v5693
      %v6093 = vsel %vm4203, %v6061, %v5695
      %v6094 = vsel %vm4203, %v6062, %v5697
      %v6095 = vsel %vm4203, %v6063, %v5699
      %v6096 = vsel %vm4203, %v6064, %v3826
      %v6097 = vsel %vm4203, %v6065, %v3826
      %v6098 = vsel %vm4236, %v6066, %v5731
      %v6099 = vsel %vm4236, %v6067, %v5733
      %v6100 = vsel %vm4236, %v6068, %v5735
      %v6101 = vsel %vm4236, %v6069, %v5737
      %v6102 = vsel %vm4236, %v6070, %v5739
      %v6103 = vsel %vm4236, %v6071, %v5741
      %v6104 = vsel %vm4236, %v6072, %v5743
      %v6105 = vsel %vm4236, %v6073, %v5745
      %v6106 = vsel %vm4236, %v6074, %v5747
      %v6107 = vsel %vm4236, %v6075, %v5749
      %v6108 = vsel %vm4236, %v6076, %v5751
      %v6109 = vsel %vm4236, %v6077, %v5753
      %v6110 = vsel %vm4236, %v6078, %v5755
      %v6111 = vsel %vm4236, %v6079, %v5757
      %v6112 = vsel %vm4236, %v6080, %v5759
      %v6113 = vsel %vm4236, %v6081, %v5761
      %v6114 = vsel %vm4236, %v6082, %v5763
      %v6115 = vsel %vm4236, %v6083, %v5765
      %v6116 = vsel %vm4236, %v6084, %v5767
      %v6117 = vsel %vm4236, %v6085, %v5769
      %v6118 = vsel %vm4236, %v6086, %v5771
      %v6119 = vsel %vm4236, %v6087, %v5773
      %v6120 = vsel %vm4236, %v6088, %v5775
      %v6121 = vsel %vm4236, %v6089, %v5777
      %v6122 = vsel %vm4236, %v6090, %v5779
      %v6123 = vsel %vm4236, %v6091, %v5781
      %v6124 = vsel %vm4236, %v6092, %v5783
      %v6125 = vsel %vm4236, %v6093, %v5785
      %v6126 = vsel %vm4236, %v6094, %v5787
      %v6127 = vsel %vm4236, %v6095, %v5789
      %v6128 = vsel %vm4236, %v6096, %v3919
      %v6129 = vsel %vm4236, %v6097, %v3919
      %v6130 = vsel %vm4269, %v6098, %v5821
      %v6131 = vsel %vm4269, %v6099, %v5823
      %v6132 = vsel %vm4269, %v6100, %v5825
      %v6133 = vsel %vm4269, %v6101, %v5827
      %v6134 = vsel %vm4269, %v6102, %v5829
      %v6135 = vsel %vm4269, %v6103, %v5831
      %v6136 = vsel %vm4269, %v6104, %v5833
      %v6137 = vsel %vm4269, %v6105, %v5835
      %v6138 = vsel %vm4269, %v6106, %v5837
      %v6139 = vsel %vm4269, %v6107, %v5839
      %v6140 = vsel %vm4269, %v6108, %v5841
      %v6141 = vsel %vm4269, %v6109, %v5843
      %v6142 = vsel %vm4269, %v6110, %v5845
      %v6143 = vsel %vm4269, %v6111, %v5847
      %v6144 = vsel %vm4269, %v6112, %v5849
      %v6145 = vsel %vm4269, %v6113, %v5851
      %v6146 = vsel %vm4269, %v6114, %v5853
      %v6147 = vsel %vm4269, %v6115, %v5855
      %v6148 = vsel %vm4269, %v6116, %v5857
      %v6149 = vsel %vm4269, %v6117, %v5859
      %v6150 = vsel %vm4269, %v6118, %v5861
      %v6151 = vsel %vm4269, %v6119, %v5863
      %v6152 = vsel %vm4269, %v6120, %v5865
      %v6153 = vsel %vm4269, %v6121, %v5867
      %v6154 = vsel %vm4269, %v6122, %v5869
      %v6155 = vsel %vm4269, %v6123, %v5871
      %v6156 = vsel %vm4269, %v6124, %v5873
      %v6157 = vsel %vm4269, %v6125, %v5875
      %v6158 = vsel %vm4269, %v6126, %v5877
      %v6159 = vsel %vm4269, %v6127, %v5879
      %v6160 = vsel %vm4269, %v6128, %v4012
      %v6161 = vsel %vm4269, %v6129, %v4012
      %v6162 = vld [vmem:[%s14] sm:$0xff]
      %v6163 = vld [vmem:[%s14 + $0x8] sm:$0xff]
      %v6164 = vld [vmem:[%s14 + $0x10] sm:$0xff]
      %v6165 = vld [vmem:[%s14 + $0x18] sm:$0xff]
      %v6166 = vld [vmem:[%s14 + $0x20] sm:$0xff]
      %v6167 = vld [vmem:[%s14 + $0x28] sm:$0xff]
      %v6168 = vld [vmem:[%s14 + $0x30] sm:$0xff]
      %v6169 = vld [vmem:[%s14 + $0x38] sm:$0xff]
      %v6170 = vld [vmem:[%s14 + $0x40] sm:$0xff]
      %v6171 = vld [vmem:[%s15] sm:$0x1]
      %v6173 = vlaneseq
      %v6174 = vshrl.u32 %v6173, 7
      %v6175 = vsub.s32 0, %v6174
      %v6176 = vrot.slane %v6171, %v6175
      %v6179 = vsel %vm4318, %v6130, 0
      %v6182 = vsel %vm4318, %v6131, 0
      %v6185 = vsel %vm4318, %v6132, 0
      %v6188 = vsel %vm4318, %v6133, 0
      %v6191 = vsel %vm4318, %v6134, 0
      %v6194 = vsel %vm4318, %v6135, 0
      %v6197 = vsel %vm4318, %v6136, 0
      %v6200 = vsel %vm4318, %v6137, 0
      %v6203 = vsel %vm4318, %v6138, 0
      %v6206 = vsel %vm4318, %v6139, 0
      %v6209 = vsel %vm4318, %v6140, 0
      %v6212 = vsel %vm4318, %v6141, 0
      %v6215 = vsel %vm4318, %v6142, 0
      %v6218 = vsel %vm4318, %v6143, 0
      %v6221 = vsel %vm4318, %v6144, 0
      %v6224 = vsel %vm4318, %v6145, 0
      %v6227 = vsel %vm4318, %v6146, 0
      %v6230 = vsel %vm4318, %v6147, 0
      %v6233 = vsel %vm4318, %v6148, 0
      %v6236 = vsel %vm4318, %v6149, 0
      %v6239 = vsel %vm4318, %v6150, 0
      %v6242 = vsel %vm4318, %v6151, 0
      %v6245 = vsel %vm4318, %v6152, 0
      %v6248 = vsel %vm4318, %v6153, 0
      %v6251 = vsel %vm4318, %v6154, 0
      %v6254 = vsel %vm4318, %v6155, 0
      %v6257 = vsel %vm4318, %v6156, 0
      %v6260 = vsel %vm4318, %v6157, 0
      %v6263 = vsel %vm4318, %v6158, 0
      %v6266 = vsel %vm4318, %v6159, 0
      %v6269 = vsel %vm4318, %v6160, 0
      %v6272 = vsel %vm4318, %v6161, 0
      %6274 = vmatprep.subr.mxu0 0.0
      %6275 = vmatpush1.msra.mxu0 0.0
      %6276 = vmatprep.subr.mxu0 0.0
      %6277 = vmatpush1.msra.mxu0 0.0
      %6278 = vmatprep.subr.mxu0 0.0
      %6279 = vmatpush1.msra.mxu0 0.0
      %6280 = vmatprep.subr.mxu0 0.0
      %6281 = vmatpush1.msra.mxu0 0.0
      %6282 = vmatprep.subr.mxu0 0.0
      %6283 = vmatpush1.msra.mxu0 0.0
      %6284 = vmatprep.subr.mxu0 0.0
      %6285 = vmatpush1.msra.mxu0 0.0
      %6286 = vmatprep.subr.mxu0 0.0
      %6287 = vmatpush1.msra.mxu0 0.0
      %6288 = vmatprep.subr.mxu0 0.0
      %6289 = vmatpush1.msra.mxu0 %v6170
      %6290 = vmatprep.subr.mxu0 0.0
      %6291 = vmatpush1.msra.mxu0 %v6169
      %6292 = vmatprep.subr.mxu0 0.0
      %6293 = vmatpush1.msra.mxu0 %v6168
      %6294 = vmatprep.subr.mxu0 0.0
      %6295 = vmatpush1.msra.mxu0 %v6167
      %6296 = vmatprep.subr.mxu0 0.0
      %6297 = vmatpush1.msra.mxu0 %v6166
      %6298 = vmatprep.subr.mxu0 0.0
      %6299 = vmatpush1.msra.mxu0 %v6165
      %6300 = vmatprep.subr.mxu0 0.0
      %6301 = vmatpush1.msra.mxu0 %v6164
      %6302 = vmatprep.subr.mxu0 0.0
      %6303 = vmatpush1.msra.mxu0 %v6163
      %6304 = vmatprep.subr.mxu0 0.0
      %6305 = vmatpush1.msra.mxu0 %v6162
      %6306 = vmatprep.subr.mxu0 0.0
      %6307 = vmatpush2.msra.mxu0 0.0
      %6308 = vmatprep.subr.mxu0 0.0
      %6309 = vmatpush2.msra.mxu0 0.0
      %6310 = vmatprep.subr.mxu0 0.0
      %6311 = vmatpush2.msra.mxu0 0.0
      %6312 = vmatprep.subr.mxu0 0.0
      %6313 = vmatpush2.msra.mxu0 0.0
      %6314 = vmatprep.subr.mxu0 0.0
      %6315 = vmatpush2.msra.mxu0 0.0
      %6316 = vmatprep.subr.mxu0 0.0
      %6317 = vmatpush2.msra.mxu0 0.0
      %6318 = vmatprep.subr.mxu0 0.0
      %6319 = vmatpush2.msra.mxu0 0.0
      %6320 = vmatprep.subr.mxu0 0.0
      %6321 = vmatpush2.msra.mxu0 0.0
      %6322 = vmatprep.subr.mxu0 0.0
      %6323 = vmatpush2.msra.mxu0 0.0
      %6324 = vmatprep.subr.mxu0 0.0
      %6325 = vmatpush2.msra.mxu0 0.0
      %6326 = vmatprep.subr.mxu0 0.0
      %6327 = vmatpush2.msra.mxu0 0.0
      %6328 = vmatprep.subr.mxu0 0.0
      %6329 = vmatpush2.msra.mxu0 0.0
      %6330 = vmatprep.subr.mxu0 0.0
      %6331 = vmatpush2.msra.mxu0 0.0
      %6332 = vmatprep.subr.mxu0 0.0
      %6333 = vmatpush2.msra.mxu0 0.0
      %6334 = vmatprep.subr.mxu0 0.0
      %6335 = vmatpush2.msra.mxu0 0.0
      %6336 = vmatprep.subr.mxu0 0.0
      %6337 = vmatpush2.msra.mxu0 0.0
      %6338 = vmatprep.mubr.f32.mxu0 0.0
      %6339 = vmatmul.mubr.f32.gmra.mxu0 %v6179
      %v6340 = vpop.f32.mrf.mxu0
      %v6341 = vadd.f32 %v6176, %v6340
      %v6342 = vpop.f32.mrf.mxu0
      %6343 = vmatprep.mubr.f32.mxu0 0.0
      %6344 = vmatmul.mubr.f32.gmra.mxu0 %v6182
      %v6345 = vpop.f32.mrf.mxu0
      %v6346 = vadd.f32 %v6176, %v6345
      %v6347 = vpop.f32.mrf.mxu0
      %6348 = vmatprep.mubr.f32.mxu0 0.0
      %6349 = vmatmul.mubr.f32.gmra.mxu0 %v6185
      %v6350 = vpop.f32.mrf.mxu0
      %v6351 = vadd.f32 %v6176, %v6350
      %v6352 = vpop.f32.mrf.mxu0
      %6353 = vmatprep.mubr.f32.mxu0 0.0
      %6354 = vmatmul.mubr.f32.gmra.mxu0 %v6188
      %v6355 = vpop.f32.mrf.mxu0
      %v6356 = vadd.f32 %v6176, %v6355
      %v6357 = vpop.f32.mrf.mxu0
      %6358 = vmatprep.mubr.f32.mxu0 0.0
      %6359 = vmatmul.mubr.f32.gmra.mxu0 %v6191
      %v6360 = vpop.f32.mrf.mxu0
      %v6361 = vadd.f32 %v6176, %v6360
      %v6362 = vpop.f32.mrf.mxu0
      %6363 = vmatprep.mubr.f32.mxu0 0.0
      %6364 = vmatmul.mubr.f32.gmra.mxu0 %v6194
      %v6365 = vpop.f32.mrf.mxu0
      %v6366 = vadd.f32 %v6176, %v6365
      %v6367 = vpop.f32.mrf.mxu0
      %6368 = vmatprep.mubr.f32.mxu0 0.0
      %6369 = vmatmul.mubr.f32.gmra.mxu0 %v6197
      %v6370 = vpop.f32.mrf.mxu0
      %v6371 = vadd.f32 %v6176, %v6370
      %v6372 = vpop.f32.mrf.mxu0
      %6373 = vmatprep.mubr.f32.mxu0 0.0
      %6374 = vmatmul.mubr.f32.gmra.mxu0 %v6200
      %v6375 = vpop.f32.mrf.mxu0
      %v6376 = vadd.f32 %v6176, %v6375
      %v6377 = vpop.f32.mrf.mxu0
      %6378 = vmatprep.mubr.f32.mxu0 0.0
      %6379 = vmatmul.mubr.f32.gmra.mxu0 %v6203
      %v6380 = vpop.f32.mrf.mxu0
      %v6381 = vadd.f32 %v6176, %v6380
      %v6382 = vpop.f32.mrf.mxu0
      %6383 = vmatprep.mubr.f32.mxu0 0.0
      %6384 = vmatmul.mubr.f32.gmra.mxu0 %v6206
      %v6385 = vpop.f32.mrf.mxu0
      %v6386 = vadd.f32 %v6176, %v6385
      %v6387 = vpop.f32.mrf.mxu0
      %6388 = vmatprep.mubr.f32.mxu0 0.0
      %6389 = vmatmul.mubr.f32.gmra.mxu0 %v6209
      %v6390 = vpop.f32.mrf.mxu0
      %v6391 = vadd.f32 %v6176, %v6390
      %v6392 = vpop.f32.mrf.mxu0
      %6393 = vmatprep.mubr.f32.mxu0 0.0
      %6394 = vmatmul.mubr.f32.gmra.mxu0 %v6212
      %v6395 = vpop.f32.mrf.mxu0
      %v6396 = vadd.f32 %v6176, %v6395
      %v6397 = vpop.f32.mrf.mxu0
      %6398 = vmatprep.mubr.f32.mxu0 0.0
      %6399 = vmatmul.mubr.f32.gmra.mxu0 %v6215
      %v6400 = vpop.f32.mrf.mxu0
      %v6401 = vadd.f32 %v6176, %v6400
      %v6402 = vpop.f32.mrf.mxu0
      %6403 = vmatprep.mubr.f32.mxu0 0.0
      %6404 = vmatmul.mubr.f32.gmra.mxu0 %v6218
      %v6405 = vpop.f32.mrf.mxu0
      %v6406 = vadd.f32 %v6176, %v6405
      %v6407 = vpop.f32.mrf.mxu0
      %6408 = vmatprep.mubr.f32.mxu0 0.0
      %6409 = vmatmul.mubr.f32.gmra.mxu0 %v6221
      %v6410 = vpop.f32.mrf.mxu0
      %v6411 = vadd.f32 %v6176, %v6410
      %v6412 = vpop.f32.mrf.mxu0
      %6413 = vmatprep.mubr.f32.mxu0 0.0
      %6414 = vmatmul.mubr.f32.gmra.mxu0 %v6224
      %v6415 = vpop.f32.mrf.mxu0
      %v6416 = vadd.f32 %v6176, %v6415
      %v6417 = vpop.f32.mrf.mxu0
      %6418 = vmatprep.mubr.f32.mxu0 0.0
      %6419 = vmatmul.mubr.f32.gmra.mxu0 %v6227
      %v6420 = vpop.f32.mrf.mxu0
      %v6421 = vadd.f32 %v6176, %v6420
      %v6422 = vpop.f32.mrf.mxu0
      %6423 = vmatprep.mubr.f32.mxu0 0.0
      %6424 = vmatmul.mubr.f32.gmra.mxu0 %v6230
      %v6425 = vpop.f32.mrf.mxu0
      %v6426 = vadd.f32 %v6176, %v6425
      %v6427 = vpop.f32.mrf.mxu0
      %6428 = vmatprep.mubr.f32.mxu0 0.0
      %6429 = vmatmul.mubr.f32.gmra.mxu0 %v6233
      %v6430 = vpop.f32.mrf.mxu0
      %v6431 = vadd.f32 %v6176, %v6430
      %v6432 = vpop.f32.mrf.mxu0
      %6433 = vmatprep.mubr.f32.mxu0 0.0
      %6434 = vmatmul.mubr.f32.gmra.mxu0 %v6236
      %v6435 = vpop.f32.mrf.mxu0
      %v6436 = vadd.f32 %v6176, %v6435
      %v6437 = vpop.f32.mrf.mxu0
      %6438 = vmatprep.mubr.f32.mxu0 0.0
      %6439 = vmatmul.mubr.f32.gmra.mxu0 %v6239
      %v6440 = vpop.f32.mrf.mxu0
      %v6441 = vadd.f32 %v6176, %v6440
      %v6442 = vpop.f32.mrf.mxu0
      %6443 = vmatprep.mubr.f32.mxu0 0.0
      %6444 = vmatmul.mubr.f32.gmra.mxu0 %v6242
      %v6445 = vpop.f32.mrf.mxu0
      %v6446 = vadd.f32 %v6176, %v6445
      %v6447 = vpop.f32.mrf.mxu0
      %6448 = vmatprep.mubr.f32.mxu0 0.0
      %6449 = vmatmul.mubr.f32.gmra.mxu0 %v6245
      %v6450 = vpop.f32.mrf.mxu0
      %v6451 = vadd.f32 %v6176, %v6450
      %v6452 = vpop.f32.mrf.mxu0
      %6453 = vmatprep.mubr.f32.mxu0 0.0
      %6454 = vmatmul.mubr.f32.gmra.mxu0 %v6248
      %v6455 = vpop.f32.mrf.mxu0
      %v6456 = vadd.f32 %v6176, %v6455
      %v6457 = vpop.f32.mrf.mxu0
      %6458 = vmatprep.mubr.f32.mxu0 0.0
      %6459 = vmatmul.mubr.f32.gmra.mxu0 %v6251
      %v6460 = vpop.f32.mrf.mxu0
      %v6461 = vadd.f32 %v6176, %v6460
      %v6462 = vpop.f32.mrf.mxu0
      %6463 = vmatprep.mubr.f32.mxu0 0.0
      %6464 = vmatmul.mubr.f32.gmra.mxu0 %v6254
      %v6465 = vpop.f32.mrf.mxu0
      %v6466 = vadd.f32 %v6176, %v6465
      %v6467 = vpop.f32.mrf.mxu0
      %6468 = vmatprep.mubr.f32.mxu0 0.0
      %6469 = vmatmul.mubr.f32.gmra.mxu0 %v6257
      %v6470 = vpop.f32.mrf.mxu0
      %v6471 = vadd.f32 %v6176, %v6470
      %v6472 = vpop.f32.mrf.mxu0
      %6473 = vmatprep.mubr.f32.mxu0 0.0
      %6474 = vmatmul.mubr.f32.gmra.mxu0 %v6260
      %v6475 = vpop.f32.mrf.mxu0
      %v6476 = vadd.f32 %v6176, %v6475
      %v6477 = vpop.f32.mrf.mxu0
      %6478 = vmatprep.mubr.f32.mxu0 0.0
      %6479 = vmatmul.mubr.f32.gmra.mxu0 %v6263
      %v6480 = vpop.f32.mrf.mxu0
      %v6481 = vadd.f32 %v6176, %v6480
      %v6482 = vpop.f32.mrf.mxu0
      %6483 = vmatprep.mubr.f32.mxu0 0.0
      %6484 = vmatmul.mubr.f32.gmra.mxu0 %v6266
      %v6485 = vpop.f32.mrf.mxu0
      %v6486 = vadd.f32 %v6176, %v6485
      %v6487 = vpop.f32.mrf.mxu0
      %6488 = vmatprep.mubr.f32.mxu0 0.0
      %6489 = vmatmul.mubr.f32.gmra.mxu0 %v6269
      %v6490 = vpop.f32.mrf.mxu0
      %v6491 = vadd.f32 %v6176, %v6490
      %v6492 = vpop.f32.mrf.mxu0
      %6493 = vmatprep.mubr.f32.mxu0 0.0
      %6494 = vmatmul.mubr.f32.gmra.mxu0 %v6272
      %v6495 = vpop.f32.mrf.mxu0
      %v6496 = vadd.f32 %v6176, %v6495
      %v6497 = vpop.f32.mrf.mxu0
      %6498 = vdwg.mxu0
      %v6499 = vld [vmem:[%s16] sm:$0x1]
      %v6501 = vlaneseq
      %v6502 = vshrl.u32 %v6501, 7
      %v6503 = vsub.s32 0, %v6502
      %v6504 = vrot.slane %v6499, %v6503
      %v6506 = vmul.f32 %v6341, %v6504
      %v6507 = vmul.f32 %v6346, %v6504
      %v6508 = vmul.f32 %v6351, %v6504
      %v6509 = vmul.f32 %v6356, %v6504
      %v6510 = vmul.f32 %v6361, %v6504
      %v6511 = vmul.f32 %v6366, %v6504
      %v6512 = vmul.f32 %v6371, %v6504
      %v6513 = vmul.f32 %v6376, %v6504
      %v6514 = vmul.f32 %v6381, %v6504
      %v6515 = vmul.f32 %v6386, %v6504
      %v6516 = vmul.f32 %v6391, %v6504
      %v6517 = vmul.f32 %v6396, %v6504
      %v6518 = vmul.f32 %v6401, %v6504
      %v6519 = vmul.f32 %v6406, %v6504
      %v6520 = vmul.f32 %v6411, %v6504
      %v6521 = vmul.f32 %v6416, %v6504
      %v6522 = vmul.f32 %v6421, %v6504
      %v6523 = vmul.f32 %v6426, %v6504
      %v6524 = vmul.f32 %v6431, %v6504
      %v6525 = vmul.f32 %v6436, %v6504
      %v6526 = vmul.f32 %v6441, %v6504
      %v6527 = vmul.f32 %v6446, %v6504
      %v6528 = vmul.f32 %v6451, %v6504
      %v6529 = vmul.f32 %v6456, %v6504
      %v6530 = vmul.f32 %v6461, %v6504
      %v6531 = vmul.f32 %v6466, %v6504
      %v6532 = vmul.f32 %v6471, %v6504
      %v6533 = vmul.f32 %v6476, %v6504
      %v6534 = vmul.f32 %v6481, %v6504
      %v6535 = vmul.f32 %v6486, %v6504
      %v6536 = vmul.f32 %v6491, %v6504
      %v6537 = vmul.f32 %v6496, %v6504
      %v6538 = vld [vmem:[%s17] sm:$0x1]
      %v6540 = vlaneseq
      %v6541 = vshrl.u32 %v6540, 7
      %v6542 = vsub.s32 0, %v6541
      %v6543 = vrot.slane %v6538, %v6542
      %v6545 = vadd.f32 %v6506, %v6543
      %v6546 = vadd.f32 %v6507, %v6543
      %v6547 = vadd.f32 %v6508, %v6543
      %v6548 = vadd.f32 %v6509, %v6543
      %v6549 = vadd.f32 %v6510, %v6543
      %v6550 = vadd.f32 %v6511, %v6543
      %v6551 = vadd.f32 %v6512, %v6543
      %v6552 = vadd.f32 %v6513, %v6543
      %v6553 = vadd.f32 %v6514, %v6543
      %v6554 = vadd.f32 %v6515, %v6543
      %v6555 = vadd.f32 %v6516, %v6543
      %v6556 = vadd.f32 %v6517, %v6543
      %v6557 = vadd.f32 %v6518, %v6543
      %v6558 = vadd.f32 %v6519, %v6543
      %v6559 = vadd.f32 %v6520, %v6543
      %v6560 = vadd.f32 %v6521, %v6543
      %v6561 = vadd.f32 %v6522, %v6543
      %v6562 = vadd.f32 %v6523, %v6543
      %v6563 = vadd.f32 %v6524, %v6543
      %v6564 = vadd.f32 %v6525, %v6543
      %v6565 = vadd.f32 %v6526, %v6543
      %v6566 = vadd.f32 %v6527, %v6543
      %v6567 = vadd.f32 %v6528, %v6543
      %v6568 = vadd.f32 %v6529, %v6543
      %v6569 = vadd.f32 %v6530, %v6543
      %v6570 = vadd.f32 %v6531, %v6543
      %v6571 = vadd.f32 %v6532, %v6543
      %v6572 = vadd.f32 %v6533, %v6543
      %v6573 = vadd.f32 %v6534, %v6543
      %v6574 = vadd.f32 %v6535, %v6543
      %v6575 = vadd.f32 %v6536, %v6543
      %v6576 = vadd.f32 %v6537, %v6543
      %v6577 = vmax.f32 %v6545, 0.0
      %v6578 = vmax.f32 %v6546, 0.0
      %v6579 = vmax.f32 %v6547, 0.0
      %v6580 = vmax.f32 %v6548, 0.0
      %v6581 = vmax.f32 %v6549, 0.0
      %v6582 = vmax.f32 %v6550, 0.0
      %v6583 = vmax.f32 %v6551, 0.0
      %v6584 = vmax.f32 %v6552, 0.0
      %v6585 = vmax.f32 %v6553, 0.0
      %v6586 = vmax.f32 %v6554, 0.0
      %v6587 = vmax.f32 %v6555, 0.0
      %v6588 = vmax.f32 %v6556, 0.0
      %v6589 = vmax.f32 %v6557, 0.0
      %v6590 = vmax.f32 %v6558, 0.0
      %v6591 = vmax.f32 %v6559, 0.0
      %v6592 = vmax.f32 %v6560, 0.0
      %v6593 = vmax.f32 %v6561, 0.0
      %v6594 = vmax.f32 %v6562, 0.0
      %v6595 = vmax.f32 %v6563, 0.0
      %v6596 = vmax.f32 %v6564, 0.0
      %v6597 = vmax.f32 %v6565, 0.0
      %v6598 = vmax.f32 %v6566, 0.0
      %v6599 = vmax.f32 %v6567, 0.0
      %v6600 = vmax.f32 %v6568, 0.0
      %v6601 = vmax.f32 %v6569, 0.0
      %v6602 = vmax.f32 %v6570, 0.0
      %v6603 = vmax.f32 %v6571, 0.0
      %v6604 = vmax.f32 %v6572, 0.0
      %v6605 = vmax.f32 %v6573, 0.0
      %v6606 = vmax.f32 %v6574, 0.0
      %v6607 = vmax.f32 %v6575, 0.0
      %v6608 = vmax.f32 %v6576, 0.0
      %v6641 = vrot.slane %v6577, 7
      %v6642 = vrot.slane %v6578, 7
      %v6643 = vsel %vm1152, %v6641, %v6642
      %v6644 = vrot.slane %v6579, 7
      %v6645 = vrot.slane %v6580, 7
      %v6646 = vsel %vm1152, %v6644, %v6645
      %v6647 = vrot.slane %v6581, 7
      %v6648 = vrot.slane %v6582, 7
      %v6649 = vsel %vm1152, %v6647, %v6648
      %v6650 = vrot.slane %v6583, 7
      %v6651 = vrot.slane %v6584, 7
      %v6652 = vsel %vm1152, %v6650, %v6651
      %v6653 = vrot.slane %v6585, 7
      %v6654 = vrot.slane %v6586, 7
      %v6655 = vsel %vm1152, %v6653, %v6654
      %v6656 = vrot.slane %v6587, 7
      %v6657 = vrot.slane %v6588, 7
      %v6658 = vsel %vm1152, %v6656, %v6657
      %v6659 = vrot.slane %v6589, 7
      %v6660 = vrot.slane %v6590, 7
      %v6661 = vsel %vm1152, %v6659, %v6660
      %v6662 = vrot.slane %v6591, 7
      %v6663 = vrot.slane %v6592, 7
      %v6664 = vsel %vm1152, %v6662, %v6663
      %v6665 = vrot.slane %v6593, 7
      %v6666 = vrot.slane %v6594, 7
      %v6667 = vsel %vm1152, %v6665, %v6666
      %v6668 = vrot.slane %v6595, 7
      %v6669 = vrot.slane %v6596, 7
      %v6670 = vsel %vm1152, %v6668, %v6669
      %v6671 = vrot.slane %v6597, 7
      %v6672 = vrot.slane %v6598, 7
      %v6673 = vsel %vm1152, %v6671, %v6672
      %v6674 = vrot.slane %v6599, 7
      %v6675 = vrot.slane %v6600, 7
      %v6676 = vsel %vm1152, %v6674, %v6675
      %v6677 = vrot.slane %v6601, 7
      %v6678 = vrot.slane %v6602, 7
      %v6679 = vsel %vm1152, %v6677, %v6678
      %v6680 = vrot.slane %v6603, 7
      %v6681 = vrot.slane %v6604, 7
      %v6682 = vsel %vm1152, %v6680, %v6681
      %v6683 = vrot.slane %v6605, 7
      %v6684 = vrot.slane %v6606, 7
      %v6685 = vsel %vm1152, %v6683, %v6684
      %v6686 = vrot.slane %v6607, 7
      %v6687 = vrot.slane %v6608, 7
      %v6688 = vsel %vm1152, %v6686, %v6687
      %v6736 = vsel %vm1152, 0.0, %v6641
      %v6737 = vsel %vm1152, 0.0, %v6644
      %v6738 = vsel %vm1152, 0.0, %v6647
      %v6739 = vsel %vm1152, 0.0, %v6650
      %v6740 = vsel %vm1152, 0.0, %v6653
      %v6741 = vsel %vm1152, 0.0, %v6656
      %v6742 = vsel %vm1152, 0.0, %v6659
      %v6743 = vsel %vm1152, 0.0, %v6662
      %v6744 = vsel %vm1152, 0.0, %v6665
      %v6745 = vsel %vm1152, 0.0, %v6668
      %v6746 = vsel %vm1152, 0.0, %v6671
      %v6747 = vsel %vm1152, 0.0, %v6674
      %v6748 = vsel %vm1152, 0.0, %v6677
      %v6749 = vsel %vm1152, 0.0, %v6680
      %v6750 = vsel %vm1152, 0.0, %v6683
      %v6751 = vsel %vm1152, 0.0, %v6686
      %v6752 = vsel %vm1152, %v6642, 0.0
      %v6753 = vsel %vm1152, %v6645, 0.0
      %v6754 = vsel %vm1152, %v6648, 0.0
      %v6755 = vsel %vm1152, %v6651, 0.0
      %v6756 = vsel %vm1152, %v6654, 0.0
      %v6757 = vsel %vm1152, %v6657, 0.0
      %v6758 = vsel %vm1152, %v6660, 0.0
      %v6759 = vsel %vm1152, %v6663, 0.0
      %v6760 = vsel %vm1152, %v6666, 0.0
      %v6761 = vsel %vm1152, %v6669, 0.0
      %v6762 = vsel %vm1152, %v6672, 0.0
      %v6763 = vsel %vm1152, %v6675, 0.0
      %v6764 = vsel %vm1152, %v6678, 0.0
      %v6765 = vsel %vm1152, %v6681, 0.0
      %v6766 = vsel %vm1152, %v6684, 0.0
      %v6767 = vsel %vm1152, %v6687, 0.0
      %v6798 = vrot.slane %v6736, 1
      %v6799 = vrot.slane %v6643, 1
      %v6800 = vsel %vm1311, %v6798, %v6799
      %v6801 = vrot.slane %v6752, 1
      %v6802 = vsel %vm1311, %v6799, %v6801
      %v6803 = vrot.slane %v6737, 1
      %v6804 = vrot.slane %v6646, 1
      %v6805 = vsel %vm1311, %v6803, %v6804
      %v6806 = vrot.slane %v6753, 1
      %v6807 = vsel %vm1311, %v6804, %v6806
      %v6808 = vrot.slane %v6738, 1
      %v6809 = vrot.slane %v6649, 1
      %v6810 = vsel %vm1311, %v6808, %v6809
      %v6811 = vrot.slane %v6754, 1
      %v6812 = vsel %vm1311, %v6809, %v6811
      %v6813 = vrot.slane %v6739, 1
      %v6814 = vrot.slane %v6652, 1
      %v6815 = vsel %vm1311, %v6813, %v6814
      %v6816 = vrot.slane %v6755, 1
      %v6817 = vsel %vm1311, %v6814, %v6816
      %v6818 = vrot.slane %v6740, 1
      %v6819 = vrot.slane %v6655, 1
      %v6820 = vsel %vm1311, %v6818, %v6819
      %v6821 = vrot.slane %v6756, 1
      %v6822 = vsel %vm1311, %v6819, %v6821
      %v6823 = vrot.slane %v6741, 1
      %v6824 = vrot.slane %v6658, 1
      %v6825 = vsel %vm1311, %v6823, %v6824
      %v6826 = vrot.slane %v6757, 1
      %v6827 = vsel %vm1311, %v6824, %v6826
      %v6828 = vrot.slane %v6742, 1
      %v6829 = vrot.slane %v6661, 1
      %v6830 = vsel %vm1311, %v6828, %v6829
      %v6831 = vrot.slane %v6758, 1
      %v6832 = vsel %vm1311, %v6829, %v6831
      %v6833 = vrot.slane %v6743, 1
      %v6834 = vrot.slane %v6664, 1
      %v6835 = vsel %vm1311, %v6833, %v6834
      %v6836 = vrot.slane %v6759, 1
      %v6837 = vsel %vm1311, %v6834, %v6836
      %v6838 = vrot.slane %v6744, 1
      %v6839 = vrot.slane %v6667, 1
      %v6840 = vsel %vm1311, %v6838, %v6839
      %v6841 = vrot.slane %v6760, 1
      %v6842 = vsel %vm1311, %v6839, %v6841
      %v6843 = vrot.slane %v6745, 1
      %v6844 = vrot.slane %v6670, 1
      %v6845 = vsel %vm1311, %v6843, %v6844
      %v6846 = vrot.slane %v6761, 1
      %v6847 = vsel %vm1311, %v6844, %v6846
      %v6848 = vrot.slane %v6746, 1
      %v6849 = vrot.slane %v6673, 1
      %v6850 = vsel %vm1311, %v6848, %v6849
      %v6851 = vrot.slane %v6762, 1
      %v6852 = vsel %vm1311, %v6849, %v6851
      %v6853 = vrot.slane %v6747, 1
      %v6854 = vrot.slane %v6676, 1
      %v6855 = vsel %vm1311, %v6853, %v6854
      %v6856 = vrot.slane %v6763, 1
      %v6857 = vsel %vm1311, %v6854, %v6856
      %v6858 = vrot.slane %v6748, 1
      %v6859 = vrot.slane %v6679, 1
      %v6860 = vsel %vm1311, %v6858, %v6859
      %v6861 = vrot.slane %v6764, 1
      %v6862 = vsel %vm1311, %v6859, %v6861
      %v6863 = vrot.slane %v6749, 1
      %v6864 = vrot.slane %v6682, 1
      %v6865 = vsel %vm1311, %v6863, %v6864
      %v6866 = vrot.slane %v6765, 1
      %v6867 = vsel %vm1311, %v6864, %v6866
      %v6868 = vrot.slane %v6750, 1
      %v6869 = vrot.slane %v6685, 1
      %v6870 = vsel %vm1311, %v6868, %v6869
      %v6871 = vrot.slane %v6766, 1
      %v6872 = vsel %vm1311, %v6869, %v6871
      %6873 = vrot.lane.b32.xlu0 %v6800, 8
      %v6874 = vpop.permute.xlu0 %6873
      %6875 = vrot.lane.b32.xlu0 %v6802, 8
      %v6876 = vpop.permute.xlu0 %6875
      %6877 = vrot.lane.b32.xlu0 %v6805, 8
      %v6878 = vpop.permute.xlu0 %6877
      %6879 = vrot.lane.b32.xlu0 %v6807, 8
      %v6880 = vpop.permute.xlu0 %6879
      %6881 = vrot.lane.b32.xlu0 %v6810, 8
      %v6882 = vpop.permute.xlu0 %6881
      %6883 = vrot.lane.b32.xlu0 %v6812, 8
      %v6884 = vpop.permute.xlu0 %6883
      %6885 = vrot.lane.b32.xlu0 %v6815, 8
      %v6886 = vpop.permute.xlu0 %6885
      %6887 = vrot.lane.b32.xlu0 %v6817, 8
      %v6888 = vpop.permute.xlu0 %6887
      %6889 = vrot.lane.b32.xlu0 %v6820, 8
      %v6890 = vpop.permute.xlu0 %6889
      %6891 = vrot.lane.b32.xlu0 %v6822, 8
      %v6892 = vpop.permute.xlu0 %6891
      %6893 = vrot.lane.b32.xlu0 %v6825, 8
      %v6894 = vpop.permute.xlu0 %6893
      %6895 = vrot.lane.b32.xlu0 %v6827, 8
      %v6896 = vpop.permute.xlu0 %6895
      %6897 = vrot.lane.b32.xlu0 %v6830, 8
      %v6898 = vpop.permute.xlu0 %6897
      %6899 = vrot.lane.b32.xlu0 %v6832, 8
      %v6900 = vpop.permute.xlu0 %6899
      %6901 = vrot.lane.b32.xlu0 %v6835, 8
      %v6902 = vpop.permute.xlu0 %6901
      %6903 = vrot.lane.b32.xlu0 %v6837, 8
      %v6904 = vpop.permute.xlu0 %6903
      %6905 = vrot.lane.b32.xlu0 %v6840, 8
      %v6906 = vpop.permute.xlu0 %6905
      %6907 = vrot.lane.b32.xlu0 %v6842, 8
      %v6908 = vpop.permute.xlu0 %6907
      %6909 = vrot.lane.b32.xlu0 %v6845, 8
      %v6910 = vpop.permute.xlu0 %6909
      %6911 = vrot.lane.b32.xlu0 %v6847, 8
      %v6912 = vpop.permute.xlu0 %6911
      %6913 = vrot.lane.b32.xlu0 %v6850, 8
      %v6914 = vpop.permute.xlu0 %6913
      %6915 = vrot.lane.b32.xlu0 %v6852, 8
      %v6916 = vpop.permute.xlu0 %6915
      %6917 = vrot.lane.b32.xlu0 %v6855, 8
      %v6918 = vpop.permute.xlu0 %6917
      %6919 = vrot.lane.b32.xlu0 %v6857, 8
      %v6920 = vpop.permute.xlu0 %6919
      %6921 = vrot.lane.b32.xlu0 %v6860, 8
      %v6922 = vpop.permute.xlu0 %6921
      %6923 = vrot.lane.b32.xlu0 %v6862, 8
      %v6924 = vpop.permute.xlu0 %6923
      %6925 = vrot.lane.b32.xlu0 %v6865, 8
      %v6926 = vpop.permute.xlu0 %6925
      %6927 = vrot.lane.b32.xlu0 %v6867, 8
      %v6928 = vpop.permute.xlu0 %6927
      %6929 = vrot.lane.b32.xlu0 %v6870, 8
      %v6930 = vpop.permute.xlu0 %6929
      %6931 = vrot.lane.b32.xlu0 %v6872, 8
      %v6932 = vpop.permute.xlu0 %6931
      %v6963 = vrot.slane %v6736, 2
      %v6964 = vrot.slane %v6643, 2
      %v6965 = vsel %vm1482, %v6963, %v6964
      %v6966 = vrot.slane %v6752, 2
      %v6967 = vsel %vm1482, %v6964, %v6966
      %v6968 = vrot.slane %v6737, 2
      %v6969 = vrot.slane %v6646, 2
      %v6970 = vsel %vm1482, %v6968, %v6969
      %v6971 = vrot.slane %v6753, 2
      %v6972 = vsel %vm1482, %v6969, %v6971
      %v6973 = vrot.slane %v6738, 2
      %v6974 = vrot.slane %v6649, 2
      %v6975 = vsel %vm1482, %v6973, %v6974
      %v6976 = vrot.slane %v6754, 2
      %v6977 = vsel %vm1482, %v6974, %v6976
      %v6978 = vrot.slane %v6739, 2
      %v6979 = vrot.slane %v6652, 2
      %v6980 = vsel %vm1482, %v6978, %v6979
      %v6981 = vrot.slane %v6755, 2
      %v6982 = vsel %vm1482, %v6979, %v6981
      %v6983 = vrot.slane %v6740, 2
      %v6984 = vrot.slane %v6655, 2
      %v6985 = vsel %vm1482, %v6983, %v6984
      %v6986 = vrot.slane %v6756, 2
      %v6987 = vsel %vm1482, %v6984, %v6986
      %v6988 = vrot.slane %v6741, 2
      %v6989 = vrot.slane %v6658, 2
      %v6990 = vsel %vm1482, %v6988, %v6989
      %v6991 = vrot.slane %v6757, 2
      %v6992 = vsel %vm1482, %v6989, %v6991
      %v6993 = vrot.slane %v6742, 2
      %v6994 = vrot.slane %v6661, 2
      %v6995 = vsel %vm1482, %v6993, %v6994
      %v6996 = vrot.slane %v6758, 2
      %v6997 = vsel %vm1482, %v6994, %v6996
      %v6998 = vrot.slane %v6743, 2
      %v6999 = vrot.slane %v6664, 2
      %v7000 = vsel %vm1482, %v6998, %v6999
      %v7001 = vrot.slane %v6759, 2
      %v7002 = vsel %vm1482, %v6999, %v7001
      %v7003 = vrot.slane %v6744, 2
      %v7004 = vrot.slane %v6667, 2
      %v7005 = vsel %vm1482, %v7003, %v7004
      %v7006 = vrot.slane %v6760, 2
      %v7007 = vsel %vm1482, %v7004, %v7006
      %v7008 = vrot.slane %v6745, 2
      %v7009 = vrot.slane %v6670, 2
      %v7010 = vsel %vm1482, %v7008, %v7009
      %v7011 = vrot.slane %v6761, 2
      %v7012 = vsel %vm1482, %v7009, %v7011
      %v7013 = vrot.slane %v6746, 2
      %v7014 = vrot.slane %v6673, 2
      %v7015 = vsel %vm1482, %v7013, %v7014
      %v7016 = vrot.slane %v6762, 2
      %v7017 = vsel %vm1482, %v7014, %v7016
      %v7018 = vrot.slane %v6747, 2
      %v7019 = vrot.slane %v6676, 2
      %v7020 = vsel %vm1482, %v7018, %v7019
      %v7021 = vrot.slane %v6763, 2
      %v7022 = vsel %vm1482, %v7019, %v7021
      %v7023 = vrot.slane %v6748, 2
      %v7024 = vrot.slane %v6679, 2
      %v7025 = vsel %vm1482, %v7023, %v7024
      %v7026 = vrot.slane %v6764, 2
      %v7027 = vsel %vm1482, %v7024, %v7026
      %v7028 = vrot.slane %v6749, 2
      %v7029 = vrot.slane %v6682, 2
      %v7030 = vsel %vm1482, %v7028, %v7029
      %v7031 = vrot.slane %v6765, 2
      %v7032 = vsel %vm1482, %v7029, %v7031
      %v7033 = vrot.slane %v6750, 2
      %v7034 = vrot.slane %v6685, 2
      %v7035 = vsel %vm1482, %v7033, %v7034
      %v7036 = vrot.slane %v6766, 2
      %v7037 = vsel %vm1482, %v7034, %v7036
      %7038 = vrot.lane.b32.xlu0 %v6965, 16
      %v7039 = vpop.permute.xlu0 %7038
      %7040 = vrot.lane.b32.xlu0 %v6967, 16
      %v7041 = vpop.permute.xlu0 %7040
      %7042 = vrot.lane.b32.xlu0 %v6970, 16
      %v7043 = vpop.permute.xlu0 %7042
      %7044 = vrot.lane.b32.xlu0 %v6972, 16
      %v7045 = vpop.permute.xlu0 %7044
      %7046 = vrot.lane.b32.xlu0 %v6975, 16
      %v7047 = vpop.permute.xlu0 %7046
      %7048 = vrot.lane.b32.xlu0 %v6977, 16
      %v7049 = vpop.permute.xlu0 %7048
      %7050 = vrot.lane.b32.xlu0 %v6980, 16
      %v7051 = vpop.permute.xlu0 %7050
      %7052 = vrot.lane.b32.xlu0 %v6982, 16
      %v7053 = vpop.permute.xlu0 %7052
      %7054 = vrot.lane.b32.xlu0 %v6985, 16
      %v7055 = vpop.permute.xlu0 %7054
      %7056 = vrot.lane.b32.xlu0 %v6987, 16
      %v7057 = vpop.permute.xlu0 %7056
      %7058 = vrot.lane.b32.xlu0 %v6990, 16
      %v7059 = vpop.permute.xlu0 %7058
      %7060 = vrot.lane.b32.xlu0 %v6992, 16
      %v7061 = vpop.permute.xlu0 %7060
      %7062 = vrot.lane.b32.xlu0 %v6995, 16
      %v7063 = vpop.permute.xlu0 %7062
      %7064 = vrot.lane.b32.xlu0 %v6997, 16
      %v7065 = vpop.permute.xlu0 %7064
      %7066 = vrot.lane.b32.xlu0 %v7000, 16
      %v7067 = vpop.permute.xlu0 %7066
      %7068 = vrot.lane.b32.xlu0 %v7002, 16
      %v7069 = vpop.permute.xlu0 %7068
      %7070 = vrot.lane.b32.xlu0 %v7005, 16
      %v7071 = vpop.permute.xlu0 %7070
      %7072 = vrot.lane.b32.xlu0 %v7007, 16
      %v7073 = vpop.permute.xlu0 %7072
      %7074 = vrot.lane.b32.xlu0 %v7010, 16
      %v7075 = vpop.permute.xlu0 %7074
      %7076 = vrot.lane.b32.xlu0 %v7012, 16
      %v7077 = vpop.permute.xlu0 %7076
      %7078 = vrot.lane.b32.xlu0 %v7015, 16
      %v7079 = vpop.permute.xlu0 %7078
      %7080 = vrot.lane.b32.xlu0 %v7017, 16
      %v7081 = vpop.permute.xlu0 %7080
      %7082 = vrot.lane.b32.xlu0 %v7020, 16
      %v7083 = vpop.permute.xlu0 %7082
      %7084 = vrot.lane.b32.xlu0 %v7022, 16
      %v7085 = vpop.permute.xlu0 %7084
      %7086 = vrot.lane.b32.xlu0 %v7025, 16
      %v7087 = vpop.permute.xlu0 %7086
      %7088 = vrot.lane.b32.xlu0 %v7027, 16
      %v7089 = vpop.permute.xlu0 %7088
      %7090 = vrot.lane.b32.xlu0 %v7030, 16
      %v7091 = vpop.permute.xlu0 %7090
      %7092 = vrot.lane.b32.xlu0 %v7032, 16
      %v7093 = vpop.permute.xlu0 %7092
      %7094 = vrot.lane.b32.xlu0 %v7035, 16
      %v7095 = vpop.permute.xlu0 %7094
      %7096 = vrot.lane.b32.xlu0 %v7037, 16
      %v7097 = vpop.permute.xlu0 %7096
      %7129 = vrot.lane.b32.xlu0 %v6736, 24
      %v7130 = vpop.permute.xlu0 %7129
      %7131 = vrot.lane.b32.xlu0 %v6643, 24
      %v7132 = vpop.permute.xlu0 %7131
      %7133 = vrot.lane.b32.xlu0 %v6737, 24
      %v7134 = vpop.permute.xlu0 %7133
      %7135 = vrot.lane.b32.xlu0 %v6646, 24
      %v7136 = vpop.permute.xlu0 %7135
      %7137 = vrot.lane.b32.xlu0 %v6738, 24
      %v7138 = vpop.permute.xlu0 %7137
      %7139 = vrot.lane.b32.xlu0 %v6649, 24
      %v7140 = vpop.permute.xlu0 %7139
      %7141 = vrot.lane.b32.xlu0 %v6739, 24
      %v7142 = vpop.permute.xlu0 %7141
      %7143 = vrot.lane.b32.xlu0 %v6652, 24
      %v7144 = vpop.permute.xlu0 %7143
      %7145 = vrot.lane.b32.xlu0 %v6740, 24
      %v7146 = vpop.permute.xlu0 %7145
      %7147 = vrot.lane.b32.xlu0 %v6655, 24
      %v7148 = vpop.permute.xlu0 %7147
      %7149 = vrot.lane.b32.xlu0 %v6741, 24
      %v7150 = vpop.permute.xlu0 %7149
      %7151 = vrot.lane.b32.xlu0 %v6658, 24
      %v7152 = vpop.permute.xlu0 %7151
      %7153 = vrot.lane.b32.xlu0 %v6742, 24
      %v7154 = vpop.permute.xlu0 %7153
      %7155 = vrot.lane.b32.xlu0 %v6661, 24
      %v7156 = vpop.permute.xlu0 %7155
      %7157 = vrot.lane.b32.xlu0 %v6743, 24
      %v7158 = vpop.permute.xlu0 %7157
      %7159 = vrot.lane.b32.xlu0 %v6664, 24
      %v7160 = vpop.permute.xlu0 %7159
      %7161 = vrot.lane.b32.xlu0 %v6744, 24
      %v7162 = vpop.permute.xlu0 %7161
      %7163 = vrot.lane.b32.xlu0 %v6667, 24
      %v7164 = vpop.permute.xlu0 %7163
      %7165 = vrot.lane.b32.xlu0 %v6745, 24
      %v7166 = vpop.permute.xlu0 %7165
      %7167 = vrot.lane.b32.xlu0 %v6670, 24
      %v7168 = vpop.permute.xlu0 %7167
      %7169 = vrot.lane.b32.xlu0 %v6746, 24
      %v7170 = vpop.permute.xlu0 %7169
      %7171 = vrot.lane.b32.xlu0 %v6673, 24
      %v7172 = vpop.permute.xlu0 %7171
      %7173 = vrot.lane.b32.xlu0 %v6747, 24
      %v7174 = vpop.permute.xlu0 %7173
      %7175 = vrot.lane.b32.xlu0 %v6676, 24
      %v7176 = vpop.permute.xlu0 %7175
      %7177 = vrot.lane.b32.xlu0 %v6748, 24
      %v7178 = vpop.permute.xlu0 %7177
      %7179 = vrot.lane.b32.xlu0 %v6679, 24
      %v7180 = vpop.permute.xlu0 %7179
      %7181 = vrot.lane.b32.xlu0 %v6749, 24
      %v7182 = vpop.permute.xlu0 %7181
      %7183 = vrot.lane.b32.xlu0 %v6682, 24
      %v7184 = vpop.permute.xlu0 %7183
      %7185 = vrot.lane.b32.xlu0 %v6750, 24
      %v7186 = vpop.permute.xlu0 %7185
      %7187 = vrot.lane.b32.xlu0 %v6685, 24
      %v7188 = vpop.permute.xlu0 %7187
      %7189 = vrot.lane.b32.xlu0 %v6751, 24
      %v7190 = vpop.permute.xlu0 %7189
      %7191 = vrot.lane.b32.xlu0 %v6688, 24
      %v7192 = vpop.permute.xlu0 %7191
      %v7226 = vrot.slane %v6751, 1
      %v7227 = vrot.slane %v6688, 1
      %v7228 = vsel %vm1311, %v7226, %v7227
      %v7229 = vrot.slane %v6767, 1
      %v7230 = vsel %vm1311, %v7227, %v7229
      %7231 = vrot.lane.b32.xlu0 %v6800, 32
      %v7232 = vpop.permute.xlu0 %7231
      %7233 = vrot.lane.b32.xlu0 %v6802, 32
      %v7234 = vpop.permute.xlu0 %7233
      %7235 = vrot.lane.b32.xlu0 %v6805, 32
      %v7236 = vpop.permute.xlu0 %7235
      %7237 = vrot.lane.b32.xlu0 %v6807, 32
      %v7238 = vpop.permute.xlu0 %7237
      %7239 = vrot.lane.b32.xlu0 %v6810, 32
      %v7240 = vpop.permute.xlu0 %7239
      %7241 = vrot.lane.b32.xlu0 %v6812, 32
      %v7242 = vpop.permute.xlu0 %7241
      %7243 = vrot.lane.b32.xlu0 %v6815, 32
      %v7244 = vpop.permute.xlu0 %7243
      %7245 = vrot.lane.b32.xlu0 %v6817, 32
      %v7246 = vpop.permute.xlu0 %7245
      %7247 = vrot.lane.b32.xlu0 %v6820, 32
      %v7248 = vpop.permute.xlu0 %7247
      %7249 = vrot.lane.b32.xlu0 %v6822, 32
      %v7250 = vpop.permute.xlu0 %7249
      %7251 = vrot.lane.b32.xlu0 %v6825, 32
      %v7252 = vpop.permute.xlu0 %7251
      %7253 = vrot.lane.b32.xlu0 %v6827, 32
      %v7254 = vpop.permute.xlu0 %7253
      %7255 = vrot.lane.b32.xlu0 %v6830, 32
      %v7256 = vpop.permute.xlu0 %7255
      %7257 = vrot.lane.b32.xlu0 %v6832, 32
      %v7258 = vpop.permute.xlu0 %7257
      %7259 = vrot.lane.b32.xlu0 %v6835, 32
      %v7260 = vpop.permute.xlu0 %7259
      %7261 = vrot.lane.b32.xlu0 %v6837, 32
      %v7262 = vpop.permute.xlu0 %7261
      %7263 = vrot.lane.b32.xlu0 %v6840, 32
      %v7264 = vpop.permute.xlu0 %7263
      %7265 = vrot.lane.b32.xlu0 %v6842, 32
      %v7266 = vpop.permute.xlu0 %7265
      %7267 = vrot.lane.b32.xlu0 %v6845, 32
      %v7268 = vpop.permute.xlu0 %7267
      %7269 = vrot.lane.b32.xlu0 %v6847, 32
      %v7270 = vpop.permute.xlu0 %7269
      %7271 = vrot.lane.b32.xlu0 %v6850, 32
      %v7272 = vpop.permute.xlu0 %7271
      %7273 = vrot.lane.b32.xlu0 %v6852, 32
      %v7274 = vpop.permute.xlu0 %7273
      %7275 = vrot.lane.b32.xlu0 %v6855, 32
      %v7276 = vpop.permute.xlu0 %7275
      %7277 = vrot.lane.b32.xlu0 %v6857, 32
      %v7278 = vpop.permute.xlu0 %7277
      %7279 = vrot.lane.b32.xlu0 %v6860, 32
      %v7280 = vpop.permute.xlu0 %7279
      %7281 = vrot.lane.b32.xlu0 %v6862, 32
      %v7282 = vpop.permute.xlu0 %7281
      %7283 = vrot.lane.b32.xlu0 %v6865, 32
      %v7284 = vpop.permute.xlu0 %7283
      %7285 = vrot.lane.b32.xlu0 %v6867, 32
      %v7286 = vpop.permute.xlu0 %7285
      %7287 = vrot.lane.b32.xlu0 %v6870, 32
      %v7288 = vpop.permute.xlu0 %7287
      %7289 = vrot.lane.b32.xlu0 %v6872, 32
      %v7290 = vpop.permute.xlu0 %7289
      %7291 = vrot.lane.b32.xlu0 %v7228, 32
      %v7292 = vpop.permute.xlu0 %7291
      %7293 = vrot.lane.b32.xlu0 %v7230, 32
      %v7294 = vpop.permute.xlu0 %7293
      %v7327 = vrot.slane %v6751, 2
      %v7328 = vrot.slane %v6688, 2
      %v7329 = vsel %vm1482, %v7327, %v7328
      %v7330 = vrot.slane %v6767, 2
      %v7331 = vsel %vm1482, %v7328, %v7330
      %7332 = vrot.lane.b32.xlu0 %v6965, 40
      %v7333 = vpop.permute.xlu0 %7332
      %7334 = vrot.lane.b32.xlu0 %v6967, 40
      %v7335 = vpop.permute.xlu0 %7334
      %7336 = vrot.lane.b32.xlu0 %v6970, 40
      %v7337 = vpop.permute.xlu0 %7336
      %7338 = vrot.lane.b32.xlu0 %v6972, 40
      %v7339 = vpop.permute.xlu0 %7338
      %7340 = vrot.lane.b32.xlu0 %v6975, 40
      %v7341 = vpop.permute.xlu0 %7340
      %7342 = vrot.lane.b32.xlu0 %v6977, 40
      %v7343 = vpop.permute.xlu0 %7342
      %7344 = vrot.lane.b32.xlu0 %v6980, 40
      %v7345 = vpop.permute.xlu0 %7344
      %7346 = vrot.lane.b32.xlu0 %v6982, 40
      %v7347 = vpop.permute.xlu0 %7346
      %7348 = vrot.lane.b32.xlu0 %v6985, 40
      %v7349 = vpop.permute.xlu0 %7348
      %7350 = vrot.lane.b32.xlu0 %v6987, 40
      %v7351 = vpop.permute.xlu0 %7350
      %7352 = vrot.lane.b32.xlu0 %v6990, 40
      %v7353 = vpop.permute.xlu0 %7352
      %7354 = vrot.lane.b32.xlu0 %v6992, 40
      %v7355 = vpop.permute.xlu0 %7354
      %7356 = vrot.lane.b32.xlu0 %v6995, 40
      %v7357 = vpop.permute.xlu0 %7356
      %7358 = vrot.lane.b32.xlu0 %v6997, 40
      %v7359 = vpop.permute.xlu0 %7358
      %7360 = vrot.lane.b32.xlu0 %v7000, 40
      %v7361 = vpop.permute.xlu0 %7360
      %7362 = vrot.lane.b32.xlu0 %v7002, 40
      %v7363 = vpop.permute.xlu0 %7362
      %7364 = vrot.lane.b32.xlu0 %v7005, 40
      %v7365 = vpop.permute.xlu0 %7364
      %7366 = vrot.lane.b32.xlu0 %v7007, 40
      %v7367 = vpop.permute.xlu0 %7366
      %7368 = vrot.lane.b32.xlu0 %v7010, 40
      %v7369 = vpop.permute.xlu0 %7368
      %7370 = vrot.lane.b32.xlu0 %v7012, 40
      %v7371 = vpop.permute.xlu0 %7370
      %7372 = vrot.lane.b32.xlu0 %v7015, 40
      %v7373 = vpop.permute.xlu0 %7372
      %7374 = vrot.lane.b32.xlu0 %v7017, 40
      %v7375 = vpop.permute.xlu0 %7374
      %7376 = vrot.lane.b32.xlu0 %v7020, 40
      %v7377 = vpop.permute.xlu0 %7376
      %7378 = vrot.lane.b32.xlu0 %v7022, 40
      %v7379 = vpop.permute.xlu0 %7378
      %7380 = vrot.lane.b32.xlu0 %v7025, 40
      %v7381 = vpop.permute.xlu0 %7380
      %7382 = vrot.lane.b32.xlu0 %v7027, 40
      %v7383 = vpop.permute.xlu0 %7382
      %7384 = vrot.lane.b32.xlu0 %v7030, 40
      %v7385 = vpop.permute.xlu0 %7384
      %7386 = vrot.lane.b32.xlu0 %v7032, 40
      %v7387 = vpop.permute.xlu0 %7386
      %7388 = vrot.lane.b32.xlu0 %v7035, 40
      %v7389 = vpop.permute.xlu0 %7388
      %7390 = vrot.lane.b32.xlu0 %v7037, 40
      %v7391 = vpop.permute.xlu0 %7390
      %7392 = vrot.lane.b32.xlu0 %v7329, 40
      %v7393 = vpop.permute.xlu0 %7392
      %7394 = vrot.lane.b32.xlu0 %v7331, 40
      %v7395 = vpop.permute.xlu0 %7394
      %7428 = vrot.lane.b32.xlu0 %v6737, 48
      %v7429 = vpop.permute.xlu0 %7428
      %7430 = vrot.lane.b32.xlu0 %v6646, 48
      %v7431 = vpop.permute.xlu0 %7430
      %7432 = vrot.lane.b32.xlu0 %v6738, 48
      %v7433 = vpop.permute.xlu0 %7432
      %7434 = vrot.lane.b32.xlu0 %v6649, 48
      %v7435 = vpop.permute.xlu0 %7434
      %7436 = vrot.lane.b32.xlu0 %v6739, 48
      %v7437 = vpop.permute.xlu0 %7436
      %7438 = vrot.lane.b32.xlu0 %v6652, 48
      %v7439 = vpop.permute.xlu0 %7438
      %7440 = vrot.lane.b32.xlu0 %v6740, 48
      %v7441 = vpop.permute.xlu0 %7440
      %7442 = vrot.lane.b32.xlu0 %v6655, 48
      %v7443 = vpop.permute.xlu0 %7442
      %7444 = vrot.lane.b32.xlu0 %v6741, 48
      %v7445 = vpop.permute.xlu0 %7444
      %7446 = vrot.lane.b32.xlu0 %v6658, 48
      %v7447 = vpop.permute.xlu0 %7446
      %7448 = vrot.lane.b32.xlu0 %v6742, 48
      %v7449 = vpop.permute.xlu0 %7448
      %7450 = vrot.lane.b32.xlu0 %v6661, 48
      %v7451 = vpop.permute.xlu0 %7450
      %7452 = vrot.lane.b32.xlu0 %v6743, 48
      %v7453 = vpop.permute.xlu0 %7452
      %7454 = vrot.lane.b32.xlu0 %v6664, 48
      %v7455 = vpop.permute.xlu0 %7454
      %7456 = vrot.lane.b32.xlu0 %v6744, 48
      %v7457 = vpop.permute.xlu0 %7456
      %7458 = vrot.lane.b32.xlu0 %v6667, 48
      %v7459 = vpop.permute.xlu0 %7458
      %7460 = vrot.lane.b32.xlu0 %v6745, 48
      %v7461 = vpop.permute.xlu0 %7460
      %7462 = vrot.lane.b32.xlu0 %v6670, 48
      %v7463 = vpop.permute.xlu0 %7462
      %7464 = vrot.lane.b32.xlu0 %v6746, 48
      %v7465 = vpop.permute.xlu0 %7464
      %7466 = vrot.lane.b32.xlu0 %v6673, 48
      %v7467 = vpop.permute.xlu0 %7466
      %7468 = vrot.lane.b32.xlu0 %v6747, 48
      %v7469 = vpop.permute.xlu0 %7468
      %7470 = vrot.lane.b32.xlu0 %v6676, 48
      %v7471 = vpop.permute.xlu0 %7470
      %7472 = vrot.lane.b32.xlu0 %v6748, 48
      %v7473 = vpop.permute.xlu0 %7472
      %7474 = vrot.lane.b32.xlu0 %v6679, 48
      %v7475 = vpop.permute.xlu0 %7474
      %7476 = vrot.lane.b32.xlu0 %v6749, 48
      %v7477 = vpop.permute.xlu0 %7476
      %7478 = vrot.lane.b32.xlu0 %v6682, 48
      %v7479 = vpop.permute.xlu0 %7478
      %7480 = vrot.lane.b32.xlu0 %v6750, 48
      %v7481 = vpop.permute.xlu0 %7480
      %7482 = vrot.lane.b32.xlu0 %v6685, 48
      %v7483 = vpop.permute.xlu0 %7482
      %7484 = vrot.lane.b32.xlu0 %v6751, 48
      %v7485 = vpop.permute.xlu0 %7484
      %7486 = vrot.lane.b32.xlu0 %v6688, 48
      %v7487 = vpop.permute.xlu0 %7486
      %7518 = vrot.lane.b32.xlu0 %v6805, 56
      %v7519 = vpop.permute.xlu0 %7518
      %7520 = vrot.lane.b32.xlu0 %v6807, 56
      %v7521 = vpop.permute.xlu0 %7520
      %7522 = vrot.lane.b32.xlu0 %v6810, 56
      %v7523 = vpop.permute.xlu0 %7522
      %7524 = vrot.lane.b32.xlu0 %v6812, 56
      %v7525 = vpop.permute.xlu0 %7524
      %7526 = vrot.lane.b32.xlu0 %v6815, 56
      %v7527 = vpop.permute.xlu0 %7526
      %7528 = vrot.lane.b32.xlu0 %v6817, 56
      %v7529 = vpop.permute.xlu0 %7528
      %7530 = vrot.lane.b32.xlu0 %v6820, 56
      %v7531 = vpop.permute.xlu0 %7530
      %7532 = vrot.lane.b32.xlu0 %v6822, 56
      %v7533 = vpop.permute.xlu0 %7532
      %7534 = vrot.lane.b32.xlu0 %v6825, 56
      %v7535 = vpop.permute.xlu0 %7534
      %7536 = vrot.lane.b32.xlu0 %v6827, 56
      %v7537 = vpop.permute.xlu0 %7536
      %7538 = vrot.lane.b32.xlu0 %v6830, 56
      %v7539 = vpop.permute.xlu0 %7538
      %7540 = vrot.lane.b32.xlu0 %v6832, 56
      %v7541 = vpop.permute.xlu0 %7540
      %7542 = vrot.lane.b32.xlu0 %v6835, 56
      %v7543 = vpop.permute.xlu0 %7542
      %7544 = vrot.lane.b32.xlu0 %v6837, 56
      %v7545 = vpop.permute.xlu0 %7544
      %7546 = vrot.lane.b32.xlu0 %v6840, 56
      %v7547 = vpop.permute.xlu0 %7546
      %7548 = vrot.lane.b32.xlu0 %v6842, 56
      %v7549 = vpop.permute.xlu0 %7548
      %7550 = vrot.lane.b32.xlu0 %v6845, 56
      %v7551 = vpop.permute.xlu0 %7550
      %7552 = vrot.lane.b32.xlu0 %v6847, 56
      %v7553 = vpop.permute.xlu0 %7552
      %7554 = vrot.lane.b32.xlu0 %v6850, 56
      %v7555 = vpop.permute.xlu0 %7554
      %7556 = vrot.lane.b32.xlu0 %v6852, 56
      %v7557 = vpop.permute.xlu0 %7556
      %7558 = vrot.lane.b32.xlu0 %v6855, 56
      %v7559 = vpop.permute.xlu0 %7558
      %7560 = vrot.lane.b32.xlu0 %v6857, 56
      %v7561 = vpop.permute.xlu0 %7560
      %7562 = vrot.lane.b32.xlu0 %v6860, 56
      %v7563 = vpop.permute.xlu0 %7562
      %7564 = vrot.lane.b32.xlu0 %v6862, 56
      %v7565 = vpop.permute.xlu0 %7564
      %7566 = vrot.lane.b32.xlu0 %v6865, 56
      %v7567 = vpop.permute.xlu0 %7566
      %7568 = vrot.lane.b32.xlu0 %v6867, 56
      %v7569 = vpop.permute.xlu0 %7568
      %7570 = vrot.lane.b32.xlu0 %v6870, 56
      %v7571 = vpop.permute.xlu0 %7570
      %7572 = vrot.lane.b32.xlu0 %v6872, 56
      %v7573 = vpop.permute.xlu0 %7572
      %7574 = vrot.lane.b32.xlu0 %v7228, 56
      %v7575 = vpop.permute.xlu0 %7574
      %7576 = vrot.lane.b32.xlu0 %v7230, 56
      %v7577 = vpop.permute.xlu0 %7576
      %7608 = vrot.lane.b32.xlu0 %v6970, 64
      %v7609 = vpop.permute.xlu0 %7608
      %7610 = vrot.lane.b32.xlu0 %v6972, 64
      %v7611 = vpop.permute.xlu0 %7610
      %7612 = vrot.lane.b32.xlu0 %v6975, 64
      %v7613 = vpop.permute.xlu0 %7612
      %7614 = vrot.lane.b32.xlu0 %v6977, 64
      %v7615 = vpop.permute.xlu0 %7614
      %7616 = vrot.lane.b32.xlu0 %v6980, 64
      %v7617 = vpop.permute.xlu0 %7616
      %7618 = vrot.lane.b32.xlu0 %v6982, 64
      %v7619 = vpop.permute.xlu0 %7618
      %7620 = vrot.lane.b32.xlu0 %v6985, 64
      %v7621 = vpop.permute.xlu0 %7620
      %7622 = vrot.lane.b32.xlu0 %v6987, 64
      %v7623 = vpop.permute.xlu0 %7622
      %7624 = vrot.lane.b32.xlu0 %v6990, 64
      %v7625 = vpop.permute.xlu0 %7624
      %7626 = vrot.lane.b32.xlu0 %v6992, 64
      %v7627 = vpop.permute.xlu0 %7626
      %7628 = vrot.lane.b32.xlu0 %v6995, 64
      %v7629 = vpop.permute.xlu0 %7628
      %7630 = vrot.lane.b32.xlu0 %v6997, 64
      %v7631 = vpop.permute.xlu0 %7630
      %7632 = vrot.lane.b32.xlu0 %v7000, 64
      %v7633 = vpop.permute.xlu0 %7632
      %7634 = vrot.lane.b32.xlu0 %v7002, 64
      %v7635 = vpop.permute.xlu0 %7634
      %7636 = vrot.lane.b32.xlu0 %v7005, 64
      %v7637 = vpop.permute.xlu0 %7636
      %7638 = vrot.lane.b32.xlu0 %v7007, 64
      %v7639 = vpop.permute.xlu0 %7638
      %7640 = vrot.lane.b32.xlu0 %v7010, 64
      %v7641 = vpop.permute.xlu0 %7640
      %7642 = vrot.lane.b32.xlu0 %v7012, 64
      %v7643 = vpop.permute.xlu0 %7642
      %7644 = vrot.lane.b32.xlu0 %v7015, 64
      %v7645 = vpop.permute.xlu0 %7644
      %7646 = vrot.lane.b32.xlu0 %v7017, 64
      %v7647 = vpop.permute.xlu0 %7646
      %7648 = vrot.lane.b32.xlu0 %v7020, 64
      %v7649 = vpop.permute.xlu0 %7648
      %7650 = vrot.lane.b32.xlu0 %v7022, 64
      %v7651 = vpop.permute.xlu0 %7650
      %7652 = vrot.lane.b32.xlu0 %v7025, 64
      %v7653 = vpop.permute.xlu0 %7652
      %7654 = vrot.lane.b32.xlu0 %v7027, 64
      %v7655 = vpop.permute.xlu0 %7654
      %7656 = vrot.lane.b32.xlu0 %v7030, 64
      %v7657 = vpop.permute.xlu0 %7656
      %7658 = vrot.lane.b32.xlu0 %v7032, 64
      %v7659 = vpop.permute.xlu0 %7658
      %7660 = vrot.lane.b32.xlu0 %v7035, 64
      %v7661 = vpop.permute.xlu0 %7660
      %7662 = vrot.lane.b32.xlu0 %v7037, 64
      %v7663 = vpop.permute.xlu0 %7662
      %7664 = vrot.lane.b32.xlu0 %v7329, 64
      %v7665 = vpop.permute.xlu0 %7664
      %7666 = vrot.lane.b32.xlu0 %v7331, 64
      %v7667 = vpop.permute.xlu0 %7666
      %v7698 = vsel %vm2263, %v6736, %v6874
      %v7699 = vsel %vm2263, %v6643, %v6876
      %v7700 = vsel %vm2263, %v6737, %v6878
      %v7701 = vsel %vm2263, %v6646, %v6880
      %v7702 = vsel %vm2263, %v6738, %v6882
      %v7703 = vsel %vm2263, %v6649, %v6884
      %v7704 = vsel %vm2263, %v6739, %v6886
      %v7705 = vsel %vm2263, %v6652, %v6888
      %v7706 = vsel %vm2263, %v6740, %v6890
      %v7707 = vsel %vm2263, %v6655, %v6892
      %v7708 = vsel %vm2263, %v6741, %v6894
      %v7709 = vsel %vm2263, %v6658, %v6896
      %v7710 = vsel %vm2263, %v6742, %v6898
      %v7711 = vsel %vm2263, %v6661, %v6900
      %v7712 = vsel %vm2263, %v6743, %v6902
      %v7713 = vsel %vm2263, %v6664, %v6904
      %v7714 = vsel %vm2263, %v6744, %v6906
      %v7715 = vsel %vm2263, %v6667, %v6908
      %v7716 = vsel %vm2263, %v6745, %v6910
      %v7717 = vsel %vm2263, %v6670, %v6912
      %v7718 = vsel %vm2263, %v6746, %v6914
      %v7719 = vsel %vm2263, %v6673, %v6916
      %v7720 = vsel %vm2263, %v6747, %v6918
      %v7721 = vsel %vm2263, %v6676, %v6920
      %v7722 = vsel %vm2263, %v6748, %v6922
      %v7723 = vsel %vm2263, %v6679, %v6924
      %v7724 = vsel %vm2263, %v6749, %v6926
      %v7725 = vsel %vm2263, %v6682, %v6928
      %v7726 = vsel %vm2263, %v6750, %v6930
      %v7727 = vsel %vm2263, %v6685, %v6932
      %v7728 = vsel %vm2328, %v7698, %v7039
      %v7729 = vsel %vm2328, %v7699, %v7041
      %v7730 = vsel %vm2328, %v7700, %v7043
      %v7731 = vsel %vm2328, %v7701, %v7045
      %v7732 = vsel %vm2328, %v7702, %v7047
      %v7733 = vsel %vm2328, %v7703, %v7049
      %v7734 = vsel %vm2328, %v7704, %v7051
      %v7735 = vsel %vm2328, %v7705, %v7053
      %v7736 = vsel %vm2328, %v7706, %v7055
      %v7737 = vsel %vm2328, %v7707, %v7057
      %v7738 = vsel %vm2328, %v7708, %v7059
      %v7739 = vsel %vm2328, %v7709, %v7061
      %v7740 = vsel %vm2328, %v7710, %v7063
      %v7741 = vsel %vm2328, %v7711, %v7065
      %v7742 = vsel %vm2328, %v7712, %v7067
      %v7743 = vsel %vm2328, %v7713, %v7069
      %v7744 = vsel %vm2328, %v7714, %v7071
      %v7745 = vsel %vm2328, %v7715, %v7073
      %v7746 = vsel %vm2328, %v7716, %v7075
      %v7747 = vsel %vm2328, %v7717, %v7077
      %v7748 = vsel %vm2328, %v7718, %v7079
      %v7749 = vsel %vm2328, %v7719, %v7081
      %v7750 = vsel %vm2328, %v7720, %v7083
      %v7751 = vsel %vm2328, %v7721, %v7085
      %v7752 = vsel %vm2328, %v7722, %v7087
      %v7753 = vsel %vm2328, %v7723, %v7089
      %v7754 = vsel %vm2328, %v7724, %v7091
      %v7755 = vsel %vm2328, %v7725, %v7093
      %v7756 = vsel %vm2328, %v7726, %v7095
      %v7757 = vsel %vm2328, %v7727, %v7097
      %v7758 = vsel %vm2394, %v4075, %v7130
      %v7759 = vsel %vm2394, %v4075, %v7132
      %v7760 = vsel %vm2394, %v7728, %v7134
      %v7761 = vsel %vm2394, %v7729, %v7136
      %v7762 = vsel %vm2394, %v7730, %v7138
      %v7763 = vsel %vm2394, %v7731, %v7140
      %v7764 = vsel %vm2394, %v7732, %v7142
      %v7765 = vsel %vm2394, %v7733, %v7144
      %v7766 = vsel %vm2394, %v7734, %v7146
      %v7767 = vsel %vm2394, %v7735, %v7148
      %v7768 = vsel %vm2394, %v7736, %v7150
      %v7769 = vsel %vm2394, %v7737, %v7152
      %v7770 = vsel %vm2394, %v7738, %v7154
      %v7771 = vsel %vm2394, %v7739, %v7156
      %v7772 = vsel %vm2394, %v7740, %v7158
      %v7773 = vsel %vm2394, %v7741, %v7160
      %v7774 = vsel %vm2394, %v7742, %v7162
      %v7775 = vsel %vm2394, %v7743, %v7164
      %v7776 = vsel %vm2394, %v7744, %v7166
      %v7777 = vsel %vm2394, %v7745, %v7168
      %v7778 = vsel %vm2394, %v7746, %v7170
      %v7779 = vsel %vm2394, %v7747, %v7172
      %v7780 = vsel %vm2394, %v7748, %v7174
      %v7781 = vsel %vm2394, %v7749, %v7176
      %v7782 = vsel %vm2394, %v7750, %v7178
      %v7783 = vsel %vm2394, %v7751, %v7180
      %v7784 = vsel %vm2394, %v7752, %v7182
      %v7785 = vsel %vm2394, %v7753, %v7184
      %v7786 = vsel %vm2394, %v7754, %v7186
      %v7787 = vsel %vm2394, %v7755, %v7188
      %v7788 = vsel %vm2394, %v7756, %v7190
      %v7789 = vsel %vm2394, %v7757, %v7192
      %v7790 = vsel %vm2460, %v7758, %v7232
      %v7791 = vsel %vm2460, %v7759, %v7234
      %v7792 = vsel %vm2460, %v7760, %v7236
      %v7793 = vsel %vm2460, %v7761, %v7238
      %v7794 = vsel %vm2460, %v7762, %v7240
      %v7795 = vsel %vm2460, %v7763, %v7242
      %v7796 = vsel %vm2460, %v7764, %v7244
      %v7797 = vsel %vm2460, %v7765, %v7246
      %v7798 = vsel %vm2460, %v7766, %v7248
      %v7799 = vsel %vm2460, %v7767, %v7250
      %v7800 = vsel %vm2460, %v7768, %v7252
      %v7801 = vsel %vm2460, %v7769, %v7254
      %v7802 = vsel %vm2460, %v7770, %v7256
      %v7803 = vsel %vm2460, %v7771, %v7258
      %v7804 = vsel %vm2460, %v7772, %v7260
      %v7805 = vsel %vm2460, %v7773, %v7262
      %v7806 = vsel %vm2460, %v7774, %v7264
      %v7807 = vsel %vm2460, %v7775, %v7266
      %v7808 = vsel %vm2460, %v7776, %v7268
      %v7809 = vsel %vm2460, %v7777, %v7270
      %v7810 = vsel %vm2460, %v7778, %v7272
      %v7811 = vsel %vm2460, %v7779, %v7274
      %v7812 = vsel %vm2460, %v7780, %v7276
      %v7813 = vsel %vm2460, %v7781, %v7278
      %v7814 = vsel %vm2460, %v7782, %v7280
      %v7815 = vsel %vm2460, %v7783, %v7282
      %v7816 = vsel %vm2460, %v7784, %v7284
      %v7817 = vsel %vm2460, %v7785, %v7286
      %v7818 = vsel %vm2460, %v7786, %v7288
      %v7819 = vsel %vm2460, %v7787, %v7290
      %v7820 = vsel %vm2460, %v7788, %v7292
      %v7821 = vsel %vm2460, %v7789, %v7294
      %v7822 = vsel %vm4170, %v7790, %v7333
      %v7823 = vsel %vm4170, %v7791, %v7335
      %v7824 = vsel %vm4170, %v7792, %v7337
      %v7825 = vsel %vm4170, %v7793, %v7339
      %v7826 = vsel %vm4170, %v7794, %v7341
      %v7827 = vsel %vm4170, %v7795, %v7343
      %v7828 = vsel %vm4170, %v7796, %v7345
      %v7829 = vsel %vm4170, %v7797, %v7347
      %v7830 = vsel %vm4170, %v7798, %v7349
      %v7831 = vsel %vm4170, %v7799, %v7351
      %v7832 = vsel %vm4170, %v7800, %v7353
      %v7833 = vsel %vm4170, %v7801, %v7355
      %v7834 = vsel %vm4170, %v7802, %v7357
      %v7835 = vsel %vm4170, %v7803, %v7359
      %v7836 = vsel %vm4170, %v7804, %v7361
      %v7837 = vsel %vm4170, %v7805, %v7363
      %v7838 = vsel %vm4170, %v7806, %v7365
      %v7839 = vsel %vm4170, %v7807, %v7367
      %v7840 = vsel %vm4170, %v7808, %v7369
      %v7841 = vsel %vm4170, %v7809, %v7371
      %v7842 = vsel %vm4170, %v7810, %v7373
      %v7843 = vsel %vm4170, %v7811, %v7375
      %v7844 = vsel %vm4170, %v7812, %v7377
      %v7845 = vsel %vm4170, %v7813, %v7379
      %v7846 = vsel %vm4170, %v7814, %v7381
      %v7847 = vsel %vm4170, %v7815, %v7383
      %v7848 = vsel %vm4170, %v7816, %v7385
      %v7849 = vsel %vm4170, %v7817, %v7387
      %v7850 = vsel %vm4170, %v7818, %v7389
      %v7851 = vsel %vm4170, %v7819, %v7391
      %v7852 = vsel %vm4170, %v7820, %v7393
      %v7853 = vsel %vm4170, %v7821, %v7395
      %v7854 = vsel %vm4203, %v7822, %v7429
      %v7855 = vsel %vm4203, %v7823, %v7431
      %v7856 = vsel %vm4203, %v7824, %v7433
      %v7857 = vsel %vm4203, %v7825, %v7435
      %v7858 = vsel %vm4203, %v7826, %v7437
      %v7859 = vsel %vm4203, %v7827, %v7439
      %v7860 = vsel %vm4203, %v7828, %v7441
      %v7861 = vsel %vm4203, %v7829, %v7443
      %v7862 = vsel %vm4203, %v7830, %v7445
      %v7863 = vsel %vm4203, %v7831, %v7447
      %v7864 = vsel %vm4203, %v7832, %v7449
      %v7865 = vsel %vm4203, %v7833, %v7451
      %v7866 = vsel %vm4203, %v7834, %v7453
      %v7867 = vsel %vm4203, %v7835, %v7455
      %v7868 = vsel %vm4203, %v7836, %v7457
      %v7869 = vsel %vm4203, %v7837, %v7459
      %v7870 = vsel %vm4203, %v7838, %v7461
      %v7871 = vsel %vm4203, %v7839, %v7463
      %v7872 = vsel %vm4203, %v7840, %v7465
      %v7873 = vsel %vm4203, %v7841, %v7467
      %v7874 = vsel %vm4203, %v7842, %v7469
      %v7875 = vsel %vm4203, %v7843, %v7471
      %v7876 = vsel %vm4203, %v7844, %v7473
      %v7877 = vsel %vm4203, %v7845, %v7475
      %v7878 = vsel %vm4203, %v7846, %v7477
      %v7879 = vsel %vm4203, %v7847, %v7479
      %v7880 = vsel %vm4203, %v7848, %v7481
      %v7881 = vsel %vm4203, %v7849, %v7483
      %v7882 = vsel %vm4203, %v7850, %v7485
      %v7883 = vsel %vm4203, %v7851, %v7487
      %v7884 = vsel %vm4203, %v7852, %v3826
      %v7885 = vsel %vm4203, %v7853, %v3826
      %v7886 = vsel %vm4236, %v7854, %v7519
      %v7887 = vsel %vm4236, %v7855, %v7521
      %v7888 = vsel %vm4236, %v7856, %v7523
      %v7889 = vsel %vm4236, %v7857, %v7525
      %v7890 = vsel %vm4236, %v7858, %v7527
      %v7891 = vsel %vm4236, %v7859, %v7529
      %v7892 = vsel %vm4236, %v7860, %v7531
      %v7893 = vsel %vm4236, %v7861, %v7533
      %v7894 = vsel %vm4236, %v7862, %v7535
      %v7895 = vsel %vm4236, %v7863, %v7537
      %v7896 = vsel %vm4236, %v7864, %v7539
      %v7897 = vsel %vm4236, %v7865, %v7541
      %v7898 = vsel %vm4236, %v7866, %v7543
      %v7899 = vsel %vm4236, %v7867, %v7545
      %v7900 = vsel %vm4236, %v7868, %v7547
      %v7901 = vsel %vm4236, %v7869, %v7549
      %v7902 = vsel %vm4236, %v7870, %v7551
      %v7903 = vsel %vm4236, %v7871, %v7553
      %v7904 = vsel %vm4236, %v7872, %v7555
      %v7905 = vsel %vm4236, %v7873, %v7557
      %v7906 = vsel %vm4236, %v7874, %v7559
      %v7907 = vsel %vm4236, %v7875, %v7561
      %v7908 = vsel %vm4236, %v7876, %v7563
      %v7909 = vsel %vm4236, %v7877, %v7565
      %v7910 = vsel %vm4236, %v7878, %v7567
      %v7911 = vsel %vm4236, %v7879, %v7569
      %v7912 = vsel %vm4236, %v7880, %v7571
      %v7913 = vsel %vm4236, %v7881, %v7573
      %v7914 = vsel %vm4236, %v7882, %v7575
      %v7915 = vsel %vm4236, %v7883, %v7577
      %v7916 = vsel %vm4236, %v7884, %v3919
      %v7917 = vsel %vm4236, %v7885, %v3919
      %v7918 = vsel %vm4269, %v7886, %v7609
      %v7919 = vsel %vm4269, %v7887, %v7611
      %v7920 = vsel %vm4269, %v7888, %v7613
      %v7921 = vsel %vm4269, %v7889, %v7615
      %v7922 = vsel %vm4269, %v7890, %v7617
      %v7923 = vsel %vm4269, %v7891, %v7619
      %v7924 = vsel %vm4269, %v7892, %v7621
      %v7925 = vsel %vm4269, %v7893, %v7623
      %v7926 = vsel %vm4269, %v7894, %v7625
      %v7927 = vsel %vm4269, %v7895, %v7627
      %v7928 = vsel %vm4269, %v7896, %v7629
      %v7929 = vsel %vm4269, %v7897, %v7631
      %v7930 = vsel %vm4269, %v7898, %v7633
      %v7931 = vsel %vm4269, %v7899, %v7635
      %v7932 = vsel %vm4269, %v7900, %v7637
      %v7933 = vsel %vm4269, %v7901, %v7639
      %v7934 = vsel %vm4269, %v7902, %v7641
      %v7935 = vsel %vm4269, %v7903, %v7643
      %v7936 = vsel %vm4269, %v7904, %v7645
      %v7937 = vsel %vm4269, %v7905, %v7647
      %v7938 = vsel %vm4269, %v7906, %v7649
      %v7939 = vsel %vm4269, %v7907, %v7651
      %v7940 = vsel %vm4269, %v7908, %v7653
      %v7941 = vsel %vm4269, %v7909, %v7655
      %v7942 = vsel %vm4269, %v7910, %v7657
      %v7943 = vsel %vm4269, %v7911, %v7659
      %v7944 = vsel %vm4269, %v7912, %v7661
      %v7945 = vsel %vm4269, %v7913, %v7663
      %v7946 = vsel %vm4269, %v7914, %v7665
      %v7947 = vsel %vm4269, %v7915, %v7667
      %v7948 = vsel %vm4269, %v7916, %v4012
      %v7949 = vsel %vm4269, %v7917, %v4012
      %v7950 = vld [vmem:[%s18] sm:$0xff]
      %v7951 = vld [vmem:[%s18 + $0x8] sm:$0xff]
      %v7952 = vld [vmem:[%s18 + $0x10] sm:$0xff]
      %v7953 = vld [vmem:[%s18 + $0x18] sm:$0xff]
      %v7954 = vld [vmem:[%s18 + $0x20] sm:$0xff]
      %v7955 = vld [vmem:[%s18 + $0x28] sm:$0xff]
      %v7956 = vld [vmem:[%s18 + $0x30] sm:$0xff]
      %v7957 = vld [vmem:[%s18 + $0x38] sm:$0xff]
      %v7958 = vld [vmem:[%s18 + $0x40] sm:$0xff]
      %v7959 = vld [vmem:[%s19] sm:$0x1]
      %v7961 = vlaneseq
      %v7962 = vshrl.u32 %v7961, 7
      %v7963 = vsub.s32 0, %v7962
      %v7964 = vrot.slane %v7959, %v7963
      %v7967 = vsel %vm4318, %v7918, 0
      %v7970 = vsel %vm4318, %v7919, 0
      %v7973 = vsel %vm4318, %v7920, 0
      %v7976 = vsel %vm4318, %v7921, 0
      %v7979 = vsel %vm4318, %v7922, 0
      %v7982 = vsel %vm4318, %v7923, 0
      %v7985 = vsel %vm4318, %v7924, 0
      %v7988 = vsel %vm4318, %v7925, 0
      %v7991 = vsel %vm4318, %v7926, 0
      %v7994 = vsel %vm4318, %v7927, 0
      %v7997 = vsel %vm4318, %v7928, 0
      %v8000 = vsel %vm4318, %v7929, 0
      %v8003 = vsel %vm4318, %v7930, 0
      %v8006 = vsel %vm4318, %v7931, 0
      %v8009 = vsel %vm4318, %v7932, 0
      %v8012 = vsel %vm4318, %v7933, 0
      %v8015 = vsel %vm4318, %v7934, 0
      %v8018 = vsel %vm4318, %v7935, 0
      %v8021 = vsel %vm4318, %v7936, 0
      %v8024 = vsel %vm4318, %v7937, 0
      %v8027 = vsel %vm4318, %v7938, 0
      %v8030 = vsel %vm4318, %v7939, 0
      %v8033 = vsel %vm4318, %v7940, 0
      %v8036 = vsel %vm4318, %v7941, 0
      %v8039 = vsel %vm4318, %v7942, 0
      %v8042 = vsel %vm4318, %v7943, 0
      %v8045 = vsel %vm4318, %v7944, 0
      %v8048 = vsel %vm4318, %v7945, 0
      %v8051 = vsel %vm4318, %v7946, 0
      %v8054 = vsel %vm4318, %v7947, 0
      %v8057 = vsel %vm4318, %v7948, 0
      %v8060 = vsel %vm4318, %v7949, 0
      %8062 = vmatprep.subr.mxu0 0.0
      %8063 = vmatpush1.msra.mxu0 0.0
      %8064 = vmatprep.subr.mxu0 0.0
      %8065 = vmatpush1.msra.mxu0 0.0
      %8066 = vmatprep.subr.mxu0 0.0
      %8067 = vmatpush1.msra.mxu0 0.0
      %8068 = vmatprep.subr.mxu0 0.0
      %8069 = vmatpush1.msra.mxu0 0.0
      %8070 = vmatprep.subr.mxu0 0.0
      %8071 = vmatpush1.msra.mxu0 0.0
      %8072 = vmatprep.subr.mxu0 0.0
      %8073 = vmatpush1.msra.mxu0 0.0
      %8074 = vmatprep.subr.mxu0 0.0
      %8075 = vmatpush1.msra.mxu0 0.0
      %8076 = vmatprep.subr.mxu0 0.0
      %8077 = vmatpush1.msra.mxu0 %v7958
      %8078 = vmatprep.subr.mxu0 0.0
      %8079 = vmatpush1.msra.mxu0 %v7957
      %8080 = vmatprep.subr.mxu0 0.0
      %8081 = vmatpush1.msra.mxu0 %v7956
      %8082 = vmatprep.subr.mxu0 0.0
      %8083 = vmatpush1.msra.mxu0 %v7955
      %8084 = vmatprep.subr.mxu0 0.0
      %8085 = vmatpush1.msra.mxu0 %v7954
      %8086 = vmatprep.subr.mxu0 0.0
      %8087 = vmatpush1.msra.mxu0 %v7953
      %8088 = vmatprep.subr.mxu0 0.0
      %8089 = vmatpush1.msra.mxu0 %v7952
      %8090 = vmatprep.subr.mxu0 0.0
      %8091 = vmatpush1.msra.mxu0 %v7951
      %8092 = vmatprep.subr.mxu0 0.0
      %8093 = vmatpush1.msra.mxu0 %v7950
      %8094 = vmatprep.subr.mxu0 0.0
      %8095 = vmatpush2.msra.mxu0 0.0
      %8096 = vmatprep.subr.mxu0 0.0
      %8097 = vmatpush2.msra.mxu0 0.0
      %8098 = vmatprep.subr.mxu0 0.0
      %8099 = vmatpush2.msra.mxu0 0.0
      %8100 = vmatprep.subr.mxu0 0.0
      %8101 = vmatpush2.msra.mxu0 0.0
      %8102 = vmatprep.subr.mxu0 0.0
      %8103 = vmatpush2.msra.mxu0 0.0
      %8104 = vmatprep.subr.mxu0 0.0
      %8105 = vmatpush2.msra.mxu0 0.0
      %8106 = vmatprep.subr.mxu0 0.0
      %8107 = vmatpush2.msra.mxu0 0.0
      %8108 = vmatprep.subr.mxu0 0.0
      %8109 = vmatpush2.msra.mxu0 0.0
      %8110 = vmatprep.subr.mxu0 0.0
      %8111 = vmatpush2.msra.mxu0 0.0
      %8112 = vmatprep.subr.mxu0 0.0
      %8113 = vmatpush2.msra.mxu0 0.0
      %8114 = vmatprep.subr.mxu0 0.0
      %8115 = vmatpush2.msra.mxu0 0.0
      %8116 = vmatprep.subr.mxu0 0.0
      %8117 = vmatpush2.msra.mxu0 0.0
      %8118 = vmatprep.subr.mxu0 0.0
      %8119 = vmatpush2.msra.mxu0 0.0
      %8120 = vmatprep.subr.mxu0 0.0
      %8121 = vmatpush2.msra.mxu0 0.0
      %8122 = vmatprep.subr.mxu0 0.0
      %8123 = vmatpush2.msra.mxu0 0.0
      %8124 = vmatprep.subr.mxu0 0.0
      %8125 = vmatpush2.msra.mxu0 0.0
      %8126 = vmatprep.mubr.f32.mxu0 0.0
      %8127 = vmatmul.mubr.f32.gmra.mxu0 %v7967
      %v8128 = vpop.f32.mrf.mxu0
      %v8129 = vadd.f32 %v7964, %v8128
      %v8130 = vpop.f32.mrf.mxu0
      %8131 = vmatprep.mubr.f32.mxu0 0.0
      %8132 = vmatmul.mubr.f32.gmra.mxu0 %v7970
      %v8133 = vpop.f32.mrf.mxu0
      %v8134 = vadd.f32 %v7964, %v8133
      %v8135 = vpop.f32.mrf.mxu0
      %8136 = vmatprep.mubr.f32.mxu0 0.0
      %8137 = vmatmul.mubr.f32.gmra.mxu0 %v7973
      %v8138 = vpop.f32.mrf.mxu0
      %v8139 = vadd.f32 %v7964, %v8138
      %v8140 = vpop.f32.mrf.mxu0
      %8141 = vmatprep.mubr.f32.mxu0 0.0
      %8142 = vmatmul.mubr.f32.gmra.mxu0 %v7976
      %v8143 = vpop.f32.mrf.mxu0
      %v8144 = vadd.f32 %v7964, %v8143
      %v8145 = vpop.f32.mrf.mxu0
      %8146 = vmatprep.mubr.f32.mxu0 0.0
      %8147 = vmatmul.mubr.f32.gmra.mxu0 %v7979
      %v8148 = vpop.f32.mrf.mxu0
      %v8149 = vadd.f32 %v7964, %v8148
      %v8150 = vpop.f32.mrf.mxu0
      %8151 = vmatprep.mubr.f32.mxu0 0.0
      %8152 = vmatmul.mubr.f32.gmra.mxu0 %v7982
      %v8153 = vpop.f32.mrf.mxu0
      %v8154 = vadd.f32 %v7964, %v8153
      %v8155 = vpop.f32.mrf.mxu0
      %8156 = vmatprep.mubr.f32.mxu0 0.0
      %8157 = vmatmul.mubr.f32.gmra.mxu0 %v7985
      %v8158 = vpop.f32.mrf.mxu0
      %v8159 = vadd.f32 %v7964, %v8158
      %v8160 = vpop.f32.mrf.mxu0
      %8161 = vmatprep.mubr.f32.mxu0 0.0
      %8162 = vmatmul.mubr.f32.gmra.mxu0 %v7988
      %v8163 = vpop.f32.mrf.mxu0
      %v8164 = vadd.f32 %v7964, %v8163
      %v8165 = vpop.f32.mrf.mxu0
      %8166 = vmatprep.mubr.f32.mxu0 0.0
      %8167 = vmatmul.mubr.f32.gmra.mxu0 %v7991
      %v8168 = vpop.f32.mrf.mxu0
      %v8169 = vadd.f32 %v7964, %v8168
      %v8170 = vpop.f32.mrf.mxu0
      %8171 = vmatprep.mubr.f32.mxu0 0.0
      %8172 = vmatmul.mubr.f32.gmra.mxu0 %v7994
      %v8173 = vpop.f32.mrf.mxu0
      %v8174 = vadd.f32 %v7964, %v8173
      %v8175 = vpop.f32.mrf.mxu0
      %8176 = vmatprep.mubr.f32.mxu0 0.0
      %8177 = vmatmul.mubr.f32.gmra.mxu0 %v7997
      %v8178 = vpop.f32.mrf.mxu0
      %v8179 = vadd.f32 %v7964, %v8178
      %v8180 = vpop.f32.mrf.mxu0
      %8181 = vmatprep.mubr.f32.mxu0 0.0
      %8182 = vmatmul.mubr.f32.gmra.mxu0 %v8000
      %v8183 = vpop.f32.mrf.mxu0
      %v8184 = vadd.f32 %v7964, %v8183
      %v8185 = vpop.f32.mrf.mxu0
      %8186 = vmatprep.mubr.f32.mxu0 0.0
      %8187 = vmatmul.mubr.f32.gmra.mxu0 %v8003
      %v8188 = vpop.f32.mrf.mxu0
      %v8189 = vadd.f32 %v7964, %v8188
      %v8190 = vpop.f32.mrf.mxu0
      %8191 = vmatprep.mubr.f32.mxu0 0.0
      %8192 = vmatmul.mubr.f32.gmra.mxu0 %v8006
      %v8193 = vpop.f32.mrf.mxu0
      %v8194 = vadd.f32 %v7964, %v8193
      %v8195 = vpop.f32.mrf.mxu0
      %8196 = vmatprep.mubr.f32.mxu0 0.0
      %8197 = vmatmul.mubr.f32.gmra.mxu0 %v8009
      %v8198 = vpop.f32.mrf.mxu0
      %v8199 = vadd.f32 %v7964, %v8198
      %v8200 = vpop.f32.mrf.mxu0
      %8201 = vmatprep.mubr.f32.mxu0 0.0
      %8202 = vmatmul.mubr.f32.gmra.mxu0 %v8012
      %v8203 = vpop.f32.mrf.mxu0
      %v8204 = vadd.f32 %v7964, %v8203
      %v8205 = vpop.f32.mrf.mxu0
      %8206 = vmatprep.mubr.f32.mxu0 0.0
      %8207 = vmatmul.mubr.f32.gmra.mxu0 %v8015
      %v8208 = vpop.f32.mrf.mxu0
      %v8209 = vadd.f32 %v7964, %v8208
      %v8210 = vpop.f32.mrf.mxu0
      %8211 = vmatprep.mubr.f32.mxu0 0.0
      %8212 = vmatmul.mubr.f32.gmra.mxu0 %v8018
      %v8213 = vpop.f32.mrf.mxu0
      %v8214 = vadd.f32 %v7964, %v8213
      %v8215 = vpop.f32.mrf.mxu0
      %8216 = vmatprep.mubr.f32.mxu0 0.0
      %8217 = vmatmul.mubr.f32.gmra.mxu0 %v8021
      %v8218 = vpop.f32.mrf.mxu0
      %v8219 = vadd.f32 %v7964, %v8218
      %v8220 = vpop.f32.mrf.mxu0
      %8221 = vmatprep.mubr.f32.mxu0 0.0
      %8222 = vmatmul.mubr.f32.gmra.mxu0 %v8024
      %v8223 = vpop.f32.mrf.mxu0
      %v8224 = vadd.f32 %v7964, %v8223
      %v8225 = vpop.f32.mrf.mxu0
      %8226 = vmatprep.mubr.f32.mxu0 0.0
      %8227 = vmatmul.mubr.f32.gmra.mxu0 %v8027
      %v8228 = vpop.f32.mrf.mxu0
      %v8229 = vadd.f32 %v7964, %v8228
      %v8230 = vpop.f32.mrf.mxu0
      %8231 = vmatprep.mubr.f32.mxu0 0.0
      %8232 = vmatmul.mubr.f32.gmra.mxu0 %v8030
      %v8233 = vpop.f32.mrf.mxu0
      %v8234 = vadd.f32 %v7964, %v8233
      %v8235 = vpop.f32.mrf.mxu0
      %8236 = vmatprep.mubr.f32.mxu0 0.0
      %8237 = vmatmul.mubr.f32.gmra.mxu0 %v8033
      %v8238 = vpop.f32.mrf.mxu0
      %v8239 = vadd.f32 %v7964, %v8238
      %v8240 = vpop.f32.mrf.mxu0
      %8241 = vmatprep.mubr.f32.mxu0 0.0
      %8242 = vmatmul.mubr.f32.gmra.mxu0 %v8036
      %v8243 = vpop.f32.mrf.mxu0
      %v8244 = vadd.f32 %v7964, %v8243
      %v8245 = vpop.f32.mrf.mxu0
      %8246 = vmatprep.mubr.f32.mxu0 0.0
      %8247 = vmatmul.mubr.f32.gmra.mxu0 %v8039
      %v8248 = vpop.f32.mrf.mxu0
      %v8249 = vadd.f32 %v7964, %v8248
      %v8250 = vpop.f32.mrf.mxu0
      %8251 = vmatprep.mubr.f32.mxu0 0.0
      %8252 = vmatmul.mubr.f32.gmra.mxu0 %v8042
      %v8253 = vpop.f32.mrf.mxu0
      %v8254 = vadd.f32 %v7964, %v8253
      %v8255 = vpop.f32.mrf.mxu0
      %8256 = vmatprep.mubr.f32.mxu0 0.0
      %8257 = vmatmul.mubr.f32.gmra.mxu0 %v8045
      %v8258 = vpop.f32.mrf.mxu0
      %v8259 = vadd.f32 %v7964, %v8258
      %v8260 = vpop.f32.mrf.mxu0
      %8261 = vmatprep.mubr.f32.mxu0 0.0
      %8262 = vmatmul.mubr.f32.gmra.mxu0 %v8048
      %v8263 = vpop.f32.mrf.mxu0
      %v8264 = vadd.f32 %v7964, %v8263
      %v8265 = vpop.f32.mrf.mxu0
      %8266 = vmatprep.mubr.f32.mxu0 0.0
      %8267 = vmatmul.mubr.f32.gmra.mxu0 %v8051
      %v8268 = vpop.f32.mrf.mxu0
      %v8269 = vadd.f32 %v7964, %v8268
      %v8270 = vpop.f32.mrf.mxu0
      %8271 = vmatprep.mubr.f32.mxu0 0.0
      %8272 = vmatmul.mubr.f32.gmra.mxu0 %v8054
      %v8273 = vpop.f32.mrf.mxu0
      %v8274 = vadd.f32 %v7964, %v8273
      %v8275 = vpop.f32.mrf.mxu0
      %8276 = vmatprep.mubr.f32.mxu0 0.0
      %8277 = vmatmul.mubr.f32.gmra.mxu0 %v8057
      %v8278 = vpop.f32.mrf.mxu0
      %v8279 = vadd.f32 %v7964, %v8278
      %v8280 = vpop.f32.mrf.mxu0
      %8281 = vmatprep.mubr.f32.mxu0 0.0
      %8282 = vmatmul.mubr.f32.gmra.mxu0 %v8060
      %v8283 = vpop.f32.mrf.mxu0
      %v8284 = vadd.f32 %v7964, %v8283
      %v8285 = vpop.f32.mrf.mxu0
      %8286 = vdwg.mxu0
      %v8287 = vadd.f32 %v4679, %v8129
      %v8288 = vadd.f32 %v4680, %v8134
      %v8289 = vadd.f32 %v4681, %v8139
      %v8290 = vadd.f32 %v4682, %v8144
      %v8291 = vadd.f32 %v4683, %v8149
      %v8292 = vadd.f32 %v4684, %v8154
      %v8293 = vadd.f32 %v4685, %v8159
      %v8294 = vadd.f32 %v4686, %v8164
      %v8295 = vadd.f32 %v4687, %v8169
      %v8296 = vadd.f32 %v4688, %v8174
      %v8297 = vadd.f32 %v4689, %v8179
      %v8298 = vadd.f32 %v4690, %v8184
      %v8299 = vadd.f32 %v4691, %v8189
      %v8300 = vadd.f32 %v4692, %v8194
      %v8301 = vadd.f32 %v4693, %v8199
      %v8302 = vadd.f32 %v4694, %v8204
      %v8303 = vadd.f32 %v4695, %v8209
      %v8304 = vadd.f32 %v4696, %v8214
      %v8305 = vadd.f32 %v4697, %v8219
      %v8306 = vadd.f32 %v4698, %v8224
      %v8307 = vadd.f32 %v4699, %v8229
      %v8308 = vadd.f32 %v4700, %v8234
      %v8309 = vadd.f32 %v4701, %v8239
      %v8310 = vadd.f32 %v4702, %v8244
      %v8311 = vadd.f32 %v4703, %v8249
      %v8312 = vadd.f32 %v4704, %v8254
      %v8313 = vadd.f32 %v4705, %v8259
      %v8314 = vadd.f32 %v4706, %v8264
      %v8315 = vadd.f32 %v4707, %v8269
      %v8316 = vadd.f32 %v4708, %v8274
      %v8317 = vadd.f32 %v4709, %v8279
      %v8318 = vadd.f32 %v4710, %v8284
      %8319 = vst.msk [vmem:[%s643] sm:$0xff] %vm2263, %v8287
      %8320 = vst.msk [vmem:[%s643 + $0x8] sm:$0xff] %vm2263, %v8288
      %8321 = vst.msk [vmem:[%s643 + $0x10] sm:$0xff] %vm2263, %v8289
      %8322 = vst.msk [vmem:[%s643 + $0x18] sm:$0xff] %vm2263, %v8290
      %8323 = vst.msk [vmem:[%s643 + $0x20] sm:$0xff] %vm2263, %v8291
      %8324 = vst.msk [vmem:[%s643 + $0x28] sm:$0xff] %vm2263, %v8292
      %8325 = vst.msk [vmem:[%s643 + $0x30] sm:$0xff] %vm2263, %v8293
      %8326 = vst.msk [vmem:[%s643 + $0x38] sm:$0xff] %vm2263, %v8294
      %8327 = vst.msk [vmem:[%s643 + $0x40] sm:$0xff] %vm2263, %v8295
      %8328 = vst.msk [vmem:[%s643 + $0x48] sm:$0xff] %vm2263, %v8296
      %8329 = vst.msk [vmem:[%s643 + $0x50] sm:$0xff] %vm2263, %v8297
      %8330 = vst.msk [vmem:[%s643 + $0x58] sm:$0xff] %vm2263, %v8298
      %8331 = vst.msk [vmem:[%s643 + $0x60] sm:$0xff] %vm2263, %v8299
      %8332 = vst.msk [vmem:[%s643 + $0x68] sm:$0xff] %vm2263, %v8300
      %8333 = vst.msk [vmem:[%s643 + $0x70] sm:$0xff] %vm2263, %v8301
      %8334 = vst.msk [vmem:[%s643 + $0x78] sm:$0xff] %vm2263, %v8302
      %8335 = vst.msk [vmem:[%s643 + $0x80] sm:$0xff] %vm2263, %v8303
      %8336 = vst.msk [vmem:[%s643 + $0x88] sm:$0xff] %vm2263, %v8304
      %8337 = vst.msk [vmem:[%s643 + $0x90] sm:$0xff] %vm2263, %v8305
      %8338 = vst.msk [vmem:[%s643 + $0x98] sm:$0xff] %vm2263, %v8306
      %8339 = vst.msk [vmem:[%s643 + $0xa0] sm:$0xff] %vm2263, %v8307
      %8340 = vst.msk [vmem:[%s643 + $0xa8] sm:$0xff] %vm2263, %v8308
      %8341 = vst.msk [vmem:[%s643 + $0xb0] sm:$0xff] %vm2263, %v8309
      %8342 = vst.msk [vmem:[%s643 + $0xb8] sm:$0xff] %vm2263, %v8310
      %8343 = vst.msk [vmem:[%s643 + $0xc0] sm:$0xff] %vm2263, %v8311
      %8344 = vst.msk [vmem:[%s643 + $0xc8] sm:$0xff] %vm2263, %v8312
      %8345 = vst.msk [vmem:[%s643 + $0xd0] sm:$0xff] %vm2263, %v8313
      %8346 = vst.msk [vmem:[%s643 + $0xd8] sm:$0xff] %vm2263, %v8314
      %8347 = vst.msk [vmem:[%s643 + $0xe0] sm:$0xff] %vm2263, %v8315
      %8348 = vst.msk [vmem:[%s643 + $0xe8] sm:$0xff] %vm2263, %v8316
      %8349 = vst.msk [vmem:[%s643 + $0xf0] sm:$0xff] %vm2263, %v8317
      %8350 = vst.msk [vmem:[%s643 + $0xf8] sm:$0xff] %vm2263, %v8318
      %p8351 = scmp.lt.s32.totalorder %s31, 1
      %s8352 = scalar_select %p8351, %s31, 1
      %s8353 = smul.addr %s8352, 32
      %s8354 = smul.addr %s8353, 8
      %s8355 = scalar_lea.vmem %s20, %s8354
      // Predicated region
      $region101: #{tpu_custom_call.1} parent=99 // pred_check
        %p8356 = pneg %p479
      $region102: #{tpu_custom_call.1} parent=99 // pred_check_branch
        %8358 = sbr.rel (%p8356) target = $region104
      $region103: #{tpu_custom_call.1} parent=99 // pred_region
        _
      $region104: #{tpu_custom_call.1} parent=99 // pred_fallthru
        _
    $region100: #{tpu_custom_call.1} parent=5 // pred_fallthru
      _
    %p8359 = scmp.le.s32.totalorder 2, %s26
    // Predicated region
    $region105: #{tpu_custom_call.1} parent=5 // pred_check
      %p8360 = pneg %p8359
    $region106: #{tpu_custom_call.1} parent=5 // pred_check_branch
      %8362 = sbr.rel (%p8360) target = $region108
    $region107: #{tpu_custom_call.1} parent=5 // pred_region
      %s8363 = ssub.s32 %s26, 2
      // Predicated region
      $region109: #{tpu_custom_call.1} parent=107 // pred_check
        %p8364 = pneg %p485
      $region110: #{tpu_custom_call.1} parent=107 // pred_check_branch
        %8366 = sbr.rel (%p8364) target = $region112
      $region111: #{tpu_custom_call.1} parent=107 // pred_region
        %p8367 = scmp.lt.s32.totalorder %s32, 1
        %s8368 = scalar_select %p8367, %s32, 1
        %s8369 = smul.addr %s8368, 32
        %s8370 = smul.addr %s8369, 8
        %s8371 = scalar_lea.vmem %s20, %s8370
      $region112: #{tpu_custom_call.1} parent=107 // pred_fallthru
        _
    $region108: #{tpu_custom_call.1} parent=5 // pred_fallthru
      _
  $region6: #{tpu_custom_call.1} parent=0 // loop_footer
    %s30 = sadd.s32 1, %s26
  $region7: #{tpu_custom_call.1} parent=0 // loop_footer_branch
    %25 = sbr.rel target = $region3
  $region8: #{tpu_custom_call.1} parent=0 // loop_exit
    _

</llo_original>
